<compile_context>
chip_gen: v7x
topology: tpu7x:2x2x1
jax: 0.10.0
libtpu: 0.0.40
codegen_flags: <defaults>
</compile_context>

<pallas_src>
import functools

import jax
import jax.numpy as jnp
from jax.experimental import pallas as pl
from jax.experimental.pallas import tpu as pltpu


# ----------------------------------------------------------------------------
# Tile-size selection: largest divisor of H_out whose GEMM row count
# (row_tile * W_out) keeps the per-step f32 im2col working set to a few MiB.
# ----------------------------------------------------------------------------
def _pick_row_tile(h_out, w_out, k_max):
    row_budget = max(w_out, min(2048, (4 * 1024 * 1024) // max(1, 4 * k_max)))
    best = 1
    for th in range(1, h_out + 1):
        if h_out % th == 0 and th * w_out <= row_budget:
            best = th
    return best


# ----------------------------------------------------------------------------
# Fused forward: all (p, d, k) layers in a single Pallas kernel.
# ----------------------------------------------------------------------------
def unified_conv2d_set_forward(x_nchw, weights, configs, stride=1):
    configs = tuple(tuple(int(v) for v in c) for c in configs)
    return _forward_jit(x_nchw, tuple(weights), configs=configs,
                        stride=int(stride))


@functools.partial(jax.jit, static_argnames=("configs", "stride"))
def _forward_jit(x_nchw, weights, configs, stride):
    # TODO(synk): only stride == 1 (the module/test default) is implemented in
    # the fused Pallas path; stride > 1 would need strided pl.ds tap slices.
    assert stride == 1, "fused Pallas path implements stride == 1"

    N, Cin, H, W = x_nchw.shape
    L = len(configs)
    couts = tuple(int(w.shape[0]) for w in weights)
    Ctot = sum(couts)
    p_max = max(p for (p, d, k) in configs)

    # All configs must produce the same output size (torch.cat dim=1 requires it).
    def _osz(sz, p, d, k):
        return (sz + 2 * p - d * (k - 1) - 1) // stride + 1

    Ho = _osz(H, *configs[0])
    Wo = _osz(W, *configs[0])
    for cfg in configs:
        assert _osz(H, *cfg) == Ho and _osz(W, *cfg) == Wo, (
            "all configs must yield the same output spatial size")

    # ---- host glue: one NHWC transpose + ONE wrap pad with p_max, bf16 -----
    # Slicing the p_max-padded array at offset (p_max - p) reproduces each
    # layer's own circular padding exactly.
    x_nhwc = jnp.transpose(x_nchw, (0, 2, 3, 1))
    xp = jnp.pad(x_nhwc, ((0, 0), (p_max, p_max), (p_max, p_max), (0, 0)),
                 mode="wrap").astype(jnp.bfloat16)
    Hp, Wp = H + 2 * p_max, W + 2 * p_max

    # Per-layer weight matrices B_l: (k*k*Cin, Cout_l), rows ordered (ki, kj, c).
    Bs, Ks = [], []
    for (p, d, k), w in zip(configs, weights):
        B = jnp.transpose(w, (2, 3, 1, 0)).reshape(k * k * Cin, w.shape[0])
        Bs.append(B.astype(jnp.bfloat16))
        Ks.append(k * k * Cin)

    th = _pick_row_tile(Ho, Wo, max(Ks))      # output rows per grid step
    nb = Ho // th
    Mtile = th * Wo                           # GEMM rows per grid step

    # ---- fused kernel: in-kernel im2col + one bf16 MXU GEMM per config -----
    def kernel(x_ref, *rest):
        b_refs = rest[:L]
        o_ref = rest[L]
        i = pl.program_id(1)
        h_base = i * th                       # stride == 1
        per_layer = []
        for (p, d, k), b_ref in zip(configs, b_refs):
            off = p_max - p                   # offset into the p_max padding
            taps = []
            for ki in range(k):
                row0 = off + ki * d
                for kj in range(k):
                    col0 = off + kj * d
                    # (th, Wo, Cin) window of the VMEM-resident padded image.
                    sl = x_ref[0, pl.ds(h_base + row0, th),
                               col0:col0 + Wo, :]
                    # Widen to f32 for the lane-dim concat (robust layout);
                    # the matmul itself runs in bf16 below.
                    taps.append(sl.astype(jnp.float32).reshape(Mtile, Cin))
            A = jnp.concatenate(taps, axis=-1)          # (Mtile, k*k*Cin)
            res = jnp.dot(A.astype(jnp.bfloat16), b_ref[...],
                          preferred_element_type=jnp.float32)
            per_layer.append(res)                       # (Mtile, Cout_l) f32
        out = jnp.concatenate(per_layer, axis=-1)       # (Mtile, Ctot) f32
        o_ref[...] = out.reshape(1, th, Wo, Ctot).astype(o_ref.dtype)

    # Padded image: block index depends only on n -> fetched once per image
    # and reused across all row tiles.  Weights: constant block, fetched once.
    x_spec = pl.BlockSpec((1, Hp, Wp, Cin), lambda n, i: (n, 0, 0, 0))
    b_specs = [pl.BlockSpec(B.shape, lambda n, i: (0, 0)) for B in Bs]
    out_spec = pl.BlockSpec((1, th, Wo, Ctot), lambda n, i: (n, i, 0, 0))

    flops = 2 * N * Ho * Wo * sum(kk * co for kk, co in zip(Ks, couts))
    bytes_accessed = (xp.size * 2 + sum(B.size * 2 for B in Bs)
                      + N * Ho * Wo * Ctot * 4)
    cost = pl.CostEstimate(flops=int(flops), transcendentals=0,
                           bytes_accessed=int(bytes_accessed))

    y_nhwc = pl.pallas_call(
        kernel,
        out_shape=jax.ShapeDtypeStruct((N, Ho, Wo, Ctot), jnp.float32),
        grid_spec=pltpu.PrefetchScalarGridSpec(
            num_scalar_prefetch=0,
            grid=(N, nb),
            in_specs=[x_spec] + b_specs,
            out_specs=out_spec,
        ),
        compiler_params=pltpu.CompilerParams(
            dimension_semantics=("parallel", "parallel"),
            vmem_limit_bytes=32 * 1024 * 1024,
        ),
        cost_estimate=cost,
    )(xp, *Bs)

    # Single transpose back to the module's NCHW output layout.
    return jnp.transpose(y_nhwc, (0, 3, 1, 2))


# ----------------------------------------------------------------------------
# Pure-JAX reference (lax.conv_general_dilated, f32) for correctness check.
# ----------------------------------------------------------------------------
def reference_forward(x_nchw, weights, configs, stride=1):
    outs = []
    for (p, d, k), w in zip(configs, weights):
        xp = jnp.pad(x_nchw, ((0, 0), (0, 0), (p, p), (p, p)), mode="wrap")
        y = jax.lax.conv_general_dilated(
            xp, w,
            window_strides=(stride, stride),
            padding="VALID",
            rhs_dilation=(d, d),
            dimension_numbers=("NCHW", "OIHW", "NCHW"),
        )
        outs.append(y)
    return jnp.concatenate(outs, axis=1)


def make_config_list(size, stride, limit=None):
    """Mirror of the reference config_list generator, emitting (p, d, k) triples
    as expected by Unified_Conv2d_set.__init__."""
    record = []
    s = stride
    for p in range(1, size // 2):
        for d in range(1, 2 * p + s - 1 + 16):
            if (2 * p + s - 1) % d != 0:
                continue
            record.append((p, d, (2 * p + s - 1) // d + 1))
    return record if limit is None else record[:limit]


if __name__ == "__main__":
    # Small deterministic setup: N=2, C_in=4, C_out=4, H=W=16, stride=1.
    key = jax.random.PRNGKey(0)
    N, Cin, Cout, H, W = 2, 4, 4, 16, 16
    stride = 1
    configs = make_config_list(H, stride, limit=4)  # [(1,1,3),(1,2,2),(2,1,5),(2,2,3)]

    kx, kw = jax.random.split(key)
    x = jax.random.normal(kx, (N, Cin, H, W), dtype=jnp.float32)

    weights = []
    wkeys = jax.random.split(kw, len(configs))
    for (p, d, k), wk in zip(configs, wkeys):
        weights.append(
            0.1 * jax.random.normal(wk, (Cout, Cin, k, k), dtype=jnp.float32)
        )

    out = unified_conv2d_set_forward(x, weights, configs, stride)
    out = jax.block_until_ready(out)

    ref = jax.block_until_ready(reference_forward(x, weights, configs, stride))

    assert out.shape == (N, Cout * len(configs), H, W), out.shape
    max_err = float(jnp.max(jnp.abs(out - ref)))
    # bf16 MXU inputs with f32 accumulation: tolerance loosened accordingly.
    assert jnp.allclose(out, ref, atol=3e-2, rtol=3e-2), max_err
    print("KERNEL_OK")
</pallas_src>

<mosaic_0001>
module attributes {stable_mosaic.version = 11 : i64} {
  func.func @kernel(%arg0: i32, %arg1: i32, %arg2: memref<1x20x20x4xbf16, #tpu.memory_space<vmem>>, %arg3: memref<36x4xbf16, #tpu.memory_space<vmem>>, %arg4: memref<16x4xbf16, #tpu.memory_space<vmem>>, %arg5: memref<100x4xbf16, #tpu.memory_space<vmem>>, %arg6: memref<36x4xbf16, #tpu.memory_space<vmem>>, %arg7: memref<1x16x16x16xf32, #tpu.memory_space<vmem>>) attributes {dimension_semantics = [#tpu.dimension_semantics<parallel>, #tpu.dimension_semantics<parallel>], iteration_bounds = array<i64: 2, 1>, scalar_prefetch = 0 : i64, scratch_operands = 0 : i64, tpu.core_type = #tpu.core_type<tc>, window_params = [{transform_indices = @transform_0, window_bounds = array<i64: 1, 20, 20, 4>}, {pipeline_mode = #tpu.pipeline_mode<synchronous>, transform_indices = @transform_1, window_bounds = array<i64: 36, 4>}, {pipeline_mode = #tpu.pipeline_mode<synchronous>, transform_indices = @transform_2, window_bounds = array<i64: 16, 4>}, {pipeline_mode = #tpu.pipeline_mode<synchronous>, transform_indices = @transform_3, window_bounds = array<i64: 100, 4>}, {pipeline_mode = #tpu.pipeline_mode<synchronous>, transform_indices = @transform_4, window_bounds = array<i64: 36, 4>}, {transform_indices = @transform_5, window_bounds = array<i64: 1, 16, 16, 16>}]} {
    %c16_i32 = arith.constant 16 : i32
    %0 = arith.muli %arg1, %c16_i32 : i32
    %c1_i32 = arith.constant 1 : i32
    %1 = arith.addi %0, %c1_i32 : i32
    %c0 = arith.constant 0 : index
    %2 = arith.index_cast %1 : i32 to index
    %c1 = arith.constant 1 : index
    %c0_0 = arith.constant 0 : index
    %3 = vector.load %arg2[%c0, %2, %c1, %c0_0] : memref<1x20x20x4xbf16, #tpu.memory_space<vmem>>, vector<1x16x16x4xbf16>
    %4 = vector.shape_cast %3 : vector<1x16x16x4xbf16> to vector<16x16x4xbf16>
    %5 = arith.extf %4 : vector<16x16x4xbf16> to vector<16x16x4xf32>
    %6 = vector.shape_cast %5 : vector<16x16x4xf32> to vector<256x4xf32>
    %c1_i32_1 = arith.constant 1 : i32
    %7 = arith.addi %0, %c1_i32_1 : i32
    %c0_2 = arith.constant 0 : index
    %8 = arith.index_cast %7 : i32 to index
    %c2 = arith.constant 2 : index
    %c0_3 = arith.constant 0 : index
    %9 = vector.load %arg2[%c0_2, %8, %c2, %c0_3] : memref<1x20x20x4xbf16, #tpu.memory_space<vmem>>, vector<1x16x16x4xbf16>
    %10 = vector.shape_cast %9 : vector<1x16x16x4xbf16> to vector<16x16x4xbf16>
    %11 = arith.extf %10 : vector<16x16x4xbf16> to vector<16x16x4xf32>
    %12 = vector.shape_cast %11 : vector<16x16x4xf32> to vector<256x4xf32>
    %c1_i32_4 = arith.constant 1 : i32
    %13 = arith.addi %0, %c1_i32_4 : i32
    %c0_5 = arith.constant 0 : index
    %14 = arith.index_cast %13 : i32 to index
    %c3 = arith.constant 3 : index
    %c0_6 = arith.constant 0 : index
    %15 = vector.load %arg2[%c0_5, %14, %c3, %c0_6] : memref<1x20x20x4xbf16, #tpu.memory_space<vmem>>, vector<1x16x16x4xbf16>
    %16 = vector.shape_cast %15 : vector<1x16x16x4xbf16> to vector<16x16x4xbf16>
    %17 = arith.extf %16 : vector<16x16x4xbf16> to vector<16x16x4xf32>
    %18 = vector.shape_cast %17 : vector<16x16x4xf32> to vector<256x4xf32>
    %c2_i32 = arith.constant 2 : i32
    %19 = arith.addi %0, %c2_i32 : i32
    %c0_7 = arith.constant 0 : index
    %20 = arith.index_cast %19 : i32 to index
    %c1_8 = arith.constant 1 : index
    %c0_9 = arith.constant 0 : index
    %21 = vector.load %arg2[%c0_7, %20, %c1_8, %c0_9] : memref<1x20x20x4xbf16, #tpu.memory_space<vmem>>, vector<1x16x16x4xbf16>
    %22 = vector.shape_cast %21 : vector<1x16x16x4xbf16> to vector<16x16x4xbf16>
    %23 = arith.extf %22 : vector<16x16x4xbf16> to vector<16x16x4xf32>
    %24 = vector.shape_cast %23 : vector<16x16x4xf32> to vector<256x4xf32>
    %c2_i32_10 = arith.constant 2 : i32
    %25 = arith.addi %0, %c2_i32_10 : i32
    %c0_11 = arith.constant 0 : index
    %26 = arith.index_cast %25 : i32 to index
    %c2_12 = arith.constant 2 : index
    %c0_13 = arith.constant 0 : index
    %27 = vector.load %arg2[%c0_11, %26, %c2_12, %c0_13] : memref<1x20x20x4xbf16, #tpu.memory_space<vmem>>, vector<1x16x16x4xbf16>
    %28 = vector.shape_cast %27 : vector<1x16x16x4xbf16> to vector<16x16x4xbf16>
    %29 = arith.extf %28 : vector<16x16x4xbf16> to vector<16x16x4xf32>
    %30 = vector.shape_cast %29 : vector<16x16x4xf32> to vector<256x4xf32>
    %c2_i32_14 = arith.constant 2 : i32
    %31 = arith.addi %0, %c2_i32_14 : i32
    %c0_15 = arith.constant 0 : index
    %32 = arith.index_cast %31 : i32 to index
    %c3_16 = arith.constant 3 : index
    %c0_17 = arith.constant 0 : index
    %33 = vector.load %arg2[%c0_15, %32, %c3_16, %c0_17] : memref<1x20x20x4xbf16, #tpu.memory_space<vmem>>, vector<1x16x16x4xbf16>
    %34 = vector.shape_cast %33 : vector<1x16x16x4xbf16> to vector<16x16x4xbf16>
    %35 = arith.extf %34 : vector<16x16x4xbf16> to vector<16x16x4xf32>
    %36 = vector.shape_cast %35 : vector<16x16x4xf32> to vector<256x4xf32>
    %c3_i32 = arith.constant 3 : i32
    %37 = arith.addi %0, %c3_i32 : i32
    %c0_18 = arith.constant 0 : index
    %38 = arith.index_cast %37 : i32 to index
    %c1_19 = arith.constant 1 : index
    %c0_20 = arith.constant 0 : index
    %39 = vector.load %arg2[%c0_18, %38, %c1_19, %c0_20] : memref<1x20x20x4xbf16, #tpu.memory_space<vmem>>, vector<1x16x16x4xbf16>
    %40 = vector.shape_cast %39 : vector<1x16x16x4xbf16> to vector<16x16x4xbf16>
    %41 = arith.extf %40 : vector<16x16x4xbf16> to vector<16x16x4xf32>
    %42 = vector.shape_cast %41 : vector<16x16x4xf32> to vector<256x4xf32>
    %c3_i32_21 = arith.constant 3 : i32
    %43 = arith.addi %0, %c3_i32_21 : i32
    %c0_22 = arith.constant 0 : index
    %44 = arith.index_cast %43 : i32 to index
    %c2_23 = arith.constant 2 : index
    %c0_24 = arith.constant 0 : index
    %45 = vector.load %arg2[%c0_22, %44, %c2_23, %c0_24] : memref<1x20x20x4xbf16, #tpu.memory_space<vmem>>, vector<1x16x16x4xbf16>
    %46 = vector.shape_cast %45 : vector<1x16x16x4xbf16> to vector<16x16x4xbf16>
    %47 = arith.extf %46 : vector<16x16x4xbf16> to vector<16x16x4xf32>
    %48 = vector.shape_cast %47 : vector<16x16x4xf32> to vector<256x4xf32>
    %c3_i32_25 = arith.constant 3 : i32
    %49 = arith.addi %0, %c3_i32_25 : i32
    %c0_26 = arith.constant 0 : index
    %50 = arith.index_cast %49 : i32 to index
    %c3_27 = arith.constant 3 : index
    %c0_28 = arith.constant 0 : index
    %51 = vector.load %arg2[%c0_26, %50, %c3_27, %c0_28] : memref<1x20x20x4xbf16, #tpu.memory_space<vmem>>, vector<1x16x16x4xbf16>
    %52 = vector.shape_cast %51 : vector<1x16x16x4xbf16> to vector<16x16x4xbf16>
    %53 = arith.extf %52 : vector<16x16x4xbf16> to vector<16x16x4xf32>
    %54 = vector.shape_cast %53 : vector<16x16x4xf32> to vector<256x4xf32>
    %55 = tpu.concatenate %6, %12, %18, %24, %30, %36, %42, %48, %54 in 1 : vector<256x4xf32>, vector<256x4xf32>, vector<256x4xf32>, vector<256x4xf32>, vector<256x4xf32>, vector<256x4xf32>, vector<256x4xf32>, vector<256x4xf32>, vector<256x4xf32> -> vector<256x36xf32>
    %56 = arith.truncf %55 : vector<256x36xf32> to vector<256x36xbf16>
    %c0_29 = arith.constant 0 : index
    %c0_30 = arith.constant 0 : index
    %57 = vector.load %arg3[%c0_29, %c0_30] : memref<36x4xbf16, #tpu.memory_space<vmem>>, vector<36x4xbf16>
    %cst = arith.constant dense<0.000000e+00> : vector<256x4xf32>
    %58 = tpu.matmul %56, %57, %cst {dimension_numbers = #tpu.dot_dimension_numbers<[1], [0], [0], [1], [0, 0, 1, 1], [], []>} : vector<256x36xbf16>, vector<36x4xbf16>, vector<256x4xf32> -> vector<256x4xf32>
    %c1_i32_31 = arith.constant 1 : i32
    %59 = arith.addi %0, %c1_i32_31 : i32
    %c0_32 = arith.constant 0 : index
    %60 = arith.index_cast %59 : i32 to index
    %c1_33 = arith.constant 1 : index
    %c0_34 = arith.constant 0 : index
    %61 = vector.load %arg2[%c0_32, %60, %c1_33, %c0_34] : memref<1x20x20x4xbf16, #tpu.memory_space<vmem>>, vector<1x16x16x4xbf16>
    %62 = vector.shape_cast %61 : vector<1x16x16x4xbf16> to vector<16x16x4xbf16>
    %63 = arith.extf %62 : vector<16x16x4xbf16> to vector<16x16x4xf32>
    %64 = vector.shape_cast %63 : vector<16x16x4xf32> to vector<256x4xf32>
    %c1_i32_35 = arith.constant 1 : i32
    %65 = arith.addi %0, %c1_i32_35 : i32
    %c0_36 = arith.constant 0 : index
    %66 = arith.index_cast %65 : i32 to index
    %c3_37 = arith.constant 3 : index
    %c0_38 = arith.constant 0 : index
    %67 = vector.load %arg2[%c0_36, %66, %c3_37, %c0_38] : memref<1x20x20x4xbf16, #tpu.memory_space<vmem>>, vector<1x16x16x4xbf16>
    %68 = vector.shape_cast %67 : vector<1x16x16x4xbf16> to vector<16x16x4xbf16>
    %69 = arith.extf %68 : vector<16x16x4xbf16> to vector<16x16x4xf32>
    %70 = vector.shape_cast %69 : vector<16x16x4xf32> to vector<256x4xf32>
    %c3_i32_39 = arith.constant 3 : i32
    %71 = arith.addi %0, %c3_i32_39 : i32
    %c0_40 = arith.constant 0 : index
    %72 = arith.index_cast %71 : i32 to index
    %c1_41 = arith.constant 1 : index
    %c0_42 = arith.constant 0 : index
    %73 = vector.load %arg2[%c0_40, %72, %c1_41, %c0_42] : memref<1x20x20x4xbf16, #tpu.memory_space<vmem>>, vector<1x16x16x4xbf16>
    %74 = vector.shape_cast %73 : vector<1x16x16x4xbf16> to vector<16x16x4xbf16>
    %75 = arith.extf %74 : vector<16x16x4xbf16> to vector<16x16x4xf32>
    %76 = vector.shape_cast %75 : vector<16x16x4xf32> to vector<256x4xf32>
    %c3_i32_43 = arith.constant 3 : i32
    %77 = arith.addi %0, %c3_i32_43 : i32
    %c0_44 = arith.constant 0 : index
    %78 = arith.index_cast %77 : i32 to index
    %c3_45 = arith.constant 3 : index
    %c0_46 = arith.constant 0 : index
    %79 = vector.load %arg2[%c0_44, %78, %c3_45, %c0_46] : memref<1x20x20x4xbf16, #tpu.memory_space<vmem>>, vector<1x16x16x4xbf16>
    %80 = vector.shape_cast %79 : vector<1x16x16x4xbf16> to vector<16x16x4xbf16>
    %81 = arith.extf %80 : vector<16x16x4xbf16> to vector<16x16x4xf32>
    %82 = vector.shape_cast %81 : vector<16x16x4xf32> to vector<256x4xf32>
    %83 = tpu.concatenate %64, %70, %76, %82 in 1 : vector<256x4xf32>, vector<256x4xf32>, vector<256x4xf32>, vector<256x4xf32> -> vector<256x16xf32>
    %84 = arith.truncf %83 : vector<256x16xf32> to vector<256x16xbf16>
    %c0_47 = arith.constant 0 : index
    %c0_48 = arith.constant 0 : index
    %85 = vector.load %arg4[%c0_47, %c0_48] : memref<16x4xbf16, #tpu.memory_space<vmem>>, vector<16x4xbf16>
    %cst_49 = arith.constant dense<0.000000e+00> : vector<256x4xf32>
    %86 = tpu.matmul %84, %85, %cst_49 {dimension_numbers = #tpu.dot_dimension_numbers<[1], [0], [0], [1], [0, 0, 1, 1], [], []>} : vector<256x16xbf16>, vector<16x4xbf16>, vector<256x4xf32> -> vector<256x4xf32>
    %c0_i32 = arith.constant 0 : i32
    %87 = arith.addi %0, %c0_i32 : i32
    %c0_50 = arith.constant 0 : index
    %88 = arith.index_cast %87 : i32 to index
    %c0_51 = arith.constant 0 : index
    %c0_52 = arith.constant 0 : index
    %89 = vector.load %arg2[%c0_50, %88, %c0_51, %c0_52] : memref<1x20x20x4xbf16, #tpu.memory_space<vmem>>, vector<1x16x16x4xbf16>
    %90 = vector.shape_cast %89 : vector<1x16x16x4xbf16> to vector<16x16x4xbf16>
    %91 = arith.extf %90 : vector<16x16x4xbf16> to vector<16x16x4xf32>
    %92 = vector.shape_cast %91 : vector<16x16x4xf32> to vector<256x4xf32>
    %c0_i32_53 = arith.constant 0 : i32
    %93 = arith.addi %0, %c0_i32_53 : i32
    %c0_54 = arith.constant 0 : index
    %94 = arith.index_cast %93 : i32 to index
    %c1_55 = arith.constant 1 : index
    %c0_56 = arith.constant 0 : index
    %95 = vector.load %arg2[%c0_54, %94, %c1_55, %c0_56] : memref<1x20x20x4xbf16, #tpu.memory_space<vmem>>, vector<1x16x16x4xbf16>
    %96 = vector.shape_cast %95 : vector<1x16x16x4xbf16> to vector<16x16x4xbf16>
    %97 = arith.extf %96 : vector<16x16x4xbf16> to vector<16x16x4xf32>
    %98 = vector.shape_cast %97 : vector<16x16x4xf32> to vector<256x4xf32>
    %c0_i32_57 = arith.constant 0 : i32
    %99 = arith.addi %0, %c0_i32_57 : i32
    %c0_58 = arith.constant 0 : index
    %100 = arith.index_cast %99 : i32 to index
    %c2_59 = arith.constant 2 : index
    %c0_60 = arith.constant 0 : index
    %101 = vector.load %arg2[%c0_58, %100, %c2_59, %c0_60] : memref<1x20x20x4xbf16, #tpu.memory_space<vmem>>, vector<1x16x16x4xbf16>
    %102 = vector.shape_cast %101 : vector<1x16x16x4xbf16> to vector<16x16x4xbf16>
    %103 = arith.extf %102 : vector<16x16x4xbf16> to vector<16x16x4xf32>
    %104 = vector.shape_cast %103 : vector<16x16x4xf32> to vector<256x4xf32>
    %c0_i32_61 = arith.constant 0 : i32
    %105 = arith.addi %0, %c0_i32_61 : i32
    %c0_62 = arith.constant 0 : index
    %106 = arith.index_cast %105 : i32 to index
    %c3_63 = arith.constant 3 : index
    %c0_64 = arith.constant 0 : index
    %107 = vector.load %arg2[%c0_62, %106, %c3_63, %c0_64] : memref<1x20x20x4xbf16, #tpu.memory_space<vmem>>, vector<1x16x16x4xbf16>
    %108 = vector.shape_cast %107 : vector<1x16x16x4xbf16> to vector<16x16x4xbf16>
    %109 = arith.extf %108 : vector<16x16x4xbf16> to vector<16x16x4xf32>
    %110 = vector.shape_cast %109 : vector<16x16x4xf32> to vector<256x4xf32>
    %c0_i32_65 = arith.constant 0 : i32
    %111 = arith.addi %0, %c0_i32_65 : i32
    %c0_66 = arith.constant 0 : index
    %112 = arith.index_cast %111 : i32 to index
    %c4 = arith.constant 4 : index
    %c0_67 = arith.constant 0 : index
    %113 = vector.load %arg2[%c0_66, %112, %c4, %c0_67] : memref<1x20x20x4xbf16, #tpu.memory_space<vmem>>, vector<1x16x16x4xbf16>
    %114 = vector.shape_cast %113 : vector<1x16x16x4xbf16> to vector<16x16x4xbf16>
    %115 = arith.extf %114 : vector<16x16x4xbf16> to vector<16x16x4xf32>
    %116 = vector.shape_cast %115 : vector<16x16x4xf32> to vector<256x4xf32>
    %c1_i32_68 = arith.constant 1 : i32
    %117 = arith.addi %0, %c1_i32_68 : i32
    %c0_69 = arith.constant 0 : index
    %118 = arith.index_cast %117 : i32 to index
    %c0_70 = arith.constant 0 : index
    %c0_71 = arith.constant 0 : index
    %119 = vector.load %arg2[%c0_69, %118, %c0_70, %c0_71] : memref<1x20x20x4xbf16, #tpu.memory_space<vmem>>, vector<1x16x16x4xbf16>
    %120 = vector.shape_cast %119 : vector<1x16x16x4xbf16> to vector<16x16x4xbf16>
    %121 = arith.extf %120 : vector<16x16x4xbf16> to vector<16x16x4xf32>
    %122 = vector.shape_cast %121 : vector<16x16x4xf32> to vector<256x4xf32>
    %c1_i32_72 = arith.constant 1 : i32
    %123 = arith.addi %0, %c1_i32_72 : i32
    %c0_73 = arith.constant 0 : index
    %124 = arith.index_cast %123 : i32 to index
    %c1_74 = arith.constant 1 : index
    %c0_75 = arith.constant 0 : index
    %125 = vector.load %arg2[%c0_73, %124, %c1_74, %c0_75] : memref<1x20x20x4xbf16, #tpu.memory_space<vmem>>, vector<1x16x16x4xbf16>
    %126 = vector.shape_cast %125 : vector<1x16x16x4xbf16> to vector<16x16x4xbf16>
    %127 = arith.extf %126 : vector<16x16x4xbf16> to vector<16x16x4xf32>
    %128 = vector.shape_cast %127 : vector<16x16x4xf32> to vector<256x4xf32>
    %c1_i32_76 = arith.constant 1 : i32
    %129 = arith.addi %0, %c1_i32_76 : i32
    %c0_77 = arith.constant 0 : index
    %130 = arith.index_cast %129 : i32 to index
    %c2_78 = arith.constant 2 : index
    %c0_79 = arith.constant 0 : index
    %131 = vector.load %arg2[%c0_77, %130, %c2_78, %c0_79] : memref<1x20x20x4xbf16, #tpu.memory_space<vmem>>, vector<1x16x16x4xbf16>
    %132 = vector.shape_cast %131 : vector<1x16x16x4xbf16> to vector<16x16x4xbf16>
    %133 = arith.extf %132 : vector<16x16x4xbf16> to vector<16x16x4xf32>
    %134 = vector.shape_cast %133 : vector<16x16x4xf32> to vector<256x4xf32>
    %c1_i32_80 = arith.constant 1 : i32
    %135 = arith.addi %0, %c1_i32_80 : i32
    %c0_81 = arith.constant 0 : index
    %136 = arith.index_cast %135 : i32 to index
    %c3_82 = arith.constant 3 : index
    %c0_83 = arith.constant 0 : index
    %137 = vector.load %arg2[%c0_81, %136, %c3_82, %c0_83] : memref<1x20x20x4xbf16, #tpu.memory_space<vmem>>, vector<1x16x16x4xbf16>
    %138 = vector.shape_cast %137 : vector<1x16x16x4xbf16> to vector<16x16x4xbf16>
    %139 = arith.extf %138 : vector<16x16x4xbf16> to vector<16x16x4xf32>
    %140 = vector.shape_cast %139 : vector<16x16x4xf32> to vector<256x4xf32>
    %c1_i32_84 = arith.constant 1 : i32
    %141 = arith.addi %0, %c1_i32_84 : i32
    %c0_85 = arith.constant 0 : index
    %142 = arith.index_cast %141 : i32 to index
    %c4_86 = arith.constant 4 : index
    %c0_87 = arith.constant 0 : index
    %143 = vector.load %arg2[%c0_85, %142, %c4_86, %c0_87] : memref<1x20x20x4xbf16, #tpu.memory_space<vmem>>, vector<1x16x16x4xbf16>
    %144 = vector.shape_cast %143 : vector<1x16x16x4xbf16> to vector<16x16x4xbf16>
    %145 = arith.extf %144 : vector<16x16x4xbf16> to vector<16x16x4xf32>
    %146 = vector.shape_cast %145 : vector<16x16x4xf32> to vector<256x4xf32>
    %c2_i32_88 = arith.constant 2 : i32
    %147 = arith.addi %0, %c2_i32_88 : i32
    %c0_89 = arith.constant 0 : index
    %148 = arith.index_cast %147 : i32 to index
    %c0_90 = arith.constant 0 : index
    %c0_91 = arith.constant 0 : index
    %149 = vector.load %arg2[%c0_89, %148, %c0_90, %c0_91] : memref<1x20x20x4xbf16, #tpu.memory_space<vmem>>, vector<1x16x16x4xbf16>
    %150 = vector.shape_cast %149 : vector<1x16x16x4xbf16> to vector<16x16x4xbf16>
    %151 = arith.extf %150 : vector<16x16x4xbf16> to vector<16x16x4xf32>
    %152 = vector.shape_cast %151 : vector<16x16x4xf32> to vector<256x4xf32>
    %c2_i32_92 = arith.constant 2 : i32
    %153 = arith.addi %0, %c2_i32_92 : i32
    %c0_93 = arith.constant 0 : index
    %154 = arith.index_cast %153 : i32 to index
    %c1_94 = arith.constant 1 : index
    %c0_95 = arith.constant 0 : index
    %155 = vector.load %arg2[%c0_93, %154, %c1_94, %c0_95] : memref<1x20x20x4xbf16, #tpu.memory_space<vmem>>, vector<1x16x16x4xbf16>
    %156 = vector.shape_cast %155 : vector<1x16x16x4xbf16> to vector<16x16x4xbf16>
    %157 = arith.extf %156 : vector<16x16x4xbf16> to vector<16x16x4xf32>
    %158 = vector.shape_cast %157 : vector<16x16x4xf32> to vector<256x4xf32>
    %c2_i32_96 = arith.constant 2 : i32
    %159 = arith.addi %0, %c2_i32_96 : i32
    %c0_97 = arith.constant 0 : index
    %160 = arith.index_cast %159 : i32 to index
    %c2_98 = arith.constant 2 : index
    %c0_99 = arith.constant 0 : index
    %161 = vector.load %arg2[%c0_97, %160, %c2_98, %c0_99] : memref<1x20x20x4xbf16, #tpu.memory_space<vmem>>, vector<1x16x16x4xbf16>
    %162 = vector.shape_cast %161 : vector<1x16x16x4xbf16> to vector<16x16x4xbf16>
    %163 = arith.extf %162 : vector<16x16x4xbf16> to vector<16x16x4xf32>
    %164 = vector.shape_cast %163 : vector<16x16x4xf32> to vector<256x4xf32>
    %c2_i32_100 = arith.constant 2 : i32
    %165 = arith.addi %0, %c2_i32_100 : i32
    %c0_101 = arith.constant 0 : index
    %166 = arith.index_cast %165 : i32 to index
    %c3_102 = arith.constant 3 : index
    %c0_103 = arith.constant 0 : index
    %167 = vector.load %arg2[%c0_101, %166, %c3_102, %c0_103] : memref<1x20x20x4xbf16, #tpu.memory_space<vmem>>, vector<1x16x16x4xbf16>
    %168 = vector.shape_cast %167 : vector<1x16x16x4xbf16> to vector<16x16x4xbf16>
    %169 = arith.extf %168 : vector<16x16x4xbf16> to vector<16x16x4xf32>
    %170 = vector.shape_cast %169 : vector<16x16x4xf32> to vector<256x4xf32>
    %c2_i32_104 = arith.constant 2 : i32
    %171 = arith.addi %0, %c2_i32_104 : i32
    %c0_105 = arith.constant 0 : index
    %172 = arith.index_cast %171 : i32 to index
    %c4_106 = arith.constant 4 : index
    %c0_107 = arith.constant 0 : index
    %173 = vector.load %arg2[%c0_105, %172, %c4_106, %c0_107] : memref<1x20x20x4xbf16, #tpu.memory_space<vmem>>, vector<1x16x16x4xbf16>
    %174 = vector.shape_cast %173 : vector<1x16x16x4xbf16> to vector<16x16x4xbf16>
    %175 = arith.extf %174 : vector<16x16x4xbf16> to vector<16x16x4xf32>
    %176 = vector.shape_cast %175 : vector<16x16x4xf32> to vector<256x4xf32>
    %c3_i32_108 = arith.constant 3 : i32
    %177 = arith.addi %0, %c3_i32_108 : i32
    %c0_109 = arith.constant 0 : index
    %178 = arith.index_cast %177 : i32 to index
    %c0_110 = arith.constant 0 : index
    %c0_111 = arith.constant 0 : index
    %179 = vector.load %arg2[%c0_109, %178, %c0_110, %c0_111] : memref<1x20x20x4xbf16, #tpu.memory_space<vmem>>, vector<1x16x16x4xbf16>
    %180 = vector.shape_cast %179 : vector<1x16x16x4xbf16> to vector<16x16x4xbf16>
    %181 = arith.extf %180 : vector<16x16x4xbf16> to vector<16x16x4xf32>
    %182 = vector.shape_cast %181 : vector<16x16x4xf32> to vector<256x4xf32>
    %c3_i32_112 = arith.constant 3 : i32
    %183 = arith.addi %0, %c3_i32_112 : i32
    %c0_113 = arith.constant 0 : index
    %184 = arith.index_cast %183 : i32 to index
    %c1_114 = arith.constant 1 : index
    %c0_115 = arith.constant 0 : index
    %185 = vector.load %arg2[%c0_113, %184, %c1_114, %c0_115] : memref<1x20x20x4xbf16, #tpu.memory_space<vmem>>, vector<1x16x16x4xbf16>
    %186 = vector.shape_cast %185 : vector<1x16x16x4xbf16> to vector<16x16x4xbf16>
    %187 = arith.extf %186 : vector<16x16x4xbf16> to vector<16x16x4xf32>
    %188 = vector.shape_cast %187 : vector<16x16x4xf32> to vector<256x4xf32>
    %c3_i32_116 = arith.constant 3 : i32
    %189 = arith.addi %0, %c3_i32_116 : i32
    %c0_117 = arith.constant 0 : index
    %190 = arith.index_cast %189 : i32 to index
    %c2_118 = arith.constant 2 : index
    %c0_119 = arith.constant 0 : index
    %191 = vector.load %arg2[%c0_117, %190, %c2_118, %c0_119] : memref<1x20x20x4xbf16, #tpu.memory_space<vmem>>, vector<1x16x16x4xbf16>
    %192 = vector.shape_cast %191 : vector<1x16x16x4xbf16> to vector<16x16x4xbf16>
    %193 = arith.extf %192 : vector<16x16x4xbf16> to vector<16x16x4xf32>
    %194 = vector.shape_cast %193 : vector<16x16x4xf32> to vector<256x4xf32>
    %c3_i32_120 = arith.constant 3 : i32
    %195 = arith.addi %0, %c3_i32_120 : i32
    %c0_121 = arith.constant 0 : index
    %196 = arith.index_cast %195 : i32 to index
    %c3_122 = arith.constant 3 : index
    %c0_123 = arith.constant 0 : index
    %197 = vector.load %arg2[%c0_121, %196, %c3_122, %c0_123] : memref<1x20x20x4xbf16, #tpu.memory_space<vmem>>, vector<1x16x16x4xbf16>
    %198 = vector.shape_cast %197 : vector<1x16x16x4xbf16> to vector<16x16x4xbf16>
    %199 = arith.extf %198 : vector<16x16x4xbf16> to vector<16x16x4xf32>
    %200 = vector.shape_cast %199 : vector<16x16x4xf32> to vector<256x4xf32>
    %c3_i32_124 = arith.constant 3 : i32
    %201 = arith.addi %0, %c3_i32_124 : i32
    %c0_125 = arith.constant 0 : index
    %202 = arith.index_cast %201 : i32 to index
    %c4_126 = arith.constant 4 : index
    %c0_127 = arith.constant 0 : index
    %203 = vector.load %arg2[%c0_125, %202, %c4_126, %c0_127] : memref<1x20x20x4xbf16, #tpu.memory_space<vmem>>, vector<1x16x16x4xbf16>
    %204 = vector.shape_cast %203 : vector<1x16x16x4xbf16> to vector<16x16x4xbf16>
    %205 = arith.extf %204 : vector<16x16x4xbf16> to vector<16x16x4xf32>
    %206 = vector.shape_cast %205 : vector<16x16x4xf32> to vector<256x4xf32>
    %c4_i32 = arith.constant 4 : i32
    %207 = arith.addi %0, %c4_i32 : i32
    %c0_128 = arith.constant 0 : index
    %208 = arith.index_cast %207 : i32 to index
    %c0_129 = arith.constant 0 : index
    %c0_130 = arith.constant 0 : index
    %209 = vector.load %arg2[%c0_128, %208, %c0_129, %c0_130] : memref<1x20x20x4xbf16, #tpu.memory_space<vmem>>, vector<1x16x16x4xbf16>
    %210 = vector.shape_cast %209 : vector<1x16x16x4xbf16> to vector<16x16x4xbf16>
    %211 = arith.extf %210 : vector<16x16x4xbf16> to vector<16x16x4xf32>
    %212 = vector.shape_cast %211 : vector<16x16x4xf32> to vector<256x4xf32>
    %c4_i32_131 = arith.constant 4 : i32
    %213 = arith.addi %0, %c4_i32_131 : i32
    %c0_132 = arith.constant 0 : index
    %214 = arith.index_cast %213 : i32 to index
    %c1_133 = arith.constant 1 : index
    %c0_134 = arith.constant 0 : index
    %215 = vector.load %arg2[%c0_132, %214, %c1_133, %c0_134] : memref<1x20x20x4xbf16, #tpu.memory_space<vmem>>, vector<1x16x16x4xbf16>
    %216 = vector.shape_cast %215 : vector<1x16x16x4xbf16> to vector<16x16x4xbf16>
    %217 = arith.extf %216 : vector<16x16x4xbf16> to vector<16x16x4xf32>
    %218 = vector.shape_cast %217 : vector<16x16x4xf32> to vector<256x4xf32>
    %c4_i32_135 = arith.constant 4 : i32
    %219 = arith.addi %0, %c4_i32_135 : i32
    %c0_136 = arith.constant 0 : index
    %220 = arith.index_cast %219 : i32 to index
    %c2_137 = arith.constant 2 : index
    %c0_138 = arith.constant 0 : index
    %221 = vector.load %arg2[%c0_136, %220, %c2_137, %c0_138] : memref<1x20x20x4xbf16, #tpu.memory_space<vmem>>, vector<1x16x16x4xbf16>
    %222 = vector.shape_cast %221 : vector<1x16x16x4xbf16> to vector<16x16x4xbf16>
    %223 = arith.extf %222 : vector<16x16x4xbf16> to vector<16x16x4xf32>
    %224 = vector.shape_cast %223 : vector<16x16x4xf32> to vector<256x4xf32>
    %c4_i32_139 = arith.constant 4 : i32
    %225 = arith.addi %0, %c4_i32_139 : i32
    %c0_140 = arith.constant 0 : index
    %226 = arith.index_cast %225 : i32 to index
    %c3_141 = arith.constant 3 : index
    %c0_142 = arith.constant 0 : index
    %227 = vector.load %arg2[%c0_140, %226, %c3_141, %c0_142] : memref<1x20x20x4xbf16, #tpu.memory_space<vmem>>, vector<1x16x16x4xbf16>
    %228 = vector.shape_cast %227 : vector<1x16x16x4xbf16> to vector<16x16x4xbf16>
    %229 = arith.extf %228 : vector<16x16x4xbf16> to vector<16x16x4xf32>
    %230 = vector.shape_cast %229 : vector<16x16x4xf32> to vector<256x4xf32>
    %c4_i32_143 = arith.constant 4 : i32
    %231 = arith.addi %0, %c4_i32_143 : i32
    %c0_144 = arith.constant 0 : index
    %232 = arith.index_cast %231 : i32 to index
    %c4_145 = arith.constant 4 : index
    %c0_146 = arith.constant 0 : index
    %233 = vector.load %arg2[%c0_144, %232, %c4_145, %c0_146] : memref<1x20x20x4xbf16, #tpu.memory_space<vmem>>, vector<1x16x16x4xbf16>
    %234 = vector.shape_cast %233 : vector<1x16x16x4xbf16> to vector<16x16x4xbf16>
    %235 = arith.extf %234 : vector<16x16x4xbf16> to vector<16x16x4xf32>
    %236 = vector.shape_cast %235 : vector<16x16x4xf32> to vector<256x4xf32>
    %237 = tpu.concatenate %92, %98, %104, %110, %116, %122, %128, %134, %140, %146, %152, %158, %164, %170, %176, %182 in 1 : vector<256x4xf32>, vector<256x4xf32>, vector<256x4xf32>, vector<256x4xf32>, vector<256x4xf32>, vector<256x4xf32>, vector<256x4xf32>, vector<256x4xf32>, vector<256x4xf32>, vector<256x4xf32>, vector<256x4xf32>, vector<256x4xf32>, vector<256x4xf32>, vector<256x4xf32>, vector<256x4xf32>, vector<256x4xf32> -> vector<256x64xf32>
    %238 = tpu.concatenate %188, %194, %200, %206, %212, %218, %224, %230, %236 in 1 : vector<256x4xf32>, vector<256x4xf32>, vector<256x4xf32>, vector<256x4xf32>, vector<256x4xf32>, vector<256x4xf32>, vector<256x4xf32>, vector<256x4xf32>, vector<256x4xf32> -> vector<256x36xf32>
    %239 = tpu.concatenate %237, %238 in 1 : vector<256x64xf32>, vector<256x36xf32> -> vector<256x100xf32>
    %240 = arith.truncf %239 : vector<256x100xf32> to vector<256x100xbf16>
    %c0_147 = arith.constant 0 : index
    %c0_148 = arith.constant 0 : index
    %241 = vector.load %arg5[%c0_147, %c0_148] : memref<100x4xbf16, #tpu.memory_space<vmem>>, vector<100x4xbf16>
    %cst_149 = arith.constant dense<0.000000e+00> : vector<256x4xf32>
    %242 = tpu.matmul %240, %241, %cst_149 {dimension_numbers = #tpu.dot_dimension_numbers<[1], [0], [0], [1], [0, 0, 1, 1], [], []>} : vector<256x100xbf16>, vector<100x4xbf16>, vector<256x4xf32> -> vector<256x4xf32>
    %c0_i32_150 = arith.constant 0 : i32
    %243 = arith.addi %0, %c0_i32_150 : i32
    %c0_151 = arith.constant 0 : index
    %244 = arith.index_cast %243 : i32 to index
    %c0_152 = arith.constant 0 : index
    %c0_153 = arith.constant 0 : index
    %245 = vector.load %arg2[%c0_151, %244, %c0_152, %c0_153] : memref<1x20x20x4xbf16, #tpu.memory_space<vmem>>, vector<1x16x16x4xbf16>
    %246 = vector.shape_cast %245 : vector<1x16x16x4xbf16> to vector<16x16x4xbf16>
    %247 = arith.extf %246 : vector<16x16x4xbf16> to vector<16x16x4xf32>
    %248 = vector.shape_cast %247 : vector<16x16x4xf32> to vector<256x4xf32>
    %c0_i32_154 = arith.constant 0 : i32
    %249 = arith.addi %0, %c0_i32_154 : i32
    %c0_155 = arith.constant 0 : index
    %250 = arith.index_cast %249 : i32 to index
    %c2_156 = arith.constant 2 : index
    %c0_157 = arith.constant 0 : index
    %251 = vector.load %arg2[%c0_155, %250, %c2_156, %c0_157] : memref<1x20x20x4xbf16, #tpu.memory_space<vmem>>, vector<1x16x16x4xbf16>
    %252 = vector.shape_cast %251 : vector<1x16x16x4xbf16> to vector<16x16x4xbf16>
    %253 = arith.extf %252 : vector<16x16x4xbf16> to vector<16x16x4xf32>
    %254 = vector.shape_cast %253 : vector<16x16x4xf32> to vector<256x4xf32>
    %c0_i32_158 = arith.constant 0 : i32
    %255 = arith.addi %0, %c0_i32_158 : i32
    %c0_159 = arith.constant 0 : index
    %256 = arith.index_cast %255 : i32 to index
    %c4_160 = arith.constant 4 : index
    %c0_161 = arith.constant 0 : index
    %257 = vector.load %arg2[%c0_159, %256, %c4_160, %c0_161] : memref<1x20x20x4xbf16, #tpu.memory_space<vmem>>, vector<1x16x16x4xbf16>
    %258 = vector.shape_cast %257 : vector<1x16x16x4xbf16> to vector<16x16x4xbf16>
    %259 = arith.extf %258 : vector<16x16x4xbf16> to vector<16x16x4xf32>
    %260 = vector.shape_cast %259 : vector<16x16x4xf32> to vector<256x4xf32>
    %c2_i32_162 = arith.constant 2 : i32
    %261 = arith.addi %0, %c2_i32_162 : i32
    %c0_163 = arith.constant 0 : index
    %262 = arith.index_cast %261 : i32 to index
    %c0_164 = arith.constant 0 : index
    %c0_165 = arith.constant 0 : index
    %263 = vector.load %arg2[%c0_163, %262, %c0_164, %c0_165] : memref<1x20x20x4xbf16, #tpu.memory_space<vmem>>, vector<1x16x16x4xbf16>
    %264 = vector.shape_cast %263 : vector<1x16x16x4xbf16> to vector<16x16x4xbf16>
    %265 = arith.extf %264 : vector<16x16x4xbf16> to vector<16x16x4xf32>
    %266 = vector.shape_cast %265 : vector<16x16x4xf32> to vector<256x4xf32>
    %c2_i32_166 = arith.constant 2 : i32
    %267 = arith.addi %0, %c2_i32_166 : i32
    %c0_167 = arith.constant 0 : index
    %268 = arith.index_cast %267 : i32 to index
    %c2_168 = arith.constant 2 : index
    %c0_169 = arith.constant 0 : index
    %269 = vector.load %arg2[%c0_167, %268, %c2_168, %c0_169] : memref<1x20x20x4xbf16, #tpu.memory_space<vmem>>, vector<1x16x16x4xbf16>
    %270 = vector.shape_cast %269 : vector<1x16x16x4xbf16> to vector<16x16x4xbf16>
    %271 = arith.extf %270 : vector<16x16x4xbf16> to vector<16x16x4xf32>
    %272 = vector.shape_cast %271 : vector<16x16x4xf32> to vector<256x4xf32>
    %c2_i32_170 = arith.constant 2 : i32
    %273 = arith.addi %0, %c2_i32_170 : i32
    %c0_171 = arith.constant 0 : index
    %274 = arith.index_cast %273 : i32 to index
    %c4_172 = arith.constant 4 : index
    %c0_173 = arith.constant 0 : index
    %275 = vector.load %arg2[%c0_171, %274, %c4_172, %c0_173] : memref<1x20x20x4xbf16, #tpu.memory_space<vmem>>, vector<1x16x16x4xbf16>
    %276 = vector.shape_cast %275 : vector<1x16x16x4xbf16> to vector<16x16x4xbf16>
    %277 = arith.extf %276 : vector<16x16x4xbf16> to vector<16x16x4xf32>
    %278 = vector.shape_cast %277 : vector<16x16x4xf32> to vector<256x4xf32>
    %c4_i32_174 = arith.constant 4 : i32
    %279 = arith.addi %0, %c4_i32_174 : i32
    %c0_175 = arith.constant 0 : index
    %280 = arith.index_cast %279 : i32 to index
    %c0_176 = arith.constant 0 : index
    %c0_177 = arith.constant 0 : index
    %281 = vector.load %arg2[%c0_175, %280, %c0_176, %c0_177] : memref<1x20x20x4xbf16, #tpu.memory_space<vmem>>, vector<1x16x16x4xbf16>
    %282 = vector.shape_cast %281 : vector<1x16x16x4xbf16> to vector<16x16x4xbf16>
    %283 = arith.extf %282 : vector<16x16x4xbf16> to vector<16x16x4xf32>
    %284 = vector.shape_cast %283 : vector<16x16x4xf32> to vector<256x4xf32>
    %c4_i32_178 = arith.constant 4 : i32
    %285 = arith.addi %0, %c4_i32_178 : i32
    %c0_179 = arith.constant 0 : index
    %286 = arith.index_cast %285 : i32 to index
    %c2_180 = arith.constant 2 : index
    %c0_181 = arith.constant 0 : index
    %287 = vector.load %arg2[%c0_179, %286, %c2_180, %c0_181] : memref<1x20x20x4xbf16, #tpu.memory_space<vmem>>, vector<1x16x16x4xbf16>
    %288 = vector.shape_cast %287 : vector<1x16x16x4xbf16> to vector<16x16x4xbf16>
    %289 = arith.extf %288 : vector<16x16x4xbf16> to vector<16x16x4xf32>
    %290 = vector.shape_cast %289 : vector<16x16x4xf32> to vector<256x4xf32>
    %c4_i32_182 = arith.constant 4 : i32
    %291 = arith.addi %0, %c4_i32_182 : i32
    %c0_183 = arith.constant 0 : index
    %292 = arith.index_cast %291 : i32 to index
    %c4_184 = arith.constant 4 : index
    %c0_185 = arith.constant 0 : index
    %293 = vector.load %arg2[%c0_183, %292, %c4_184, %c0_185] : memref<1x20x20x4xbf16, #tpu.memory_space<vmem>>, vector<1x16x16x4xbf16>
    %294 = vector.shape_cast %293 : vector<1x16x16x4xbf16> to vector<16x16x4xbf16>
    %295 = arith.extf %294 : vector<16x16x4xbf16> to vector<16x16x4xf32>
    %296 = vector.shape_cast %295 : vector<16x16x4xf32> to vector<256x4xf32>
    %297 = tpu.concatenate %248, %254, %260, %266, %272, %278, %284, %290, %296 in 1 : vector<256x4xf32>, vector<256x4xf32>, vector<256x4xf32>, vector<256x4xf32>, vector<256x4xf32>, vector<256x4xf32>, vector<256x4xf32>, vector<256x4xf32>, vector<256x4xf32> -> vector<256x36xf32>
    %298 = arith.truncf %297 : vector<256x36xf32> to vector<256x36xbf16>
    %c0_186 = arith.constant 0 : index
    %c0_187 = arith.constant 0 : index
    %299 = vector.load %arg6[%c0_186, %c0_187] : memref<36x4xbf16, #tpu.memory_space<vmem>>, vector<36x4xbf16>
    %cst_188 = arith.constant dense<0.000000e+00> : vector<256x4xf32>
    %300 = tpu.matmul %298, %299, %cst_188 {dimension_numbers = #tpu.dot_dimension_numbers<[1], [0], [0], [1], [0, 0, 1, 1], [], []>} : vector<256x36xbf16>, vector<36x4xbf16>, vector<256x4xf32> -> vector<256x4xf32>
    %301 = tpu.concatenate %58, %86, %242, %300 in 1 : vector<256x4xf32>, vector<256x4xf32>, vector<256x4xf32>, vector<256x4xf32> -> vector<256x16xf32>
    %302 = vector.shape_cast %301 : vector<256x16xf32> to vector<1x16x16x16xf32>
    %c0_189 = arith.constant 0 : index
    %c0_190 = arith.constant 0 : index
    %c0_191 = arith.constant 0 : index
    %c0_192 = arith.constant 0 : index
    %303 = vector.load %arg7[%c0_189, %c0_190, %c0_191, %c0_192] : memref<1x16x16x16xf32, #tpu.memory_space<vmem>>, vector<1x16x16x16xf32>
    tpu.vector_store %arg7[%c0_189, %c0_190, %c0_191, %c0_192], %302 {strides = array<i32>} : memref<1x16x16x16xf32, #tpu.memory_space<vmem>>, vector<1x16x16x16xf32>,
    return
  }
  func.func @transform_0(%arg0: i32, %arg1: i32) -> (i32, i32, i32, i32) {
    %c0_i32 = arith.constant 0 : i32
    %c0_i32_0 = arith.constant 0 : i32
    %c0_i32_1 = arith.constant 0 : i32
    %c0_i32_2 = arith.constant 0 : i32
    return %arg0, %c0_i32, %c0_i32_0, %c0_i32_1 : i32, i32, i32, i32
  }
  func.func @transform_1(%arg0: i32, %arg1: i32) -> (i32, i32) {
    %c0_i32 = arith.constant 0 : i32
    %c0_i32_0 = arith.constant 0 : i32
    %c0_i32_1 = arith.constant 0 : i32
    return %c0_i32, %c0_i32_0 : i32, i32
  }
  func.func @transform_2(%arg0: i32, %arg1: i32) -> (i32, i32) {
    %c0_i32 = arith.constant 0 : i32
    %c0_i32_0 = arith.constant 0 : i32
    %c0_i32_1 = arith.constant 0 : i32
    return %c0_i32, %c0_i32_0 : i32, i32
  }
  func.func @transform_3(%arg0: i32, %arg1: i32) -> (i32, i32) {
    %c0_i32 = arith.constant 0 : i32
    %c0_i32_0 = arith.constant 0 : i32
    %c0_i32_1 = arith.constant 0 : i32
    return %c0_i32, %c0_i32_0 : i32, i32
  }
  func.func @transform_4(%arg0: i32, %arg1: i32) -> (i32, i32) {
    %c0_i32 = arith.constant 0 : i32
    %c0_i32_0 = arith.constant 0 : i32
    %c0_i32_1 = arith.constant 0 : i32
    return %c0_i32, %c0_i32_0 : i32, i32
  }
  func.func @transform_5(%arg0: i32, %arg1: i32) -> (i32, i32, i32, i32) {
    %c0_i32 = arith.constant 0 : i32
    %c0_i32_0 = arith.constant 0 : i32
    %c0_i32_1 = arith.constant 0 : i32
    return %arg0, %arg1, %c0_i32, %c0_i32_0 : i32, i32, i32, i32
  }
}

</mosaic_0001>

<llo_original>
// kernel: _forward_jit.1
$region0: #{_forward_jit.1}
  #allocation0 [shape = 'u32[]', space=smem, size = 0x4, offset = 0x4, fixed_abs, tag = 'smem constant byte address 0x4 - core index']
  #allocation1 [shape = 'u32[144,128]{1,0:T(1,128)}', space=vmem, size = 0x12000, scoped, tag = 'internal scratch']
  %s0 = inlined_call_operand.vmem [shape: bf16[2,20,20,4], index: 0, kind: input, shape index: {}]
  %s1 = inlined_call_operand.vmem [shape: bf16[36,4], index: 1, kind: input, shape index: {}]
  %s2 = inlined_call_operand.vmem [shape: bf16[16,4], index: 2, kind: input, shape index: {}]
  %s3 = inlined_call_operand.vmem [shape: bf16[100,4], index: 3, kind: input, shape index: {}]
  %s4 = inlined_call_operand.vmem [shape: bf16[36,4], index: 4, kind: input, shape index: {}]
  %s5 = inlined_call_operand.vmem [shape: f32[2,16,16,16], index: 5, kind: output, shape index: {}]
  %s6 = sld [smem:[#allocation0]]
  $region53: #{_forward_jit.1} parent=0
    _
  %s8 = ssub.s32 1, %s6
  %s9 = scalar_select 0, %s8, %s6
  loop: start=0, step=1, limit=4
  $region2: #{_forward_jit.1} parent=0 // loop_pre_header
    _
  $region3: #{_forward_jit.1} parent=0 // loop_header
    %s11 = sphi 0, %s15
    %p12 = scmp.ge.s32.totalorder %s11, 4
    %s18 = sphi 0, %s30
    %s19 = sphi 0, %s26
    %s20 = sphi 0, %s18
    %s21 = sphi 0, %s19
    %s22 = sphi 0, %s20
    %s23 = sphi 0, %s21
    %s33 = sphi 0, %s35
    %s36 = sphi 0, %s33
    %s37 = sphi 0, %s36
    %s53 = sphi 0, %s37
    %s57 = sphi 0, %s57
    %s59 = sphi 0, %s57
    %s60 = sphi 0, %s59
    %s74 = sphi 0, %s60
    %s78 = sphi 0, %s78
    %s80 = sphi 0, %s78
    %s81 = sphi 0, %s80
    %s95 = sphi 0, %s81
    %s99 = sphi 0, %s99
    %s101 = sphi 0, %s99
    %s102 = sphi 0, %s101
    %s116 = sphi 0, %s102
    %s120 = sphi 0, %s120
    %s122 = sphi 0, %s120
    %s123 = sphi 0, %s122
    %s137 = sphi 0, %s123
    %s145 = sphi 0, %s147
    %s148 = sphi 0, %s145
    %s149 = sphi 0, %s148
    %s165 = sphi 0, %s149
  $region4: #{_forward_jit.1} parent=0 // loop_header_branch
    %14 = sbr.rel (%p12) target = $region8
  $region5: #{_forward_jit.1} parent=0 // loop_body
    %s16 = ssub.s32 %s11, 1
    %s17 = ssub.s32 %s11, 2
    %s24 = sadd.s32 1, %s19
    %p25 = scmp.ge.s32.totalorder %s24, 1
    %s26 = scalar_select %p25, 0, %s24
    %s27 = sadd.s32 1, %s18
    %s28 = scalar_select %p25, %s27, %s18
    %p29 = scmp.ge.s32.totalorder %s28, 2
    %s30 = scalar_select %p29, 0, %s28
    %s31 = ssub.s32 %s18, %s30
    %p32 = scmp.eq.s32.totalorder %s31, 0
    %s34 = sadd.s32 %s33, 1
    %s35 = scalar_select %p32, %s33, %s34
    %p38 = pneg %p32
    %p39 = scmp.eq.s32.totalorder %s11, 1
    %p40 = por %p38, %p39
    %p41 = scmp.ne.s32.totalorder %s33, %s36
    %p42 = scmp.eq.s32.totalorder %s11, 0
    %p43 = por %p41, %p42
    %p44 = scmp.ne.s32.totalorder %s33, %s36
    %p45 = scmp.eq.s32.totalorder %s16, 1
    %p46 = por %p44, %p45
    %p47 = scmp.ne.s32.totalorder %s36, %s37
    %p48 = scmp.eq.s32.totalorder %s16, 0
    %p49 = por %p47, %p48
    %p50 = scmp.ne.s32.totalorder %s36, %s37
    %p51 = scmp.eq.s32.totalorder %s17, 1
    %p52 = por %p50, %p51
    %p54 = scmp.ne.s32.totalorder %s37, %s53
    %p55 = scmp.eq.s32.totalorder %s17, 0
    %p56 = por %p54, %p55
    %s58 = sadd.s32 %s57, 1
    %p61 = scmp.eq.s32.totalorder %s11, 1
    %p62 = scmp.ne.s32.totalorder %s57, %s59
    %p63 = scmp.eq.s32.totalorder %s11, 0
    %p64 = por %p62, %p63
    %p65 = scmp.ne.s32.totalorder %s57, %s59
    %p66 = scmp.eq.s32.totalorder %s16, 1
    %p67 = por %p65, %p66
    %p68 = scmp.ne.s32.totalorder %s59, %s60
    %p69 = scmp.eq.s32.totalorder %s16, 0
    %p70 = por %p68, %p69
    %p71 = scmp.ne.s32.totalorder %s59, %s60
    %p72 = scmp.eq.s32.totalorder %s17, 1
    %p73 = por %p71, %p72
    %p75 = scmp.ne.s32.totalorder %s60, %s74
    %p76 = scmp.eq.s32.totalorder %s17, 0
    %p77 = por %p75, %p76
    %s79 = sadd.s32 %s78, 1
    %p82 = scmp.eq.s32.totalorder %s11, 1
    %p83 = scmp.ne.s32.totalorder %s78, %s80
    %p84 = scmp.eq.s32.totalorder %s11, 0
    %p85 = por %p83, %p84
    %p86 = scmp.ne.s32.totalorder %s78, %s80
    %p87 = scmp.eq.s32.totalorder %s16, 1
    %p88 = por %p86, %p87
    %p89 = scmp.ne.s32.totalorder %s80, %s81
    %p90 = scmp.eq.s32.totalorder %s16, 0
    %p91 = por %p89, %p90
    %p92 = scmp.ne.s32.totalorder %s80, %s81
    %p93 = scmp.eq.s32.totalorder %s17, 1
    %p94 = por %p92, %p93
    %p96 = scmp.ne.s32.totalorder %s81, %s95
    %p97 = scmp.eq.s32.totalorder %s17, 0
    %p98 = por %p96, %p97
    %s100 = sadd.s32 %s99, 1
    %p103 = scmp.eq.s32.totalorder %s11, 1
    %p104 = scmp.ne.s32.totalorder %s99, %s101
    %p105 = scmp.eq.s32.totalorder %s11, 0
    %p106 = por %p104, %p105
    %p107 = scmp.ne.s32.totalorder %s99, %s101
    %p108 = scmp.eq.s32.totalorder %s16, 1
    %p109 = por %p107, %p108
    %p110 = scmp.ne.s32.totalorder %s101, %s102
    %p111 = scmp.eq.s32.totalorder %s16, 0
    %p112 = por %p110, %p111
    %p113 = scmp.ne.s32.totalorder %s101, %s102
    %p114 = scmp.eq.s32.totalorder %s17, 1
    %p115 = por %p113, %p114
    %p117 = scmp.ne.s32.totalorder %s102, %s116
    %p118 = scmp.eq.s32.totalorder %s17, 0
    %p119 = por %p117, %p118
    %s121 = sadd.s32 %s120, 1
    %p124 = scmp.eq.s32.totalorder %s11, 1
    %p125 = scmp.ne.s32.totalorder %s120, %s122
    %p126 = scmp.eq.s32.totalorder %s11, 0
    %p127 = por %p125, %p126
    %p128 = scmp.ne.s32.totalorder %s120, %s122
    %p129 = scmp.eq.s32.totalorder %s16, 1
    %p130 = por %p128, %p129
    %p131 = scmp.ne.s32.totalorder %s122, %s123
    %p132 = scmp.eq.s32.totalorder %s16, 0
    %p133 = por %p131, %p132
    %p134 = scmp.ne.s32.totalorder %s122, %s123
    %p135 = scmp.eq.s32.totalorder %s17, 1
    %p136 = por %p134, %p135
    %p138 = scmp.ne.s32.totalorder %s123, %s137
    %p139 = scmp.eq.s32.totalorder %s17, 0
    %p140 = por %p138, %p139
    %s141 = ssub.s32 %s18, %s30
    %s142 = ssub.s32 %s19, %s26
    %s143 = sor.u32 %s141, %s142
    %p144 = scmp.eq.s32.totalorder %s143, 0
    %s146 = sadd.s32 %s145, 1
    %s147 = scalar_select %p144, %s145, %s146
    %p150 = pneg %p144
    %p151 = scmp.eq.s32.totalorder %s11, 1
    %p152 = por %p150, %p151
    %p153 = scmp.ne.s32.totalorder %s145, %s148
    %p154 = scmp.eq.s32.totalorder %s11, 0
    %p155 = por %p153, %p154
    %p156 = scmp.ne.s32.totalorder %s145, %s148
    %p157 = scmp.eq.s32.totalorder %s16, 1
    %p158 = por %p156, %p157
    %p159 = scmp.ne.s32.totalorder %s148, %s149
    %p160 = scmp.eq.s32.totalorder %s16, 0
    %p161 = por %p159, %p160
    %p162 = scmp.ne.s32.totalorder %s148, %s149
    %p163 = scmp.eq.s32.totalorder %s17, 1
    %p164 = por %p162, %p163
    %p166 = scmp.ne.s32.totalorder %s149, %s165
    %p167 = scmp.eq.s32.totalorder %s17, 0
    %p168 = por %p166, %p167
    %p169 = scmp.le.s32.totalorder 1, %s11
    %p170 = scmp.lt.s32.totalorder %s11, 3
    %p171 = pnand %p169, %p170
    %p172 = pneg %p171
    // Predicated region
    $region9: #{_forward_jit.1} parent=5 // pred_check
      _
    $region10: #{_forward_jit.1} parent=5 // pred_check_branch
      %174 = sbr.rel (%p171) target = $region12
    $region11: #{_forward_jit.1} parent=5 // pred_region
      %s175 = ssub.s32 %s11, 1
      // Predicated region
      $region13: #{_forward_jit.1} parent=11 // pred_check
        %p176 = pneg %p70
      $region14: #{_forward_jit.1} parent=11 // pred_check_branch
        %178 = sbr.rel (%p176) target = $region16
      $region15: #{_forward_jit.1} parent=11 // pred_region
        _
      $region16: #{_forward_jit.1} parent=11 // pred_fallthru
        _
      // Predicated region
      $region17: #{_forward_jit.1} parent=11 // pred_check
        %p179 = pneg %p91
      $region18: #{_forward_jit.1} parent=11 // pred_check_branch
        %181 = sbr.rel (%p179) target = $region20
      $region19: #{_forward_jit.1} parent=11 // pred_region
        _
      $region20: #{_forward_jit.1} parent=11 // pred_fallthru
        _
      // Predicated region
      $region21: #{_forward_jit.1} parent=11 // pred_check
        %p182 = pneg %p112
      $region22: #{_forward_jit.1} parent=11 // pred_check_branch
        %184 = sbr.rel (%p182) target = $region24
      $region23: #{_forward_jit.1} parent=11 // pred_region
        _
      $region24: #{_forward_jit.1} parent=11 // pred_fallthru
        _
      // Predicated region
      $region25: #{_forward_jit.1} parent=11 // pred_check
        %p185 = pneg %p133
      $region26: #{_forward_jit.1} parent=11 // pred_check_branch
        %187 = sbr.rel (%p185) target = $region28
      $region27: #{_forward_jit.1} parent=11 // pred_region
        _
      $region28: #{_forward_jit.1} parent=11 // pred_fallthru
        _
    $region12: #{_forward_jit.1} parent=5 // pred_fallthru
      _
    %p188 = scmp.lt.s32.totalorder %s11, 2
    // Predicated region
    $region29: #{_forward_jit.1} parent=5 // pred_check
      %p189 = pneg %p188
    $region30: #{_forward_jit.1} parent=5 // pred_check_branch
      %191 = sbr.rel (%p189) target = $region32
    $region31: #{_forward_jit.1} parent=5 // pred_region
      // Predicated region
      $region33: #{_forward_jit.1} parent=31 // pred_check
        %p192 = pneg %p43
      $region34: #{_forward_jit.1} parent=31 // pred_check_branch
        %194 = sbr.rel (%p192) target = $region36
      $region35: #{_forward_jit.1} parent=31 // pred_region
        %p195 = scmp.lt.s32.totalorder %s18, 1
        %s196 = scalar_select %p195, %s18, 1
        %s197 = smul.addr %s196, 60
        %s198 = smul.addr %s197, 4
        %s199 = scalar_lea.vmem %s0, %s198
      $region36: #{_forward_jit.1} parent=31 // pred_fallthru
        _
    $region32: #{_forward_jit.1} parent=5 // pred_fallthru
      _
    %p200 = scmp.le.s32.totalorder 1, %s11
    %p201 = scmp.lt.s32.totalorder %s11, 3
    %p202 = pnand %p200, %p201
    %p203 = pneg %p202
    // Predicated region
    $region37: #{_forward_jit.1} parent=5 // pred_check
      _
    $region38: #{_forward_jit.1} parent=5 // pred_check_branch
      %205 = sbr.rel (%p202) target = $region40
    $region39: #{_forward_jit.1} parent=5 // pred_region
      %s206 = ssub.s32 %s11, 1
      %p207 = scmp.lt.s32.totalorder %s20, 1
      %s208 = scalar_select %p207, %s20, 1
      %s209 = smul.addr %s208, 60
      %s210 = smul.addr %s209, 4
      %s211 = scalar_lea.vmem %s0, %s210
      %p212 = pneg %p49
      %p213 = pneg %p46
      %p214 = pneg %p70
      %p215 = pneg %p67
      %p216 = pneg %p91
      %p217 = pneg %p88
      %p218 = pneg %p112
      %p219 = pneg %p109
      %p220 = pneg %p133
      %p221 = pneg %p130
      %p222 = pneg %p161
      %p223 = pneg %p158
      %s224 = smul.u32 16, %s21
      %p225 = scmp.lt.s32.totalorder %s20, 1
      %s226 = scalar_select %p225, %s20, 1
      %p227 = scmp.lt.s32.totalorder %s224, 15
      %s228 = scalar_select %p227, %s224, 15
      %s229 = smul.addr %s228, 2
      %s230 = smul.addr %s226, 32
      %s231 = sadd.s32 %s229, %s230
      %s232 = smul.addr %s231, 8
      %s233 = scalar_lea.vmem %s5, %s232
      %p234 = scmp.lt.s32.totalorder %s20, 1
      %s235 = scalar_select %p234, %s20, 1
      %s236 = smul.addr %s235, 60
      %s237 = smul.addr %s236, 4
      %s238 = scalar_lea.vmem %s0, %s237
      %s239 = smul.u32 16, %s21
      %p240 = scmp.lt.s32.totalorder %s20, 1
      %s241 = scalar_select %p240, %s20, 1
      %p242 = scmp.lt.s32.totalorder %s239, 15
      %s243 = scalar_select %p242, %s239, 15
      %s244 = smul.addr %s243, 2
      %s245 = smul.addr %s241, 32
      %s246 = sadd.s32 %s244, %s245
      %s247 = smul.addr %s246, 8
      %s248 = scalar_lea.vmem %s5, %s247
      %s249 = smul.u32 16, %s21
      %s251 = smul.u32 %s21, 16
      %s252 = sadd.s32 %s251, 1
      %s253 = smul.u32 %s252, 3
      %s254 = smul.addr %s253, 4
      %s255 = scalar_lea.vmem %s238, %s254
      %v256 = vld [vmem:[%s255] sm:$0xf]
      %v257 = vld [vmem:[%s255 + $0x4] sm:$0xf]
      %v258 = vld [vmem:[%s255 + $0x8] sm:$0x1]
      %v259 = vld [vmem:[%s255 + $0xc] sm:$0xf]
      %v260 = vld [vmem:[%s255 + $0x10] sm:$0xf]
      %v261 = vld [vmem:[%s255 + $0x14] sm:$0x1]
      %v262 = vld [vmem:[%s255 + $0x18] sm:$0xf]
      %v263 = vld [vmem:[%s255 + $0x1c] sm:$0xf]
      %v264 = vld [vmem:[%s255 + $0x20] sm:$0x1]
      %v265 = vld [vmem:[%s255 + $0x24] sm:$0xf]
      %v266 = vld [vmem:[%s255 + $0x28] sm:$0xf]
      %v267 = vld [vmem:[%s255 + $0x2c] sm:$0x1]
      %v268 = vld [vmem:[%s255 + $0x30] sm:$0xf]
      %v269 = vld [vmem:[%s255 + $0x34] sm:$0xf]
      %v270 = vld [vmem:[%s255 + $0x38] sm:$0x1]
      %v271 = vld [vmem:[%s255 + $0x3c] sm:$0xf]
      %v272 = vld [vmem:[%s255 + $0x40] sm:$0xf]
      %v273 = vld [vmem:[%s255 + $0x44] sm:$0x1]
      %v274 = vld [vmem:[%s255 + $0x48] sm:$0xf]
      %v275 = vld [vmem:[%s255 + $0x4c] sm:$0xf]
      %v276 = vld [vmem:[%s255 + $0x50] sm:$0x1]
      %v277 = vld [vmem:[%s255 + $0x54] sm:$0xf]
      %v278 = vld [vmem:[%s255 + $0x58] sm:$0xf]
      %v279 = vld [vmem:[%s255 + $0x5c] sm:$0x1]
      %v280 = vld [vmem:[%s255 + $0x60] sm:$0xf]
      %v281 = vld [vmem:[%s255 + $0x64] sm:$0xf]
      %v282 = vld [vmem:[%s255 + $0x68] sm:$0x1]
      %v283 = vld [vmem:[%s255 + $0x6c] sm:$0xf]
      %v284 = vld [vmem:[%s255 + $0x70] sm:$0xf]
      %v285 = vld [vmem:[%s255 + $0x74] sm:$0x1]
      %v286 = vld [vmem:[%s255 + $0x78] sm:$0xf]
      %v287 = vld [vmem:[%s255 + $0x7c] sm:$0xf]
      %v288 = vld [vmem:[%s255 + $0x80] sm:$0x1]
      %v289 = vld [vmem:[%s255 + $0x84] sm:$0xf]
      %v290 = vld [vmem:[%s255 + $0x88] sm:$0xf]
      %v291 = vld [vmem:[%s255 + $0x8c] sm:$0x1]
      %v292 = vld [vmem:[%s255 + $0x90] sm:$0xf]
      %v293 = vld [vmem:[%s255 + $0x94] sm:$0xf]
      %v294 = vld [vmem:[%s255 + $0x98] sm:$0x1]
      %v295 = vld [vmem:[%s255 + $0x9c] sm:$0xf]
      %v296 = vld [vmem:[%s255 + $0xa0] sm:$0xf]
      %v297 = vld [vmem:[%s255 + $0xa4] sm:$0x1]
      %v298 = vld [vmem:[%s255 + $0xa8] sm:$0xf]
      %v299 = vld [vmem:[%s255 + $0xac] sm:$0xf]
      %v300 = vld [vmem:[%s255 + $0xb0] sm:$0x1]
      %v301 = vld [vmem:[%s255 + $0xb4] sm:$0xf]
      %v302 = vld [vmem:[%s255 + $0xb8] sm:$0xf]
      %v303 = vld [vmem:[%s255 + $0xbc] sm:$0x1]
      %v304 = vunpack.c.l.bf16 %v256
      %v305 = vunpack.c.l.bf16 %v257
      %v306 = vunpack.c.l.bf16 %v258
      %v307 = vunpack.c.l.bf16 %v259
      %v308 = vunpack.c.l.bf16 %v260
      %v309 = vunpack.c.l.bf16 %v261
      %v310 = vunpack.c.l.bf16 %v262
      %v311 = vunpack.c.l.bf16 %v263
      %v312 = vunpack.c.l.bf16 %v264
      %v313 = vunpack.c.l.bf16 %v265
      %v314 = vunpack.c.l.bf16 %v266
      %v315 = vunpack.c.l.bf16 %v267
      %v316 = vunpack.c.l.bf16 %v268
      %v317 = vunpack.c.l.bf16 %v269
      %v318 = vunpack.c.l.bf16 %v270
      %v319 = vunpack.c.l.bf16 %v271
      %v320 = vunpack.c.l.bf16 %v272
      %v321 = vunpack.c.l.bf16 %v273
      %v322 = vunpack.c.l.bf16 %v274
      %v323 = vunpack.c.l.bf16 %v275
      %v324 = vunpack.c.l.bf16 %v276
      %v325 = vunpack.c.l.bf16 %v277
      %v326 = vunpack.c.l.bf16 %v278
      %v327 = vunpack.c.l.bf16 %v279
      %v328 = vunpack.c.l.bf16 %v280
      %v329 = vunpack.c.l.bf16 %v281
      %v330 = vunpack.c.l.bf16 %v282
      %v331 = vunpack.c.l.bf16 %v283
      %v332 = vunpack.c.l.bf16 %v284
      %v333 = vunpack.c.l.bf16 %v285
      %v334 = vunpack.c.l.bf16 %v286
      %v335 = vunpack.c.l.bf16 %v287
      %v336 = vunpack.c.l.bf16 %v288
      %v337 = vunpack.c.l.bf16 %v289
      %v338 = vunpack.c.l.bf16 %v290
      %v339 = vunpack.c.l.bf16 %v291
      %v340 = vunpack.c.l.bf16 %v292
      %v341 = vunpack.c.l.bf16 %v293
      %v342 = vunpack.c.l.bf16 %v294
      %v343 = vunpack.c.l.bf16 %v295
      %v344 = vunpack.c.l.bf16 %v296
      %v345 = vunpack.c.l.bf16 %v297
      %v346 = vunpack.c.l.bf16 %v298
      %v347 = vunpack.c.l.bf16 %v299
      %v348 = vunpack.c.l.bf16 %v300
      %v349 = vunpack.c.l.bf16 %v301
      %v350 = vunpack.c.l.bf16 %v302
      %v351 = vunpack.c.l.bf16 %v303
      %vm400 = vcmask 1046528
      %v401 = vrot.slane %v304, 1
      %v402 = vrot.slane %v305, 1
      %v403 = vsel %vm400, %v401, %v402
      %v404 = vrot.slane %v306, 1
      %v405 = vsel %vm400, %v402, %v404
      %v406 = vrot.slane %v307, 1
      %v407 = vrot.slane %v308, 1
      %v408 = vsel %vm400, %v406, %v407
      %v409 = vrot.slane %v309, 1
      %v410 = vsel %vm400, %v407, %v409
      %v411 = vrot.slane %v310, 1
      %v412 = vrot.slane %v311, 1
      %v413 = vsel %vm400, %v411, %v412
      %v414 = vrot.slane %v312, 1
      %v415 = vsel %vm400, %v412, %v414
      %v416 = vrot.slane %v313, 1
      %v417 = vrot.slane %v314, 1
      %v418 = vsel %vm400, %v416, %v417
      %v419 = vrot.slane %v315, 1
      %v420 = vsel %vm400, %v417, %v419
      %v421 = vrot.slane %v316, 1
      %v422 = vrot.slane %v317, 1
      %v423 = vsel %vm400, %v421, %v422
      %v424 = vrot.slane %v318, 1
      %v425 = vsel %vm400, %v422, %v424
      %v426 = vrot.slane %v319, 1
      %v427 = vrot.slane %v320, 1
      %v428 = vsel %vm400, %v426, %v427
      %v429 = vrot.slane %v321, 1
      %v430 = vsel %vm400, %v427, %v429
      %v431 = vrot.slane %v322, 1
      %v432 = vrot.slane %v323, 1
      %v433 = vsel %vm400, %v431, %v432
      %v434 = vrot.slane %v324, 1
      %v435 = vsel %vm400, %v432, %v434
      %v436 = vrot.slane %v325, 1
      %v437 = vrot.slane %v326, 1
      %v438 = vsel %vm400, %v436, %v437
      %v439 = vrot.slane %v327, 1
      %v440 = vsel %vm400, %v437, %v439
      %v441 = vrot.slane %v328, 1
      %v442 = vrot.slane %v329, 1
      %v443 = vsel %vm400, %v441, %v442
      %v444 = vrot.slane %v330, 1
      %v445 = vsel %vm400, %v442, %v444
      %v446 = vrot.slane %v331, 1
      %v447 = vrot.slane %v332, 1
      %v448 = vsel %vm400, %v446, %v447
      %v449 = vrot.slane %v333, 1
      %v450 = vsel %vm400, %v447, %v449
      %v451 = vrot.slane %v334, 1
      %v452 = vrot.slane %v335, 1
      %v453 = vsel %vm400, %v451, %v452
      %v454 = vrot.slane %v336, 1
      %v455 = vsel %vm400, %v452, %v454
      %v456 = vrot.slane %v337, 1
      %v457 = vrot.slane %v338, 1
      %v458 = vsel %vm400, %v456, %v457
      %v459 = vrot.slane %v339, 1
      %v460 = vsel %vm400, %v457, %v459
      %v461 = vrot.slane %v340, 1
      %v462 = vrot.slane %v341, 1
      %v463 = vsel %vm400, %v461, %v462
      %v464 = vrot.slane %v342, 1
      %v465 = vsel %vm400, %v462, %v464
      %v466 = vrot.slane %v343, 1
      %v467 = vrot.slane %v344, 1
      %v468 = vsel %vm400, %v466, %v467
      %v469 = vrot.slane %v345, 1
      %v470 = vsel %vm400, %v467, %v469
      %v471 = vrot.slane %v346, 1
      %v472 = vrot.slane %v347, 1
      %v473 = vsel %vm400, %v471, %v472
      %v474 = vrot.slane %v348, 1
      %v475 = vsel %vm400, %v472, %v474
      %v476 = vrot.slane %v349, 1
      %v477 = vrot.slane %v350, 1
      %v478 = vsel %vm400, %v476, %v477
      %v479 = vrot.slane %v351, 1
      %v480 = vsel %vm400, %v477, %v479
      %v513 = vld [vmem:[%s255] sm:$0xe]
      %v514 = vld [vmem:[%s255 + $0xc] sm:$0xe]
      %v515 = vld [vmem:[%s255 + $0x18] sm:$0xe]
      %v516 = vld [vmem:[%s255 + $0x24] sm:$0xe]
      %v517 = vld [vmem:[%s255 + $0x30] sm:$0xe]
      %v518 = vld [vmem:[%s255 + $0x3c] sm:$0xe]
      %v519 = vld [vmem:[%s255 + $0x48] sm:$0xe]
      %v520 = vld [vmem:[%s255 + $0x54] sm:$0xe]
      %v521 = vld [vmem:[%s255 + $0x60] sm:$0xe]
      %v522 = vld [vmem:[%s255 + $0x6c] sm:$0xe]
      %v523 = vld [vmem:[%s255 + $0x78] sm:$0xe]
      %v524 = vld [vmem:[%s255 + $0x84] sm:$0xe]
      %v525 = vld [vmem:[%s255 + $0x90] sm:$0xe]
      %v526 = vld [vmem:[%s255 + $0x9c] sm:$0xe]
      %v527 = vld [vmem:[%s255 + $0xa8] sm:$0xe]
      %v528 = vld [vmem:[%s255 + $0xb4] sm:$0xe]
      %v529 = vunpack.c.l.bf16 %v513
      %v530 = vunpack.c.l.bf16 %v514
      %v531 = vunpack.c.l.bf16 %v515
      %v532 = vunpack.c.l.bf16 %v516
      %v533 = vunpack.c.l.bf16 %v517
      %v534 = vunpack.c.l.bf16 %v518
      %v535 = vunpack.c.l.bf16 %v519
      %v536 = vunpack.c.l.bf16 %v520
      %v537 = vunpack.c.l.bf16 %v521
      %v538 = vunpack.c.l.bf16 %v522
      %v539 = vunpack.c.l.bf16 %v523
      %v540 = vunpack.c.l.bf16 %v524
      %v541 = vunpack.c.l.bf16 %v525
      %v542 = vunpack.c.l.bf16 %v526
      %v543 = vunpack.c.l.bf16 %v527
      %v544 = vunpack.c.l.bf16 %v528
      %vm561 = vcmask 1045504
      %v562 = vrot.slane %v529, 2
      %v563 = vrot.slane %v305, 2
      %v564 = vsel %vm561, %v562, %v563
      %v565 = vrot.slane %v306, 2
      %v566 = vsel %vm561, %v563, %v565
      %v567 = vrot.slane %v530, 2
      %v568 = vrot.slane %v308, 2
      %v569 = vsel %vm561, %v567, %v568
      %v570 = vrot.slane %v309, 2
      %v571 = vsel %vm561, %v568, %v570
      %v572 = vrot.slane %v531, 2
      %v573 = vrot.slane %v311, 2
      %v574 = vsel %vm561, %v572, %v573
      %v575 = vrot.slane %v312, 2
      %v576 = vsel %vm561, %v573, %v575
      %v577 = vrot.slane %v532, 2
      %v578 = vrot.slane %v314, 2
      %v579 = vsel %vm561, %v577, %v578
      %v580 = vrot.slane %v315, 2
      %v581 = vsel %vm561, %v578, %v580
      %v582 = vrot.slane %v533, 2
      %v583 = vrot.slane %v317, 2
      %v584 = vsel %vm561, %v582, %v583
      %v585 = vrot.slane %v318, 2
      %v586 = vsel %vm561, %v583, %v585
      %v587 = vrot.slane %v534, 2
      %v588 = vrot.slane %v320, 2
      %v589 = vsel %vm561, %v587, %v588
      %v590 = vrot.slane %v321, 2
      %v591 = vsel %vm561, %v588, %v590
      %v592 = vrot.slane %v535, 2
      %v593 = vrot.slane %v323, 2
      %v594 = vsel %vm561, %v592, %v593
      %v595 = vrot.slane %v324, 2
      %v596 = vsel %vm561, %v593, %v595
      %v597 = vrot.slane %v536, 2
      %v598 = vrot.slane %v326, 2
      %v599 = vsel %vm561, %v597, %v598
      %v600 = vrot.slane %v327, 2
      %v601 = vsel %vm561, %v598, %v600
      %v602 = vrot.slane %v537, 2
      %v603 = vrot.slane %v329, 2
      %v604 = vsel %vm561, %v602, %v603
      %v605 = vrot.slane %v330, 2
      %v606 = vsel %vm561, %v603, %v605
      %v607 = vrot.slane %v538, 2
      %v608 = vrot.slane %v332, 2
      %v609 = vsel %vm561, %v607, %v608
      %v610 = vrot.slane %v333, 2
      %v611 = vsel %vm561, %v608, %v610
      %v612 = vrot.slane %v539, 2
      %v613 = vrot.slane %v335, 2
      %v614 = vsel %vm561, %v612, %v613
      %v615 = vrot.slane %v336, 2
      %v616 = vsel %vm561, %v613, %v615
      %v617 = vrot.slane %v540, 2
      %v618 = vrot.slane %v338, 2
      %v619 = vsel %vm561, %v617, %v618
      %v620 = vrot.slane %v339, 2
      %v621 = vsel %vm561, %v618, %v620
      %v622 = vrot.slane %v541, 2
      %v623 = vrot.slane %v341, 2
      %v624 = vsel %vm561, %v622, %v623
      %v625 = vrot.slane %v342, 2
      %v626 = vsel %vm561, %v623, %v625
      %v627 = vrot.slane %v542, 2
      %v628 = vrot.slane %v344, 2
      %v629 = vsel %vm561, %v627, %v628
      %v630 = vrot.slane %v345, 2
      %v631 = vsel %vm561, %v628, %v630
      %v632 = vrot.slane %v543, 2
      %v633 = vrot.slane %v347, 2
      %v634 = vsel %vm561, %v632, %v633
      %v635 = vrot.slane %v348, 2
      %v636 = vsel %vm561, %v633, %v635
      %v637 = vrot.slane %v544, 2
      %v638 = vrot.slane %v350, 2
      %v639 = vsel %vm561, %v637, %v638
      %v640 = vrot.slane %v351, 2
      %v641 = vsel %vm561, %v638, %v640
      %v642 = vld [vmem:[%s255 + $0x8] sm:$0x3]
      %v643 = vld [vmem:[%s255 + $0x14] sm:$0x3]
      %v644 = vld [vmem:[%s255 + $0x20] sm:$0x3]
      %v645 = vld [vmem:[%s255 + $0x2c] sm:$0x3]
      %v646 = vld [vmem:[%s255 + $0x38] sm:$0x3]
      %v647 = vld [vmem:[%s255 + $0x44] sm:$0x3]
      %v648 = vld [vmem:[%s255 + $0x50] sm:$0x3]
      %v649 = vld [vmem:[%s255 + $0x5c] sm:$0x3]
      %v650 = vld [vmem:[%s255 + $0x68] sm:$0x3]
      %v651 = vld [vmem:[%s255 + $0x74] sm:$0x3]
      %v652 = vld [vmem:[%s255 + $0x80] sm:$0x3]
      %v653 = vld [vmem:[%s255 + $0x8c] sm:$0x3]
      %v654 = vld [vmem:[%s255 + $0x98] sm:$0x3]
      %v655 = vld [vmem:[%s255 + $0xa4] sm:$0x3]
      %v656 = vld [vmem:[%s255 + $0xb0] sm:$0x3]
      %v657 = vld [vmem:[%s255 + $0xbc] sm:$0x3]
      %v658 = vunpack.c.l.bf16 %v642
      %v659 = vunpack.c.l.bf16 %v643
      %v660 = vunpack.c.l.bf16 %v644
      %v661 = vunpack.c.l.bf16 %v645
      %v662 = vunpack.c.l.bf16 %v646
      %v663 = vunpack.c.l.bf16 %v647
      %v664 = vunpack.c.l.bf16 %v648
      %v665 = vunpack.c.l.bf16 %v649
      %v666 = vunpack.c.l.bf16 %v650
      %v667 = vunpack.c.l.bf16 %v651
      %v668 = vunpack.c.l.bf16 %v652
      %v669 = vunpack.c.l.bf16 %v653
      %v670 = vunpack.c.l.bf16 %v654
      %v671 = vunpack.c.l.bf16 %v655
      %v672 = vunpack.c.l.bf16 %v656
      %v673 = vunpack.c.l.bf16 %v657
      %vm690 = vcmask 1044480
      %v691 = vrot.slane %v529, 3
      %v692 = vrot.slane %v305, 3
      %v693 = vsel %vm690, %v691, %v692
      %v694 = vrot.slane %v658, 3
      %v695 = vsel %vm690, %v692, %v694
      %v696 = vrot.slane %v530, 3
      %v697 = vrot.slane %v308, 3
      %v698 = vsel %vm690, %v696, %v697
      %v699 = vrot.slane %v659, 3
      %v700 = vsel %vm690, %v697, %v699
      %v701 = vrot.slane %v531, 3
      %v702 = vrot.slane %v311, 3
      %v703 = vsel %vm690, %v701, %v702
      %v704 = vrot.slane %v660, 3
      %v705 = vsel %vm690, %v702, %v704
      %v706 = vrot.slane %v532, 3
      %v707 = vrot.slane %v314, 3
      %v708 = vsel %vm690, %v706, %v707
      %v709 = vrot.slane %v661, 3
      %v710 = vsel %vm690, %v707, %v709
      %v711 = vrot.slane %v533, 3
      %v712 = vrot.slane %v317, 3
      %v713 = vsel %vm690, %v711, %v712
      %v714 = vrot.slane %v662, 3
      %v715 = vsel %vm690, %v712, %v714
      %v716 = vrot.slane %v534, 3
      %v717 = vrot.slane %v320, 3
      %v718 = vsel %vm690, %v716, %v717
      %v719 = vrot.slane %v663, 3
      %v720 = vsel %vm690, %v717, %v719
      %v721 = vrot.slane %v535, 3
      %v722 = vrot.slane %v323, 3
      %v723 = vsel %vm690, %v721, %v722
      %v724 = vrot.slane %v664, 3
      %v725 = vsel %vm690, %v722, %v724
      %v726 = vrot.slane %v536, 3
      %v727 = vrot.slane %v326, 3
      %v728 = vsel %vm690, %v726, %v727
      %v729 = vrot.slane %v665, 3
      %v730 = vsel %vm690, %v727, %v729
      %v731 = vrot.slane %v537, 3
      %v732 = vrot.slane %v329, 3
      %v733 = vsel %vm690, %v731, %v732
      %v734 = vrot.slane %v666, 3
      %v735 = vsel %vm690, %v732, %v734
      %v736 = vrot.slane %v538, 3
      %v737 = vrot.slane %v332, 3
      %v738 = vsel %vm690, %v736, %v737
      %v739 = vrot.slane %v667, 3
      %v740 = vsel %vm690, %v737, %v739
      %v741 = vrot.slane %v539, 3
      %v742 = vrot.slane %v335, 3
      %v743 = vsel %vm690, %v741, %v742
      %v744 = vrot.slane %v668, 3
      %v745 = vsel %vm690, %v742, %v744
      %v746 = vrot.slane %v540, 3
      %v747 = vrot.slane %v338, 3
      %v748 = vsel %vm690, %v746, %v747
      %v749 = vrot.slane %v669, 3
      %v750 = vsel %vm690, %v747, %v749
      %v751 = vrot.slane %v541, 3
      %v752 = vrot.slane %v341, 3
      %v753 = vsel %vm690, %v751, %v752
      %v754 = vrot.slane %v670, 3
      %v755 = vsel %vm690, %v752, %v754
      %v756 = vrot.slane %v542, 3
      %v757 = vrot.slane %v344, 3
      %v758 = vsel %vm690, %v756, %v757
      %v759 = vrot.slane %v671, 3
      %v760 = vsel %vm690, %v757, %v759
      %v761 = vrot.slane %v543, 3
      %v762 = vrot.slane %v347, 3
      %v763 = vsel %vm690, %v761, %v762
      %v764 = vrot.slane %v672, 3
      %v765 = vsel %vm690, %v762, %v764
      %v766 = vrot.slane %v544, 3
      %v767 = vrot.slane %v350, 3
      %v768 = vsel %vm690, %v766, %v767
      %v769 = vrot.slane %v673, 3
      %v770 = vsel %vm690, %v767, %v769
      %s771 = sadd.s32 %s251, 2
      %s772 = smul.u32 %s771, 3
      %s773 = smul.addr %s772, 4
      %s774 = scalar_lea.vmem %s238, %s773
      %v775 = vld [vmem:[%s774] sm:$0xf]
      %v776 = vld [vmem:[%s774 + $0x4] sm:$0xf]
      %v777 = vld [vmem:[%s774 + $0x8] sm:$0x1]
      %v778 = vld [vmem:[%s774 + $0xc] sm:$0xf]
      %v779 = vld [vmem:[%s774 + $0x10] sm:$0xf]
      %v780 = vld [vmem:[%s774 + $0x14] sm:$0x1]
      %v781 = vld [vmem:[%s774 + $0x18] sm:$0xf]
      %v782 = vld [vmem:[%s774 + $0x1c] sm:$0xf]
      %v783 = vld [vmem:[%s774 + $0x20] sm:$0x1]
      %v784 = vld [vmem:[%s774 + $0x24] sm:$0xf]
      %v785 = vld [vmem:[%s774 + $0x28] sm:$0xf]
      %v786 = vld [vmem:[%s774 + $0x2c] sm:$0x1]
      %v787 = vld [vmem:[%s774 + $0x30] sm:$0xf]
      %v788 = vld [vmem:[%s774 + $0x34] sm:$0xf]
      %v789 = vld [vmem:[%s774 + $0x38] sm:$0x1]
      %v790 = vld [vmem:[%s774 + $0x3c] sm:$0xf]
      %v791 = vld [vmem:[%s774 + $0x40] sm:$0xf]
      %v792 = vld [vmem:[%s774 + $0x44] sm:$0x1]
      %v793 = vld [vmem:[%s774 + $0x48] sm:$0xf]
      %v794 = vld [vmem:[%s774 + $0x4c] sm:$0xf]
      %v795 = vld [vmem:[%s774 + $0x50] sm:$0x1]
      %v796 = vld [vmem:[%s774 + $0x54] sm:$0xf]
      %v797 = vld [vmem:[%s774 + $0x58] sm:$0xf]
      %v798 = vld [vmem:[%s774 + $0x5c] sm:$0x1]
      %v799 = vld [vmem:[%s774 + $0x60] sm:$0xf]
      %v800 = vld [vmem:[%s774 + $0x64] sm:$0xf]
      %v801 = vld [vmem:[%s774 + $0x68] sm:$0x1]
      %v802 = vld [vmem:[%s774 + $0x6c] sm:$0xf]
      %v803 = vld [vmem:[%s774 + $0x70] sm:$0xf]
      %v804 = vld [vmem:[%s774 + $0x74] sm:$0x1]
      %v805 = vld [vmem:[%s774 + $0x78] sm:$0xf]
      %v806 = vld [vmem:[%s774 + $0x7c] sm:$0xf]
      %v807 = vld [vmem:[%s774 + $0x80] sm:$0x1]
      %v808 = vld [vmem:[%s774 + $0x84] sm:$0xf]
      %v809 = vld [vmem:[%s774 + $0x88] sm:$0xf]
      %v810 = vld [vmem:[%s774 + $0x8c] sm:$0x1]
      %v811 = vld [vmem:[%s774 + $0x90] sm:$0xf]
      %v812 = vld [vmem:[%s774 + $0x94] sm:$0xf]
      %v813 = vld [vmem:[%s774 + $0x98] sm:$0x1]
      %v814 = vld [vmem:[%s774 + $0x9c] sm:$0xf]
      %v815 = vld [vmem:[%s774 + $0xa0] sm:$0xf]
      %v816 = vld [vmem:[%s774 + $0xa4] sm:$0x1]
      %v817 = vld [vmem:[%s774 + $0xa8] sm:$0xf]
      %v818 = vld [vmem:[%s774 + $0xac] sm:$0xf]
      %v819 = vld [vmem:[%s774 + $0xb0] sm:$0x1]
      %v820 = vld [vmem:[%s774 + $0xb4] sm:$0xf]
      %v821 = vld [vmem:[%s774 + $0xb8] sm:$0xf]
      %v822 = vld [vmem:[%s774 + $0xbc] sm:$0x1]
      %v823 = vunpack.c.l.bf16 %v775
      %v824 = vunpack.c.l.bf16 %v776
      %v825 = vunpack.c.l.bf16 %v777
      %v826 = vunpack.c.l.bf16 %v778
      %v827 = vunpack.c.l.bf16 %v779
      %v828 = vunpack.c.l.bf16 %v780
      %v829 = vunpack.c.l.bf16 %v781
      %v830 = vunpack.c.l.bf16 %v782
      %v831 = vunpack.c.l.bf16 %v783
      %v832 = vunpack.c.l.bf16 %v784
      %v833 = vunpack.c.l.bf16 %v785
      %v834 = vunpack.c.l.bf16 %v786
      %v835 = vunpack.c.l.bf16 %v787
      %v836 = vunpack.c.l.bf16 %v788
      %v837 = vunpack.c.l.bf16 %v789
      %v838 = vunpack.c.l.bf16 %v790
      %v839 = vunpack.c.l.bf16 %v791
      %v840 = vunpack.c.l.bf16 %v792
      %v841 = vunpack.c.l.bf16 %v793
      %v842 = vunpack.c.l.bf16 %v794
      %v843 = vunpack.c.l.bf16 %v795
      %v844 = vunpack.c.l.bf16 %v796
      %v845 = vunpack.c.l.bf16 %v797
      %v846 = vunpack.c.l.bf16 %v798
      %v847 = vunpack.c.l.bf16 %v799
      %v848 = vunpack.c.l.bf16 %v800
      %v849 = vunpack.c.l.bf16 %v801
      %v850 = vunpack.c.l.bf16 %v802
      %v851 = vunpack.c.l.bf16 %v803
      %v852 = vunpack.c.l.bf16 %v804
      %v853 = vunpack.c.l.bf16 %v805
      %v854 = vunpack.c.l.bf16 %v806
      %v855 = vunpack.c.l.bf16 %v807
      %v856 = vunpack.c.l.bf16 %v808
      %v857 = vunpack.c.l.bf16 %v809
      %v858 = vunpack.c.l.bf16 %v810
      %v859 = vunpack.c.l.bf16 %v811
      %v860 = vunpack.c.l.bf16 %v812
      %v861 = vunpack.c.l.bf16 %v813
      %v862 = vunpack.c.l.bf16 %v814
      %v863 = vunpack.c.l.bf16 %v815
      %v864 = vunpack.c.l.bf16 %v816
      %v865 = vunpack.c.l.bf16 %v817
      %v866 = vunpack.c.l.bf16 %v818
      %v867 = vunpack.c.l.bf16 %v819
      %v868 = vunpack.c.l.bf16 %v820
      %v869 = vunpack.c.l.bf16 %v821
      %v870 = vunpack.c.l.bf16 %v822
      %v919 = vrot.slane %v823, 1
      %v920 = vrot.slane %v824, 1
      %v921 = vsel %vm400, %v919, %v920
      %v922 = vrot.slane %v825, 1
      %v923 = vsel %vm400, %v920, %v922
      %v924 = vrot.slane %v826, 1
      %v925 = vrot.slane %v827, 1
      %v926 = vsel %vm400, %v924, %v925
      %v927 = vrot.slane %v828, 1
      %v928 = vsel %vm400, %v925, %v927
      %v929 = vrot.slane %v829, 1
      %v930 = vrot.slane %v830, 1
      %v931 = vsel %vm400, %v929, %v930
      %v932 = vrot.slane %v831, 1
      %v933 = vsel %vm400, %v930, %v932
      %v934 = vrot.slane %v832, 1
      %v935 = vrot.slane %v833, 1
      %v936 = vsel %vm400, %v934, %v935
      %v937 = vrot.slane %v834, 1
      %v938 = vsel %vm400, %v935, %v937
      %v939 = vrot.slane %v835, 1
      %v940 = vrot.slane %v836, 1
      %v941 = vsel %vm400, %v939, %v940
      %v942 = vrot.slane %v837, 1
      %v943 = vsel %vm400, %v940, %v942
      %v944 = vrot.slane %v838, 1
      %v945 = vrot.slane %v839, 1
      %v946 = vsel %vm400, %v944, %v945
      %v947 = vrot.slane %v840, 1
      %v948 = vsel %vm400, %v945, %v947
      %v949 = vrot.slane %v841, 1
      %v950 = vrot.slane %v842, 1
      %v951 = vsel %vm400, %v949, %v950
      %v952 = vrot.slane %v843, 1
      %v953 = vsel %vm400, %v950, %v952
      %v954 = vrot.slane %v844, 1
      %v955 = vrot.slane %v845, 1
      %v956 = vsel %vm400, %v954, %v955
      %v957 = vrot.slane %v846, 1
      %v958 = vsel %vm400, %v955, %v957
      %v959 = vrot.slane %v847, 1
      %v960 = vrot.slane %v848, 1
      %v961 = vsel %vm400, %v959, %v960
      %v962 = vrot.slane %v849, 1
      %v963 = vsel %vm400, %v960, %v962
      %v964 = vrot.slane %v850, 1
      %v965 = vrot.slane %v851, 1
      %v966 = vsel %vm400, %v964, %v965
      %v967 = vrot.slane %v852, 1
      %v968 = vsel %vm400, %v965, %v967
      %v969 = vrot.slane %v853, 1
      %v970 = vrot.slane %v854, 1
      %v971 = vsel %vm400, %v969, %v970
      %v972 = vrot.slane %v855, 1
      %v973 = vsel %vm400, %v970, %v972
      %v974 = vrot.slane %v856, 1
      %v975 = vrot.slane %v857, 1
      %v976 = vsel %vm400, %v974, %v975
      %v977 = vrot.slane %v858, 1
      %v978 = vsel %vm400, %v975, %v977
      %v979 = vrot.slane %v859, 1
      %v980 = vrot.slane %v860, 1
      %v981 = vsel %vm400, %v979, %v980
      %v982 = vrot.slane %v861, 1
      %v983 = vsel %vm400, %v980, %v982
      %v984 = vrot.slane %v862, 1
      %v985 = vrot.slane %v863, 1
      %v986 = vsel %vm400, %v984, %v985
      %v987 = vrot.slane %v864, 1
      %v988 = vsel %vm400, %v985, %v987
      %v989 = vrot.slane %v865, 1
      %v990 = vrot.slane %v866, 1
      %v991 = vsel %vm400, %v989, %v990
      %v992 = vrot.slane %v867, 1
      %v993 = vsel %vm400, %v990, %v992
      %v994 = vrot.slane %v868, 1
      %v995 = vrot.slane %v869, 1
      %v996 = vsel %vm400, %v994, %v995
      %v997 = vrot.slane %v870, 1
      %v998 = vsel %vm400, %v995, %v997
      %v999 = vld [vmem:[%s774] sm:$0xe]
      %v1000 = vld [vmem:[%s774 + $0xc] sm:$0xe]
      %v1001 = vld [vmem:[%s774 + $0x18] sm:$0xe]
      %v1002 = vld [vmem:[%s774 + $0x24] sm:$0xe]
      %v1003 = vld [vmem:[%s774 + $0x30] sm:$0xe]
      %v1004 = vld [vmem:[%s774 + $0x3c] sm:$0xe]
      %v1005 = vld [vmem:[%s774 + $0x48] sm:$0xe]
      %v1006 = vld [vmem:[%s774 + $0x54] sm:$0xe]
      %v1007 = vld [vmem:[%s774 + $0x60] sm:$0xe]
      %v1008 = vld [vmem:[%s774 + $0x6c] sm:$0xe]
      %v1009 = vld [vmem:[%s774 + $0x78] sm:$0xe]
      %v1010 = vld [vmem:[%s774 + $0x84] sm:$0xe]
      %v1011 = vld [vmem:[%s774 + $0x90] sm:$0xe]
      %v1012 = vld [vmem:[%s774 + $0x9c] sm:$0xe]
      %v1013 = vld [vmem:[%s774 + $0xa8] sm:$0xe]
      %v1014 = vld [vmem:[%s774 + $0xb4] sm:$0xe]
      %v1015 = vunpack.c.l.bf16 %v999
      %v1016 = vunpack.c.l.bf16 %v1000
      %v1017 = vunpack.c.l.bf16 %v1001
      %v1018 = vunpack.c.l.bf16 %v1002
      %v1019 = vunpack.c.l.bf16 %v1003
      %v1020 = vunpack.c.l.bf16 %v1004
      %v1021 = vunpack.c.l.bf16 %v1005
      %v1022 = vunpack.c.l.bf16 %v1006
      %v1023 = vunpack.c.l.bf16 %v1007
      %v1024 = vunpack.c.l.bf16 %v1008
      %v1025 = vunpack.c.l.bf16 %v1009
      %v1026 = vunpack.c.l.bf16 %v1010
      %v1027 = vunpack.c.l.bf16 %v1011
      %v1028 = vunpack.c.l.bf16 %v1012
      %v1029 = vunpack.c.l.bf16 %v1013
      %v1030 = vunpack.c.l.bf16 %v1014
      %v1047 = vrot.slane %v1015, 2
      %v1048 = vrot.slane %v824, 2
      %v1049 = vsel %vm561, %v1047, %v1048
      %v1050 = vrot.slane %v825, 2
      %v1051 = vsel %vm561, %v1048, %v1050
      %v1052 = vrot.slane %v1016, 2
      %v1053 = vrot.slane %v827, 2
      %v1054 = vsel %vm561, %v1052, %v1053
      %v1055 = vrot.slane %v828, 2
      %v1056 = vsel %vm561, %v1053, %v1055
      %v1057 = vrot.slane %v1017, 2
      %v1058 = vrot.slane %v830, 2
      %v1059 = vsel %vm561, %v1057, %v1058
      %v1060 = vrot.slane %v831, 2
      %v1061 = vsel %vm561, %v1058, %v1060
      %v1062 = vrot.slane %v1018, 2
      %v1063 = vrot.slane %v833, 2
      %v1064 = vsel %vm561, %v1062, %v1063
      %v1065 = vrot.slane %v834, 2
      %v1066 = vsel %vm561, %v1063, %v1065
      %v1067 = vrot.slane %v1019, 2
      %v1068 = vrot.slane %v836, 2
      %v1069 = vsel %vm561, %v1067, %v1068
      %v1070 = vrot.slane %v837, 2
      %v1071 = vsel %vm561, %v1068, %v1070
      %v1072 = vrot.slane %v1020, 2
      %v1073 = vrot.slane %v839, 2
      %v1074 = vsel %vm561, %v1072, %v1073
      %v1075 = vrot.slane %v840, 2
      %v1076 = vsel %vm561, %v1073, %v1075
      %v1077 = vrot.slane %v1021, 2
      %v1078 = vrot.slane %v842, 2
      %v1079 = vsel %vm561, %v1077, %v1078
      %v1080 = vrot.slane %v843, 2
      %v1081 = vsel %vm561, %v1078, %v1080
      %v1082 = vrot.slane %v1022, 2
      %v1083 = vrot.slane %v845, 2
      %v1084 = vsel %vm561, %v1082, %v1083
      %v1085 = vrot.slane %v846, 2
      %v1086 = vsel %vm561, %v1083, %v1085
      %v1087 = vrot.slane %v1023, 2
      %v1088 = vrot.slane %v848, 2
      %v1089 = vsel %vm561, %v1087, %v1088
      %v1090 = vrot.slane %v849, 2
      %v1091 = vsel %vm561, %v1088, %v1090
      %v1092 = vrot.slane %v1024, 2
      %v1093 = vrot.slane %v851, 2
      %v1094 = vsel %vm561, %v1092, %v1093
      %v1095 = vrot.slane %v852, 2
      %v1096 = vsel %vm561, %v1093, %v1095
      %v1097 = vrot.slane %v1025, 2
      %v1098 = vrot.slane %v854, 2
      %v1099 = vsel %vm561, %v1097, %v1098
      %v1100 = vrot.slane %v855, 2
      %v1101 = vsel %vm561, %v1098, %v1100
      %v1102 = vrot.slane %v1026, 2
      %v1103 = vrot.slane %v857, 2
      %v1104 = vsel %vm561, %v1102, %v1103
      %v1105 = vrot.slane %v858, 2
      %v1106 = vsel %vm561, %v1103, %v1105
      %v1107 = vrot.slane %v1027, 2
      %v1108 = vrot.slane %v860, 2
      %v1109 = vsel %vm561, %v1107, %v1108
      %v1110 = vrot.slane %v861, 2
      %v1111 = vsel %vm561, %v1108, %v1110
      %v1112 = vrot.slane %v1028, 2
      %v1113 = vrot.slane %v863, 2
      %v1114 = vsel %vm561, %v1112, %v1113
      %v1115 = vrot.slane %v864, 2
      %v1116 = vsel %vm561, %v1113, %v1115
      %v1117 = vrot.slane %v1029, 2
      %v1118 = vrot.slane %v866, 2
      %v1119 = vsel %vm561, %v1117, %v1118
      %v1120 = vrot.slane %v867, 2
      %v1121 = vsel %vm561, %v1118, %v1120
      %v1122 = vrot.slane %v1030, 2
      %v1123 = vrot.slane %v869, 2
      %v1124 = vsel %vm561, %v1122, %v1123
      %v1125 = vrot.slane %v870, 2
      %v1126 = vsel %vm561, %v1123, %v1125
      %v1127 = vld [vmem:[%s774 + $0x8] sm:$0x3]
      %v1128 = vld [vmem:[%s774 + $0x14] sm:$0x3]
      %v1129 = vld [vmem:[%s774 + $0x20] sm:$0x3]
      %v1130 = vld [vmem:[%s774 + $0x2c] sm:$0x3]
      %v1131 = vld [vmem:[%s774 + $0x38] sm:$0x3]
      %v1132 = vld [vmem:[%s774 + $0x44] sm:$0x3]
      %v1133 = vld [vmem:[%s774 + $0x50] sm:$0x3]
      %v1134 = vld [vmem:[%s774 + $0x5c] sm:$0x3]
      %v1135 = vld [vmem:[%s774 + $0x68] sm:$0x3]
      %v1136 = vld [vmem:[%s774 + $0x74] sm:$0x3]
      %v1137 = vld [vmem:[%s774 + $0x80] sm:$0x3]
      %v1138 = vld [vmem:[%s774 + $0x8c] sm:$0x3]
      %v1139 = vld [vmem:[%s774 + $0x98] sm:$0x3]
      %v1140 = vld [vmem:[%s774 + $0xa4] sm:$0x3]
      %v1141 = vld [vmem:[%s774 + $0xb0] sm:$0x3]
      %v1142 = vld [vmem:[%s774 + $0xbc] sm:$0x3]
      %v1143 = vunpack.c.l.bf16 %v1127
      %v1144 = vunpack.c.l.bf16 %v1128
      %v1145 = vunpack.c.l.bf16 %v1129
      %v1146 = vunpack.c.l.bf16 %v1130
      %v1147 = vunpack.c.l.bf16 %v1131
      %v1148 = vunpack.c.l.bf16 %v1132
      %v1149 = vunpack.c.l.bf16 %v1133
      %v1150 = vunpack.c.l.bf16 %v1134
      %v1151 = vunpack.c.l.bf16 %v1135
      %v1152 = vunpack.c.l.bf16 %v1136
      %v1153 = vunpack.c.l.bf16 %v1137
      %v1154 = vunpack.c.l.bf16 %v1138
      %v1155 = vunpack.c.l.bf16 %v1139
      %v1156 = vunpack.c.l.bf16 %v1140
      %v1157 = vunpack.c.l.bf16 %v1141
      %v1158 = vunpack.c.l.bf16 %v1142
      %v1175 = vrot.slane %v1015, 3
      %v1176 = vrot.slane %v824, 3
      %v1177 = vsel %vm690, %v1175, %v1176
      %v1178 = vrot.slane %v1143, 3
      %v1179 = vsel %vm690, %v1176, %v1178
      %v1180 = vrot.slane %v1016, 3
      %v1181 = vrot.slane %v827, 3
      %v1182 = vsel %vm690, %v1180, %v1181
      %v1183 = vrot.slane %v1144, 3
      %v1184 = vsel %vm690, %v1181, %v1183
      %v1185 = vrot.slane %v1017, 3
      %v1186 = vrot.slane %v830, 3
      %v1187 = vsel %vm690, %v1185, %v1186
      %v1188 = vrot.slane %v1145, 3
      %v1189 = vsel %vm690, %v1186, %v1188
      %v1190 = vrot.slane %v1018, 3
      %v1191 = vrot.slane %v833, 3
      %v1192 = vsel %vm690, %v1190, %v1191
      %v1193 = vrot.slane %v1146, 3
      %v1194 = vsel %vm690, %v1191, %v1193
      %v1195 = vrot.slane %v1019, 3
      %v1196 = vrot.slane %v836, 3
      %v1197 = vsel %vm690, %v1195, %v1196
      %v1198 = vrot.slane %v1147, 3
      %v1199 = vsel %vm690, %v1196, %v1198
      %v1200 = vrot.slane %v1020, 3
      %v1201 = vrot.slane %v839, 3
      %v1202 = vsel %vm690, %v1200, %v1201
      %v1203 = vrot.slane %v1148, 3
      %v1204 = vsel %vm690, %v1201, %v1203
      %v1205 = vrot.slane %v1021, 3
      %v1206 = vrot.slane %v842, 3
      %v1207 = vsel %vm690, %v1205, %v1206
      %v1208 = vrot.slane %v1149, 3
      %v1209 = vsel %vm690, %v1206, %v1208
      %v1210 = vrot.slane %v1022, 3
      %v1211 = vrot.slane %v845, 3
      %v1212 = vsel %vm690, %v1210, %v1211
      %v1213 = vrot.slane %v1150, 3
      %v1214 = vsel %vm690, %v1211, %v1213
      %v1215 = vrot.slane %v1023, 3
      %v1216 = vrot.slane %v848, 3
      %v1217 = vsel %vm690, %v1215, %v1216
      %v1218 = vrot.slane %v1151, 3
      %v1219 = vsel %vm690, %v1216, %v1218
      %v1220 = vrot.slane %v1024, 3
      %v1221 = vrot.slane %v851, 3
      %v1222 = vsel %vm690, %v1220, %v1221
      %v1223 = vrot.slane %v1152, 3
      %v1224 = vsel %vm690, %v1221, %v1223
      %v1225 = vrot.slane %v1025, 3
      %v1226 = vrot.slane %v854, 3
      %v1227 = vsel %vm690, %v1225, %v1226
      %v1228 = vrot.slane %v1153, 3
      %v1229 = vsel %vm690, %v1226, %v1228
      %v1230 = vrot.slane %v1026, 3
      %v1231 = vrot.slane %v857, 3
      %v1232 = vsel %vm690, %v1230, %v1231
      %v1233 = vrot.slane %v1154, 3
      %v1234 = vsel %vm690, %v1231, %v1233
      %v1235 = vrot.slane %v1027, 3
      %v1236 = vrot.slane %v860, 3
      %v1237 = vsel %vm690, %v1235, %v1236
      %v1238 = vrot.slane %v1155, 3
      %v1239 = vsel %vm690, %v1236, %v1238
      %v1240 = vrot.slane %v1028, 3
      %v1241 = vrot.slane %v863, 3
      %v1242 = vsel %vm690, %v1240, %v1241
      %v1243 = vrot.slane %v1156, 3
      %v1244 = vsel %vm690, %v1241, %v1243
      %v1245 = vrot.slane %v1029, 3
      %v1246 = vrot.slane %v866, 3
      %v1247 = vsel %vm690, %v1245, %v1246
      %v1248 = vrot.slane %v1157, 3
      %v1249 = vsel %vm690, %v1246, %v1248
      %v1250 = vrot.slane %v1030, 3
      %v1251 = vrot.slane %v869, 3
      %v1252 = vsel %vm690, %v1250, %v1251
      %v1253 = vrot.slane %v1158, 3
      %v1254 = vsel %vm690, %v1251, %v1253
      %s1255 = sadd.s32 %s251, 3
      %s1256 = smul.u32 %s1255, 3
      %s1257 = smul.addr %s1256, 4
      %s1258 = scalar_lea.vmem %s238, %s1257
      %v1259 = vld [vmem:[%s1258] sm:$0xf]
      %v1260 = vld [vmem:[%s1258 + $0x4] sm:$0xf]
      %v1261 = vld [vmem:[%s1258 + $0x8] sm:$0x1]
      %v1262 = vld [vmem:[%s1258 + $0xc] sm:$0xf]
      %v1263 = vld [vmem:[%s1258 + $0x10] sm:$0xf]
      %v1264 = vld [vmem:[%s1258 + $0x14] sm:$0x1]
      %v1265 = vld [vmem:[%s1258 + $0x18] sm:$0xf]
      %v1266 = vld [vmem:[%s1258 + $0x1c] sm:$0xf]
      %v1267 = vld [vmem:[%s1258 + $0x20] sm:$0x1]
      %v1268 = vld [vmem:[%s1258 + $0x24] sm:$0xf]
      %v1269 = vld [vmem:[%s1258 + $0x28] sm:$0xf]
      %v1270 = vld [vmem:[%s1258 + $0x2c] sm:$0x1]
      %v1271 = vld [vmem:[%s1258 + $0x30] sm:$0xf]
      %v1272 = vld [vmem:[%s1258 + $0x34] sm:$0xf]
      %v1273 = vld [vmem:[%s1258 + $0x38] sm:$0x1]
      %v1274 = vld [vmem:[%s1258 + $0x3c] sm:$0xf]
      %v1275 = vld [vmem:[%s1258 + $0x40] sm:$0xf]
      %v1276 = vld [vmem:[%s1258 + $0x44] sm:$0x1]
      %v1277 = vld [vmem:[%s1258 + $0x48] sm:$0xf]
      %v1278 = vld [vmem:[%s1258 + $0x4c] sm:$0xf]
      %v1279 = vld [vmem:[%s1258 + $0x50] sm:$0x1]
      %v1280 = vld [vmem:[%s1258 + $0x54] sm:$0xf]
      %v1281 = vld [vmem:[%s1258 + $0x58] sm:$0xf]
      %v1282 = vld [vmem:[%s1258 + $0x5c] sm:$0x1]
      %v1283 = vld [vmem:[%s1258 + $0x60] sm:$0xf]
      %v1284 = vld [vmem:[%s1258 + $0x64] sm:$0xf]
      %v1285 = vld [vmem:[%s1258 + $0x68] sm:$0x1]
      %v1286 = vld [vmem:[%s1258 + $0x6c] sm:$0xf]
      %v1287 = vld [vmem:[%s1258 + $0x70] sm:$0xf]
      %v1288 = vld [vmem:[%s1258 + $0x74] sm:$0x1]
      %v1289 = vld [vmem:[%s1258 + $0x78] sm:$0xf]
      %v1290 = vld [vmem:[%s1258 + $0x7c] sm:$0xf]
      %v1291 = vld [vmem:[%s1258 + $0x80] sm:$0x1]
      %v1292 = vld [vmem:[%s1258 + $0x84] sm:$0xf]
      %v1293 = vld [vmem:[%s1258 + $0x88] sm:$0xf]
      %v1294 = vld [vmem:[%s1258 + $0x8c] sm:$0x1]
      %v1295 = vld [vmem:[%s1258 + $0x90] sm:$0xf]
      %v1296 = vld [vmem:[%s1258 + $0x94] sm:$0xf]
      %v1297 = vld [vmem:[%s1258 + $0x98] sm:$0x1]
      %v1298 = vld [vmem:[%s1258 + $0x9c] sm:$0xf]
      %v1299 = vld [vmem:[%s1258 + $0xa0] sm:$0xf]
      %v1300 = vld [vmem:[%s1258 + $0xa4] sm:$0x1]
      %v1301 = vld [vmem:[%s1258 + $0xa8] sm:$0xf]
      %v1302 = vld [vmem:[%s1258 + $0xac] sm:$0xf]
      %v1303 = vld [vmem:[%s1258 + $0xb0] sm:$0x1]
      %v1304 = vld [vmem:[%s1258 + $0xb4] sm:$0xf]
      %v1305 = vld [vmem:[%s1258 + $0xb8] sm:$0xf]
      %v1306 = vld [vmem:[%s1258 + $0xbc] sm:$0x1]
      %v1307 = vunpack.c.l.bf16 %v1259
      %v1308 = vunpack.c.l.bf16 %v1260
      %v1309 = vunpack.c.l.bf16 %v1261
      %v1310 = vunpack.c.l.bf16 %v1262
      %v1311 = vunpack.c.l.bf16 %v1263
      %v1312 = vunpack.c.l.bf16 %v1264
      %v1313 = vunpack.c.l.bf16 %v1265
      %v1314 = vunpack.c.l.bf16 %v1266
      %v1315 = vunpack.c.l.bf16 %v1267
      %v1316 = vunpack.c.l.bf16 %v1268
      %v1317 = vunpack.c.l.bf16 %v1269
      %v1318 = vunpack.c.l.bf16 %v1270
      %v1319 = vunpack.c.l.bf16 %v1271
      %v1320 = vunpack.c.l.bf16 %v1272
      %v1321 = vunpack.c.l.bf16 %v1273
      %v1322 = vunpack.c.l.bf16 %v1274
      %v1323 = vunpack.c.l.bf16 %v1275
      %v1324 = vunpack.c.l.bf16 %v1276
      %v1325 = vunpack.c.l.bf16 %v1277
      %v1326 = vunpack.c.l.bf16 %v1278
      %v1327 = vunpack.c.l.bf16 %v1279
      %v1328 = vunpack.c.l.bf16 %v1280
      %v1329 = vunpack.c.l.bf16 %v1281
      %v1330 = vunpack.c.l.bf16 %v1282
      %v1331 = vunpack.c.l.bf16 %v1283
      %v1332 = vunpack.c.l.bf16 %v1284
      %v1333 = vunpack.c.l.bf16 %v1285
      %v1334 = vunpack.c.l.bf16 %v1286
      %v1335 = vunpack.c.l.bf16 %v1287
      %v1336 = vunpack.c.l.bf16 %v1288
      %v1337 = vunpack.c.l.bf16 %v1289
      %v1338 = vunpack.c.l.bf16 %v1290
      %v1339 = vunpack.c.l.bf16 %v1291
      %v1340 = vunpack.c.l.bf16 %v1292
      %v1341 = vunpack.c.l.bf16 %v1293
      %v1342 = vunpack.c.l.bf16 %v1294
      %v1343 = vunpack.c.l.bf16 %v1295
      %v1344 = vunpack.c.l.bf16 %v1296
      %v1345 = vunpack.c.l.bf16 %v1297
      %v1346 = vunpack.c.l.bf16 %v1298
      %v1347 = vunpack.c.l.bf16 %v1299
      %v1348 = vunpack.c.l.bf16 %v1300
      %v1349 = vunpack.c.l.bf16 %v1301
      %v1350 = vunpack.c.l.bf16 %v1302
      %v1351 = vunpack.c.l.bf16 %v1303
      %v1352 = vunpack.c.l.bf16 %v1304
      %v1353 = vunpack.c.l.bf16 %v1305
      %v1354 = vunpack.c.l.bf16 %v1306
      %v1403 = vrot.slane %v1307, 1
      %v1404 = vrot.slane %v1308, 1
      %v1405 = vsel %vm400, %v1403, %v1404
      %v1406 = vrot.slane %v1309, 1
      %v1407 = vsel %vm400, %v1404, %v1406
      %v1408 = vrot.slane %v1310, 1
      %v1409 = vrot.slane %v1311, 1
      %v1410 = vsel %vm400, %v1408, %v1409
      %v1411 = vrot.slane %v1312, 1
      %v1412 = vsel %vm400, %v1409, %v1411
      %v1413 = vrot.slane %v1313, 1
      %v1414 = vrot.slane %v1314, 1
      %v1415 = vsel %vm400, %v1413, %v1414
      %v1416 = vrot.slane %v1315, 1
      %v1417 = vsel %vm400, %v1414, %v1416
      %v1418 = vrot.slane %v1316, 1
      %v1419 = vrot.slane %v1317, 1
      %v1420 = vsel %vm400, %v1418, %v1419
      %v1421 = vrot.slane %v1318, 1
      %v1422 = vsel %vm400, %v1419, %v1421
      %v1423 = vrot.slane %v1319, 1
      %v1424 = vrot.slane %v1320, 1
      %v1425 = vsel %vm400, %v1423, %v1424
      %v1426 = vrot.slane %v1321, 1
      %v1427 = vsel %vm400, %v1424, %v1426
      %v1428 = vrot.slane %v1322, 1
      %v1429 = vrot.slane %v1323, 1
      %v1430 = vsel %vm400, %v1428, %v1429
      %v1431 = vrot.slane %v1324, 1
      %v1432 = vsel %vm400, %v1429, %v1431
      %v1433 = vrot.slane %v1325, 1
      %v1434 = vrot.slane %v1326, 1
      %v1435 = vsel %vm400, %v1433, %v1434
      %v1436 = vrot.slane %v1327, 1
      %v1437 = vsel %vm400, %v1434, %v1436
      %v1438 = vrot.slane %v1328, 1
      %v1439 = vrot.slane %v1329, 1
      %v1440 = vsel %vm400, %v1438, %v1439
      %v1441 = vrot.slane %v1330, 1
      %v1442 = vsel %vm400, %v1439, %v1441
      %v1443 = vrot.slane %v1331, 1
      %v1444 = vrot.slane %v1332, 1
      %v1445 = vsel %vm400, %v1443, %v1444
      %v1446 = vrot.slane %v1333, 1
      %v1447 = vsel %vm400, %v1444, %v1446
      %v1448 = vrot.slane %v1334, 1
      %v1449 = vrot.slane %v1335, 1
      %v1450 = vsel %vm400, %v1448, %v1449
      %v1451 = vrot.slane %v1336, 1
      %v1452 = vsel %vm400, %v1449, %v1451
      %v1453 = vrot.slane %v1337, 1
      %v1454 = vrot.slane %v1338, 1
      %v1455 = vsel %vm400, %v1453, %v1454
      %v1456 = vrot.slane %v1339, 1
      %v1457 = vsel %vm400, %v1454, %v1456
      %v1458 = vrot.slane %v1340, 1
      %v1459 = vrot.slane %v1341, 1
      %v1460 = vsel %vm400, %v1458, %v1459
      %v1461 = vrot.slane %v1342, 1
      %v1462 = vsel %vm400, %v1459, %v1461
      %v1463 = vrot.slane %v1343, 1
      %v1464 = vrot.slane %v1344, 1
      %v1465 = vsel %vm400, %v1463, %v1464
      %v1466 = vrot.slane %v1345, 1
      %v1467 = vsel %vm400, %v1464, %v1466
      %v1468 = vrot.slane %v1346, 1
      %v1469 = vrot.slane %v1347, 1
      %v1470 = vsel %vm400, %v1468, %v1469
      %v1471 = vrot.slane %v1348, 1
      %v1472 = vsel %vm400, %v1469, %v1471
      %v1473 = vrot.slane %v1349, 1
      %v1474 = vrot.slane %v1350, 1
      %v1475 = vsel %vm400, %v1473, %v1474
      %v1476 = vrot.slane %v1351, 1
      %v1477 = vsel %vm400, %v1474, %v1476
      %v1478 = vrot.slane %v1352, 1
      %v1479 = vrot.slane %v1353, 1
      %v1480 = vsel %vm400, %v1478, %v1479
      %v1481 = vrot.slane %v1354, 1
      %v1482 = vsel %vm400, %v1479, %v1481
      %v1515 = vld [vmem:[%s1258] sm:$0xe]
      %v1516 = vld [vmem:[%s1258 + $0xc] sm:$0xe]
      %v1517 = vld [vmem:[%s1258 + $0x18] sm:$0xe]
      %v1518 = vld [vmem:[%s1258 + $0x24] sm:$0xe]
      %v1519 = vld [vmem:[%s1258 + $0x30] sm:$0xe]
      %v1520 = vld [vmem:[%s1258 + $0x3c] sm:$0xe]
      %v1521 = vld [vmem:[%s1258 + $0x48] sm:$0xe]
      %v1522 = vld [vmem:[%s1258 + $0x54] sm:$0xe]
      %v1523 = vld [vmem:[%s1258 + $0x60] sm:$0xe]
      %v1524 = vld [vmem:[%s1258 + $0x6c] sm:$0xe]
      %v1525 = vld [vmem:[%s1258 + $0x78] sm:$0xe]
      %v1526 = vld [vmem:[%s1258 + $0x84] sm:$0xe]
      %v1527 = vld [vmem:[%s1258 + $0x90] sm:$0xe]
      %v1528 = vld [vmem:[%s1258 + $0x9c] sm:$0xe]
      %v1529 = vld [vmem:[%s1258 + $0xa8] sm:$0xe]
      %v1530 = vld [vmem:[%s1258 + $0xb4] sm:$0xe]
      %v1531 = vunpack.c.l.bf16 %v1515
      %v1532 = vunpack.c.l.bf16 %v1516
      %v1533 = vunpack.c.l.bf16 %v1517
      %v1534 = vunpack.c.l.bf16 %v1518
      %v1535 = vunpack.c.l.bf16 %v1519
      %v1536 = vunpack.c.l.bf16 %v1520
      %v1537 = vunpack.c.l.bf16 %v1521
      %v1538 = vunpack.c.l.bf16 %v1522
      %v1539 = vunpack.c.l.bf16 %v1523
      %v1540 = vunpack.c.l.bf16 %v1524
      %v1541 = vunpack.c.l.bf16 %v1525
      %v1542 = vunpack.c.l.bf16 %v1526
      %v1543 = vunpack.c.l.bf16 %v1527
      %v1544 = vunpack.c.l.bf16 %v1528
      %v1545 = vunpack.c.l.bf16 %v1529
      %v1546 = vunpack.c.l.bf16 %v1530
      %v1563 = vrot.slane %v1531, 2
      %v1564 = vrot.slane %v1308, 2
      %v1565 = vsel %vm561, %v1563, %v1564
      %v1566 = vrot.slane %v1309, 2
      %v1567 = vsel %vm561, %v1564, %v1566
      %v1568 = vrot.slane %v1532, 2
      %v1569 = vrot.slane %v1311, 2
      %v1570 = vsel %vm561, %v1568, %v1569
      %v1571 = vrot.slane %v1312, 2
      %v1572 = vsel %vm561, %v1569, %v1571
      %v1573 = vrot.slane %v1533, 2
      %v1574 = vrot.slane %v1314, 2
      %v1575 = vsel %vm561, %v1573, %v1574
      %v1576 = vrot.slane %v1315, 2
      %v1577 = vsel %vm561, %v1574, %v1576
      %v1578 = vrot.slane %v1534, 2
      %v1579 = vrot.slane %v1317, 2
      %v1580 = vsel %vm561, %v1578, %v1579
      %v1581 = vrot.slane %v1318, 2
      %v1582 = vsel %vm561, %v1579, %v1581
      %v1583 = vrot.slane %v1535, 2
      %v1584 = vrot.slane %v1320, 2
      %v1585 = vsel %vm561, %v1583, %v1584
      %v1586 = vrot.slane %v1321, 2
      %v1587 = vsel %vm561, %v1584, %v1586
      %v1588 = vrot.slane %v1536, 2
      %v1589 = vrot.slane %v1323, 2
      %v1590 = vsel %vm561, %v1588, %v1589
      %v1591 = vrot.slane %v1324, 2
      %v1592 = vsel %vm561, %v1589, %v1591
      %v1593 = vrot.slane %v1537, 2
      %v1594 = vrot.slane %v1326, 2
      %v1595 = vsel %vm561, %v1593, %v1594
      %v1596 = vrot.slane %v1327, 2
      %v1597 = vsel %vm561, %v1594, %v1596
      %v1598 = vrot.slane %v1538, 2
      %v1599 = vrot.slane %v1329, 2
      %v1600 = vsel %vm561, %v1598, %v1599
      %v1601 = vrot.slane %v1330, 2
      %v1602 = vsel %vm561, %v1599, %v1601
      %v1603 = vrot.slane %v1539, 2
      %v1604 = vrot.slane %v1332, 2
      %v1605 = vsel %vm561, %v1603, %v1604
      %v1606 = vrot.slane %v1333, 2
      %v1607 = vsel %vm561, %v1604, %v1606
      %v1608 = vrot.slane %v1540, 2
      %v1609 = vrot.slane %v1335, 2
      %v1610 = vsel %vm561, %v1608, %v1609
      %v1611 = vrot.slane %v1336, 2
      %v1612 = vsel %vm561, %v1609, %v1611
      %v1613 = vrot.slane %v1541, 2
      %v1614 = vrot.slane %v1338, 2
      %v1615 = vsel %vm561, %v1613, %v1614
      %v1616 = vrot.slane %v1339, 2
      %v1617 = vsel %vm561, %v1614, %v1616
      %v1618 = vrot.slane %v1542, 2
      %v1619 = vrot.slane %v1341, 2
      %v1620 = vsel %vm561, %v1618, %v1619
      %v1621 = vrot.slane %v1342, 2
      %v1622 = vsel %vm561, %v1619, %v1621
      %v1623 = vrot.slane %v1543, 2
      %v1624 = vrot.slane %v1344, 2
      %v1625 = vsel %vm561, %v1623, %v1624
      %v1626 = vrot.slane %v1345, 2
      %v1627 = vsel %vm561, %v1624, %v1626
      %v1628 = vrot.slane %v1544, 2
      %v1629 = vrot.slane %v1347, 2
      %v1630 = vsel %vm561, %v1628, %v1629
      %v1631 = vrot.slane %v1348, 2
      %v1632 = vsel %vm561, %v1629, %v1631
      %v1633 = vrot.slane %v1545, 2
      %v1634 = vrot.slane %v1350, 2
      %v1635 = vsel %vm561, %v1633, %v1634
      %v1636 = vrot.slane %v1351, 2
      %v1637 = vsel %vm561, %v1634, %v1636
      %v1638 = vrot.slane %v1546, 2
      %v1639 = vrot.slane %v1353, 2
      %v1640 = vsel %vm561, %v1638, %v1639
      %v1641 = vrot.slane %v1354, 2
      %v1642 = vsel %vm561, %v1639, %v1641
      %v1643 = vld [vmem:[%s1258 + $0x8] sm:$0x3]
      %v1644 = vld [vmem:[%s1258 + $0x14] sm:$0x3]
      %v1645 = vld [vmem:[%s1258 + $0x20] sm:$0x3]
      %v1646 = vld [vmem:[%s1258 + $0x2c] sm:$0x3]
      %v1647 = vld [vmem:[%s1258 + $0x38] sm:$0x3]
      %v1648 = vld [vmem:[%s1258 + $0x44] sm:$0x3]
      %v1649 = vld [vmem:[%s1258 + $0x50] sm:$0x3]
      %v1650 = vld [vmem:[%s1258 + $0x5c] sm:$0x3]
      %v1651 = vld [vmem:[%s1258 + $0x68] sm:$0x3]
      %v1652 = vld [vmem:[%s1258 + $0x74] sm:$0x3]
      %v1653 = vld [vmem:[%s1258 + $0x80] sm:$0x3]
      %v1654 = vld [vmem:[%s1258 + $0x8c] sm:$0x3]
      %v1655 = vld [vmem:[%s1258 + $0x98] sm:$0x3]
      %v1656 = vld [vmem:[%s1258 + $0xa4] sm:$0x3]
      %v1657 = vld [vmem:[%s1258 + $0xb0] sm:$0x3]
      %v1658 = vld [vmem:[%s1258 + $0xbc] sm:$0x3]
      %v1659 = vunpack.c.l.bf16 %v1643
      %v1660 = vunpack.c.l.bf16 %v1644
      %v1661 = vunpack.c.l.bf16 %v1645
      %v1662 = vunpack.c.l.bf16 %v1646
      %v1663 = vunpack.c.l.bf16 %v1647
      %v1664 = vunpack.c.l.bf16 %v1648
      %v1665 = vunpack.c.l.bf16 %v1649
      %v1666 = vunpack.c.l.bf16 %v1650
      %v1667 = vunpack.c.l.bf16 %v1651
      %v1668 = vunpack.c.l.bf16 %v1652
      %v1669 = vunpack.c.l.bf16 %v1653
      %v1670 = vunpack.c.l.bf16 %v1654
      %v1671 = vunpack.c.l.bf16 %v1655
      %v1672 = vunpack.c.l.bf16 %v1656
      %v1673 = vunpack.c.l.bf16 %v1657
      %v1674 = vunpack.c.l.bf16 %v1658
      %v1691 = vrot.slane %v1531, 3
      %v1692 = vrot.slane %v1308, 3
      %v1693 = vsel %vm690, %v1691, %v1692
      %v1694 = vrot.slane %v1659, 3
      %v1695 = vsel %vm690, %v1692, %v1694
      %v1696 = vrot.slane %v1532, 3
      %v1697 = vrot.slane %v1311, 3
      %v1698 = vsel %vm690, %v1696, %v1697
      %v1699 = vrot.slane %v1660, 3
      %v1700 = vsel %vm690, %v1697, %v1699
      %v1701 = vrot.slane %v1533, 3
      %v1702 = vrot.slane %v1314, 3
      %v1703 = vsel %vm690, %v1701, %v1702
      %v1704 = vrot.slane %v1661, 3
      %v1705 = vsel %vm690, %v1702, %v1704
      %v1706 = vrot.slane %v1534, 3
      %v1707 = vrot.slane %v1317, 3
      %v1708 = vsel %vm690, %v1706, %v1707
      %v1709 = vrot.slane %v1662, 3
      %v1710 = vsel %vm690, %v1707, %v1709
      %v1711 = vrot.slane %v1535, 3
      %v1712 = vrot.slane %v1320, 3
      %v1713 = vsel %vm690, %v1711, %v1712
      %v1714 = vrot.slane %v1663, 3
      %v1715 = vsel %vm690, %v1712, %v1714
      %v1716 = vrot.slane %v1536, 3
      %v1717 = vrot.slane %v1323, 3
      %v1718 = vsel %vm690, %v1716, %v1717
      %v1719 = vrot.slane %v1664, 3
      %v1720 = vsel %vm690, %v1717, %v1719
      %v1721 = vrot.slane %v1537, 3
      %v1722 = vrot.slane %v1326, 3
      %v1723 = vsel %vm690, %v1721, %v1722
      %v1724 = vrot.slane %v1665, 3
      %v1725 = vsel %vm690, %v1722, %v1724
      %v1726 = vrot.slane %v1538, 3
      %v1727 = vrot.slane %v1329, 3
      %v1728 = vsel %vm690, %v1726, %v1727
      %v1729 = vrot.slane %v1666, 3
      %v1730 = vsel %vm690, %v1727, %v1729
      %v1731 = vrot.slane %v1539, 3
      %v1732 = vrot.slane %v1332, 3
      %v1733 = vsel %vm690, %v1731, %v1732
      %v1734 = vrot.slane %v1667, 3
      %v1735 = vsel %vm690, %v1732, %v1734
      %v1736 = vrot.slane %v1540, 3
      %v1737 = vrot.slane %v1335, 3
      %v1738 = vsel %vm690, %v1736, %v1737
      %v1739 = vrot.slane %v1668, 3
      %v1740 = vsel %vm690, %v1737, %v1739
      %v1741 = vrot.slane %v1541, 3
      %v1742 = vrot.slane %v1338, 3
      %v1743 = vsel %vm690, %v1741, %v1742
      %v1744 = vrot.slane %v1669, 3
      %v1745 = vsel %vm690, %v1742, %v1744
      %v1746 = vrot.slane %v1542, 3
      %v1747 = vrot.slane %v1341, 3
      %v1748 = vsel %vm690, %v1746, %v1747
      %v1749 = vrot.slane %v1670, 3
      %v1750 = vsel %vm690, %v1747, %v1749
      %v1751 = vrot.slane %v1543, 3
      %v1752 = vrot.slane %v1344, 3
      %v1753 = vsel %vm690, %v1751, %v1752
      %v1754 = vrot.slane %v1671, 3
      %v1755 = vsel %vm690, %v1752, %v1754
      %v1756 = vrot.slane %v1544, 3
      %v1757 = vrot.slane %v1347, 3
      %v1758 = vsel %vm690, %v1756, %v1757
      %v1759 = vrot.slane %v1672, 3
      %v1760 = vsel %vm690, %v1757, %v1759
      %v1761 = vrot.slane %v1545, 3
      %v1762 = vrot.slane %v1350, 3
      %v1763 = vsel %vm690, %v1761, %v1762
      %v1764 = vrot.slane %v1673, 3
      %v1765 = vsel %vm690, %v1762, %v1764
      %v1766 = vrot.slane %v1546, 3
      %v1767 = vrot.slane %v1353, 3
      %v1768 = vsel %vm690, %v1766, %v1767
      %v1769 = vrot.slane %v1674, 3
      %v1770 = vsel %vm690, %v1767, %v1769
      %1771 = vrot.lane.b32.xlu0 %v564, 4
      %v1772 = vpop.permute.xlu0 %1771
      %1773 = vrot.lane.b32.xlu0 %v566, 4
      %v1774 = vpop.permute.xlu0 %1773
      %1775 = vrot.lane.b32.xlu0 %v569, 4
      %v1776 = vpop.permute.xlu0 %1775
      %1777 = vrot.lane.b32.xlu0 %v571, 4
      %v1778 = vpop.permute.xlu0 %1777
      %1779 = vrot.lane.b32.xlu0 %v574, 4
      %v1780 = vpop.permute.xlu0 %1779
      %1781 = vrot.lane.b32.xlu0 %v576, 4
      %v1782 = vpop.permute.xlu0 %1781
      %1783 = vrot.lane.b32.xlu0 %v579, 4
      %v1784 = vpop.permute.xlu0 %1783
      %1785 = vrot.lane.b32.xlu0 %v581, 4
      %v1786 = vpop.permute.xlu0 %1785
      %1787 = vrot.lane.b32.xlu0 %v584, 4
      %v1788 = vpop.permute.xlu0 %1787
      %1789 = vrot.lane.b32.xlu0 %v586, 4
      %v1790 = vpop.permute.xlu0 %1789
      %1791 = vrot.lane.b32.xlu0 %v589, 4
      %v1792 = vpop.permute.xlu0 %1791
      %1793 = vrot.lane.b32.xlu0 %v591, 4
      %v1794 = vpop.permute.xlu0 %1793
      %1795 = vrot.lane.b32.xlu0 %v594, 4
      %v1796 = vpop.permute.xlu0 %1795
      %1797 = vrot.lane.b32.xlu0 %v596, 4
      %v1798 = vpop.permute.xlu0 %1797
      %1799 = vrot.lane.b32.xlu0 %v599, 4
      %v1800 = vpop.permute.xlu0 %1799
      %1801 = vrot.lane.b32.xlu0 %v601, 4
      %v1802 = vpop.permute.xlu0 %1801
      %1803 = vrot.lane.b32.xlu0 %v604, 4
      %v1804 = vpop.permute.xlu0 %1803
      %1805 = vrot.lane.b32.xlu0 %v606, 4
      %v1806 = vpop.permute.xlu0 %1805
      %1807 = vrot.lane.b32.xlu0 %v609, 4
      %v1808 = vpop.permute.xlu0 %1807
      %1809 = vrot.lane.b32.xlu0 %v611, 4
      %v1810 = vpop.permute.xlu0 %1809
      %1811 = vrot.lane.b32.xlu0 %v614, 4
      %v1812 = vpop.permute.xlu0 %1811
      %1813 = vrot.lane.b32.xlu0 %v616, 4
      %v1814 = vpop.permute.xlu0 %1813
      %1815 = vrot.lane.b32.xlu0 %v619, 4
      %v1816 = vpop.permute.xlu0 %1815
      %1817 = vrot.lane.b32.xlu0 %v621, 4
      %v1818 = vpop.permute.xlu0 %1817
      %1819 = vrot.lane.b32.xlu0 %v624, 4
      %v1820 = vpop.permute.xlu0 %1819
      %1821 = vrot.lane.b32.xlu0 %v626, 4
      %v1822 = vpop.permute.xlu0 %1821
      %1823 = vrot.lane.b32.xlu0 %v629, 4
      %v1824 = vpop.permute.xlu0 %1823
      %1825 = vrot.lane.b32.xlu0 %v631, 4
      %v1826 = vpop.permute.xlu0 %1825
      %1827 = vrot.lane.b32.xlu0 %v634, 4
      %v1828 = vpop.permute.xlu0 %1827
      %1829 = vrot.lane.b32.xlu0 %v636, 4
      %v1830 = vpop.permute.xlu0 %1829
      %1831 = vrot.lane.b32.xlu0 %v639, 4
      %v1832 = vpop.permute.xlu0 %1831
      %1833 = vrot.lane.b32.xlu0 %v641, 4
      %v1834 = vpop.permute.xlu0 %1833
      %1867 = vrot.lane.b32.xlu0 %v693, 8
      %v1868 = vpop.permute.xlu0 %1867
      %1869 = vrot.lane.b32.xlu0 %v695, 8
      %v1870 = vpop.permute.xlu0 %1869
      %1871 = vrot.lane.b32.xlu0 %v698, 8
      %v1872 = vpop.permute.xlu0 %1871
      %1873 = vrot.lane.b32.xlu0 %v700, 8
      %v1874 = vpop.permute.xlu0 %1873
      %1875 = vrot.lane.b32.xlu0 %v703, 8
      %v1876 = vpop.permute.xlu0 %1875
      %1877 = vrot.lane.b32.xlu0 %v705, 8
      %v1878 = vpop.permute.xlu0 %1877
      %1879 = vrot.lane.b32.xlu0 %v708, 8
      %v1880 = vpop.permute.xlu0 %1879
      %1881 = vrot.lane.b32.xlu0 %v710, 8
      %v1882 = vpop.permute.xlu0 %1881
      %1883 = vrot.lane.b32.xlu0 %v713, 8
      %v1884 = vpop.permute.xlu0 %1883
      %1885 = vrot.lane.b32.xlu0 %v715, 8
      %v1886 = vpop.permute.xlu0 %1885
      %1887 = vrot.lane.b32.xlu0 %v718, 8
      %v1888 = vpop.permute.xlu0 %1887
      %1889 = vrot.lane.b32.xlu0 %v720, 8
      %v1890 = vpop.permute.xlu0 %1889
      %1891 = vrot.lane.b32.xlu0 %v723, 8
      %v1892 = vpop.permute.xlu0 %1891
      %1893 = vrot.lane.b32.xlu0 %v725, 8
      %v1894 = vpop.permute.xlu0 %1893
      %1895 = vrot.lane.b32.xlu0 %v728, 8
      %v1896 = vpop.permute.xlu0 %1895
      %1897 = vrot.lane.b32.xlu0 %v730, 8
      %v1898 = vpop.permute.xlu0 %1897
      %1899 = vrot.lane.b32.xlu0 %v733, 8
      %v1900 = vpop.permute.xlu0 %1899
      %1901 = vrot.lane.b32.xlu0 %v735, 8
      %v1902 = vpop.permute.xlu0 %1901
      %1903 = vrot.lane.b32.xlu0 %v738, 8
      %v1904 = vpop.permute.xlu0 %1903
      %1905 = vrot.lane.b32.xlu0 %v740, 8
      %v1906 = vpop.permute.xlu0 %1905
      %1907 = vrot.lane.b32.xlu0 %v743, 8
      %v1908 = vpop.permute.xlu0 %1907
      %1909 = vrot.lane.b32.xlu0 %v745, 8
      %v1910 = vpop.permute.xlu0 %1909
      %1911 = vrot.lane.b32.xlu0 %v748, 8
      %v1912 = vpop.permute.xlu0 %1911
      %1913 = vrot.lane.b32.xlu0 %v750, 8
      %v1914 = vpop.permute.xlu0 %1913
      %1915 = vrot.lane.b32.xlu0 %v753, 8
      %v1916 = vpop.permute.xlu0 %1915
      %1917 = vrot.lane.b32.xlu0 %v755, 8
      %v1918 = vpop.permute.xlu0 %1917
      %1919 = vrot.lane.b32.xlu0 %v758, 8
      %v1920 = vpop.permute.xlu0 %1919
      %1921 = vrot.lane.b32.xlu0 %v760, 8
      %v1922 = vpop.permute.xlu0 %1921
      %1923 = vrot.lane.b32.xlu0 %v763, 8
      %v1924 = vpop.permute.xlu0 %1923
      %1925 = vrot.lane.b32.xlu0 %v765, 8
      %v1926 = vpop.permute.xlu0 %1925
      %1927 = vrot.lane.b32.xlu0 %v768, 8
      %v1928 = vpop.permute.xlu0 %1927
      %1929 = vrot.lane.b32.xlu0 %v770, 8
      %v1930 = vpop.permute.xlu0 %1929
      %1963 = vrot.lane.b32.xlu0 %v921, 12
      %v1964 = vpop.permute.xlu0 %1963
      %1965 = vrot.lane.b32.xlu0 %v923, 12
      %v1966 = vpop.permute.xlu0 %1965
      %1967 = vrot.lane.b32.xlu0 %v926, 12
      %v1968 = vpop.permute.xlu0 %1967
      %1969 = vrot.lane.b32.xlu0 %v928, 12
      %v1970 = vpop.permute.xlu0 %1969
      %1971 = vrot.lane.b32.xlu0 %v931, 12
      %v1972 = vpop.permute.xlu0 %1971
      %1973 = vrot.lane.b32.xlu0 %v933, 12
      %v1974 = vpop.permute.xlu0 %1973
      %1975 = vrot.lane.b32.xlu0 %v936, 12
      %v1976 = vpop.permute.xlu0 %1975
      %1977 = vrot.lane.b32.xlu0 %v938, 12
      %v1978 = vpop.permute.xlu0 %1977
      %1979 = vrot.lane.b32.xlu0 %v941, 12
      %v1980 = vpop.permute.xlu0 %1979
      %1981 = vrot.lane.b32.xlu0 %v943, 12
      %v1982 = vpop.permute.xlu0 %1981
      %1983 = vrot.lane.b32.xlu0 %v946, 12
      %v1984 = vpop.permute.xlu0 %1983
      %1985 = vrot.lane.b32.xlu0 %v948, 12
      %v1986 = vpop.permute.xlu0 %1985
      %1987 = vrot.lane.b32.xlu0 %v951, 12
      %v1988 = vpop.permute.xlu0 %1987
      %1989 = vrot.lane.b32.xlu0 %v953, 12
      %v1990 = vpop.permute.xlu0 %1989
      %1991 = vrot.lane.b32.xlu0 %v956, 12
      %v1992 = vpop.permute.xlu0 %1991
      %1993 = vrot.lane.b32.xlu0 %v958, 12
      %v1994 = vpop.permute.xlu0 %1993
      %1995 = vrot.lane.b32.xlu0 %v961, 12
      %v1996 = vpop.permute.xlu0 %1995
      %1997 = vrot.lane.b32.xlu0 %v963, 12
      %v1998 = vpop.permute.xlu0 %1997
      %1999 = vrot.lane.b32.xlu0 %v966, 12
      %v2000 = vpop.permute.xlu0 %1999
      %2001 = vrot.lane.b32.xlu0 %v968, 12
      %v2002 = vpop.permute.xlu0 %2001
      %2003 = vrot.lane.b32.xlu0 %v971, 12
      %v2004 = vpop.permute.xlu0 %2003
      %2005 = vrot.lane.b32.xlu0 %v973, 12
      %v2006 = vpop.permute.xlu0 %2005
      %2007 = vrot.lane.b32.xlu0 %v976, 12
      %v2008 = vpop.permute.xlu0 %2007
      %2009 = vrot.lane.b32.xlu0 %v978, 12
      %v2010 = vpop.permute.xlu0 %2009
      %2011 = vrot.lane.b32.xlu0 %v981, 12
      %v2012 = vpop.permute.xlu0 %2011
      %2013 = vrot.lane.b32.xlu0 %v983, 12
      %v2014 = vpop.permute.xlu0 %2013
      %2015 = vrot.lane.b32.xlu0 %v986, 12
      %v2016 = vpop.permute.xlu0 %2015
      %2017 = vrot.lane.b32.xlu0 %v988, 12
      %v2018 = vpop.permute.xlu0 %2017
      %2019 = vrot.lane.b32.xlu0 %v991, 12
      %v2020 = vpop.permute.xlu0 %2019
      %2021 = vrot.lane.b32.xlu0 %v993, 12
      %v2022 = vpop.permute.xlu0 %2021
      %2023 = vrot.lane.b32.xlu0 %v996, 12
      %v2024 = vpop.permute.xlu0 %2023
      %2025 = vrot.lane.b32.xlu0 %v998, 12
      %v2026 = vpop.permute.xlu0 %2025
      %2059 = vrot.lane.b32.xlu0 %v1049, 16
      %v2060 = vpop.permute.xlu0 %2059
      %2061 = vrot.lane.b32.xlu0 %v1051, 16
      %v2062 = vpop.permute.xlu0 %2061
      %2063 = vrot.lane.b32.xlu0 %v1054, 16
      %v2064 = vpop.permute.xlu0 %2063
      %2065 = vrot.lane.b32.xlu0 %v1056, 16
      %v2066 = vpop.permute.xlu0 %2065
      %2067 = vrot.lane.b32.xlu0 %v1059, 16
      %v2068 = vpop.permute.xlu0 %2067
      %2069 = vrot.lane.b32.xlu0 %v1061, 16
      %v2070 = vpop.permute.xlu0 %2069
      %2071 = vrot.lane.b32.xlu0 %v1064, 16
      %v2072 = vpop.permute.xlu0 %2071
      %2073 = vrot.lane.b32.xlu0 %v1066, 16
      %v2074 = vpop.permute.xlu0 %2073
      %2075 = vrot.lane.b32.xlu0 %v1069, 16
      %v2076 = vpop.permute.xlu0 %2075
      %2077 = vrot.lane.b32.xlu0 %v1071, 16
      %v2078 = vpop.permute.xlu0 %2077
      %2079 = vrot.lane.b32.xlu0 %v1074, 16
      %v2080 = vpop.permute.xlu0 %2079
      %2081 = vrot.lane.b32.xlu0 %v1076, 16
      %v2082 = vpop.permute.xlu0 %2081
      %2083 = vrot.lane.b32.xlu0 %v1079, 16
      %v2084 = vpop.permute.xlu0 %2083
      %2085 = vrot.lane.b32.xlu0 %v1081, 16
      %v2086 = vpop.permute.xlu0 %2085
      %2087 = vrot.lane.b32.xlu0 %v1084, 16
      %v2088 = vpop.permute.xlu0 %2087
      %2089 = vrot.lane.b32.xlu0 %v1086, 16
      %v2090 = vpop.permute.xlu0 %2089
      %2091 = vrot.lane.b32.xlu0 %v1089, 16
      %v2092 = vpop.permute.xlu0 %2091
      %2093 = vrot.lane.b32.xlu0 %v1091, 16
      %v2094 = vpop.permute.xlu0 %2093
      %2095 = vrot.lane.b32.xlu0 %v1094, 16
      %v2096 = vpop.permute.xlu0 %2095
      %2097 = vrot.lane.b32.xlu0 %v1096, 16
      %v2098 = vpop.permute.xlu0 %2097
      %2099 = vrot.lane.b32.xlu0 %v1099, 16
      %v2100 = vpop.permute.xlu0 %2099
      %2101 = vrot.lane.b32.xlu0 %v1101, 16
      %v2102 = vpop.permute.xlu0 %2101
      %2103 = vrot.lane.b32.xlu0 %v1104, 16
      %v2104 = vpop.permute.xlu0 %2103
      %2105 = vrot.lane.b32.xlu0 %v1106, 16
      %v2106 = vpop.permute.xlu0 %2105
      %2107 = vrot.lane.b32.xlu0 %v1109, 16
      %v2108 = vpop.permute.xlu0 %2107
      %2109 = vrot.lane.b32.xlu0 %v1111, 16
      %v2110 = vpop.permute.xlu0 %2109
      %2111 = vrot.lane.b32.xlu0 %v1114, 16
      %v2112 = vpop.permute.xlu0 %2111
      %2113 = vrot.lane.b32.xlu0 %v1116, 16
      %v2114 = vpop.permute.xlu0 %2113
      %2115 = vrot.lane.b32.xlu0 %v1119, 16
      %v2116 = vpop.permute.xlu0 %2115
      %2117 = vrot.lane.b32.xlu0 %v1121, 16
      %v2118 = vpop.permute.xlu0 %2117
      %2119 = vrot.lane.b32.xlu0 %v1124, 16
      %v2120 = vpop.permute.xlu0 %2119
      %2121 = vrot.lane.b32.xlu0 %v1126, 16
      %v2122 = vpop.permute.xlu0 %2121
      %2155 = vrot.lane.b32.xlu0 %v1177, 20
      %v2156 = vpop.permute.xlu0 %2155
      %2157 = vrot.lane.b32.xlu0 %v1179, 20
      %v2158 = vpop.permute.xlu0 %2157
      %2159 = vrot.lane.b32.xlu0 %v1182, 20
      %v2160 = vpop.permute.xlu0 %2159
      %2161 = vrot.lane.b32.xlu0 %v1184, 20
      %v2162 = vpop.permute.xlu0 %2161
      %2163 = vrot.lane.b32.xlu0 %v1187, 20
      %v2164 = vpop.permute.xlu0 %2163
      %2165 = vrot.lane.b32.xlu0 %v1189, 20
      %v2166 = vpop.permute.xlu0 %2165
      %2167 = vrot.lane.b32.xlu0 %v1192, 20
      %v2168 = vpop.permute.xlu0 %2167
      %2169 = vrot.lane.b32.xlu0 %v1194, 20
      %v2170 = vpop.permute.xlu0 %2169
      %2171 = vrot.lane.b32.xlu0 %v1197, 20
      %v2172 = vpop.permute.xlu0 %2171
      %2173 = vrot.lane.b32.xlu0 %v1199, 20
      %v2174 = vpop.permute.xlu0 %2173
      %2175 = vrot.lane.b32.xlu0 %v1202, 20
      %v2176 = vpop.permute.xlu0 %2175
      %2177 = vrot.lane.b32.xlu0 %v1204, 20
      %v2178 = vpop.permute.xlu0 %2177
      %2179 = vrot.lane.b32.xlu0 %v1207, 20
      %v2180 = vpop.permute.xlu0 %2179
      %2181 = vrot.lane.b32.xlu0 %v1209, 20
      %v2182 = vpop.permute.xlu0 %2181
      %2183 = vrot.lane.b32.xlu0 %v1212, 20
      %v2184 = vpop.permute.xlu0 %2183
      %2185 = vrot.lane.b32.xlu0 %v1214, 20
      %v2186 = vpop.permute.xlu0 %2185
      %2187 = vrot.lane.b32.xlu0 %v1217, 20
      %v2188 = vpop.permute.xlu0 %2187
      %2189 = vrot.lane.b32.xlu0 %v1219, 20
      %v2190 = vpop.permute.xlu0 %2189
      %2191 = vrot.lane.b32.xlu0 %v1222, 20
      %v2192 = vpop.permute.xlu0 %2191
      %2193 = vrot.lane.b32.xlu0 %v1224, 20
      %v2194 = vpop.permute.xlu0 %2193
      %2195 = vrot.lane.b32.xlu0 %v1227, 20
      %v2196 = vpop.permute.xlu0 %2195
      %2197 = vrot.lane.b32.xlu0 %v1229, 20
      %v2198 = vpop.permute.xlu0 %2197
      %2199 = vrot.lane.b32.xlu0 %v1232, 20
      %v2200 = vpop.permute.xlu0 %2199
      %2201 = vrot.lane.b32.xlu0 %v1234, 20
      %v2202 = vpop.permute.xlu0 %2201
      %2203 = vrot.lane.b32.xlu0 %v1237, 20
      %v2204 = vpop.permute.xlu0 %2203
      %2205 = vrot.lane.b32.xlu0 %v1239, 20
      %v2206 = vpop.permute.xlu0 %2205
      %2207 = vrot.lane.b32.xlu0 %v1242, 20
      %v2208 = vpop.permute.xlu0 %2207
      %2209 = vrot.lane.b32.xlu0 %v1244, 20
      %v2210 = vpop.permute.xlu0 %2209
      %2211 = vrot.lane.b32.xlu0 %v1247, 20
      %v2212 = vpop.permute.xlu0 %2211
      %2213 = vrot.lane.b32.xlu0 %v1249, 20
      %v2214 = vpop.permute.xlu0 %2213
      %2215 = vrot.lane.b32.xlu0 %v1252, 20
      %v2216 = vpop.permute.xlu0 %2215
      %2217 = vrot.lane.b32.xlu0 %v1254, 20
      %v2218 = vpop.permute.xlu0 %2217
      %2251 = vrot.lane.b32.xlu0 %v1405, 24
      %v2252 = vpop.permute.xlu0 %2251
      %2253 = vrot.lane.b32.xlu0 %v1407, 24
      %v2254 = vpop.permute.xlu0 %2253
      %2255 = vrot.lane.b32.xlu0 %v1410, 24
      %v2256 = vpop.permute.xlu0 %2255
      %2257 = vrot.lane.b32.xlu0 %v1412, 24
      %v2258 = vpop.permute.xlu0 %2257
      %2259 = vrot.lane.b32.xlu0 %v1415, 24
      %v2260 = vpop.permute.xlu0 %2259
      %2261 = vrot.lane.b32.xlu0 %v1417, 24
      %v2262 = vpop.permute.xlu0 %2261
      %2263 = vrot.lane.b32.xlu0 %v1420, 24
      %v2264 = vpop.permute.xlu0 %2263
      %2265 = vrot.lane.b32.xlu0 %v1422, 24
      %v2266 = vpop.permute.xlu0 %2265
      %2267 = vrot.lane.b32.xlu0 %v1425, 24
      %v2268 = vpop.permute.xlu0 %2267
      %2269 = vrot.lane.b32.xlu0 %v1427, 24
      %v2270 = vpop.permute.xlu0 %2269
      %2271 = vrot.lane.b32.xlu0 %v1430, 24
      %v2272 = vpop.permute.xlu0 %2271
      %2273 = vrot.lane.b32.xlu0 %v1432, 24
      %v2274 = vpop.permute.xlu0 %2273
      %2275 = vrot.lane.b32.xlu0 %v1435, 24
      %v2276 = vpop.permute.xlu0 %2275
      %2277 = vrot.lane.b32.xlu0 %v1437, 24
      %v2278 = vpop.permute.xlu0 %2277
      %2279 = vrot.lane.b32.xlu0 %v1440, 24
      %v2280 = vpop.permute.xlu0 %2279
      %2281 = vrot.lane.b32.xlu0 %v1442, 24
      %v2282 = vpop.permute.xlu0 %2281
      %2283 = vrot.lane.b32.xlu0 %v1445, 24
      %v2284 = vpop.permute.xlu0 %2283
      %2285 = vrot.lane.b32.xlu0 %v1447, 24
      %v2286 = vpop.permute.xlu0 %2285
      %2287 = vrot.lane.b32.xlu0 %v1450, 24
      %v2288 = vpop.permute.xlu0 %2287
      %2289 = vrot.lane.b32.xlu0 %v1452, 24
      %v2290 = vpop.permute.xlu0 %2289
      %2291 = vrot.lane.b32.xlu0 %v1455, 24
      %v2292 = vpop.permute.xlu0 %2291
      %2293 = vrot.lane.b32.xlu0 %v1457, 24
      %v2294 = vpop.permute.xlu0 %2293
      %2295 = vrot.lane.b32.xlu0 %v1460, 24
      %v2296 = vpop.permute.xlu0 %2295
      %2297 = vrot.lane.b32.xlu0 %v1462, 24
      %v2298 = vpop.permute.xlu0 %2297
      %2299 = vrot.lane.b32.xlu0 %v1465, 24
      %v2300 = vpop.permute.xlu0 %2299
      %2301 = vrot.lane.b32.xlu0 %v1467, 24
      %v2302 = vpop.permute.xlu0 %2301
      %2303 = vrot.lane.b32.xlu0 %v1470, 24
      %v2304 = vpop.permute.xlu0 %2303
      %2305 = vrot.lane.b32.xlu0 %v1472, 24
      %v2306 = vpop.permute.xlu0 %2305
      %2307 = vrot.lane.b32.xlu0 %v1475, 24
      %v2308 = vpop.permute.xlu0 %2307
      %2309 = vrot.lane.b32.xlu0 %v1477, 24
      %v2310 = vpop.permute.xlu0 %2309
      %2311 = vrot.lane.b32.xlu0 %v1480, 24
      %v2312 = vpop.permute.xlu0 %2311
      %2313 = vrot.lane.b32.xlu0 %v1482, 24
      %v2314 = vpop.permute.xlu0 %2313
      %2347 = vrot.lane.b32.xlu0 %v1565, 28
      %v2348 = vpop.permute.xlu0 %2347
      %2349 = vrot.lane.b32.xlu0 %v1567, 28
      %v2350 = vpop.permute.xlu0 %2349
      %2351 = vrot.lane.b32.xlu0 %v1570, 28
      %v2352 = vpop.permute.xlu0 %2351
      %2353 = vrot.lane.b32.xlu0 %v1572, 28
      %v2354 = vpop.permute.xlu0 %2353
      %2355 = vrot.lane.b32.xlu0 %v1575, 28
      %v2356 = vpop.permute.xlu0 %2355
      %2357 = vrot.lane.b32.xlu0 %v1577, 28
      %v2358 = vpop.permute.xlu0 %2357
      %2359 = vrot.lane.b32.xlu0 %v1580, 28
      %v2360 = vpop.permute.xlu0 %2359
      %2361 = vrot.lane.b32.xlu0 %v1582, 28
      %v2362 = vpop.permute.xlu0 %2361
      %2363 = vrot.lane.b32.xlu0 %v1585, 28
      %v2364 = vpop.permute.xlu0 %2363
      %2365 = vrot.lane.b32.xlu0 %v1587, 28
      %v2366 = vpop.permute.xlu0 %2365
      %2367 = vrot.lane.b32.xlu0 %v1590, 28
      %v2368 = vpop.permute.xlu0 %2367
      %2369 = vrot.lane.b32.xlu0 %v1592, 28
      %v2370 = vpop.permute.xlu0 %2369
      %2371 = vrot.lane.b32.xlu0 %v1595, 28
      %v2372 = vpop.permute.xlu0 %2371
      %2373 = vrot.lane.b32.xlu0 %v1597, 28
      %v2374 = vpop.permute.xlu0 %2373
      %2375 = vrot.lane.b32.xlu0 %v1600, 28
      %v2376 = vpop.permute.xlu0 %2375
      %2377 = vrot.lane.b32.xlu0 %v1602, 28
      %v2378 = vpop.permute.xlu0 %2377
      %2379 = vrot.lane.b32.xlu0 %v1605, 28
      %v2380 = vpop.permute.xlu0 %2379
      %2381 = vrot.lane.b32.xlu0 %v1607, 28
      %v2382 = vpop.permute.xlu0 %2381
      %2383 = vrot.lane.b32.xlu0 %v1610, 28
      %v2384 = vpop.permute.xlu0 %2383
      %2385 = vrot.lane.b32.xlu0 %v1612, 28
      %v2386 = vpop.permute.xlu0 %2385
      %2387 = vrot.lane.b32.xlu0 %v1615, 28
      %v2388 = vpop.permute.xlu0 %2387
      %2389 = vrot.lane.b32.xlu0 %v1617, 28
      %v2390 = vpop.permute.xlu0 %2389
      %2391 = vrot.lane.b32.xlu0 %v1620, 28
      %v2392 = vpop.permute.xlu0 %2391
      %2393 = vrot.lane.b32.xlu0 %v1622, 28
      %v2394 = vpop.permute.xlu0 %2393
      %2395 = vrot.lane.b32.xlu0 %v1625, 28
      %v2396 = vpop.permute.xlu0 %2395
      %2397 = vrot.lane.b32.xlu0 %v1627, 28
      %v2398 = vpop.permute.xlu0 %2397
      %2399 = vrot.lane.b32.xlu0 %v1630, 28
      %v2400 = vpop.permute.xlu0 %2399
      %2401 = vrot.lane.b32.xlu0 %v1632, 28
      %v2402 = vpop.permute.xlu0 %2401
      %2403 = vrot.lane.b32.xlu0 %v1635, 28
      %v2404 = vpop.permute.xlu0 %2403
      %2405 = vrot.lane.b32.xlu0 %v1637, 28
      %v2406 = vpop.permute.xlu0 %2405
      %2407 = vrot.lane.b32.xlu0 %v1640, 28
      %v2408 = vpop.permute.xlu0 %2407
      %2409 = vrot.lane.b32.xlu0 %v1642, 28
      %v2410 = vpop.permute.xlu0 %2409
      %2443 = vrot.lane.b32.xlu0 %v1693, 32
      %v2444 = vpop.permute.xlu0 %2443
      %2445 = vrot.lane.b32.xlu0 %v1695, 32
      %v2446 = vpop.permute.xlu0 %2445
      %2447 = vrot.lane.b32.xlu0 %v1698, 32
      %v2448 = vpop.permute.xlu0 %2447
      %2449 = vrot.lane.b32.xlu0 %v1700, 32
      %v2450 = vpop.permute.xlu0 %2449
      %2451 = vrot.lane.b32.xlu0 %v1703, 32
      %v2452 = vpop.permute.xlu0 %2451
      %2453 = vrot.lane.b32.xlu0 %v1705, 32
      %v2454 = vpop.permute.xlu0 %2453
      %2455 = vrot.lane.b32.xlu0 %v1708, 32
      %v2456 = vpop.permute.xlu0 %2455
      %2457 = vrot.lane.b32.xlu0 %v1710, 32
      %v2458 = vpop.permute.xlu0 %2457
      %2459 = vrot.lane.b32.xlu0 %v1713, 32
      %v2460 = vpop.permute.xlu0 %2459
      %2461 = vrot.lane.b32.xlu0 %v1715, 32
      %v2462 = vpop.permute.xlu0 %2461
      %2463 = vrot.lane.b32.xlu0 %v1718, 32
      %v2464 = vpop.permute.xlu0 %2463
      %2465 = vrot.lane.b32.xlu0 %v1720, 32
      %v2466 = vpop.permute.xlu0 %2465
      %2467 = vrot.lane.b32.xlu0 %v1723, 32
      %v2468 = vpop.permute.xlu0 %2467
      %2469 = vrot.lane.b32.xlu0 %v1725, 32
      %v2470 = vpop.permute.xlu0 %2469
      %2471 = vrot.lane.b32.xlu0 %v1728, 32
      %v2472 = vpop.permute.xlu0 %2471
      %2473 = vrot.lane.b32.xlu0 %v1730, 32
      %v2474 = vpop.permute.xlu0 %2473
      %2475 = vrot.lane.b32.xlu0 %v1733, 32
      %v2476 = vpop.permute.xlu0 %2475
      %2477 = vrot.lane.b32.xlu0 %v1735, 32
      %v2478 = vpop.permute.xlu0 %2477
      %2479 = vrot.lane.b32.xlu0 %v1738, 32
      %v2480 = vpop.permute.xlu0 %2479
      %2481 = vrot.lane.b32.xlu0 %v1740, 32
      %v2482 = vpop.permute.xlu0 %2481
      %2483 = vrot.lane.b32.xlu0 %v1743, 32
      %v2484 = vpop.permute.xlu0 %2483
      %2485 = vrot.lane.b32.xlu0 %v1745, 32
      %v2486 = vpop.permute.xlu0 %2485
      %2487 = vrot.lane.b32.xlu0 %v1748, 32
      %v2488 = vpop.permute.xlu0 %2487
      %2489 = vrot.lane.b32.xlu0 %v1750, 32
      %v2490 = vpop.permute.xlu0 %2489
      %2491 = vrot.lane.b32.xlu0 %v1753, 32
      %v2492 = vpop.permute.xlu0 %2491
      %2493 = vrot.lane.b32.xlu0 %v1755, 32
      %v2494 = vpop.permute.xlu0 %2493
      %2495 = vrot.lane.b32.xlu0 %v1758, 32
      %v2496 = vpop.permute.xlu0 %2495
      %2497 = vrot.lane.b32.xlu0 %v1760, 32
      %v2498 = vpop.permute.xlu0 %2497
      %2499 = vrot.lane.b32.xlu0 %v1763, 32
      %v2500 = vpop.permute.xlu0 %2499
      %2501 = vrot.lane.b32.xlu0 %v1765, 32
      %v2502 = vpop.permute.xlu0 %2501
      %2503 = vrot.lane.b32.xlu0 %v1768, 32
      %v2504 = vpop.permute.xlu0 %2503
      %2505 = vrot.lane.b32.xlu0 %v1770, 32
      %v2506 = vpop.permute.xlu0 %2505
      %vm2539 = vcmask 31744
      %v2540 = vsel %vm2539, %v403, %v1772
      %v2541 = vsel %vm2539, %v405, %v1774
      %v2542 = vsel %vm2539, %v408, %v1776
      %v2543 = vsel %vm2539, %v410, %v1778
      %v2544 = vsel %vm2539, %v413, %v1780
      %v2545 = vsel %vm2539, %v415, %v1782
      %v2546 = vsel %vm2539, %v418, %v1784
      %v2547 = vsel %vm2539, %v420, %v1786
      %v2548 = vsel %vm2539, %v423, %v1788
      %v2549 = vsel %vm2539, %v425, %v1790
      %v2550 = vsel %vm2539, %v428, %v1792
      %v2551 = vsel %vm2539, %v430, %v1794
      %v2552 = vsel %vm2539, %v433, %v1796
      %v2553 = vsel %vm2539, %v435, %v1798
      %v2554 = vsel %vm2539, %v438, %v1800
      %v2555 = vsel %vm2539, %v440, %v1802
      %v2556 = vsel %vm2539, %v443, %v1804
      %v2557 = vsel %vm2539, %v445, %v1806
      %v2558 = vsel %vm2539, %v448, %v1808
      %v2559 = vsel %vm2539, %v450, %v1810
      %v2560 = vsel %vm2539, %v453, %v1812
      %v2561 = vsel %vm2539, %v455, %v1814
      %v2562 = vsel %vm2539, %v458, %v1816
      %v2563 = vsel %vm2539, %v460, %v1818
      %v2564 = vsel %vm2539, %v463, %v1820
      %v2565 = vsel %vm2539, %v465, %v1822
      %v2566 = vsel %vm2539, %v468, %v1824
      %v2567 = vsel %vm2539, %v470, %v1826
      %v2568 = vsel %vm2539, %v473, %v1828
      %v2569 = vsel %vm2539, %v475, %v1830
      %v2570 = vsel %vm2539, %v478, %v1832
      %v2571 = vsel %vm2539, %v480, %v1834
      %vm2572 = vcmask 64512
      %v2573 = vsel %vm2572, %v2540, %v1868
      %v2574 = vsel %vm2572, %v2541, %v1870
      %v2575 = vsel %vm2572, %v2542, %v1872
      %v2576 = vsel %vm2572, %v2543, %v1874
      %v2577 = vsel %vm2572, %v2544, %v1876
      %v2578 = vsel %vm2572, %v2545, %v1878
      %v2579 = vsel %vm2572, %v2546, %v1880
      %v2580 = vsel %vm2572, %v2547, %v1882
      %v2581 = vsel %vm2572, %v2548, %v1884
      %v2582 = vsel %vm2572, %v2549, %v1886
      %v2583 = vsel %vm2572, %v2550, %v1888
      %v2584 = vsel %vm2572, %v2551, %v1890
      %v2585 = vsel %vm2572, %v2552, %v1892
      %v2586 = vsel %vm2572, %v2553, %v1894
      %v2587 = vsel %vm2572, %v2554, %v1896
      %v2588 = vsel %vm2572, %v2555, %v1898
      %v2589 = vsel %vm2572, %v2556, %v1900
      %v2590 = vsel %vm2572, %v2557, %v1902
      %v2591 = vsel %vm2572, %v2558, %v1904
      %v2592 = vsel %vm2572, %v2559, %v1906
      %v2593 = vsel %vm2572, %v2560, %v1908
      %v2594 = vsel %vm2572, %v2561, %v1910
      %v2595 = vsel %vm2572, %v2562, %v1912
      %v2596 = vsel %vm2572, %v2563, %v1914
      %v2597 = vsel %vm2572, %v2564, %v1916
      %v2598 = vsel %vm2572, %v2565, %v1918
      %v2599 = vsel %vm2572, %v2566, %v1920
      %v2600 = vsel %vm2572, %v2567, %v1922
      %v2601 = vsel %vm2572, %v2568, %v1924
      %v2602 = vsel %vm2572, %v2569, %v1926
      %v2603 = vsel %vm2572, %v2570, %v1928
      %v2604 = vsel %vm2572, %v2571, %v1930
      %vm2605 = vcmask 97280
      %v2606 = vsel %vm2605, %v2573, %v1964
      %v2607 = vsel %vm2605, %v2574, %v1966
      %v2608 = vsel %vm2605, %v2575, %v1968
      %v2609 = vsel %vm2605, %v2576, %v1970
      %v2610 = vsel %vm2605, %v2577, %v1972
      %v2611 = vsel %vm2605, %v2578, %v1974
      %v2612 = vsel %vm2605, %v2579, %v1976
      %v2613 = vsel %vm2605, %v2580, %v1978
      %v2614 = vsel %vm2605, %v2581, %v1980
      %v2615 = vsel %vm2605, %v2582, %v1982
      %v2616 = vsel %vm2605, %v2583, %v1984
      %v2617 = vsel %vm2605, %v2584, %v1986
      %v2618 = vsel %vm2605, %v2585, %v1988
      %v2619 = vsel %vm2605, %v2586, %v1990
      %v2620 = vsel %vm2605, %v2587, %v1992
      %v2621 = vsel %vm2605, %v2588, %v1994
      %v2622 = vsel %vm2605, %v2589, %v1996
      %v2623 = vsel %vm2605, %v2590, %v1998
      %v2624 = vsel %vm2605, %v2591, %v2000
      %v2625 = vsel %vm2605, %v2592, %v2002
      %v2626 = vsel %vm2605, %v2593, %v2004
      %v2627 = vsel %vm2605, %v2594, %v2006
      %v2628 = vsel %vm2605, %v2595, %v2008
      %v2629 = vsel %vm2605, %v2596, %v2010
      %v2630 = vsel %vm2605, %v2597, %v2012
      %v2631 = vsel %vm2605, %v2598, %v2014
      %v2632 = vsel %vm2605, %v2599, %v2016
      %v2633 = vsel %vm2605, %v2600, %v2018
      %v2634 = vsel %vm2605, %v2601, %v2020
      %v2635 = vsel %vm2605, %v2602, %v2022
      %v2636 = vsel %vm2605, %v2603, %v2024
      %v2637 = vsel %vm2605, %v2604, %v2026
      %vm2638 = vcmask 130048
      %v2639 = vsel %vm2638, %v2606, %v2060
      %v2640 = vsel %vm2638, %v2607, %v2062
      %v2641 = vsel %vm2638, %v2608, %v2064
      %v2642 = vsel %vm2638, %v2609, %v2066
      %v2643 = vsel %vm2638, %v2610, %v2068
      %v2644 = vsel %vm2638, %v2611, %v2070
      %v2645 = vsel %vm2638, %v2612, %v2072
      %v2646 = vsel %vm2638, %v2613, %v2074
      %v2647 = vsel %vm2638, %v2614, %v2076
      %v2648 = vsel %vm2638, %v2615, %v2078
      %v2649 = vsel %vm2638, %v2616, %v2080
      %v2650 = vsel %vm2638, %v2617, %v2082
      %v2651 = vsel %vm2638, %v2618, %v2084
      %v2652 = vsel %vm2638, %v2619, %v2086
      %v2653 = vsel %vm2638, %v2620, %v2088
      %v2654 = vsel %vm2638, %v2621, %v2090
      %v2655 = vsel %vm2638, %v2622, %v2092
      %v2656 = vsel %vm2638, %v2623, %v2094
      %v2657 = vsel %vm2638, %v2624, %v2096
      %v2658 = vsel %vm2638, %v2625, %v2098
      %v2659 = vsel %vm2638, %v2626, %v2100
      %v2660 = vsel %vm2638, %v2627, %v2102
      %v2661 = vsel %vm2638, %v2628, %v2104
      %v2662 = vsel %vm2638, %v2629, %v2106
      %v2663 = vsel %vm2638, %v2630, %v2108
      %v2664 = vsel %vm2638, %v2631, %v2110
      %v2665 = vsel %vm2638, %v2632, %v2112
      %v2666 = vsel %vm2638, %v2633, %v2114
      %v2667 = vsel %vm2638, %v2634, %v2116
      %v2668 = vsel %vm2638, %v2635, %v2118
      %v2669 = vsel %vm2638, %v2636, %v2120
      %v2670 = vsel %vm2638, %v2637, %v2122
      %vm2671 = vcmask 162816
      %v2672 = vsel %vm2671, %v2639, %v2156
      %v2673 = vsel %vm2671, %v2640, %v2158
      %v2674 = vsel %vm2671, %v2641, %v2160
      %v2675 = vsel %vm2671, %v2642, %v2162
      %v2676 = vsel %vm2671, %v2643, %v2164
      %v2677 = vsel %vm2671, %v2644, %v2166
      %v2678 = vsel %vm2671, %v2645, %v2168
      %v2679 = vsel %vm2671, %v2646, %v2170
      %v2680 = vsel %vm2671, %v2647, %v2172
      %v2681 = vsel %vm2671, %v2648, %v2174
      %v2682 = vsel %vm2671, %v2649, %v2176
      %v2683 = vsel %vm2671, %v2650, %v2178
      %v2684 = vsel %vm2671, %v2651, %v2180
      %v2685 = vsel %vm2671, %v2652, %v2182
      %v2686 = vsel %vm2671, %v2653, %v2184
      %v2687 = vsel %vm2671, %v2654, %v2186
      %v2688 = vsel %vm2671, %v2655, %v2188
      %v2689 = vsel %vm2671, %v2656, %v2190
      %v2690 = vsel %vm2671, %v2657, %v2192
      %v2691 = vsel %vm2671, %v2658, %v2194
      %v2692 = vsel %vm2671, %v2659, %v2196
      %v2693 = vsel %vm2671, %v2660, %v2198
      %v2694 = vsel %vm2671, %v2661, %v2200
      %v2695 = vsel %vm2671, %v2662, %v2202
      %v2696 = vsel %vm2671, %v2663, %v2204
      %v2697 = vsel %vm2671, %v2664, %v2206
      %v2698 = vsel %vm2671, %v2665, %v2208
      %v2699 = vsel %vm2671, %v2666, %v2210
      %v2700 = vsel %vm2671, %v2667, %v2212
      %v2701 = vsel %vm2671, %v2668, %v2214
      %v2702 = vsel %vm2671, %v2669, %v2216
      %v2703 = vsel %vm2671, %v2670, %v2218
      %vm2704 = vcmask 195584
      %v2705 = vsel %vm2704, %v2672, %v2252
      %v2706 = vsel %vm2704, %v2673, %v2254
      %v2707 = vsel %vm2704, %v2674, %v2256
      %v2708 = vsel %vm2704, %v2675, %v2258
      %v2709 = vsel %vm2704, %v2676, %v2260
      %v2710 = vsel %vm2704, %v2677, %v2262
      %v2711 = vsel %vm2704, %v2678, %v2264
      %v2712 = vsel %vm2704, %v2679, %v2266
      %v2713 = vsel %vm2704, %v2680, %v2268
      %v2714 = vsel %vm2704, %v2681, %v2270
      %v2715 = vsel %vm2704, %v2682, %v2272
      %v2716 = vsel %vm2704, %v2683, %v2274
      %v2717 = vsel %vm2704, %v2684, %v2276
      %v2718 = vsel %vm2704, %v2685, %v2278
      %v2719 = vsel %vm2704, %v2686, %v2280
      %v2720 = vsel %vm2704, %v2687, %v2282
      %v2721 = vsel %vm2704, %v2688, %v2284
      %v2722 = vsel %vm2704, %v2689, %v2286
      %v2723 = vsel %vm2704, %v2690, %v2288
      %v2724 = vsel %vm2704, %v2691, %v2290
      %v2725 = vsel %vm2704, %v2692, %v2292
      %v2726 = vsel %vm2704, %v2693, %v2294
      %v2727 = vsel %vm2704, %v2694, %v2296
      %v2728 = vsel %vm2704, %v2695, %v2298
      %v2729 = vsel %vm2704, %v2696, %v2300
      %v2730 = vsel %vm2704, %v2697, %v2302
      %v2731 = vsel %vm2704, %v2698, %v2304
      %v2732 = vsel %vm2704, %v2699, %v2306
      %v2733 = vsel %vm2704, %v2700, %v2308
      %v2734 = vsel %vm2704, %v2701, %v2310
      %v2735 = vsel %vm2704, %v2702, %v2312
      %v2736 = vsel %vm2704, %v2703, %v2314
      %vm2737 = vcmask 228352
      %v2738 = vsel %vm2737, %v2705, %v2348
      %v2739 = vsel %vm2737, %v2706, %v2350
      %v2740 = vsel %vm2737, %v2707, %v2352
      %v2741 = vsel %vm2737, %v2708, %v2354
      %v2742 = vsel %vm2737, %v2709, %v2356
      %v2743 = vsel %vm2737, %v2710, %v2358
      %v2744 = vsel %vm2737, %v2711, %v2360
      %v2745 = vsel %vm2737, %v2712, %v2362
      %v2746 = vsel %vm2737, %v2713, %v2364
      %v2747 = vsel %vm2737, %v2714, %v2366
      %v2748 = vsel %vm2737, %v2715, %v2368
      %v2749 = vsel %vm2737, %v2716, %v2370
      %v2750 = vsel %vm2737, %v2717, %v2372
      %v2751 = vsel %vm2737, %v2718, %v2374
      %v2752 = vsel %vm2737, %v2719, %v2376
      %v2753 = vsel %vm2737, %v2720, %v2378
      %v2754 = vsel %vm2737, %v2721, %v2380
      %v2755 = vsel %vm2737, %v2722, %v2382
      %v2756 = vsel %vm2737, %v2723, %v2384
      %v2757 = vsel %vm2737, %v2724, %v2386
      %v2758 = vsel %vm2737, %v2725, %v2388
      %v2759 = vsel %vm2737, %v2726, %v2390
      %v2760 = vsel %vm2737, %v2727, %v2392
      %v2761 = vsel %vm2737, %v2728, %v2394
      %v2762 = vsel %vm2737, %v2729, %v2396
      %v2763 = vsel %vm2737, %v2730, %v2398
      %v2764 = vsel %vm2737, %v2731, %v2400
      %v2765 = vsel %vm2737, %v2732, %v2402
      %v2766 = vsel %vm2737, %v2733, %v2404
      %v2767 = vsel %vm2737, %v2734, %v2406
      %v2768 = vsel %vm2737, %v2735, %v2408
      %v2769 = vsel %vm2737, %v2736, %v2410
      %vm2770 = vcmask 261120
      %v2771 = vsel %vm2770, %v2738, %v2444
      %v2772 = vsel %vm2770, %v2739, %v2446
      %v2773 = vsel %vm2770, %v2740, %v2448
      %v2774 = vsel %vm2770, %v2741, %v2450
      %v2775 = vsel %vm2770, %v2742, %v2452
      %v2776 = vsel %vm2770, %v2743, %v2454
      %v2777 = vsel %vm2770, %v2744, %v2456
      %v2778 = vsel %vm2770, %v2745, %v2458
      %v2779 = vsel %vm2770, %v2746, %v2460
      %v2780 = vsel %vm2770, %v2747, %v2462
      %v2781 = vsel %vm2770, %v2748, %v2464
      %v2782 = vsel %vm2770, %v2749, %v2466
      %v2783 = vsel %vm2770, %v2750, %v2468
      %v2784 = vsel %vm2770, %v2751, %v2470
      %v2785 = vsel %vm2770, %v2752, %v2472
      %v2786 = vsel %vm2770, %v2753, %v2474
      %v2787 = vsel %vm2770, %v2754, %v2476
      %v2788 = vsel %vm2770, %v2755, %v2478
      %v2789 = vsel %vm2770, %v2756, %v2480
      %v2790 = vsel %vm2770, %v2757, %v2482
      %v2791 = vsel %vm2770, %v2758, %v2484
      %v2792 = vsel %vm2770, %v2759, %v2486
      %v2793 = vsel %vm2770, %v2760, %v2488
      %v2794 = vsel %vm2770, %v2761, %v2490
      %v2795 = vsel %vm2770, %v2762, %v2492
      %v2796 = vsel %vm2770, %v2763, %v2494
      %v2797 = vsel %vm2770, %v2764, %v2496
      %v2798 = vsel %vm2770, %v2765, %v2498
      %v2799 = vsel %vm2770, %v2766, %v2500
      %v2800 = vsel %vm2770, %v2767, %v2502
      %v2801 = vsel %vm2770, %v2768, %v2504
      %v2802 = vsel %vm2770, %v2769, %v2506
      %v2803 = vpack.c.bf16 %v2772, %v2771
      %v2804 = vpack.c.bf16 %v2774, %v2773
      %v2805 = vpack.c.bf16 %v2776, %v2775
      %v2806 = vpack.c.bf16 %v2778, %v2777
      %v2807 = vpack.c.bf16 %v2780, %v2779
      %v2808 = vpack.c.bf16 %v2782, %v2781
      %v2809 = vpack.c.bf16 %v2784, %v2783
      %v2810 = vpack.c.bf16 %v2786, %v2785
      %v2811 = vpack.c.bf16 %v2788, %v2787
      %v2812 = vpack.c.bf16 %v2790, %v2789
      %v2813 = vpack.c.bf16 %v2792, %v2791
      %v2814 = vpack.c.bf16 %v2794, %v2793
      %v2815 = vpack.c.bf16 %v2796, %v2795
      %v2816 = vpack.c.bf16 %v2798, %v2797
      %v2817 = vpack.c.bf16 %v2800, %v2799
      %v2818 = vpack.c.bf16 %v2802, %v2801
      %v2819 = vld [vmem:[%s1] sm:$0xf]
      %v2820 = vld [vmem:[%s1 + $0x4] sm:$0xf]
      %v2821 = vld [vmem:[%s1 + $0x8] sm:$0xf]
      %v2822 = vld [vmem:[%s1 + $0xc] sm:$0xf]
      %v2823 = vld [vmem:[%s1 + $0x10] sm:$0x3]
      %v2829 = vunpack.c.l.b16 %v2819
      %v2830 = vunpack.c.l.b16 %v2820
      %v2831 = vunpack.c.l.b16 %v2821
      %v2832 = vunpack.c.l.b16 %v2822
      %v2833 = vunpack.c.l.b16 %v2823
      %v2834 = vpack.c.b16 %v2830, %v2829
      %v2835 = vpack.c.b16 %v2832, %v2831
      %v2836 = vpack.c.b16 %v2833, %v2833
      %vm2839 = vcmask 293888
      %v2841 = vsel %vm2839, %v2803, 0
      %v2844 = vsel %vm2839, %v2804, 0
      %v2847 = vsel %vm2839, %v2805, 0
      %v2850 = vsel %vm2839, %v2806, 0
      %v2853 = vsel %vm2839, %v2807, 0
      %v2856 = vsel %vm2839, %v2808, 0
      %v2859 = vsel %vm2839, %v2809, 0
      %v2862 = vsel %vm2839, %v2810, 0
      %v2865 = vsel %vm2839, %v2811, 0
      %v2868 = vsel %vm2839, %v2812, 0
      %v2871 = vsel %vm2839, %v2813, 0
      %v2874 = vsel %vm2839, %v2814, 0
      %v2877 = vsel %vm2839, %v2815, 0
      %v2880 = vsel %vm2839, %v2816, 0
      %v2883 = vsel %vm2839, %v2817, 0
      %v2886 = vsel %vm2839, %v2818, 0
      %vm2888 = vcmask 1041408
      %v2890 = vsel %vm2888, %v2836, 0
      %2892 = vmatprep.subr.bf16.mxu0 0
      %2893 = vmatpush1.bf16.msra.mxu0 %v2834
      %2894 = vmatprep.subr.bf16.mxu0 0
      %2895 = vmatpush1.bf16.msra.mxu0 %v2835
      %2896 = vmatprep.subr.bf16.mxu0 0
      %2897 = vmatpush1.bf16.msra.mxu0 %v2890
      %2898 = vmatprep.subr.bf16.mxu0 0
      %2899 = vmatpush1.bf16.msra.mxu0 0
      %2900 = vmatprep.subr.bf16.mxu0 0
      %2901 = vmatpush1.bf16.msra.mxu0 0
      %2902 = vmatprep.subr.bf16.mxu0 0
      %2903 = vmatpush1.bf16.msra.mxu0 0
      %2904 = vmatprep.subr.bf16.mxu0 0
      %2905 = vmatpush1.bf16.msra.mxu0 0
      %2906 = vmatprep.subr.bf16.mxu0 0
      %2907 = vmatpush1.bf16.msra.mxu0 0
      %2908 = vmatprep.subr.bf16.mxu0 0
      %2909 = vmatpush1.bf16.msra.mxu0 0
      %2910 = vmatprep.subr.bf16.mxu0 0
      %2911 = vmatpush1.bf16.msra.mxu0 0
      %2912 = vmatprep.subr.bf16.mxu0 0
      %2913 = vmatpush1.bf16.msra.mxu0 0
      %2914 = vmatprep.subr.bf16.mxu0 0
      %2915 = vmatpush1.bf16.msra.mxu0 0
      %2916 = vmatprep.subr.bf16.mxu0 0
      %2917 = vmatpush1.bf16.msra.mxu0 0
      %2918 = vmatprep.subr.bf16.mxu0 0
      %2919 = vmatpush1.bf16.msra.mxu0 0
      %2920 = vmatprep.subr.bf16.mxu0 0
      %2921 = vmatpush1.bf16.msra.mxu0 0
      %2922 = vmatprep.subr.bf16.mxu0 0
      %2923 = vmatpush1.bf16.msra.mxu0 0
      %2924 = vmatprep.mubr.bf16.mxu0 0
      %2925 = vmatmul.mubr.bf16.gmra.mrb[0].mxu0 %v2841
      %v2926 = vpop.f32.mrb[0].mxu0
      %v2927 = vadd.f32 0.0, %v2926
      %v2928 = vpop.f32.mrb[0].mxu0
      %v2929 = vpop.f32.mrb[0].mxu0
      %v2930 = vadd.f32 0.0, %v2929
      %v2931 = vpop.f32.mrb[0].mxu0
      %2932 = vmatprep.mubr.bf16.mxu0 0
      %2933 = vmatmul.mubr.bf16.gmra.mrb[0].mxu0 %v2844
      %v2934 = vpop.f32.mrb[0].mxu0
      %v2935 = vadd.f32 0.0, %v2934
      %v2936 = vpop.f32.mrb[0].mxu0
      %v2937 = vpop.f32.mrb[0].mxu0
      %v2938 = vadd.f32 0.0, %v2937
      %v2939 = vpop.f32.mrb[0].mxu0
      %2940 = vmatprep.mubr.bf16.mxu0 0
      %2941 = vmatmul.mubr.bf16.gmra.mrb[0].mxu0 %v2847
      %v2942 = vpop.f32.mrb[0].mxu0
      %v2943 = vadd.f32 0.0, %v2942
      %v2944 = vpop.f32.mrb[0].mxu0
      %v2945 = vpop.f32.mrb[0].mxu0
      %v2946 = vadd.f32 0.0, %v2945
      %v2947 = vpop.f32.mrb[0].mxu0
      %2948 = vmatprep.mubr.bf16.mxu0 0
      %2949 = vmatmul.mubr.bf16.gmra.mrb[0].mxu0 %v2850
      %v2950 = vpop.f32.mrb[0].mxu0
      %v2951 = vadd.f32 0.0, %v2950
      %v2952 = vpop.f32.mrb[0].mxu0
      %v2953 = vpop.f32.mrb[0].mxu0
      %v2954 = vadd.f32 0.0, %v2953
      %v2955 = vpop.f32.mrb[0].mxu0
      %2956 = vmatprep.mubr.bf16.mxu0 0
      %2957 = vmatmul.mubr.bf16.gmra.mrb[0].mxu0 %v2853
      %v2958 = vpop.f32.mrb[0].mxu0
      %v2959 = vadd.f32 0.0, %v2958
      %v2960 = vpop.f32.mrb[0].mxu0
      %v2961 = vpop.f32.mrb[0].mxu0
      %v2962 = vadd.f32 0.0, %v2961
      %v2963 = vpop.f32.mrb[0].mxu0
      %2964 = vmatprep.mubr.bf16.mxu0 0
      %2965 = vmatmul.mubr.bf16.gmra.mrb[0].mxu0 %v2856
      %v2966 = vpop.f32.mrb[0].mxu0
      %v2967 = vadd.f32 0.0, %v2966
      %v2968 = vpop.f32.mrb[0].mxu0
      %v2969 = vpop.f32.mrb[0].mxu0
      %v2970 = vadd.f32 0.0, %v2969
      %v2971 = vpop.f32.mrb[0].mxu0
      %2972 = vmatprep.mubr.bf16.mxu0 0
      %2973 = vmatmul.mubr.bf16.gmra.mrb[0].mxu0 %v2859
      %v2974 = vpop.f32.mrb[0].mxu0
      %v2975 = vadd.f32 0.0, %v2974
      %v2976 = vpop.f32.mrb[0].mxu0
      %v2977 = vpop.f32.mrb[0].mxu0
      %v2978 = vadd.f32 0.0, %v2977
      %v2979 = vpop.f32.mrb[0].mxu0
      %2980 = vmatprep.mubr.bf16.mxu0 0
      %2981 = vmatmul.mubr.bf16.gmra.mrb[0].mxu0 %v2862
      %v2982 = vpop.f32.mrb[0].mxu0
      %v2983 = vadd.f32 0.0, %v2982
      %v2984 = vpop.f32.mrb[0].mxu0
      %v2985 = vpop.f32.mrb[0].mxu0
      %v2986 = vadd.f32 0.0, %v2985
      %v2987 = vpop.f32.mrb[0].mxu0
      %2988 = vmatprep.mubr.bf16.mxu0 0
      %2989 = vmatmul.mubr.bf16.gmra.mrb[0].mxu0 %v2865
      %v2990 = vpop.f32.mrb[0].mxu0
      %v2991 = vadd.f32 0.0, %v2990
      %v2992 = vpop.f32.mrb[0].mxu0
      %v2993 = vpop.f32.mrb[0].mxu0
      %v2994 = vadd.f32 0.0, %v2993
      %v2995 = vpop.f32.mrb[0].mxu0
      %2996 = vmatprep.mubr.bf16.mxu0 0
      %2997 = vmatmul.mubr.bf16.gmra.mrb[0].mxu0 %v2868
      %v2998 = vpop.f32.mrb[0].mxu0
      %v2999 = vadd.f32 0.0, %v2998
      %v3000 = vpop.f32.mrb[0].mxu0
      %v3001 = vpop.f32.mrb[0].mxu0
      %v3002 = vadd.f32 0.0, %v3001
      %v3003 = vpop.f32.mrb[0].mxu0
      %3004 = vmatprep.mubr.bf16.mxu0 0
      %3005 = vmatmul.mubr.bf16.gmra.mrb[0].mxu0 %v2871
      %v3006 = vpop.f32.mrb[0].mxu0
      %v3007 = vadd.f32 0.0, %v3006
      %v3008 = vpop.f32.mrb[0].mxu0
      %v3009 = vpop.f32.mrb[0].mxu0
      %v3010 = vadd.f32 0.0, %v3009
      %v3011 = vpop.f32.mrb[0].mxu0
      %3012 = vmatprep.mubr.bf16.mxu0 0
      %3013 = vmatmul.mubr.bf16.gmra.mrb[0].mxu0 %v2874
      %v3014 = vpop.f32.mrb[0].mxu0
      %v3015 = vadd.f32 0.0, %v3014
      %v3016 = vpop.f32.mrb[0].mxu0
      %v3017 = vpop.f32.mrb[0].mxu0
      %v3018 = vadd.f32 0.0, %v3017
      %v3019 = vpop.f32.mrb[0].mxu0
      %3020 = vmatprep.mubr.bf16.mxu0 0
      %3021 = vmatmul.mubr.bf16.gmra.mrb[0].mxu0 %v2877
      %v3022 = vpop.f32.mrb[0].mxu0
      %v3023 = vadd.f32 0.0, %v3022
      %v3024 = vpop.f32.mrb[0].mxu0
      %v3025 = vpop.f32.mrb[0].mxu0
      %v3026 = vadd.f32 0.0, %v3025
      %v3027 = vpop.f32.mrb[0].mxu0
      %3028 = vmatprep.mubr.bf16.mxu0 0
      %3029 = vmatmul.mubr.bf16.gmra.mrb[0].mxu0 %v2880
      %v3030 = vpop.f32.mrb[0].mxu0
      %v3031 = vadd.f32 0.0, %v3030
      %v3032 = vpop.f32.mrb[0].mxu0
      %v3033 = vpop.f32.mrb[0].mxu0
      %v3034 = vadd.f32 0.0, %v3033
      %v3035 = vpop.f32.mrb[0].mxu0
      %3036 = vmatprep.mubr.bf16.mxu0 0
      %3037 = vmatmul.mubr.bf16.gmra.mrb[0].mxu0 %v2883
      %v3038 = vpop.f32.mrb[0].mxu0
      %v3039 = vadd.f32 0.0, %v3038
      %v3040 = vpop.f32.mrb[0].mxu0
      %v3041 = vpop.f32.mrb[0].mxu0
      %v3042 = vadd.f32 0.0, %v3041
      %v3043 = vpop.f32.mrb[0].mxu0
      %3044 = vmatprep.mubr.bf16.mxu0 0
      %3045 = vmatmul.mubr.bf16.gmra.mrb[0].mxu0 %v2886
      %v3046 = vpop.f32.mrb[0].mxu0
      %v3047 = vadd.f32 0.0, %v3046
      %v3048 = vpop.f32.mrb[0].mxu0
      %v3049 = vpop.f32.mrb[0].mxu0
      %v3050 = vadd.f32 0.0, %v3049
      %v3051 = vpop.f32.mrb[0].mxu0
      %3052 = vdwg.mxu0
      %3053 = vrot.lane.b32.xlu0 %v693, 4
      %v3054 = vpop.permute.xlu0 %3053
      %3055 = vrot.lane.b32.xlu0 %v695, 4
      %v3056 = vpop.permute.xlu0 %3055
      %3057 = vrot.lane.b32.xlu0 %v698, 4
      %v3058 = vpop.permute.xlu0 %3057
      %3059 = vrot.lane.b32.xlu0 %v700, 4
      %v3060 = vpop.permute.xlu0 %3059
      %3061 = vrot.lane.b32.xlu0 %v703, 4
      %v3062 = vpop.permute.xlu0 %3061
      %3063 = vrot.lane.b32.xlu0 %v705, 4
      %v3064 = vpop.permute.xlu0 %3063
      %3065 = vrot.lane.b32.xlu0 %v708, 4
      %v3066 = vpop.permute.xlu0 %3065
      %3067 = vrot.lane.b32.xlu0 %v710, 4
      %v3068 = vpop.permute.xlu0 %3067
      %3069 = vrot.lane.b32.xlu0 %v713, 4
      %v3070 = vpop.permute.xlu0 %3069
      %3071 = vrot.lane.b32.xlu0 %v715, 4
      %v3072 = vpop.permute.xlu0 %3071
      %3073 = vrot.lane.b32.xlu0 %v718, 4
      %v3074 = vpop.permute.xlu0 %3073
      %3075 = vrot.lane.b32.xlu0 %v720, 4
      %v3076 = vpop.permute.xlu0 %3075
      %3077 = vrot.lane.b32.xlu0 %v723, 4
      %v3078 = vpop.permute.xlu0 %3077
      %3079 = vrot.lane.b32.xlu0 %v725, 4
      %v3080 = vpop.permute.xlu0 %3079
      %3081 = vrot.lane.b32.xlu0 %v728, 4
      %v3082 = vpop.permute.xlu0 %3081
      %3083 = vrot.lane.b32.xlu0 %v730, 4
      %v3084 = vpop.permute.xlu0 %3083
      %3085 = vrot.lane.b32.xlu0 %v733, 4
      %v3086 = vpop.permute.xlu0 %3085
      %3087 = vrot.lane.b32.xlu0 %v735, 4
      %v3088 = vpop.permute.xlu0 %3087
      %3089 = vrot.lane.b32.xlu0 %v738, 4
      %v3090 = vpop.permute.xlu0 %3089
      %3091 = vrot.lane.b32.xlu0 %v740, 4
      %v3092 = vpop.permute.xlu0 %3091
      %3093 = vrot.lane.b32.xlu0 %v743, 4
      %v3094 = vpop.permute.xlu0 %3093
      %3095 = vrot.lane.b32.xlu0 %v745, 4
      %v3096 = vpop.permute.xlu0 %3095
      %3097 = vrot.lane.b32.xlu0 %v748, 4
      %v3098 = vpop.permute.xlu0 %3097
      %3099 = vrot.lane.b32.xlu0 %v750, 4
      %v3100 = vpop.permute.xlu0 %3099
      %3101 = vrot.lane.b32.xlu0 %v753, 4
      %v3102 = vpop.permute.xlu0 %3101
      %3103 = vrot.lane.b32.xlu0 %v755, 4
      %v3104 = vpop.permute.xlu0 %3103
      %3105 = vrot.lane.b32.xlu0 %v758, 4
      %v3106 = vpop.permute.xlu0 %3105
      %3107 = vrot.lane.b32.xlu0 %v760, 4
      %v3108 = vpop.permute.xlu0 %3107
      %3109 = vrot.lane.b32.xlu0 %v763, 4
      %v3110 = vpop.permute.xlu0 %3109
      %3111 = vrot.lane.b32.xlu0 %v765, 4
      %v3112 = vpop.permute.xlu0 %3111
      %3113 = vrot.lane.b32.xlu0 %v768, 4
      %v3114 = vpop.permute.xlu0 %3113
      %3115 = vrot.lane.b32.xlu0 %v770, 4
      %v3116 = vpop.permute.xlu0 %3115
      %3149 = vrot.lane.b32.xlu0 %v1405, 8
      %v3150 = vpop.permute.xlu0 %3149
      %3151 = vrot.lane.b32.xlu0 %v1407, 8
      %v3152 = vpop.permute.xlu0 %3151
      %3153 = vrot.lane.b32.xlu0 %v1410, 8
      %v3154 = vpop.permute.xlu0 %3153
      %3155 = vrot.lane.b32.xlu0 %v1412, 8
      %v3156 = vpop.permute.xlu0 %3155
      %3157 = vrot.lane.b32.xlu0 %v1415, 8
      %v3158 = vpop.permute.xlu0 %3157
      %3159 = vrot.lane.b32.xlu0 %v1417, 8
      %v3160 = vpop.permute.xlu0 %3159
      %3161 = vrot.lane.b32.xlu0 %v1420, 8
      %v3162 = vpop.permute.xlu0 %3161
      %3163 = vrot.lane.b32.xlu0 %v1422, 8
      %v3164 = vpop.permute.xlu0 %3163
      %3165 = vrot.lane.b32.xlu0 %v1425, 8
      %v3166 = vpop.permute.xlu0 %3165
      %3167 = vrot.lane.b32.xlu0 %v1427, 8
      %v3168 = vpop.permute.xlu0 %3167
      %3169 = vrot.lane.b32.xlu0 %v1430, 8
      %v3170 = vpop.permute.xlu0 %3169
      %3171 = vrot.lane.b32.xlu0 %v1432, 8
      %v3172 = vpop.permute.xlu0 %3171
      %3173 = vrot.lane.b32.xlu0 %v1435, 8
      %v3174 = vpop.permute.xlu0 %3173
      %3175 = vrot.lane.b32.xlu0 %v1437, 8
      %v3176 = vpop.permute.xlu0 %3175
      %3177 = vrot.lane.b32.xlu0 %v1440, 8
      %v3178 = vpop.permute.xlu0 %3177
      %3179 = vrot.lane.b32.xlu0 %v1442, 8
      %v3180 = vpop.permute.xlu0 %3179
      %3181 = vrot.lane.b32.xlu0 %v1445, 8
      %v3182 = vpop.permute.xlu0 %3181
      %3183 = vrot.lane.b32.xlu0 %v1447, 8
      %v3184 = vpop.permute.xlu0 %3183
      %3185 = vrot.lane.b32.xlu0 %v1450, 8
      %v3186 = vpop.permute.xlu0 %3185
      %3187 = vrot.lane.b32.xlu0 %v1452, 8
      %v3188 = vpop.permute.xlu0 %3187
      %3189 = vrot.lane.b32.xlu0 %v1455, 8
      %v3190 = vpop.permute.xlu0 %3189
      %3191 = vrot.lane.b32.xlu0 %v1457, 8
      %v3192 = vpop.permute.xlu0 %3191
      %3193 = vrot.lane.b32.xlu0 %v1460, 8
      %v3194 = vpop.permute.xlu0 %3193
      %3195 = vrot.lane.b32.xlu0 %v1462, 8
      %v3196 = vpop.permute.xlu0 %3195
      %3197 = vrot.lane.b32.xlu0 %v1465, 8
      %v3198 = vpop.permute.xlu0 %3197
      %3199 = vrot.lane.b32.xlu0 %v1467, 8
      %v3200 = vpop.permute.xlu0 %3199
      %3201 = vrot.lane.b32.xlu0 %v1470, 8
      %v3202 = vpop.permute.xlu0 %3201
      %3203 = vrot.lane.b32.xlu0 %v1472, 8
      %v3204 = vpop.permute.xlu0 %3203
      %3205 = vrot.lane.b32.xlu0 %v1475, 8
      %v3206 = vpop.permute.xlu0 %3205
      %3207 = vrot.lane.b32.xlu0 %v1477, 8
      %v3208 = vpop.permute.xlu0 %3207
      %3209 = vrot.lane.b32.xlu0 %v1480, 8
      %v3210 = vpop.permute.xlu0 %3209
      %3211 = vrot.lane.b32.xlu0 %v1482, 8
      %v3212 = vpop.permute.xlu0 %3211
      %3245 = vrot.lane.b32.xlu0 %v1693, 12
      %v3246 = vpop.permute.xlu0 %3245
      %3247 = vrot.lane.b32.xlu0 %v1695, 12
      %v3248 = vpop.permute.xlu0 %3247
      %3249 = vrot.lane.b32.xlu0 %v1698, 12
      %v3250 = vpop.permute.xlu0 %3249
      %3251 = vrot.lane.b32.xlu0 %v1700, 12
      %v3252 = vpop.permute.xlu0 %3251
      %3253 = vrot.lane.b32.xlu0 %v1703, 12
      %v3254 = vpop.permute.xlu0 %3253
      %3255 = vrot.lane.b32.xlu0 %v1705, 12
      %v3256 = vpop.permute.xlu0 %3255
      %3257 = vrot.lane.b32.xlu0 %v1708, 12
      %v3258 = vpop.permute.xlu0 %3257
      %3259 = vrot.lane.b32.xlu0 %v1710, 12
      %v3260 = vpop.permute.xlu0 %3259
      %3261 = vrot.lane.b32.xlu0 %v1713, 12
      %v3262 = vpop.permute.xlu0 %3261
      %3263 = vrot.lane.b32.xlu0 %v1715, 12
      %v3264 = vpop.permute.xlu0 %3263
      %3265 = vrot.lane.b32.xlu0 %v1718, 12
      %v3266 = vpop.permute.xlu0 %3265
      %3267 = vrot.lane.b32.xlu0 %v1720, 12
      %v3268 = vpop.permute.xlu0 %3267
      %3269 = vrot.lane.b32.xlu0 %v1723, 12
      %v3270 = vpop.permute.xlu0 %3269
      %3271 = vrot.lane.b32.xlu0 %v1725, 12
      %v3272 = vpop.permute.xlu0 %3271
      %3273 = vrot.lane.b32.xlu0 %v1728, 12
      %v3274 = vpop.permute.xlu0 %3273
      %3275 = vrot.lane.b32.xlu0 %v1730, 12
      %v3276 = vpop.permute.xlu0 %3275
      %3277 = vrot.lane.b32.xlu0 %v1733, 12
      %v3278 = vpop.permute.xlu0 %3277
      %3279 = vrot.lane.b32.xlu0 %v1735, 12
      %v3280 = vpop.permute.xlu0 %3279
      %3281 = vrot.lane.b32.xlu0 %v1738, 12
      %v3282 = vpop.permute.xlu0 %3281
      %3283 = vrot.lane.b32.xlu0 %v1740, 12
      %v3284 = vpop.permute.xlu0 %3283
      %3285 = vrot.lane.b32.xlu0 %v1743, 12
      %v3286 = vpop.permute.xlu0 %3285
      %3287 = vrot.lane.b32.xlu0 %v1745, 12
      %v3288 = vpop.permute.xlu0 %3287
      %3289 = vrot.lane.b32.xlu0 %v1748, 12
      %v3290 = vpop.permute.xlu0 %3289
      %3291 = vrot.lane.b32.xlu0 %v1750, 12
      %v3292 = vpop.permute.xlu0 %3291
      %3293 = vrot.lane.b32.xlu0 %v1753, 12
      %v3294 = vpop.permute.xlu0 %3293
      %3295 = vrot.lane.b32.xlu0 %v1755, 12
      %v3296 = vpop.permute.xlu0 %3295
      %3297 = vrot.lane.b32.xlu0 %v1758, 12
      %v3298 = vpop.permute.xlu0 %3297
      %3299 = vrot.lane.b32.xlu0 %v1760, 12
      %v3300 = vpop.permute.xlu0 %3299
      %3301 = vrot.lane.b32.xlu0 %v1763, 12
      %v3302 = vpop.permute.xlu0 %3301
      %3303 = vrot.lane.b32.xlu0 %v1765, 12
      %v3304 = vpop.permute.xlu0 %3303
      %3305 = vrot.lane.b32.xlu0 %v1768, 12
      %v3306 = vpop.permute.xlu0 %3305
      %3307 = vrot.lane.b32.xlu0 %v1770, 12
      %v3308 = vpop.permute.xlu0 %3307
      %v3341 = vsel %vm2539, %v403, %v3054
      %v3342 = vsel %vm2539, %v405, %v3056
      %v3343 = vsel %vm2539, %v408, %v3058
      %v3344 = vsel %vm2539, %v410, %v3060
      %v3345 = vsel %vm2539, %v413, %v3062
      %v3346 = vsel %vm2539, %v415, %v3064
      %v3347 = vsel %vm2539, %v418, %v3066
      %v3348 = vsel %vm2539, %v420, %v3068
      %v3349 = vsel %vm2539, %v423, %v3070
      %v3350 = vsel %vm2539, %v425, %v3072
      %v3351 = vsel %vm2539, %v428, %v3074
      %v3352 = vsel %vm2539, %v430, %v3076
      %v3353 = vsel %vm2539, %v433, %v3078
      %v3354 = vsel %vm2539, %v435, %v3080
      %v3355 = vsel %vm2539, %v438, %v3082
      %v3356 = vsel %vm2539, %v440, %v3084
      %v3357 = vsel %vm2539, %v443, %v3086
      %v3358 = vsel %vm2539, %v445, %v3088
      %v3359 = vsel %vm2539, %v448, %v3090
      %v3360 = vsel %vm2539, %v450, %v3092
      %v3361 = vsel %vm2539, %v453, %v3094
      %v3362 = vsel %vm2539, %v455, %v3096
      %v3363 = vsel %vm2539, %v458, %v3098
      %v3364 = vsel %vm2539, %v460, %v3100
      %v3365 = vsel %vm2539, %v463, %v3102
      %v3366 = vsel %vm2539, %v465, %v3104
      %v3367 = vsel %vm2539, %v468, %v3106
      %v3368 = vsel %vm2539, %v470, %v3108
      %v3369 = vsel %vm2539, %v473, %v3110
      %v3370 = vsel %vm2539, %v475, %v3112
      %v3371 = vsel %vm2539, %v478, %v3114
      %v3372 = vsel %vm2539, %v480, %v3116
      %v3373 = vsel %vm2572, %v3341, %v3150
      %v3374 = vsel %vm2572, %v3342, %v3152
      %v3375 = vsel %vm2572, %v3343, %v3154
      %v3376 = vsel %vm2572, %v3344, %v3156
      %v3377 = vsel %vm2572, %v3345, %v3158
      %v3378 = vsel %vm2572, %v3346, %v3160
      %v3379 = vsel %vm2572, %v3347, %v3162
      %v3380 = vsel %vm2572, %v3348, %v3164
      %v3381 = vsel %vm2572, %v3349, %v3166
      %v3382 = vsel %vm2572, %v3350, %v3168
      %v3383 = vsel %vm2572, %v3351, %v3170
      %v3384 = vsel %vm2572, %v3352, %v3172
      %v3385 = vsel %vm2572, %v3353, %v3174
      %v3386 = vsel %vm2572, %v3354, %v3176
      %v3387 = vsel %vm2572, %v3355, %v3178
      %v3388 = vsel %vm2572, %v3356, %v3180
      %v3389 = vsel %vm2572, %v3357, %v3182
      %v3390 = vsel %vm2572, %v3358, %v3184
      %v3391 = vsel %vm2572, %v3359, %v3186
      %v3392 = vsel %vm2572, %v3360, %v3188
      %v3393 = vsel %vm2572, %v3361, %v3190
      %v3394 = vsel %vm2572, %v3362, %v3192
      %v3395 = vsel %vm2572, %v3363, %v3194
      %v3396 = vsel %vm2572, %v3364, %v3196
      %v3397 = vsel %vm2572, %v3365, %v3198
      %v3398 = vsel %vm2572, %v3366, %v3200
      %v3399 = vsel %vm2572, %v3367, %v3202
      %v3400 = vsel %vm2572, %v3368, %v3204
      %v3401 = vsel %vm2572, %v3369, %v3206
      %v3402 = vsel %vm2572, %v3370, %v3208
      %v3403 = vsel %vm2572, %v3371, %v3210
      %v3404 = vsel %vm2572, %v3372, %v3212
      %v3405 = vsel %vm2605, %v3373, %v3246
      %v3406 = vsel %vm2605, %v3374, %v3248
      %v3407 = vsel %vm2605, %v3375, %v3250
      %v3408 = vsel %vm2605, %v3376, %v3252
      %v3409 = vsel %vm2605, %v3377, %v3254
      %v3410 = vsel %vm2605, %v3378, %v3256
      %v3411 = vsel %vm2605, %v3379, %v3258
      %v3412 = vsel %vm2605, %v3380, %v3260
      %v3413 = vsel %vm2605, %v3381, %v3262
      %v3414 = vsel %vm2605, %v3382, %v3264
      %v3415 = vsel %vm2605, %v3383, %v3266
      %v3416 = vsel %vm2605, %v3384, %v3268
      %v3417 = vsel %vm2605, %v3385, %v3270
      %v3418 = vsel %vm2605, %v3386, %v3272
      %v3419 = vsel %vm2605, %v3387, %v3274
      %v3420 = vsel %vm2605, %v3388, %v3276
      %v3421 = vsel %vm2605, %v3389, %v3278
      %v3422 = vsel %vm2605, %v3390, %v3280
      %v3423 = vsel %vm2605, %v3391, %v3282
      %v3424 = vsel %vm2605, %v3392, %v3284
      %v3425 = vsel %vm2605, %v3393, %v3286
      %v3426 = vsel %vm2605, %v3394, %v3288
      %v3427 = vsel %vm2605, %v3395, %v3290
      %v3428 = vsel %vm2605, %v3396, %v3292
      %v3429 = vsel %vm2605, %v3397, %v3294
      %v3430 = vsel %vm2605, %v3398, %v3296
      %v3431 = vsel %vm2605, %v3399, %v3298
      %v3432 = vsel %vm2605, %v3400, %v3300
      %v3433 = vsel %vm2605, %v3401, %v3302
      %v3434 = vsel %vm2605, %v3402, %v3304
      %v3435 = vsel %vm2605, %v3403, %v3306
      %v3436 = vsel %vm2605, %v3404, %v3308
      %v3437 = vpack.c.bf16 %v3406, %v3405
      %v3438 = vpack.c.bf16 %v3408, %v3407
      %v3439 = vpack.c.bf16 %v3410, %v3409
      %v3440 = vpack.c.bf16 %v3412, %v3411
      %v3441 = vpack.c.bf16 %v3414, %v3413
      %v3442 = vpack.c.bf16 %v3416, %v3415
      %v3443 = vpack.c.bf16 %v3418, %v3417
      %v3444 = vpack.c.bf16 %v3420, %v3419
      %v3445 = vpack.c.bf16 %v3422, %v3421
      %v3446 = vpack.c.bf16 %v3424, %v3423
      %v3447 = vpack.c.bf16 %v3426, %v3425
      %v3448 = vpack.c.bf16 %v3428, %v3427
      %v3449 = vpack.c.bf16 %v3430, %v3429
      %v3450 = vpack.c.bf16 %v3432, %v3431
      %v3451 = vpack.c.bf16 %v3434, %v3433
      %v3452 = vpack.c.bf16 %v3436, %v3435
      %v3453 = vld [vmem:[%s2] sm:$0xf]
      %v3454 = vld [vmem:[%s2 + $0x4] sm:$0xf]
      %v3457 = vunpack.c.l.b16 %v3453
      %v3458 = vunpack.c.l.b16 %v3454
      %v3459 = vpack.c.b16 %v3458, %v3457
      %v3462 = vsel %vm2638, %v3437, 0
      %v3465 = vsel %vm2638, %v3438, 0
      %v3468 = vsel %vm2638, %v3439, 0
      %v3471 = vsel %vm2638, %v3440, 0
      %v3474 = vsel %vm2638, %v3441, 0
      %v3477 = vsel %vm2638, %v3442, 0
      %v3480 = vsel %vm2638, %v3443, 0
      %v3483 = vsel %vm2638, %v3444, 0
      %v3486 = vsel %vm2638, %v3445, 0
      %v3489 = vsel %vm2638, %v3446, 0
      %v3492 = vsel %vm2638, %v3447, 0
      %v3495 = vsel %vm2638, %v3448, 0
      %v3498 = vsel %vm2638, %v3449, 0
      %v3501 = vsel %vm2638, %v3450, 0
      %v3504 = vsel %vm2638, %v3451, 0
      %v3507 = vsel %vm2638, %v3452, 0
      %3509 = vmatprep.subr.bf16.mxu0 0
      %3510 = vmatpush1.bf16.msra.mxu0 %v3459
      %3511 = vmatprep.subr.bf16.mxu0 0
      %3512 = vmatpush1.bf16.msra.mxu0 0
      %3513 = vmatprep.subr.bf16.mxu0 0
      %3514 = vmatpush1.bf16.msra.mxu0 0
      %3515 = vmatprep.subr.bf16.mxu0 0
      %3516 = vmatpush1.bf16.msra.mxu0 0
      %3517 = vmatprep.subr.bf16.mxu0 0
      %3518 = vmatpush1.bf16.msra.mxu0 0
      %3519 = vmatprep.subr.bf16.mxu0 0
      %3520 = vmatpush1.bf16.msra.mxu0 0
      %3521 = vmatprep.subr.bf16.mxu0 0
      %3522 = vmatpush1.bf16.msra.mxu0 0
      %3523 = vmatprep.subr.bf16.mxu0 0
      %3524 = vmatpush1.bf16.msra.mxu0 0
      %3525 = vmatprep.subr.bf16.mxu0 0
      %3526 = vmatpush1.bf16.msra.mxu0 0
      %3527 = vmatprep.subr.bf16.mxu0 0
      %3528 = vmatpush1.bf16.msra.mxu0 0
      %3529 = vmatprep.subr.bf16.mxu0 0
      %3530 = vmatpush1.bf16.msra.mxu0 0
      %3531 = vmatprep.subr.bf16.mxu0 0
      %3532 = vmatpush1.bf16.msra.mxu0 0
      %3533 = vmatprep.subr.bf16.mxu0 0
      %3534 = vmatpush1.bf16.msra.mxu0 0
      %3535 = vmatprep.subr.bf16.mxu0 0
      %3536 = vmatpush1.bf16.msra.mxu0 0
      %3537 = vmatprep.subr.bf16.mxu0 0
      %3538 = vmatpush1.bf16.msra.mxu0 0
      %3539 = vmatprep.subr.bf16.mxu0 0
      %3540 = vmatpush1.bf16.msra.mxu0 0
      %3541 = vmatprep.mubr.bf16.mxu0 0
      %3542 = vmatmul.mubr.bf16.gmra.mrb[0].mxu0 %v3462
      %v3543 = vpop.f32.mrb[0].mxu0
      %v3544 = vadd.f32 0.0, %v3543
      %v3545 = vpop.f32.mrb[0].mxu0
      %v3546 = vpop.f32.mrb[0].mxu0
      %v3547 = vadd.f32 0.0, %v3546
      %v3548 = vpop.f32.mrb[0].mxu0
      %3549 = vmatprep.mubr.bf16.mxu0 0
      %3550 = vmatmul.mubr.bf16.gmra.mrb[0].mxu0 %v3465
      %v3551 = vpop.f32.mrb[0].mxu0
      %v3552 = vadd.f32 0.0, %v3551
      %v3553 = vpop.f32.mrb[0].mxu0
      %v3554 = vpop.f32.mrb[0].mxu0
      %v3555 = vadd.f32 0.0, %v3554
      %v3556 = vpop.f32.mrb[0].mxu0
      %3557 = vmatprep.mubr.bf16.mxu0 0
      %3558 = vmatmul.mubr.bf16.gmra.mrb[0].mxu0 %v3468
      %v3559 = vpop.f32.mrb[0].mxu0
      %v3560 = vadd.f32 0.0, %v3559
      %v3561 = vpop.f32.mrb[0].mxu0
      %v3562 = vpop.f32.mrb[0].mxu0
      %v3563 = vadd.f32 0.0, %v3562
      %v3564 = vpop.f32.mrb[0].mxu0
      %3565 = vmatprep.mubr.bf16.mxu0 0
      %3566 = vmatmul.mubr.bf16.gmra.mrb[0].mxu0 %v3471
      %v3567 = vpop.f32.mrb[0].mxu0
      %v3568 = vadd.f32 0.0, %v3567
      %v3569 = vpop.f32.mrb[0].mxu0
      %v3570 = vpop.f32.mrb[0].mxu0
      %v3571 = vadd.f32 0.0, %v3570
      %v3572 = vpop.f32.mrb[0].mxu0
      %3573 = vmatprep.mubr.bf16.mxu0 0
      %3574 = vmatmul.mubr.bf16.gmra.mrb[0].mxu0 %v3474
      %v3575 = vpop.f32.mrb[0].mxu0
      %v3576 = vadd.f32 0.0, %v3575
      %v3577 = vpop.f32.mrb[0].mxu0
      %v3578 = vpop.f32.mrb[0].mxu0
      %v3579 = vadd.f32 0.0, %v3578
      %v3580 = vpop.f32.mrb[0].mxu0
      %3581 = vmatprep.mubr.bf16.mxu0 0
      %3582 = vmatmul.mubr.bf16.gmra.mrb[0].mxu0 %v3477
      %v3583 = vpop.f32.mrb[0].mxu0
      %v3584 = vadd.f32 0.0, %v3583
      %v3585 = vpop.f32.mrb[0].mxu0
      %v3586 = vpop.f32.mrb[0].mxu0
      %v3587 = vadd.f32 0.0, %v3586
      %v3588 = vpop.f32.mrb[0].mxu0
      %3589 = vmatprep.mubr.bf16.mxu0 0
      %3590 = vmatmul.mubr.bf16.gmra.mrb[0].mxu0 %v3480
      %v3591 = vpop.f32.mrb[0].mxu0
      %v3592 = vadd.f32 0.0, %v3591
      %v3593 = vpop.f32.mrb[0].mxu0
      %v3594 = vpop.f32.mrb[0].mxu0
      %v3595 = vadd.f32 0.0, %v3594
      %v3596 = vpop.f32.mrb[0].mxu0
      %3597 = vmatprep.mubr.bf16.mxu0 0
      %3598 = vmatmul.mubr.bf16.gmra.mrb[0].mxu0 %v3483
      %v3599 = vpop.f32.mrb[0].mxu0
      %v3600 = vadd.f32 0.0, %v3599
      %v3601 = vpop.f32.mrb[0].mxu0
      %v3602 = vpop.f32.mrb[0].mxu0
      %v3603 = vadd.f32 0.0, %v3602
      %v3604 = vpop.f32.mrb[0].mxu0
      %3605 = vmatprep.mubr.bf16.mxu0 0
      %3606 = vmatmul.mubr.bf16.gmra.mrb[0].mxu0 %v3486
      %v3607 = vpop.f32.mrb[0].mxu0
      %v3608 = vadd.f32 0.0, %v3607
      %v3609 = vpop.f32.mrb[0].mxu0
      %v3610 = vpop.f32.mrb[0].mxu0
      %v3611 = vadd.f32 0.0, %v3610
      %v3612 = vpop.f32.mrb[0].mxu0
      %3613 = vmatprep.mubr.bf16.mxu0 0
      %3614 = vmatmul.mubr.bf16.gmra.mrb[0].mxu0 %v3489
      %v3615 = vpop.f32.mrb[0].mxu0
      %v3616 = vadd.f32 0.0, %v3615
      %v3617 = vpop.f32.mrb[0].mxu0
      %v3618 = vpop.f32.mrb[0].mxu0
      %v3619 = vadd.f32 0.0, %v3618
      %v3620 = vpop.f32.mrb[0].mxu0
      %3621 = vmatprep.mubr.bf16.mxu0 0
      %3622 = vmatmul.mubr.bf16.gmra.mrb[0].mxu0 %v3492
      %v3623 = vpop.f32.mrb[0].mxu0
      %v3624 = vadd.f32 0.0, %v3623
      %v3625 = vpop.f32.mrb[0].mxu0
      %v3626 = vpop.f32.mrb[0].mxu0
      %v3627 = vadd.f32 0.0, %v3626
      %v3628 = vpop.f32.mrb[0].mxu0
      %3629 = vmatprep.mubr.bf16.mxu0 0
      %3630 = vmatmul.mubr.bf16.gmra.mrb[0].mxu0 %v3495
      %v3631 = vpop.f32.mrb[0].mxu0
      %v3632 = vadd.f32 0.0, %v3631
      %v3633 = vpop.f32.mrb[0].mxu0
      %v3634 = vpop.f32.mrb[0].mxu0
      %v3635 = vadd.f32 0.0, %v3634
      %v3636 = vpop.f32.mrb[0].mxu0
      %3637 = vmatprep.mubr.bf16.mxu0 0
      %3638 = vmatmul.mubr.bf16.gmra.mrb[0].mxu0 %v3498
      %v3639 = vpop.f32.mrb[0].mxu0
      %v3640 = vadd.f32 0.0, %v3639
      %v3641 = vpop.f32.mrb[0].mxu0
      %v3642 = vpop.f32.mrb[0].mxu0
      %v3643 = vadd.f32 0.0, %v3642
      %v3644 = vpop.f32.mrb[0].mxu0
      %3645 = vmatprep.mubr.bf16.mxu0 0
      %3646 = vmatmul.mubr.bf16.gmra.mrb[0].mxu0 %v3501
      %v3647 = vpop.f32.mrb[0].mxu0
      %v3648 = vadd.f32 0.0, %v3647
      %v3649 = vpop.f32.mrb[0].mxu0
      %v3650 = vpop.f32.mrb[0].mxu0
      %v3651 = vadd.f32 0.0, %v3650
      %v3652 = vpop.f32.mrb[0].mxu0
      %3653 = vmatprep.mubr.bf16.mxu0 0
      %3654 = vmatmul.mubr.bf16.gmra.mrb[0].mxu0 %v3504
      %v3655 = vpop.f32.mrb[0].mxu0
      %v3656 = vadd.f32 0.0, %v3655
      %v3657 = vpop.f32.mrb[0].mxu0
      %v3658 = vpop.f32.mrb[0].mxu0
      %v3659 = vadd.f32 0.0, %v3658
      %v3660 = vpop.f32.mrb[0].mxu0
      %3661 = vmatprep.mubr.bf16.mxu0 0
      %3662 = vmatmul.mubr.bf16.gmra.mrb[0].mxu0 %v3507
      %v3663 = vpop.f32.mrb[0].mxu0
      %v3664 = vadd.f32 0.0, %v3663
      %v3665 = vpop.f32.mrb[0].mxu0
      %v3666 = vpop.f32.mrb[0].mxu0
      %v3667 = vadd.f32 0.0, %v3666
      %v3668 = vpop.f32.mrb[0].mxu0
      %3669 = vdwg.mxu0
      %s3670 = smul.u32 %s251, 3
      %s3671 = smul.addr %s3670, 4
      %s3672 = scalar_lea.vmem %s238, %s3671
      %v3673 = vld [vmem:[%s3672] sm:$0xf]
      %v3674 = vld [vmem:[%s3672 + $0x4] sm:$0xf]
      %v3675 = vld [vmem:[%s3672 + $0xc] sm:$0xf]
      %v3676 = vld [vmem:[%s3672 + $0x10] sm:$0xf]
      %v3677 = vld [vmem:[%s3672 + $0x18] sm:$0xf]
      %v3678 = vld [vmem:[%s3672 + $0x1c] sm:$0xf]
      %v3679 = vld [vmem:[%s3672 + $0x24] sm:$0xf]
      %v3680 = vld [vmem:[%s3672 + $0x28] sm:$0xf]
      %v3681 = vld [vmem:[%s3672 + $0x30] sm:$0xf]
      %v3682 = vld [vmem:[%s3672 + $0x34] sm:$0xf]
      %v3683 = vld [vmem:[%s3672 + $0x3c] sm:$0xf]
      %v3684 = vld [vmem:[%s3672 + $0x40] sm:$0xf]
      %v3685 = vld [vmem:[%s3672 + $0x48] sm:$0xf]
      %v3686 = vld [vmem:[%s3672 + $0x4c] sm:$0xf]
      %v3687 = vld [vmem:[%s3672 + $0x54] sm:$0xf]
      %v3688 = vld [vmem:[%s3672 + $0x58] sm:$0xf]
      %v3689 = vld [vmem:[%s3672 + $0x60] sm:$0xf]
      %v3690 = vld [vmem:[%s3672 + $0x64] sm:$0xf]
      %v3691 = vld [vmem:[%s3672 + $0x6c] sm:$0xf]
      %v3692 = vld [vmem:[%s3672 + $0x70] sm:$0xf]
      %v3693 = vld [vmem:[%s3672 + $0x78] sm:$0xf]
      %v3694 = vld [vmem:[%s3672 + $0x7c] sm:$0xf]
      %v3695 = vld [vmem:[%s3672 + $0x84] sm:$0xf]
      %v3696 = vld [vmem:[%s3672 + $0x88] sm:$0xf]
      %v3697 = vld [vmem:[%s3672 + $0x90] sm:$0xf]
      %v3698 = vld [vmem:[%s3672 + $0x94] sm:$0xf]
      %v3699 = vld [vmem:[%s3672 + $0x9c] sm:$0xf]
      %v3700 = vld [vmem:[%s3672 + $0xa0] sm:$0xf]
      %v3701 = vld [vmem:[%s3672 + $0xa8] sm:$0xf]
      %v3702 = vld [vmem:[%s3672 + $0xac] sm:$0xf]
      %v3703 = vld [vmem:[%s3672 + $0xb4] sm:$0xf]
      %v3704 = vld [vmem:[%s3672 + $0xb8] sm:$0xf]
      %v3705 = vunpack.c.l.bf16 %v3673
      %v3706 = vunpack.c.l.bf16 %v3674
      %v3707 = vunpack.c.l.bf16 %v3675
      %v3708 = vunpack.c.l.bf16 %v3676
      %v3709 = vunpack.c.l.bf16 %v3677
      %v3710 = vunpack.c.l.bf16 %v3678
      %v3711 = vunpack.c.l.bf16 %v3679
      %v3712 = vunpack.c.l.bf16 %v3680
      %v3713 = vunpack.c.l.bf16 %v3681
      %v3714 = vunpack.c.l.bf16 %v3682
      %v3715 = vunpack.c.l.bf16 %v3683
      %v3716 = vunpack.c.l.bf16 %v3684
      %v3717 = vunpack.c.l.bf16 %v3685
      %v3718 = vunpack.c.l.bf16 %v3686
      %v3719 = vunpack.c.l.bf16 %v3687
      %v3720 = vunpack.c.l.bf16 %v3688
      %v3721 = vunpack.c.l.bf16 %v3689
      %v3722 = vunpack.c.l.bf16 %v3690
      %v3723 = vunpack.c.l.bf16 %v3691
      %v3724 = vunpack.c.l.bf16 %v3692
      %v3725 = vunpack.c.l.bf16 %v3693
      %v3726 = vunpack.c.l.bf16 %v3694
      %v3727 = vunpack.c.l.bf16 %v3695
      %v3728 = vunpack.c.l.bf16 %v3696
      %v3729 = vunpack.c.l.bf16 %v3697
      %v3730 = vunpack.c.l.bf16 %v3698
      %v3731 = vunpack.c.l.bf16 %v3699
      %v3732 = vunpack.c.l.bf16 %v3700
      %v3733 = vunpack.c.l.bf16 %v3701
      %v3734 = vunpack.c.l.bf16 %v3702
      %v3735 = vunpack.c.l.bf16 %v3703
      %v3736 = vunpack.c.l.bf16 %v3704
      %v3737 = vld [vmem:[%s3672 + $0x8] sm:$0x1]
      %v3738 = vld [vmem:[%s3672 + $0x14] sm:$0x1]
      %v3739 = vld [vmem:[%s3672 + $0x20] sm:$0x1]
      %v3740 = vld [vmem:[%s3672 + $0x2c] sm:$0x1]
      %v3741 = vld [vmem:[%s3672 + $0x38] sm:$0x1]
      %v3742 = vld [vmem:[%s3672 + $0x44] sm:$0x1]
      %v3743 = vld [vmem:[%s3672 + $0x50] sm:$0x1]
      %v3744 = vld [vmem:[%s3672 + $0x5c] sm:$0x1]
      %v3745 = vld [vmem:[%s3672 + $0x68] sm:$0x1]
      %v3746 = vld [vmem:[%s3672 + $0x74] sm:$0x1]
      %v3747 = vld [vmem:[%s3672 + $0x80] sm:$0x1]
      %v3748 = vld [vmem:[%s3672 + $0x8c] sm:$0x1]
      %v3749 = vld [vmem:[%s3672 + $0x98] sm:$0x1]
      %v3750 = vld [vmem:[%s3672 + $0xa4] sm:$0x1]
      %v3751 = vld [vmem:[%s3672 + $0xb0] sm:$0x1]
      %v3752 = vld [vmem:[%s3672 + $0xbc] sm:$0x1]
      %v3753 = vunpack.c.l.bf16 %v3737
      %v3754 = vunpack.c.l.bf16 %v3738
      %v3755 = vunpack.c.l.bf16 %v3739
      %v3756 = vunpack.c.l.bf16 %v3740
      %v3757 = vunpack.c.l.bf16 %v3741
      %v3758 = vunpack.c.l.bf16 %v3742
      %v3759 = vunpack.c.l.bf16 %v3743
      %v3760 = vunpack.c.l.bf16 %v3744
      %v3761 = vunpack.c.l.bf16 %v3745
      %v3762 = vunpack.c.l.bf16 %v3746
      %v3763 = vunpack.c.l.bf16 %v3747
      %v3764 = vunpack.c.l.bf16 %v3748
      %v3765 = vunpack.c.l.bf16 %v3749
      %v3766 = vunpack.c.l.bf16 %v3750
      %v3767 = vunpack.c.l.bf16 %v3751
      %v3768 = vunpack.c.l.bf16 %v3752
      %v3817 = vrot.slane %v3705, 1
      %v3818 = vrot.slane %v3706, 1
      %v3819 = vsel %vm400, %v3817, %v3818
      %v3820 = vrot.slane %v3753, 1
      %v3821 = vsel %vm400, %v3818, %v3820
      %v3822 = vrot.slane %v3707, 1
      %v3823 = vrot.slane %v3708, 1
      %v3824 = vsel %vm400, %v3822, %v3823
      %v3825 = vrot.slane %v3754, 1
      %v3826 = vsel %vm400, %v3823, %v3825
      %v3827 = vrot.slane %v3709, 1
      %v3828 = vrot.slane %v3710, 1
      %v3829 = vsel %vm400, %v3827, %v3828
      %v3830 = vrot.slane %v3755, 1
      %v3831 = vsel %vm400, %v3828, %v3830
      %v3832 = vrot.slane %v3711, 1
      %v3833 = vrot.slane %v3712, 1
      %v3834 = vsel %vm400, %v3832, %v3833
      %v3835 = vrot.slane %v3756, 1
      %v3836 = vsel %vm400, %v3833, %v3835
      %v3837 = vrot.slane %v3713, 1
      %v3838 = vrot.slane %v3714, 1
      %v3839 = vsel %vm400, %v3837, %v3838
      %v3840 = vrot.slane %v3757, 1
      %v3841 = vsel %vm400, %v3838, %v3840
      %v3842 = vrot.slane %v3715, 1
      %v3843 = vrot.slane %v3716, 1
      %v3844 = vsel %vm400, %v3842, %v3843
      %v3845 = vrot.slane %v3758, 1
      %v3846 = vsel %vm400, %v3843, %v3845
      %v3847 = vrot.slane %v3717, 1
      %v3848 = vrot.slane %v3718, 1
      %v3849 = vsel %vm400, %v3847, %v3848
      %v3850 = vrot.slane %v3759, 1
      %v3851 = vsel %vm400, %v3848, %v3850
      %v3852 = vrot.slane %v3719, 1
      %v3853 = vrot.slane %v3720, 1
      %v3854 = vsel %vm400, %v3852, %v3853
      %v3855 = vrot.slane %v3760, 1
      %v3856 = vsel %vm400, %v3853, %v3855
      %v3857 = vrot.slane %v3721, 1
      %v3858 = vrot.slane %v3722, 1
      %v3859 = vsel %vm400, %v3857, %v3858
      %v3860 = vrot.slane %v3761, 1
      %v3861 = vsel %vm400, %v3858, %v3860
      %v3862 = vrot.slane %v3723, 1
      %v3863 = vrot.slane %v3724, 1
      %v3864 = vsel %vm400, %v3862, %v3863
      %v3865 = vrot.slane %v3762, 1
      %v3866 = vsel %vm400, %v3863, %v3865
      %v3867 = vrot.slane %v3725, 1
      %v3868 = vrot.slane %v3726, 1
      %v3869 = vsel %vm400, %v3867, %v3868
      %v3870 = vrot.slane %v3763, 1
      %v3871 = vsel %vm400, %v3868, %v3870
      %v3872 = vrot.slane %v3727, 1
      %v3873 = vrot.slane %v3728, 1
      %v3874 = vsel %vm400, %v3872, %v3873
      %v3875 = vrot.slane %v3764, 1
      %v3876 = vsel %vm400, %v3873, %v3875
      %v3877 = vrot.slane %v3729, 1
      %v3878 = vrot.slane %v3730, 1
      %v3879 = vsel %vm400, %v3877, %v3878
      %v3880 = vrot.slane %v3765, 1
      %v3881 = vsel %vm400, %v3878, %v3880
      %v3882 = vrot.slane %v3731, 1
      %v3883 = vrot.slane %v3732, 1
      %v3884 = vsel %vm400, %v3882, %v3883
      %v3885 = vrot.slane %v3766, 1
      %v3886 = vsel %vm400, %v3883, %v3885
      %v3887 = vrot.slane %v3733, 1
      %v3888 = vrot.slane %v3734, 1
      %v3889 = vsel %vm400, %v3887, %v3888
      %v3890 = vrot.slane %v3767, 1
      %v3891 = vsel %vm400, %v3888, %v3890
      %v3892 = vrot.slane %v3735, 1
      %v3893 = vrot.slane %v3736, 1
      %v3894 = vsel %vm400, %v3892, %v3893
      %v3895 = vrot.slane %v3768, 1
      %v3896 = vsel %vm400, %v3893, %v3895
      %v3897 = vld [vmem:[%s3672] sm:$0xe]
      %v3898 = vld [vmem:[%s3672 + $0xc] sm:$0xe]
      %v3899 = vld [vmem:[%s3672 + $0x18] sm:$0xe]
      %v3900 = vld [vmem:[%s3672 + $0x24] sm:$0xe]
      %v3901 = vld [vmem:[%s3672 + $0x30] sm:$0xe]
      %v3902 = vld [vmem:[%s3672 + $0x3c] sm:$0xe]
      %v3903 = vld [vmem:[%s3672 + $0x48] sm:$0xe]
      %v3904 = vld [vmem:[%s3672 + $0x54] sm:$0xe]
      %v3905 = vld [vmem:[%s3672 + $0x60] sm:$0xe]
      %v3906 = vld [vmem:[%s3672 + $0x6c] sm:$0xe]
      %v3907 = vld [vmem:[%s3672 + $0x78] sm:$0xe]
      %v3908 = vld [vmem:[%s3672 + $0x84] sm:$0xe]
      %v3909 = vld [vmem:[%s3672 + $0x90] sm:$0xe]
      %v3910 = vld [vmem:[%s3672 + $0x9c] sm:$0xe]
      %v3911 = vld [vmem:[%s3672 + $0xa8] sm:$0xe]
      %v3912 = vld [vmem:[%s3672 + $0xb4] sm:$0xe]
      %v3913 = vunpack.c.l.bf16 %v3897
      %v3914 = vunpack.c.l.bf16 %v3898
      %v3915 = vunpack.c.l.bf16 %v3899
      %v3916 = vunpack.c.l.bf16 %v3900
      %v3917 = vunpack.c.l.bf16 %v3901
      %v3918 = vunpack.c.l.bf16 %v3902
      %v3919 = vunpack.c.l.bf16 %v3903
      %v3920 = vunpack.c.l.bf16 %v3904
      %v3921 = vunpack.c.l.bf16 %v3905
      %v3922 = vunpack.c.l.bf16 %v3906
      %v3923 = vunpack.c.l.bf16 %v3907
      %v3924 = vunpack.c.l.bf16 %v3908
      %v3925 = vunpack.c.l.bf16 %v3909
      %v3926 = vunpack.c.l.bf16 %v3910
      %v3927 = vunpack.c.l.bf16 %v3911
      %v3928 = vunpack.c.l.bf16 %v3912
      %v3945 = vrot.slane %v3913, 2
      %v3946 = vrot.slane %v3706, 2
      %v3947 = vsel %vm561, %v3945, %v3946
      %v3948 = vrot.slane %v3753, 2
      %v3949 = vsel %vm561, %v3946, %v3948
      %v3950 = vrot.slane %v3914, 2
      %v3951 = vrot.slane %v3708, 2
      %v3952 = vsel %vm561, %v3950, %v3951
      %v3953 = vrot.slane %v3754, 2
      %v3954 = vsel %vm561, %v3951, %v3953
      %v3955 = vrot.slane %v3915, 2
      %v3956 = vrot.slane %v3710, 2
      %v3957 = vsel %vm561, %v3955, %v3956
      %v3958 = vrot.slane %v3755, 2
      %v3959 = vsel %vm561, %v3956, %v3958
      %v3960 = vrot.slane %v3916, 2
      %v3961 = vrot.slane %v3712, 2
      %v3962 = vsel %vm561, %v3960, %v3961
      %v3963 = vrot.slane %v3756, 2
      %v3964 = vsel %vm561, %v3961, %v3963
      %v3965 = vrot.slane %v3917, 2
      %v3966 = vrot.slane %v3714, 2
      %v3967 = vsel %vm561, %v3965, %v3966
      %v3968 = vrot.slane %v3757, 2
      %v3969 = vsel %vm561, %v3966, %v3968
      %v3970 = vrot.slane %v3918, 2
      %v3971 = vrot.slane %v3716, 2
      %v3972 = vsel %vm561, %v3970, %v3971
      %v3973 = vrot.slane %v3758, 2
      %v3974 = vsel %vm561, %v3971, %v3973
      %v3975 = vrot.slane %v3919, 2
      %v3976 = vrot.slane %v3718, 2
      %v3977 = vsel %vm561, %v3975, %v3976
      %v3978 = vrot.slane %v3759, 2
      %v3979 = vsel %vm561, %v3976, %v3978
      %v3980 = vrot.slane %v3920, 2
      %v3981 = vrot.slane %v3720, 2
      %v3982 = vsel %vm561, %v3980, %v3981
      %v3983 = vrot.slane %v3760, 2
      %v3984 = vsel %vm561, %v3981, %v3983
      %v3985 = vrot.slane %v3921, 2
      %v3986 = vrot.slane %v3722, 2
      %v3987 = vsel %vm561, %v3985, %v3986
      %v3988 = vrot.slane %v3761, 2
      %v3989 = vsel %vm561, %v3986, %v3988
      %v3990 = vrot.slane %v3922, 2
      %v3991 = vrot.slane %v3724, 2
      %v3992 = vsel %vm561, %v3990, %v3991
      %v3993 = vrot.slane %v3762, 2
      %v3994 = vsel %vm561, %v3991, %v3993
      %v3995 = vrot.slane %v3923, 2
      %v3996 = vrot.slane %v3726, 2
      %v3997 = vsel %vm561, %v3995, %v3996
      %v3998 = vrot.slane %v3763, 2
      %v3999 = vsel %vm561, %v3996, %v3998
      %v4000 = vrot.slane %v3924, 2
      %v4001 = vrot.slane %v3728, 2
      %v4002 = vsel %vm561, %v4000, %v4001
      %v4003 = vrot.slane %v3764, 2
      %v4004 = vsel %vm561, %v4001, %v4003
      %v4005 = vrot.slane %v3925, 2
      %v4006 = vrot.slane %v3730, 2
      %v4007 = vsel %vm561, %v4005, %v4006
      %v4008 = vrot.slane %v3765, 2
      %v4009 = vsel %vm561, %v4006, %v4008
      %v4010 = vrot.slane %v3926, 2
      %v4011 = vrot.slane %v3732, 2
      %v4012 = vsel %vm561, %v4010, %v4011
      %v4013 = vrot.slane %v3766, 2
      %v4014 = vsel %vm561, %v4011, %v4013
      %v4015 = vrot.slane %v3927, 2
      %v4016 = vrot.slane %v3734, 2
      %v4017 = vsel %vm561, %v4015, %v4016
      %v4018 = vrot.slane %v3767, 2
      %v4019 = vsel %vm561, %v4016, %v4018
      %v4020 = vrot.slane %v3928, 2
      %v4021 = vrot.slane %v3736, 2
      %v4022 = vsel %vm561, %v4020, %v4021
      %v4023 = vrot.slane %v3768, 2
      %v4024 = vsel %vm561, %v4021, %v4023
      %v4025 = vld [vmem:[%s3672 + $0x8] sm:$0x3]
      %v4026 = vld [vmem:[%s3672 + $0x14] sm:$0x3]
      %v4027 = vld [vmem:[%s3672 + $0x20] sm:$0x3]
      %v4028 = vld [vmem:[%s3672 + $0x2c] sm:$0x3]
      %v4029 = vld [vmem:[%s3672 + $0x38] sm:$0x3]
      %v4030 = vld [vmem:[%s3672 + $0x44] sm:$0x3]
      %v4031 = vld [vmem:[%s3672 + $0x50] sm:$0x3]
      %v4032 = vld [vmem:[%s3672 + $0x5c] sm:$0x3]
      %v4033 = vld [vmem:[%s3672 + $0x68] sm:$0x3]
      %v4034 = vld [vmem:[%s3672 + $0x74] sm:$0x3]
      %v4035 = vld [vmem:[%s3672 + $0x80] sm:$0x3]
      %v4036 = vld [vmem:[%s3672 + $0x8c] sm:$0x3]
      %v4037 = vld [vmem:[%s3672 + $0x98] sm:$0x3]
      %v4038 = vld [vmem:[%s3672 + $0xa4] sm:$0x3]
      %v4039 = vld [vmem:[%s3672 + $0xb0] sm:$0x3]
      %v4040 = vld [vmem:[%s3672 + $0xbc] sm:$0x3]
      %v4041 = vunpack.c.l.bf16 %v4025
      %v4042 = vunpack.c.l.bf16 %v4026
      %v4043 = vunpack.c.l.bf16 %v4027
      %v4044 = vunpack.c.l.bf16 %v4028
      %v4045 = vunpack.c.l.bf16 %v4029
      %v4046 = vunpack.c.l.bf16 %v4030
      %v4047 = vunpack.c.l.bf16 %v4031
      %v4048 = vunpack.c.l.bf16 %v4032
      %v4049 = vunpack.c.l.bf16 %v4033
      %v4050 = vunpack.c.l.bf16 %v4034
      %v4051 = vunpack.c.l.bf16 %v4035
      %v4052 = vunpack.c.l.bf16 %v4036
      %v4053 = vunpack.c.l.bf16 %v4037
      %v4054 = vunpack.c.l.bf16 %v4038
      %v4055 = vunpack.c.l.bf16 %v4039
      %v4056 = vunpack.c.l.bf16 %v4040
      %v4073 = vrot.slane %v3913, 3
      %v4074 = vrot.slane %v3706, 3
      %v4075 = vsel %vm690, %v4073, %v4074
      %v4076 = vrot.slane %v4041, 3
      %v4077 = vsel %vm690, %v4074, %v4076
      %v4078 = vrot.slane %v3914, 3
      %v4079 = vrot.slane %v3708, 3
      %v4080 = vsel %vm690, %v4078, %v4079
      %v4081 = vrot.slane %v4042, 3
      %v4082 = vsel %vm690, %v4079, %v4081
      %v4083 = vrot.slane %v3915, 3
      %v4084 = vrot.slane %v3710, 3
      %v4085 = vsel %vm690, %v4083, %v4084
      %v4086 = vrot.slane %v4043, 3
      %v4087 = vsel %vm690, %v4084, %v4086
      %v4088 = vrot.slane %v3916, 3
      %v4089 = vrot.slane %v3712, 3
      %v4090 = vsel %vm690, %v4088, %v4089
      %v4091 = vrot.slane %v4044, 3
      %v4092 = vsel %vm690, %v4089, %v4091
      %v4093 = vrot.slane %v3917, 3
      %v4094 = vrot.slane %v3714, 3
      %v4095 = vsel %vm690, %v4093, %v4094
      %v4096 = vrot.slane %v4045, 3
      %v4097 = vsel %vm690, %v4094, %v4096
      %v4098 = vrot.slane %v3918, 3
      %v4099 = vrot.slane %v3716, 3
      %v4100 = vsel %vm690, %v4098, %v4099
      %v4101 = vrot.slane %v4046, 3
      %v4102 = vsel %vm690, %v4099, %v4101
      %v4103 = vrot.slane %v3919, 3
      %v4104 = vrot.slane %v3718, 3
      %v4105 = vsel %vm690, %v4103, %v4104
      %v4106 = vrot.slane %v4047, 3
      %v4107 = vsel %vm690, %v4104, %v4106
      %v4108 = vrot.slane %v3920, 3
      %v4109 = vrot.slane %v3720, 3
      %v4110 = vsel %vm690, %v4108, %v4109
      %v4111 = vrot.slane %v4048, 3
      %v4112 = vsel %vm690, %v4109, %v4111
      %v4113 = vrot.slane %v3921, 3
      %v4114 = vrot.slane %v3722, 3
      %v4115 = vsel %vm690, %v4113, %v4114
      %v4116 = vrot.slane %v4049, 3
      %v4117 = vsel %vm690, %v4114, %v4116
      %v4118 = vrot.slane %v3922, 3
      %v4119 = vrot.slane %v3724, 3
      %v4120 = vsel %vm690, %v4118, %v4119
      %v4121 = vrot.slane %v4050, 3
      %v4122 = vsel %vm690, %v4119, %v4121
      %v4123 = vrot.slane %v3923, 3
      %v4124 = vrot.slane %v3726, 3
      %v4125 = vsel %vm690, %v4123, %v4124
      %v4126 = vrot.slane %v4051, 3
      %v4127 = vsel %vm690, %v4124, %v4126
      %v4128 = vrot.slane %v3924, 3
      %v4129 = vrot.slane %v3728, 3
      %v4130 = vsel %vm690, %v4128, %v4129
      %v4131 = vrot.slane %v4052, 3
      %v4132 = vsel %vm690, %v4129, %v4131
      %v4133 = vrot.slane %v3925, 3
      %v4134 = vrot.slane %v3730, 3
      %v4135 = vsel %vm690, %v4133, %v4134
      %v4136 = vrot.slane %v4053, 3
      %v4137 = vsel %vm690, %v4134, %v4136
      %v4138 = vrot.slane %v3926, 3
      %v4139 = vrot.slane %v3732, 3
      %v4140 = vsel %vm690, %v4138, %v4139
      %v4141 = vrot.slane %v4054, 3
      %v4142 = vsel %vm690, %v4139, %v4141
      %v4143 = vrot.slane %v3927, 3
      %v4144 = vrot.slane %v3734, 3
      %v4145 = vsel %vm690, %v4143, %v4144
      %v4146 = vrot.slane %v4055, 3
      %v4147 = vsel %vm690, %v4144, %v4146
      %v4148 = vrot.slane %v3928, 3
      %v4149 = vrot.slane %v3736, 3
      %v4150 = vsel %vm690, %v4148, %v4149
      %v4151 = vrot.slane %v4056, 3
      %v4152 = vsel %vm690, %v4149, %v4151
      %v4153 = vld [vmem:[%s3672] sm:$0xc]
      %v4154 = vld [vmem:[%s3672 + $0xc] sm:$0xc]
      %v4155 = vld [vmem:[%s3672 + $0x18] sm:$0xc]
      %v4156 = vld [vmem:[%s3672 + $0x24] sm:$0xc]
      %v4157 = vld [vmem:[%s3672 + $0x30] sm:$0xc]
      %v4158 = vld [vmem:[%s3672 + $0x3c] sm:$0xc]
      %v4159 = vld [vmem:[%s3672 + $0x48] sm:$0xc]
      %v4160 = vld [vmem:[%s3672 + $0x54] sm:$0xc]
      %v4161 = vld [vmem:[%s3672 + $0x60] sm:$0xc]
      %v4162 = vld [vmem:[%s3672 + $0x6c] sm:$0xc]
      %v4163 = vld [vmem:[%s3672 + $0x78] sm:$0xc]
      %v4164 = vld [vmem:[%s3672 + $0x84] sm:$0xc]
      %v4165 = vld [vmem:[%s3672 + $0x90] sm:$0xc]
      %v4166 = vld [vmem:[%s3672 + $0x9c] sm:$0xc]
      %v4167 = vld [vmem:[%s3672 + $0xa8] sm:$0xc]
      %v4168 = vld [vmem:[%s3672 + $0xb4] sm:$0xc]
      %v4169 = vunpack.c.l.bf16 %v4153
      %v4170 = vunpack.c.l.bf16 %v4154
      %v4171 = vunpack.c.l.bf16 %v4155
      %v4172 = vunpack.c.l.bf16 %v4156
      %v4173 = vunpack.c.l.bf16 %v4157
      %v4174 = vunpack.c.l.bf16 %v4158
      %v4175 = vunpack.c.l.bf16 %v4159
      %v4176 = vunpack.c.l.bf16 %v4160
      %v4177 = vunpack.c.l.bf16 %v4161
      %v4178 = vunpack.c.l.bf16 %v4162
      %v4179 = vunpack.c.l.bf16 %v4163
      %v4180 = vunpack.c.l.bf16 %v4164
      %v4181 = vunpack.c.l.bf16 %v4165
      %v4182 = vunpack.c.l.bf16 %v4166
      %v4183 = vunpack.c.l.bf16 %v4167
      %v4184 = vunpack.c.l.bf16 %v4168
      %vm4201 = vcmask 1043456
      %v4202 = vrot.slane %v4169, 4
      %v4203 = vrot.slane %v3706, 4
      %v4204 = vsel %vm4201, %v4202, %v4203
      %v4205 = vrot.slane %v4041, 4
      %v4206 = vsel %vm4201, %v4203, %v4205
      %v4207 = vrot.slane %v4170, 4
      %v4208 = vrot.slane %v3708, 4
      %v4209 = vsel %vm4201, %v4207, %v4208
      %v4210 = vrot.slane %v4042, 4
      %v4211 = vsel %vm4201, %v4208, %v4210
      %v4212 = vrot.slane %v4171, 4
      %v4213 = vrot.slane %v3710, 4
      %v4214 = vsel %vm4201, %v4212, %v4213
      %v4215 = vrot.slane %v4043, 4
      %v4216 = vsel %vm4201, %v4213, %v4215
      %v4217 = vrot.slane %v4172, 4
      %v4218 = vrot.slane %v3712, 4
      %v4219 = vsel %vm4201, %v4217, %v4218
      %v4220 = vrot.slane %v4044, 4
      %v4221 = vsel %vm4201, %v4218, %v4220
      %v4222 = vrot.slane %v4173, 4
      %v4223 = vrot.slane %v3714, 4
      %v4224 = vsel %vm4201, %v4222, %v4223
      %v4225 = vrot.slane %v4045, 4
      %v4226 = vsel %vm4201, %v4223, %v4225
      %v4227 = vrot.slane %v4174, 4
      %v4228 = vrot.slane %v3716, 4
      %v4229 = vsel %vm4201, %v4227, %v4228
      %v4230 = vrot.slane %v4046, 4
      %v4231 = vsel %vm4201, %v4228, %v4230
      %v4232 = vrot.slane %v4175, 4
      %v4233 = vrot.slane %v3718, 4
      %v4234 = vsel %vm4201, %v4232, %v4233
      %v4235 = vrot.slane %v4047, 4
      %v4236 = vsel %vm4201, %v4233, %v4235
      %v4237 = vrot.slane %v4176, 4
      %v4238 = vrot.slane %v3720, 4
      %v4239 = vsel %vm4201, %v4237, %v4238
      %v4240 = vrot.slane %v4048, 4
      %v4241 = vsel %vm4201, %v4238, %v4240
      %v4242 = vrot.slane %v4177, 4
      %v4243 = vrot.slane %v3722, 4
      %v4244 = vsel %vm4201, %v4242, %v4243
      %v4245 = vrot.slane %v4049, 4
      %v4246 = vsel %vm4201, %v4243, %v4245
      %v4247 = vrot.slane %v4178, 4
      %v4248 = vrot.slane %v3724, 4
      %v4249 = vsel %vm4201, %v4247, %v4248
      %v4250 = vrot.slane %v4050, 4
      %v4251 = vsel %vm4201, %v4248, %v4250
      %v4252 = vrot.slane %v4179, 4
      %v4253 = vrot.slane %v3726, 4
      %v4254 = vsel %vm4201, %v4252, %v4253
      %v4255 = vrot.slane %v4051, 4
      %v4256 = vsel %vm4201, %v4253, %v4255
      %v4257 = vrot.slane %v4180, 4
      %v4258 = vrot.slane %v3728, 4
      %v4259 = vsel %vm4201, %v4257, %v4258
      %v4260 = vrot.slane %v4052, 4
      %v4261 = vsel %vm4201, %v4258, %v4260
      %v4262 = vrot.slane %v4181, 4
      %v4263 = vrot.slane %v3730, 4
      %v4264 = vsel %vm4201, %v4262, %v4263
      %v4265 = vrot.slane %v4053, 4
      %v4266 = vsel %vm4201, %v4263, %v4265
      %v4267 = vrot.slane %v4182, 4
      %v4268 = vrot.slane %v3732, 4
      %v4269 = vsel %vm4201, %v4267, %v4268
      %v4270 = vrot.slane %v4054, 4
      %v4271 = vsel %vm4201, %v4268, %v4270
      %v4272 = vrot.slane %v4183, 4
      %v4273 = vrot.slane %v3734, 4
      %v4274 = vsel %vm4201, %v4272, %v4273
      %v4275 = vrot.slane %v4055, 4
      %v4276 = vsel %vm4201, %v4273, %v4275
      %v4277 = vrot.slane %v4184, 4
      %v4278 = vrot.slane %v3736, 4
      %v4279 = vsel %vm4201, %v4277, %v4278
      %v4280 = vrot.slane %v4056, 4
      %v4281 = vsel %vm4201, %v4278, %v4280
      %v4282 = vld [vmem:[%s255] sm:$0xf]
      %v4283 = vld [vmem:[%s255 + $0x4] sm:$0xf]
      %v4284 = vld [vmem:[%s255 + $0xc] sm:$0xf]
      %v4285 = vld [vmem:[%s255 + $0x10] sm:$0xf]
      %v4286 = vld [vmem:[%s255 + $0x18] sm:$0xf]
      %v4287 = vld [vmem:[%s255 + $0x1c] sm:$0xf]
      %v4288 = vld [vmem:[%s255 + $0x24] sm:$0xf]
      %v4289 = vld [vmem:[%s255 + $0x28] sm:$0xf]
      %v4290 = vld [vmem:[%s255 + $0x30] sm:$0xf]
      %v4291 = vld [vmem:[%s255 + $0x34] sm:$0xf]
      %v4292 = vld [vmem:[%s255 + $0x3c] sm:$0xf]
      %v4293 = vld [vmem:[%s255 + $0x40] sm:$0xf]
      %v4294 = vld [vmem:[%s255 + $0x48] sm:$0xf]
      %v4295 = vld [vmem:[%s255 + $0x4c] sm:$0xf]
      %v4296 = vld [vmem:[%s255 + $0x54] sm:$0xf]
      %v4297 = vld [vmem:[%s255 + $0x58] sm:$0xf]
      %v4298 = vld [vmem:[%s255 + $0x60] sm:$0xf]
      %v4299 = vld [vmem:[%s255 + $0x64] sm:$0xf]
      %v4300 = vld [vmem:[%s255 + $0x6c] sm:$0xf]
      %v4301 = vld [vmem:[%s255 + $0x70] sm:$0xf]
      %v4302 = vld [vmem:[%s255 + $0x78] sm:$0xf]
      %v4303 = vld [vmem:[%s255 + $0x7c] sm:$0xf]
      %v4304 = vld [vmem:[%s255 + $0x84] sm:$0xf]
      %v4305 = vld [vmem:[%s255 + $0x88] sm:$0xf]
      %v4306 = vld [vmem:[%s255 + $0x90] sm:$0xf]
      %v4307 = vld [vmem:[%s255 + $0x94] sm:$0xf]
      %v4308 = vld [vmem:[%s255 + $0x9c] sm:$0xf]
      %v4309 = vld [vmem:[%s255 + $0xa0] sm:$0xf]
      %v4310 = vld [vmem:[%s255 + $0xa8] sm:$0xf]
      %v4311 = vld [vmem:[%s255 + $0xac] sm:$0xf]
      %v4312 = vld [vmem:[%s255 + $0xb4] sm:$0xf]
      %v4313 = vld [vmem:[%s255 + $0xb8] sm:$0xf]
      %v4314 = vunpack.c.l.bf16 %v4282
      %v4315 = vunpack.c.l.bf16 %v4283
      %v4316 = vunpack.c.l.bf16 %v4284
      %v4317 = vunpack.c.l.bf16 %v4285
      %v4318 = vunpack.c.l.bf16 %v4286
      %v4319 = vunpack.c.l.bf16 %v4287
      %v4320 = vunpack.c.l.bf16 %v4288
      %v4321 = vunpack.c.l.bf16 %v4289
      %v4322 = vunpack.c.l.bf16 %v4290
      %v4323 = vunpack.c.l.bf16 %v4291
      %v4324 = vunpack.c.l.bf16 %v4292
      %v4325 = vunpack.c.l.bf16 %v4293
      %v4326 = vunpack.c.l.bf16 %v4294
      %v4327 = vunpack.c.l.bf16 %v4295
      %v4328 = vunpack.c.l.bf16 %v4296
      %v4329 = vunpack.c.l.bf16 %v4297
      %v4330 = vunpack.c.l.bf16 %v4298
      %v4331 = vunpack.c.l.bf16 %v4299
      %v4332 = vunpack.c.l.bf16 %v4300
      %v4333 = vunpack.c.l.bf16 %v4301
      %v4334 = vunpack.c.l.bf16 %v4302
      %v4335 = vunpack.c.l.bf16 %v4303
      %v4336 = vunpack.c.l.bf16 %v4304
      %v4337 = vunpack.c.l.bf16 %v4305
      %v4338 = vunpack.c.l.bf16 %v4306
      %v4339 = vunpack.c.l.bf16 %v4307
      %v4340 = vunpack.c.l.bf16 %v4308
      %v4341 = vunpack.c.l.bf16 %v4309
      %v4342 = vunpack.c.l.bf16 %v4310
      %v4343 = vunpack.c.l.bf16 %v4311
      %v4344 = vunpack.c.l.bf16 %v4312
      %v4345 = vunpack.c.l.bf16 %v4313
      %v4346 = vld [vmem:[%s255] sm:$0xc]
      %v4347 = vld [vmem:[%s255 + $0xc] sm:$0xc]
      %v4348 = vld [vmem:[%s255 + $0x18] sm:$0xc]
      %v4349 = vld [vmem:[%s255 + $0x24] sm:$0xc]
      %v4350 = vld [vmem:[%s255 + $0x30] sm:$0xc]
      %v4351 = vld [vmem:[%s255 + $0x3c] sm:$0xc]
      %v4352 = vld [vmem:[%s255 + $0x48] sm:$0xc]
      %v4353 = vld [vmem:[%s255 + $0x54] sm:$0xc]
      %v4354 = vld [vmem:[%s255 + $0x60] sm:$0xc]
      %v4355 = vld [vmem:[%s255 + $0x6c] sm:$0xc]
      %v4356 = vld [vmem:[%s255 + $0x78] sm:$0xc]
      %v4357 = vld [vmem:[%s255 + $0x84] sm:$0xc]
      %v4358 = vld [vmem:[%s255 + $0x90] sm:$0xc]
      %v4359 = vld [vmem:[%s255 + $0x9c] sm:$0xc]
      %v4360 = vld [vmem:[%s255 + $0xa8] sm:$0xc]
      %v4361 = vld [vmem:[%s255 + $0xb4] sm:$0xc]
      %v4362 = vunpack.c.l.bf16 %v4346
      %v4363 = vunpack.c.l.bf16 %v4347
      %v4364 = vunpack.c.l.bf16 %v4348
      %v4365 = vunpack.c.l.bf16 %v4349
      %v4366 = vunpack.c.l.bf16 %v4350
      %v4367 = vunpack.c.l.bf16 %v4351
      %v4368 = vunpack.c.l.bf16 %v4352
      %v4369 = vunpack.c.l.bf16 %v4353
      %v4370 = vunpack.c.l.bf16 %v4354
      %v4371 = vunpack.c.l.bf16 %v4355
      %v4372 = vunpack.c.l.bf16 %v4356
      %v4373 = vunpack.c.l.bf16 %v4357
      %v4374 = vunpack.c.l.bf16 %v4358
      %v4375 = vunpack.c.l.bf16 %v4359
      %v4376 = vunpack.c.l.bf16 %v4360
      %v4377 = vunpack.c.l.bf16 %v4361
      %v4394 = vrot.slane %v4362, 4
      %v4395 = vrot.slane %v305, 4
      %v4396 = vsel %vm4201, %v4394, %v4395
      %v4397 = vrot.slane %v658, 4
      %v4398 = vsel %vm4201, %v4395, %v4397
      %v4399 = vrot.slane %v4363, 4
      %v4400 = vrot.slane %v308, 4
      %v4401 = vsel %vm4201, %v4399, %v4400
      %v4402 = vrot.slane %v659, 4
      %v4403 = vsel %vm4201, %v4400, %v4402
      %v4404 = vrot.slane %v4364, 4
      %v4405 = vrot.slane %v311, 4
      %v4406 = vsel %vm4201, %v4404, %v4405
      %v4407 = vrot.slane %v660, 4
      %v4408 = vsel %vm4201, %v4405, %v4407
      %v4409 = vrot.slane %v4365, 4
      %v4410 = vrot.slane %v314, 4
      %v4411 = vsel %vm4201, %v4409, %v4410
      %v4412 = vrot.slane %v661, 4
      %v4413 = vsel %vm4201, %v4410, %v4412
      %v4414 = vrot.slane %v4366, 4
      %v4415 = vrot.slane %v317, 4
      %v4416 = vsel %vm4201, %v4414, %v4415
      %v4417 = vrot.slane %v662, 4
      %v4418 = vsel %vm4201, %v4415, %v4417
      %v4419 = vrot.slane %v4367, 4
      %v4420 = vrot.slane %v320, 4
      %v4421 = vsel %vm4201, %v4419, %v4420
      %v4422 = vrot.slane %v663, 4
      %v4423 = vsel %vm4201, %v4420, %v4422
      %v4424 = vrot.slane %v4368, 4
      %v4425 = vrot.slane %v323, 4
      %v4426 = vsel %vm4201, %v4424, %v4425
      %v4427 = vrot.slane %v664, 4
      %v4428 = vsel %vm4201, %v4425, %v4427
      %v4429 = vrot.slane %v4369, 4
      %v4430 = vrot.slane %v326, 4
      %v4431 = vsel %vm4201, %v4429, %v4430
      %v4432 = vrot.slane %v665, 4
      %v4433 = vsel %vm4201, %v4430, %v4432
      %v4434 = vrot.slane %v4370, 4
      %v4435 = vrot.slane %v329, 4
      %v4436 = vsel %vm4201, %v4434, %v4435
      %v4437 = vrot.slane %v666, 4
      %v4438 = vsel %vm4201, %v4435, %v4437
      %v4439 = vrot.slane %v4371, 4
      %v4440 = vrot.slane %v332, 4
      %v4441 = vsel %vm4201, %v4439, %v4440
      %v4442 = vrot.slane %v667, 4
      %v4443 = vsel %vm4201, %v4440, %v4442
      %v4444 = vrot.slane %v4372, 4
      %v4445 = vrot.slane %v335, 4
      %v4446 = vsel %vm4201, %v4444, %v4445
      %v4447 = vrot.slane %v668, 4
      %v4448 = vsel %vm4201, %v4445, %v4447
      %v4449 = vrot.slane %v4373, 4
      %v4450 = vrot.slane %v338, 4
      %v4451 = vsel %vm4201, %v4449, %v4450
      %v4452 = vrot.slane %v669, 4
      %v4453 = vsel %vm4201, %v4450, %v4452
      %v4454 = vrot.slane %v4374, 4
      %v4455 = vrot.slane %v341, 4
      %v4456 = vsel %vm4201, %v4454, %v4455
      %v4457 = vrot.slane %v670, 4
      %v4458 = vsel %vm4201, %v4455, %v4457
      %v4459 = vrot.slane %v4375, 4
      %v4460 = vrot.slane %v344, 4
      %v4461 = vsel %vm4201, %v4459, %v4460
      %v4462 = vrot.slane %v671, 4
      %v4463 = vsel %vm4201, %v4460, %v4462
      %v4464 = vrot.slane %v4376, 4
      %v4465 = vrot.slane %v347, 4
      %v4466 = vsel %vm4201, %v4464, %v4465
      %v4467 = vrot.slane %v672, 4
      %v4468 = vsel %vm4201, %v4465, %v4467
      %v4469 = vrot.slane %v4377, 4
      %v4470 = vrot.slane %v350, 4
      %v4471 = vsel %vm4201, %v4469, %v4470
      %v4472 = vrot.slane %v673, 4
      %v4473 = vsel %vm4201, %v4470, %v4472
      %v4474 = vld [vmem:[%s774] sm:$0xf]
      %v4475 = vld [vmem:[%s774 + $0x4] sm:$0xf]
      %v4476 = vld [vmem:[%s774 + $0xc] sm:$0xf]
      %v4477 = vld [vmem:[%s774 + $0x10] sm:$0xf]
      %v4478 = vld [vmem:[%s774 + $0x18] sm:$0xf]
      %v4479 = vld [vmem:[%s774 + $0x1c] sm:$0xf]
      %v4480 = vld [vmem:[%s774 + $0x24] sm:$0xf]
      %v4481 = vld [vmem:[%s774 + $0x28] sm:$0xf]
      %v4482 = vld [vmem:[%s774 + $0x30] sm:$0xf]
      %v4483 = vld [vmem:[%s774 + $0x34] sm:$0xf]
      %v4484 = vld [vmem:[%s774 + $0x3c] sm:$0xf]
      %v4485 = vld [vmem:[%s774 + $0x40] sm:$0xf]
      %v4486 = vld [vmem:[%s774 + $0x48] sm:$0xf]
      %v4487 = vld [vmem:[%s774 + $0x4c] sm:$0xf]
      %v4488 = vld [vmem:[%s774 + $0x54] sm:$0xf]
      %v4489 = vld [vmem:[%s774 + $0x58] sm:$0xf]
      %v4490 = vld [vmem:[%s774 + $0x60] sm:$0xf]
      %v4491 = vld [vmem:[%s774 + $0x64] sm:$0xf]
      %v4492 = vld [vmem:[%s774 + $0x6c] sm:$0xf]
      %v4493 = vld [vmem:[%s774 + $0x70] sm:$0xf]
      %v4494 = vld [vmem:[%s774 + $0x78] sm:$0xf]
      %v4495 = vld [vmem:[%s774 + $0x7c] sm:$0xf]
      %v4496 = vld [vmem:[%s774 + $0x84] sm:$0xf]
      %v4497 = vld [vmem:[%s774 + $0x88] sm:$0xf]
      %v4498 = vld [vmem:[%s774 + $0x90] sm:$0xf]
      %v4499 = vld [vmem:[%s774 + $0x94] sm:$0xf]
      %v4500 = vld [vmem:[%s774 + $0x9c] sm:$0xf]
      %v4501 = vld [vmem:[%s774 + $0xa0] sm:$0xf]
      %v4502 = vld [vmem:[%s774 + $0xa8] sm:$0xf]
      %v4503 = vld [vmem:[%s774 + $0xac] sm:$0xf]
      %v4504 = vld [vmem:[%s774 + $0xb4] sm:$0xf]
      %v4505 = vld [vmem:[%s774 + $0xb8] sm:$0xf]
      %v4506 = vunpack.c.l.bf16 %v4474
      %v4507 = vunpack.c.l.bf16 %v4475
      %v4508 = vunpack.c.l.bf16 %v4476
      %v4509 = vunpack.c.l.bf16 %v4477
      %v4510 = vunpack.c.l.bf16 %v4478
      %v4511 = vunpack.c.l.bf16 %v4479
      %v4512 = vunpack.c.l.bf16 %v4480
      %v4513 = vunpack.c.l.bf16 %v4481
      %v4514 = vunpack.c.l.bf16 %v4482
      %v4515 = vunpack.c.l.bf16 %v4483
      %v4516 = vunpack.c.l.bf16 %v4484
      %v4517 = vunpack.c.l.bf16 %v4485
      %v4518 = vunpack.c.l.bf16 %v4486
      %v4519 = vunpack.c.l.bf16 %v4487
      %v4520 = vunpack.c.l.bf16 %v4488
      %v4521 = vunpack.c.l.bf16 %v4489
      %v4522 = vunpack.c.l.bf16 %v4490
      %v4523 = vunpack.c.l.bf16 %v4491
      %v4524 = vunpack.c.l.bf16 %v4492
      %v4525 = vunpack.c.l.bf16 %v4493
      %v4526 = vunpack.c.l.bf16 %v4494
      %v4527 = vunpack.c.l.bf16 %v4495
      %v4528 = vunpack.c.l.bf16 %v4496
      %v4529 = vunpack.c.l.bf16 %v4497
      %v4530 = vunpack.c.l.bf16 %v4498
      %v4531 = vunpack.c.l.bf16 %v4499
      %v4532 = vunpack.c.l.bf16 %v4500
      %v4533 = vunpack.c.l.bf16 %v4501
      %v4534 = vunpack.c.l.bf16 %v4502
      %v4535 = vunpack.c.l.bf16 %v4503
      %v4536 = vunpack.c.l.bf16 %v4504
      %v4537 = vunpack.c.l.bf16 %v4505
      %v4538 = vld [vmem:[%s774] sm:$0xc]
      %v4539 = vld [vmem:[%s774 + $0xc] sm:$0xc]
      %v4540 = vld [vmem:[%s774 + $0x18] sm:$0xc]
      %v4541 = vld [vmem:[%s774 + $0x24] sm:$0xc]
      %v4542 = vld [vmem:[%s774 + $0x30] sm:$0xc]
      %v4543 = vld [vmem:[%s774 + $0x3c] sm:$0xc]
      %v4544 = vld [vmem:[%s774 + $0x48] sm:$0xc]
      %v4545 = vld [vmem:[%s774 + $0x54] sm:$0xc]
      %v4546 = vld [vmem:[%s774 + $0x60] sm:$0xc]
      %v4547 = vld [vmem:[%s774 + $0x6c] sm:$0xc]
      %v4548 = vld [vmem:[%s774 + $0x78] sm:$0xc]
      %v4549 = vld [vmem:[%s774 + $0x84] sm:$0xc]
      %v4550 = vld [vmem:[%s774 + $0x90] sm:$0xc]
      %v4551 = vld [vmem:[%s774 + $0x9c] sm:$0xc]
      %v4552 = vld [vmem:[%s774 + $0xa8] sm:$0xc]
      %v4553 = vld [vmem:[%s774 + $0xb4] sm:$0xc]
      %v4554 = vunpack.c.l.bf16 %v4538
      %v4555 = vunpack.c.l.bf16 %v4539
      %v4556 = vunpack.c.l.bf16 %v4540
      %v4557 = vunpack.c.l.bf16 %v4541
      %v4558 = vunpack.c.l.bf16 %v4542
      %v4559 = vunpack.c.l.bf16 %v4543
      %v4560 = vunpack.c.l.bf16 %v4544
      %v4561 = vunpack.c.l.bf16 %v4545
      %v4562 = vunpack.c.l.bf16 %v4546
      %v4563 = vunpack.c.l.bf16 %v4547
      %v4564 = vunpack.c.l.bf16 %v4548
      %v4565 = vunpack.c.l.bf16 %v4549
      %v4566 = vunpack.c.l.bf16 %v4550
      %v4567 = vunpack.c.l.bf16 %v4551
      %v4568 = vunpack.c.l.bf16 %v4552
      %v4569 = vunpack.c.l.bf16 %v4553
      %v4586 = vrot.slane %v4554, 4
      %v4587 = vrot.slane %v824, 4
      %v4588 = vsel %vm4201, %v4586, %v4587
      %v4589 = vrot.slane %v1143, 4
      %v4590 = vsel %vm4201, %v4587, %v4589
      %v4591 = vrot.slane %v4555, 4
      %v4592 = vrot.slane %v827, 4
      %v4593 = vsel %vm4201, %v4591, %v4592
      %v4594 = vrot.slane %v1144, 4
      %v4595 = vsel %vm4201, %v4592, %v4594
      %v4596 = vrot.slane %v4556, 4
      %v4597 = vrot.slane %v830, 4
      %v4598 = vsel %vm4201, %v4596, %v4597
      %v4599 = vrot.slane %v1145, 4
      %v4600 = vsel %vm4201, %v4597, %v4599
      %v4601 = vrot.slane %v4557, 4
      %v4602 = vrot.slane %v833, 4
      %v4603 = vsel %vm4201, %v4601, %v4602
      %v4604 = vrot.slane %v1146, 4
      %v4605 = vsel %vm4201, %v4602, %v4604
      %v4606 = vrot.slane %v4558, 4
      %v4607 = vrot.slane %v836, 4
      %v4608 = vsel %vm4201, %v4606, %v4607
      %v4609 = vrot.slane %v1147, 4
      %v4610 = vsel %vm4201, %v4607, %v4609
      %v4611 = vrot.slane %v4559, 4
      %v4612 = vrot.slane %v839, 4
      %v4613 = vsel %vm4201, %v4611, %v4612
      %v4614 = vrot.slane %v1148, 4
      %v4615 = vsel %vm4201, %v4612, %v4614
      %v4616 = vrot.slane %v4560, 4
      %v4617 = vrot.slane %v842, 4
      %v4618 = vsel %vm4201, %v4616, %v4617
      %v4619 = vrot.slane %v1149, 4
      %v4620 = vsel %vm4201, %v4617, %v4619
      %v4621 = vrot.slane %v4561, 4
      %v4622 = vrot.slane %v845, 4
      %v4623 = vsel %vm4201, %v4621, %v4622
      %v4624 = vrot.slane %v1150, 4
      %v4625 = vsel %vm4201, %v4622, %v4624
      %v4626 = vrot.slane %v4562, 4
      %v4627 = vrot.slane %v848, 4
      %v4628 = vsel %vm4201, %v4626, %v4627
      %v4629 = vrot.slane %v1151, 4
      %v4630 = vsel %vm4201, %v4627, %v4629
      %v4631 = vrot.slane %v4563, 4
      %v4632 = vrot.slane %v851, 4
      %v4633 = vsel %vm4201, %v4631, %v4632
      %v4634 = vrot.slane %v1152, 4
      %v4635 = vsel %vm4201, %v4632, %v4634
      %v4636 = vrot.slane %v4564, 4
      %v4637 = vrot.slane %v854, 4
      %v4638 = vsel %vm4201, %v4636, %v4637
      %v4639 = vrot.slane %v1153, 4
      %v4640 = vsel %vm4201, %v4637, %v4639
      %v4641 = vrot.slane %v4565, 4
      %v4642 = vrot.slane %v857, 4
      %v4643 = vsel %vm4201, %v4641, %v4642
      %v4644 = vrot.slane %v1154, 4
      %v4645 = vsel %vm4201, %v4642, %v4644
      %v4646 = vrot.slane %v4566, 4
      %v4647 = vrot.slane %v860, 4
      %v4648 = vsel %vm4201, %v4646, %v4647
      %v4649 = vrot.slane %v1155, 4
      %v4650 = vsel %vm4201, %v4647, %v4649
      %v4651 = vrot.slane %v4567, 4
      %v4652 = vrot.slane %v863, 4
      %v4653 = vsel %vm4201, %v4651, %v4652
      %v4654 = vrot.slane %v1156, 4
      %v4655 = vsel %vm4201, %v4652, %v4654
      %v4656 = vrot.slane %v4568, 4
      %v4657 = vrot.slane %v866, 4
      %v4658 = vsel %vm4201, %v4656, %v4657
      %v4659 = vrot.slane %v1157, 4
      %v4660 = vsel %vm4201, %v4657, %v4659
      %v4661 = vrot.slane %v4569, 4
      %v4662 = vrot.slane %v869, 4
      %v4663 = vsel %vm4201, %v4661, %v4662
      %v4664 = vrot.slane %v1158, 4
      %v4665 = vsel %vm4201, %v4662, %v4664
      %v4666 = vld [vmem:[%s1258] sm:$0xf]
      %v4667 = vld [vmem:[%s1258 + $0x4] sm:$0xf]
      %v4668 = vld [vmem:[%s1258 + $0xc] sm:$0xf]
      %v4669 = vld [vmem:[%s1258 + $0x10] sm:$0xf]
      %v4670 = vld [vmem:[%s1258 + $0x18] sm:$0xf]
      %v4671 = vld [vmem:[%s1258 + $0x1c] sm:$0xf]
      %v4672 = vld [vmem:[%s1258 + $0x24] sm:$0xf]
      %v4673 = vld [vmem:[%s1258 + $0x28] sm:$0xf]
      %v4674 = vld [vmem:[%s1258 + $0x30] sm:$0xf]
      %v4675 = vld [vmem:[%s1258 + $0x34] sm:$0xf]
      %v4676 = vld [vmem:[%s1258 + $0x3c] sm:$0xf]
      %v4677 = vld [vmem:[%s1258 + $0x40] sm:$0xf]
      %v4678 = vld [vmem:[%s1258 + $0x48] sm:$0xf]
      %v4679 = vld [vmem:[%s1258 + $0x4c] sm:$0xf]
      %v4680 = vld [vmem:[%s1258 + $0x54] sm:$0xf]
      %v4681 = vld [vmem:[%s1258 + $0x58] sm:$0xf]
      %v4682 = vld [vmem:[%s1258 + $0x60] sm:$0xf]
      %v4683 = vld [vmem:[%s1258 + $0x64] sm:$0xf]
      %v4684 = vld [vmem:[%s1258 + $0x6c] sm:$0xf]
      %v4685 = vld [vmem:[%s1258 + $0x70] sm:$0xf]
      %v4686 = vld [vmem:[%s1258 + $0x78] sm:$0xf]
      %v4687 = vld [vmem:[%s1258 + $0x7c] sm:$0xf]
      %v4688 = vld [vmem:[%s1258 + $0x84] sm:$0xf]
      %v4689 = vld [vmem:[%s1258 + $0x88] sm:$0xf]
      %v4690 = vld [vmem:[%s1258 + $0x90] sm:$0xf]
      %v4691 = vld [vmem:[%s1258 + $0x94] sm:$0xf]
      %v4692 = vld [vmem:[%s1258 + $0x9c] sm:$0xf]
      %v4693 = vld [vmem:[%s1258 + $0xa0] sm:$0xf]
      %v4694 = vld [vmem:[%s1258 + $0xa8] sm:$0xf]
      %v4695 = vld [vmem:[%s1258 + $0xac] sm:$0xf]
      %v4696 = vld [vmem:[%s1258 + $0xb4] sm:$0xf]
      %v4697 = vld [vmem:[%s1258 + $0xb8] sm:$0xf]
      %v4698 = vunpack.c.l.bf16 %v4666
      %v4699 = vunpack.c.l.bf16 %v4667
      %v4700 = vunpack.c.l.bf16 %v4668
      %v4701 = vunpack.c.l.bf16 %v4669
      %v4702 = vunpack.c.l.bf16 %v4670
      %v4703 = vunpack.c.l.bf16 %v4671
      %v4704 = vunpack.c.l.bf16 %v4672
      %v4705 = vunpack.c.l.bf16 %v4673
      %v4706 = vunpack.c.l.bf16 %v4674
      %v4707 = vunpack.c.l.bf16 %v4675
      %v4708 = vunpack.c.l.bf16 %v4676
      %v4709 = vunpack.c.l.bf16 %v4677
      %v4710 = vunpack.c.l.bf16 %v4678
      %v4711 = vunpack.c.l.bf16 %v4679
      %v4712 = vunpack.c.l.bf16 %v4680
      %v4713 = vunpack.c.l.bf16 %v4681
      %v4714 = vunpack.c.l.bf16 %v4682
      %v4715 = vunpack.c.l.bf16 %v4683
      %v4716 = vunpack.c.l.bf16 %v4684
      %v4717 = vunpack.c.l.bf16 %v4685
      %v4718 = vunpack.c.l.bf16 %v4686
      %v4719 = vunpack.c.l.bf16 %v4687
      %v4720 = vunpack.c.l.bf16 %v4688
      %v4721 = vunpack.c.l.bf16 %v4689
      %v4722 = vunpack.c.l.bf16 %v4690
      %v4723 = vunpack.c.l.bf16 %v4691
      %v4724 = vunpack.c.l.bf16 %v4692
      %v4725 = vunpack.c.l.bf16 %v4693
      %v4726 = vunpack.c.l.bf16 %v4694
      %v4727 = vunpack.c.l.bf16 %v4695
      %v4728 = vunpack.c.l.bf16 %v4696
      %v4729 = vunpack.c.l.bf16 %v4697
      %v4730 = vld [vmem:[%s1258] sm:$0xc]
      %v4731 = vld [vmem:[%s1258 + $0xc] sm:$0xc]
      %v4732 = vld [vmem:[%s1258 + $0x18] sm:$0xc]
      %v4733 = vld [vmem:[%s1258 + $0x24] sm:$0xc]
      %v4734 = vld [vmem:[%s1258 + $0x30] sm:$0xc]
      %v4735 = vld [vmem:[%s1258 + $0x3c] sm:$0xc]
      %v4736 = vld [vmem:[%s1258 + $0x48] sm:$0xc]
      %v4737 = vld [vmem:[%s1258 + $0x54] sm:$0xc]
      %v4738 = vld [vmem:[%s1258 + $0x60] sm:$0xc]
      %v4739 = vld [vmem:[%s1258 + $0x6c] sm:$0xc]
      %v4740 = vld [vmem:[%s1258 + $0x78] sm:$0xc]
      %v4741 = vld [vmem:[%s1258 + $0x84] sm:$0xc]
      %v4742 = vld [vmem:[%s1258 + $0x90] sm:$0xc]
      %v4743 = vld [vmem:[%s1258 + $0x9c] sm:$0xc]
      %v4744 = vld [vmem:[%s1258 + $0xa8] sm:$0xc]
      %v4745 = vld [vmem:[%s1258 + $0xb4] sm:$0xc]
      %v4746 = vunpack.c.l.bf16 %v4730
      %v4747 = vunpack.c.l.bf16 %v4731
      %v4748 = vunpack.c.l.bf16 %v4732
      %v4749 = vunpack.c.l.bf16 %v4733
      %v4750 = vunpack.c.l.bf16 %v4734
      %v4751 = vunpack.c.l.bf16 %v4735
      %v4752 = vunpack.c.l.bf16 %v4736
      %v4753 = vunpack.c.l.bf16 %v4737
      %v4754 = vunpack.c.l.bf16 %v4738
      %v4755 = vunpack.c.l.bf16 %v4739
      %v4756 = vunpack.c.l.bf16 %v4740
      %v4757 = vunpack.c.l.bf16 %v4741
      %v4758 = vunpack.c.l.bf16 %v4742
      %v4759 = vunpack.c.l.bf16 %v4743
      %v4760 = vunpack.c.l.bf16 %v4744
      %v4761 = vunpack.c.l.bf16 %v4745
      %v4778 = vrot.slane %v4746, 4
      %v4779 = vrot.slane %v1308, 4
      %v4780 = vsel %vm4201, %v4778, %v4779
      %v4781 = vrot.slane %v1659, 4
      %v4782 = vsel %vm4201, %v4779, %v4781
      %v4783 = vrot.slane %v4747, 4
      %v4784 = vrot.slane %v1311, 4
      %v4785 = vsel %vm4201, %v4783, %v4784
      %v4786 = vrot.slane %v1660, 4
      %v4787 = vsel %vm4201, %v4784, %v4786
      %v4788 = vrot.slane %v4748, 4
      %v4789 = vrot.slane %v1314, 4
      %v4790 = vsel %vm4201, %v4788, %v4789
      %v4791 = vrot.slane %v1661, 4
      %v4792 = vsel %vm4201, %v4789, %v4791
      %v4793 = vrot.slane %v4749, 4
      %v4794 = vrot.slane %v1317, 4
      %v4795 = vsel %vm4201, %v4793, %v4794
      %v4796 = vrot.slane %v1662, 4
      %v4797 = vsel %vm4201, %v4794, %v4796
      %v4798 = vrot.slane %v4750, 4
      %v4799 = vrot.slane %v1320, 4
      %v4800 = vsel %vm4201, %v4798, %v4799
      %v4801 = vrot.slane %v1663, 4
      %v4802 = vsel %vm4201, %v4799, %v4801
      %v4803 = vrot.slane %v4751, 4
      %v4804 = vrot.slane %v1323, 4
      %v4805 = vsel %vm4201, %v4803, %v4804
      %v4806 = vrot.slane %v1664, 4
      %v4807 = vsel %vm4201, %v4804, %v4806
      %v4808 = vrot.slane %v4752, 4
      %v4809 = vrot.slane %v1326, 4
      %v4810 = vsel %vm4201, %v4808, %v4809
      %v4811 = vrot.slane %v1665, 4
      %v4812 = vsel %vm4201, %v4809, %v4811
      %v4813 = vrot.slane %v4753, 4
      %v4814 = vrot.slane %v1329, 4
      %v4815 = vsel %vm4201, %v4813, %v4814
      %v4816 = vrot.slane %v1666, 4
      %v4817 = vsel %vm4201, %v4814, %v4816
      %v4818 = vrot.slane %v4754, 4
      %v4819 = vrot.slane %v1332, 4
      %v4820 = vsel %vm4201, %v4818, %v4819
      %v4821 = vrot.slane %v1667, 4
      %v4822 = vsel %vm4201, %v4819, %v4821
      %v4823 = vrot.slane %v4755, 4
      %v4824 = vrot.slane %v1335, 4
      %v4825 = vsel %vm4201, %v4823, %v4824
      %v4826 = vrot.slane %v1668, 4
      %v4827 = vsel %vm4201, %v4824, %v4826
      %v4828 = vrot.slane %v4756, 4
      %v4829 = vrot.slane %v1338, 4
      %v4830 = vsel %vm4201, %v4828, %v4829
      %v4831 = vrot.slane %v1669, 4
      %v4832 = vsel %vm4201, %v4829, %v4831
      %v4833 = vrot.slane %v4757, 4
      %v4834 = vrot.slane %v1341, 4
      %v4835 = vsel %vm4201, %v4833, %v4834
      %v4836 = vrot.slane %v1670, 4
      %v4837 = vsel %vm4201, %v4834, %v4836
      %v4838 = vrot.slane %v4758, 4
      %v4839 = vrot.slane %v1344, 4
      %v4840 = vsel %vm4201, %v4838, %v4839
      %v4841 = vrot.slane %v1671, 4
      %v4842 = vsel %vm4201, %v4839, %v4841
      %v4843 = vrot.slane %v4759, 4
      %v4844 = vrot.slane %v1347, 4
      %v4845 = vsel %vm4201, %v4843, %v4844
      %v4846 = vrot.slane %v1672, 4
      %v4847 = vsel %vm4201, %v4844, %v4846
      %v4848 = vrot.slane %v4760, 4
      %v4849 = vrot.slane %v1350, 4
      %v4850 = vsel %vm4201, %v4848, %v4849
      %v4851 = vrot.slane %v1673, 4
      %v4852 = vsel %vm4201, %v4849, %v4851
      %v4853 = vrot.slane %v4761, 4
      %v4854 = vrot.slane %v1353, 4
      %v4855 = vsel %vm4201, %v4853, %v4854
      %v4856 = vrot.slane %v1674, 4
      %v4857 = vsel %vm4201, %v4854, %v4856
      %s4858 = sadd.s32 %s251, 4
      %s4859 = smul.u32 %s4858, 3
      %s4860 = smul.addr %s4859, 4
      %s4861 = scalar_lea.vmem %s238, %s4860
      %v4862 = vld [vmem:[%s4861] sm:$0xf]
      %v4863 = vld [vmem:[%s4861 + $0x4] sm:$0xf]
      %v4864 = vld [vmem:[%s4861 + $0xc] sm:$0xf]
      %v4865 = vld [vmem:[%s4861 + $0x10] sm:$0xf]
      %v4866 = vld [vmem:[%s4861 + $0x18] sm:$0xf]
      %v4867 = vld [vmem:[%s4861 + $0x1c] sm:$0xf]
      %v4868 = vld [vmem:[%s4861 + $0x24] sm:$0xf]
      %v4869 = vld [vmem:[%s4861 + $0x28] sm:$0xf]
      %v4870 = vld [vmem:[%s4861 + $0x30] sm:$0xf]
      %v4871 = vld [vmem:[%s4861 + $0x34] sm:$0xf]
      %v4872 = vld [vmem:[%s4861 + $0x3c] sm:$0xf]
      %v4873 = vld [vmem:[%s4861 + $0x40] sm:$0xf]
      %v4874 = vld [vmem:[%s4861 + $0x48] sm:$0xf]
      %v4875 = vld [vmem:[%s4861 + $0x4c] sm:$0xf]
      %v4876 = vld [vmem:[%s4861 + $0x54] sm:$0xf]
      %v4877 = vld [vmem:[%s4861 + $0x58] sm:$0xf]
      %v4878 = vld [vmem:[%s4861 + $0x60] sm:$0xf]
      %v4879 = vld [vmem:[%s4861 + $0x64] sm:$0xf]
      %v4880 = vld [vmem:[%s4861 + $0x6c] sm:$0xf]
      %v4881 = vld [vmem:[%s4861 + $0x70] sm:$0xf]
      %v4882 = vld [vmem:[%s4861 + $0x78] sm:$0xf]
      %v4883 = vld [vmem:[%s4861 + $0x7c] sm:$0xf]
      %v4884 = vld [vmem:[%s4861 + $0x84] sm:$0xf]
      %v4885 = vld [vmem:[%s4861 + $0x88] sm:$0xf]
      %v4886 = vld [vmem:[%s4861 + $0x90] sm:$0xf]
      %v4887 = vld [vmem:[%s4861 + $0x94] sm:$0xf]
      %v4888 = vld [vmem:[%s4861 + $0x9c] sm:$0xf]
      %v4889 = vld [vmem:[%s4861 + $0xa0] sm:$0xf]
      %v4890 = vld [vmem:[%s4861 + $0xa8] sm:$0xf]
      %v4891 = vld [vmem:[%s4861 + $0xac] sm:$0xf]
      %v4892 = vld [vmem:[%s4861 + $0xb4] sm:$0xf]
      %v4893 = vld [vmem:[%s4861 + $0xb8] sm:$0xf]
      %v4894 = vunpack.c.l.bf16 %v4862
      %v4895 = vunpack.c.l.bf16 %v4863
      %v4896 = vunpack.c.l.bf16 %v4864
      %v4897 = vunpack.c.l.bf16 %v4865
      %v4898 = vunpack.c.l.bf16 %v4866
      %v4899 = vunpack.c.l.bf16 %v4867
      %v4900 = vunpack.c.l.bf16 %v4868
      %v4901 = vunpack.c.l.bf16 %v4869
      %v4902 = vunpack.c.l.bf16 %v4870
      %v4903 = vunpack.c.l.bf16 %v4871
      %v4904 = vunpack.c.l.bf16 %v4872
      %v4905 = vunpack.c.l.bf16 %v4873
      %v4906 = vunpack.c.l.bf16 %v4874
      %v4907 = vunpack.c.l.bf16 %v4875
      %v4908 = vunpack.c.l.bf16 %v4876
      %v4909 = vunpack.c.l.bf16 %v4877
      %v4910 = vunpack.c.l.bf16 %v4878
      %v4911 = vunpack.c.l.bf16 %v4879
      %v4912 = vunpack.c.l.bf16 %v4880
      %v4913 = vunpack.c.l.bf16 %v4881
      %v4914 = vunpack.c.l.bf16 %v4882
      %v4915 = vunpack.c.l.bf16 %v4883
      %v4916 = vunpack.c.l.bf16 %v4884
      %v4917 = vunpack.c.l.bf16 %v4885
      %v4918 = vunpack.c.l.bf16 %v4886
      %v4919 = vunpack.c.l.bf16 %v4887
      %v4920 = vunpack.c.l.bf16 %v4888
      %v4921 = vunpack.c.l.bf16 %v4889
      %v4922 = vunpack.c.l.bf16 %v4890
      %v4923 = vunpack.c.l.bf16 %v4891
      %v4924 = vunpack.c.l.bf16 %v4892
      %v4925 = vunpack.c.l.bf16 %v4893
      %v4926 = vld [vmem:[%s4861 + $0x8] sm:$0x1]
      %v4927 = vld [vmem:[%s4861 + $0x14] sm:$0x1]
      %v4928 = vld [vmem:[%s4861 + $0x20] sm:$0x1]
      %v4929 = vld [vmem:[%s4861 + $0x2c] sm:$0x1]
      %v4930 = vld [vmem:[%s4861 + $0x38] sm:$0x1]
      %v4931 = vld [vmem:[%s4861 + $0x44] sm:$0x1]
      %v4932 = vld [vmem:[%s4861 + $0x50] sm:$0x1]
      %v4933 = vld [vmem:[%s4861 + $0x5c] sm:$0x1]
      %v4934 = vld [vmem:[%s4861 + $0x68] sm:$0x1]
      %v4935 = vld [vmem:[%s4861 + $0x74] sm:$0x1]
      %v4936 = vld [vmem:[%s4861 + $0x80] sm:$0x1]
      %v4937 = vld [vmem:[%s4861 + $0x8c] sm:$0x1]
      %v4938 = vld [vmem:[%s4861 + $0x98] sm:$0x1]
      %v4939 = vld [vmem:[%s4861 + $0xa4] sm:$0x1]
      %v4940 = vld [vmem:[%s4861 + $0xb0] sm:$0x1]
      %v4941 = vld [vmem:[%s4861 + $0xbc] sm:$0x1]
      %v4942 = vunpack.c.l.bf16 %v4926
      %v4943 = vunpack.c.l.bf16 %v4927
      %v4944 = vunpack.c.l.bf16 %v4928
      %v4945 = vunpack.c.l.bf16 %v4929
      %v4946 = vunpack.c.l.bf16 %v4930
      %v4947 = vunpack.c.l.bf16 %v4931
      %v4948 = vunpack.c.l.bf16 %v4932
      %v4949 = vunpack.c.l.bf16 %v4933
      %v4950 = vunpack.c.l.bf16 %v4934
      %v4951 = vunpack.c.l.bf16 %v4935
      %v4952 = vunpack.c.l.bf16 %v4936
      %v4953 = vunpack.c.l.bf16 %v4937
      %v4954 = vunpack.c.l.bf16 %v4938
      %v4955 = vunpack.c.l.bf16 %v4939
      %v4956 = vunpack.c.l.bf16 %v4940
      %v4957 = vunpack.c.l.bf16 %v4941
      %v5006 = vrot.slane %v4894, 1
      %v5007 = vrot.slane %v4895, 1
      %v5008 = vsel %vm400, %v5006, %v5007
      %v5009 = vrot.slane %v4942, 1
      %v5010 = vsel %vm400, %v5007, %v5009
      %v5011 = vrot.slane %v4896, 1
      %v5012 = vrot.slane %v4897, 1
      %v5013 = vsel %vm400, %v5011, %v5012
      %v5014 = vrot.slane %v4943, 1
      %v5015 = vsel %vm400, %v5012, %v5014
      %v5016 = vrot.slane %v4898, 1
      %v5017 = vrot.slane %v4899, 1
      %v5018 = vsel %vm400, %v5016, %v5017
      %v5019 = vrot.slane %v4944, 1
      %v5020 = vsel %vm400, %v5017, %v5019
      %v5021 = vrot.slane %v4900, 1
      %v5022 = vrot.slane %v4901, 1
      %v5023 = vsel %vm400, %v5021, %v5022
      %v5024 = vrot.slane %v4945, 1
      %v5025 = vsel %vm400, %v5022, %v5024
      %v5026 = vrot.slane %v4902, 1
      %v5027 = vrot.slane %v4903, 1
      %v5028 = vsel %vm400, %v5026, %v5027
      %v5029 = vrot.slane %v4946, 1
      %v5030 = vsel %vm400, %v5027, %v5029
      %v5031 = vrot.slane %v4904, 1
      %v5032 = vrot.slane %v4905, 1
      %v5033 = vsel %vm400, %v5031, %v5032
      %v5034 = vrot.slane %v4947, 1
      %v5035 = vsel %vm400, %v5032, %v5034
      %v5036 = vrot.slane %v4906, 1
      %v5037 = vrot.slane %v4907, 1
      %v5038 = vsel %vm400, %v5036, %v5037
      %v5039 = vrot.slane %v4948, 1
      %v5040 = vsel %vm400, %v5037, %v5039
      %v5041 = vrot.slane %v4908, 1
      %v5042 = vrot.slane %v4909, 1
      %v5043 = vsel %vm400, %v5041, %v5042
      %v5044 = vrot.slane %v4949, 1
      %v5045 = vsel %vm400, %v5042, %v5044
      %v5046 = vrot.slane %v4910, 1
      %v5047 = vrot.slane %v4911, 1
      %v5048 = vsel %vm400, %v5046, %v5047
      %v5049 = vrot.slane %v4950, 1
      %v5050 = vsel %vm400, %v5047, %v5049
      %v5051 = vrot.slane %v4912, 1
      %v5052 = vrot.slane %v4913, 1
      %v5053 = vsel %vm400, %v5051, %v5052
      %v5054 = vrot.slane %v4951, 1
      %v5055 = vsel %vm400, %v5052, %v5054
      %v5056 = vrot.slane %v4914, 1
      %v5057 = vrot.slane %v4915, 1
      %v5058 = vsel %vm400, %v5056, %v5057
      %v5059 = vrot.slane %v4952, 1
      %v5060 = vsel %vm400, %v5057, %v5059
      %v5061 = vrot.slane %v4916, 1
      %v5062 = vrot.slane %v4917, 1
      %v5063 = vsel %vm400, %v5061, %v5062
      %v5064 = vrot.slane %v4953, 1
      %v5065 = vsel %vm400, %v5062, %v5064
      %v5066 = vrot.slane %v4918, 1
      %v5067 = vrot.slane %v4919, 1
      %v5068 = vsel %vm400, %v5066, %v5067
      %v5069 = vrot.slane %v4954, 1
      %v5070 = vsel %vm400, %v5067, %v5069
      %v5071 = vrot.slane %v4920, 1
      %v5072 = vrot.slane %v4921, 1
      %v5073 = vsel %vm400, %v5071, %v5072
      %v5074 = vrot.slane %v4955, 1
      %v5075 = vsel %vm400, %v5072, %v5074
      %v5076 = vrot.slane %v4922, 1
      %v5077 = vrot.slane %v4923, 1
      %v5078 = vsel %vm400, %v5076, %v5077
      %v5079 = vrot.slane %v4956, 1
      %v5080 = vsel %vm400, %v5077, %v5079
      %v5081 = vrot.slane %v4924, 1
      %v5082 = vrot.slane %v4925, 1
      %v5083 = vsel %vm400, %v5081, %v5082
      %v5084 = vrot.slane %v4957, 1
      %v5085 = vsel %vm400, %v5082, %v5084
      %v5086 = vld [vmem:[%s4861] sm:$0xe]
      %v5087 = vld [vmem:[%s4861 + $0xc] sm:$0xe]
      %v5088 = vld [vmem:[%s4861 + $0x18] sm:$0xe]
      %v5089 = vld [vmem:[%s4861 + $0x24] sm:$0xe]
      %v5090 = vld [vmem:[%s4861 + $0x30] sm:$0xe]
      %v5091 = vld [vmem:[%s4861 + $0x3c] sm:$0xe]
      %v5092 = vld [vmem:[%s4861 + $0x48] sm:$0xe]
      %v5093 = vld [vmem:[%s4861 + $0x54] sm:$0xe]
      %v5094 = vld [vmem:[%s4861 + $0x60] sm:$0xe]
      %v5095 = vld [vmem:[%s4861 + $0x6c] sm:$0xe]
      %v5096 = vld [vmem:[%s4861 + $0x78] sm:$0xe]
      %v5097 = vld [vmem:[%s4861 + $0x84] sm:$0xe]
      %v5098 = vld [vmem:[%s4861 + $0x90] sm:$0xe]
      %v5099 = vld [vmem:[%s4861 + $0x9c] sm:$0xe]
      %v5100 = vld [vmem:[%s4861 + $0xa8] sm:$0xe]
      %v5101 = vld [vmem:[%s4861 + $0xb4] sm:$0xe]
      %v5102 = vunpack.c.l.bf16 %v5086
      %v5103 = vunpack.c.l.bf16 %v5087
      %v5104 = vunpack.c.l.bf16 %v5088
      %v5105 = vunpack.c.l.bf16 %v5089
      %v5106 = vunpack.c.l.bf16 %v5090
      %v5107 = vunpack.c.l.bf16 %v5091
      %v5108 = vunpack.c.l.bf16 %v5092
      %v5109 = vunpack.c.l.bf16 %v5093
      %v5110 = vunpack.c.l.bf16 %v5094
      %v5111 = vunpack.c.l.bf16 %v5095
      %v5112 = vunpack.c.l.bf16 %v5096
      %v5113 = vunpack.c.l.bf16 %v5097
      %v5114 = vunpack.c.l.bf16 %v5098
      %v5115 = vunpack.c.l.bf16 %v5099
      %v5116 = vunpack.c.l.bf16 %v5100
      %v5117 = vunpack.c.l.bf16 %v5101
      %v5134 = vrot.slane %v5102, 2
      %v5135 = vrot.slane %v4895, 2
      %v5136 = vsel %vm561, %v5134, %v5135
      %v5137 = vrot.slane %v4942, 2
      %v5138 = vsel %vm561, %v5135, %v5137
      %v5139 = vrot.slane %v5103, 2
      %v5140 = vrot.slane %v4897, 2
      %v5141 = vsel %vm561, %v5139, %v5140
      %v5142 = vrot.slane %v4943, 2
      %v5143 = vsel %vm561, %v5140, %v5142
      %v5144 = vrot.slane %v5104, 2
      %v5145 = vrot.slane %v4899, 2
      %v5146 = vsel %vm561, %v5144, %v5145
      %v5147 = vrot.slane %v4944, 2
      %v5148 = vsel %vm561, %v5145, %v5147
      %v5149 = vrot.slane %v5105, 2
      %v5150 = vrot.slane %v4901, 2
      %v5151 = vsel %vm561, %v5149, %v5150
      %v5152 = vrot.slane %v4945, 2
      %v5153 = vsel %vm561, %v5150, %v5152
      %v5154 = vrot.slane %v5106, 2
      %v5155 = vrot.slane %v4903, 2
      %v5156 = vsel %vm561, %v5154, %v5155
      %v5157 = vrot.slane %v4946, 2
      %v5158 = vsel %vm561, %v5155, %v5157
      %v5159 = vrot.slane %v5107, 2
      %v5160 = vrot.slane %v4905, 2
      %v5161 = vsel %vm561, %v5159, %v5160
      %v5162 = vrot.slane %v4947, 2
      %v5163 = vsel %vm561, %v5160, %v5162
      %v5164 = vrot.slane %v5108, 2
      %v5165 = vrot.slane %v4907, 2
      %v5166 = vsel %vm561, %v5164, %v5165
      %v5167 = vrot.slane %v4948, 2
      %v5168 = vsel %vm561, %v5165, %v5167
      %v5169 = vrot.slane %v5109, 2
      %v5170 = vrot.slane %v4909, 2
      %v5171 = vsel %vm561, %v5169, %v5170
      %v5172 = vrot.slane %v4949, 2
      %v5173 = vsel %vm561, %v5170, %v5172
      %v5174 = vrot.slane %v5110, 2
      %v5175 = vrot.slane %v4911, 2
      %v5176 = vsel %vm561, %v5174, %v5175
      %v5177 = vrot.slane %v4950, 2
      %v5178 = vsel %vm561, %v5175, %v5177
      %v5179 = vrot.slane %v5111, 2
      %v5180 = vrot.slane %v4913, 2
      %v5181 = vsel %vm561, %v5179, %v5180
      %v5182 = vrot.slane %v4951, 2
      %v5183 = vsel %vm561, %v5180, %v5182
      %v5184 = vrot.slane %v5112, 2
      %v5185 = vrot.slane %v4915, 2
      %v5186 = vsel %vm561, %v5184, %v5185
      %v5187 = vrot.slane %v4952, 2
      %v5188 = vsel %vm561, %v5185, %v5187
      %v5189 = vrot.slane %v5113, 2
      %v5190 = vrot.slane %v4917, 2
      %v5191 = vsel %vm561, %v5189, %v5190
      %v5192 = vrot.slane %v4953, 2
      %v5193 = vsel %vm561, %v5190, %v5192
      %v5194 = vrot.slane %v5114, 2
      %v5195 = vrot.slane %v4919, 2
      %v5196 = vsel %vm561, %v5194, %v5195
      %v5197 = vrot.slane %v4954, 2
      %v5198 = vsel %vm561, %v5195, %v5197
      %v5199 = vrot.slane %v5115, 2
      %v5200 = vrot.slane %v4921, 2
      %v5201 = vsel %vm561, %v5199, %v5200
      %v5202 = vrot.slane %v4955, 2
      %v5203 = vsel %vm561, %v5200, %v5202
      %v5204 = vrot.slane %v5116, 2
      %v5205 = vrot.slane %v4923, 2
      %v5206 = vsel %vm561, %v5204, %v5205
      %v5207 = vrot.slane %v4956, 2
      %v5208 = vsel %vm561, %v5205, %v5207
      %v5209 = vrot.slane %v5117, 2
      %v5210 = vrot.slane %v4925, 2
      %v5211 = vsel %vm561, %v5209, %v5210
      %v5212 = vrot.slane %v4957, 2
      %v5213 = vsel %vm561, %v5210, %v5212
      %v5214 = vld [vmem:[%s4861 + $0x8] sm:$0x3]
      %v5215 = vld [vmem:[%s4861 + $0x14] sm:$0x3]
      %v5216 = vld [vmem:[%s4861 + $0x20] sm:$0x3]
      %v5217 = vld [vmem:[%s4861 + $0x2c] sm:$0x3]
      %v5218 = vld [vmem:[%s4861 + $0x38] sm:$0x3]
      %v5219 = vld [vmem:[%s4861 + $0x44] sm:$0x3]
      %v5220 = vld [vmem:[%s4861 + $0x50] sm:$0x3]
      %v5221 = vld [vmem:[%s4861 + $0x5c] sm:$0x3]
      %v5222 = vld [vmem:[%s4861 + $0x68] sm:$0x3]
      %v5223 = vld [vmem:[%s4861 + $0x74] sm:$0x3]
      %v5224 = vld [vmem:[%s4861 + $0x80] sm:$0x3]
      %v5225 = vld [vmem:[%s4861 + $0x8c] sm:$0x3]
      %v5226 = vld [vmem:[%s4861 + $0x98] sm:$0x3]
      %v5227 = vld [vmem:[%s4861 + $0xa4] sm:$0x3]
      %v5228 = vld [vmem:[%s4861 + $0xb0] sm:$0x3]
      %v5229 = vld [vmem:[%s4861 + $0xbc] sm:$0x3]
      %v5230 = vunpack.c.l.bf16 %v5214
      %v5231 = vunpack.c.l.bf16 %v5215
      %v5232 = vunpack.c.l.bf16 %v5216
      %v5233 = vunpack.c.l.bf16 %v5217
      %v5234 = vunpack.c.l.bf16 %v5218
      %v5235 = vunpack.c.l.bf16 %v5219
      %v5236 = vunpack.c.l.bf16 %v5220
      %v5237 = vunpack.c.l.bf16 %v5221
      %v5238 = vunpack.c.l.bf16 %v5222
      %v5239 = vunpack.c.l.bf16 %v5223
      %v5240 = vunpack.c.l.bf16 %v5224
      %v5241 = vunpack.c.l.bf16 %v5225
      %v5242 = vunpack.c.l.bf16 %v5226
      %v5243 = vunpack.c.l.bf16 %v5227
      %v5244 = vunpack.c.l.bf16 %v5228
      %v5245 = vunpack.c.l.bf16 %v5229
      %v5262 = vrot.slane %v5102, 3
      %v5263 = vrot.slane %v4895, 3
      %v5264 = vsel %vm690, %v5262, %v5263
      %v5265 = vrot.slane %v5230, 3
      %v5266 = vsel %vm690, %v5263, %v5265
      %v5267 = vrot.slane %v5103, 3
      %v5268 = vrot.slane %v4897, 3
      %v5269 = vsel %vm690, %v5267, %v5268
      %v5270 = vrot.slane %v5231, 3
      %v5271 = vsel %vm690, %v5268, %v5270
      %v5272 = vrot.slane %v5104, 3
      %v5273 = vrot.slane %v4899, 3
      %v5274 = vsel %vm690, %v5272, %v5273
      %v5275 = vrot.slane %v5232, 3
      %v5276 = vsel %vm690, %v5273, %v5275
      %v5277 = vrot.slane %v5105, 3
      %v5278 = vrot.slane %v4901, 3
      %v5279 = vsel %vm690, %v5277, %v5278
      %v5280 = vrot.slane %v5233, 3
      %v5281 = vsel %vm690, %v5278, %v5280
      %v5282 = vrot.slane %v5106, 3
      %v5283 = vrot.slane %v4903, 3
      %v5284 = vsel %vm690, %v5282, %v5283
      %v5285 = vrot.slane %v5234, 3
      %v5286 = vsel %vm690, %v5283, %v5285
      %v5287 = vrot.slane %v5107, 3
      %v5288 = vrot.slane %v4905, 3
      %v5289 = vsel %vm690, %v5287, %v5288
      %v5290 = vrot.slane %v5235, 3
      %v5291 = vsel %vm690, %v5288, %v5290
      %v5292 = vrot.slane %v5108, 3
      %v5293 = vrot.slane %v4907, 3
      %v5294 = vsel %vm690, %v5292, %v5293
      %v5295 = vrot.slane %v5236, 3
      %v5296 = vsel %vm690, %v5293, %v5295
      %v5297 = vrot.slane %v5109, 3
      %v5298 = vrot.slane %v4909, 3
      %v5299 = vsel %vm690, %v5297, %v5298
      %v5300 = vrot.slane %v5237, 3
      %v5301 = vsel %vm690, %v5298, %v5300
      %v5302 = vrot.slane %v5110, 3
      %v5303 = vrot.slane %v4911, 3
      %v5304 = vsel %vm690, %v5302, %v5303
      %v5305 = vrot.slane %v5238, 3
      %v5306 = vsel %vm690, %v5303, %v5305
      %v5307 = vrot.slane %v5111, 3
      %v5308 = vrot.slane %v4913, 3
      %v5309 = vsel %vm690, %v5307, %v5308
      %v5310 = vrot.slane %v5239, 3
      %v5311 = vsel %vm690, %v5308, %v5310
      %v5312 = vrot.slane %v5112, 3
      %v5313 = vrot.slane %v4915, 3
      %v5314 = vsel %vm690, %v5312, %v5313
      %v5315 = vrot.slane %v5240, 3
      %v5316 = vsel %vm690, %v5313, %v5315
      %v5317 = vrot.slane %v5113, 3
      %v5318 = vrot.slane %v4917, 3
      %v5319 = vsel %vm690, %v5317, %v5318
      %v5320 = vrot.slane %v5241, 3
      %v5321 = vsel %vm690, %v5318, %v5320
      %v5322 = vrot.slane %v5114, 3
      %v5323 = vrot.slane %v4919, 3
      %v5324 = vsel %vm690, %v5322, %v5323
      %v5325 = vrot.slane %v5242, 3
      %v5326 = vsel %vm690, %v5323, %v5325
      %v5327 = vrot.slane %v5115, 3
      %v5328 = vrot.slane %v4921, 3
      %v5329 = vsel %vm690, %v5327, %v5328
      %v5330 = vrot.slane %v5243, 3
      %v5331 = vsel %vm690, %v5328, %v5330
      %v5332 = vrot.slane %v5116, 3
      %v5333 = vrot.slane %v4923, 3
      %v5334 = vsel %vm690, %v5332, %v5333
      %v5335 = vrot.slane %v5244, 3
      %v5336 = vsel %vm690, %v5333, %v5335
      %v5337 = vrot.slane %v5117, 3
      %v5338 = vrot.slane %v4925, 3
      %v5339 = vsel %vm690, %v5337, %v5338
      %v5340 = vrot.slane %v5245, 3
      %v5341 = vsel %vm690, %v5338, %v5340
      %v5342 = vld [vmem:[%s4861] sm:$0xc]
      %v5343 = vld [vmem:[%s4861 + $0xc] sm:$0xc]
      %v5344 = vld [vmem:[%s4861 + $0x18] sm:$0xc]
      %v5345 = vld [vmem:[%s4861 + $0x24] sm:$0xc]
      %v5346 = vld [vmem:[%s4861 + $0x30] sm:$0xc]
      %v5347 = vld [vmem:[%s4861 + $0x3c] sm:$0xc]
      %v5348 = vld [vmem:[%s4861 + $0x48] sm:$0xc]
      %v5349 = vld [vmem:[%s4861 + $0x54] sm:$0xc]
      %v5350 = vld [vmem:[%s4861 + $0x60] sm:$0xc]
      %v5351 = vld [vmem:[%s4861 + $0x6c] sm:$0xc]
      %v5352 = vld [vmem:[%s4861 + $0x78] sm:$0xc]
      %v5353 = vld [vmem:[%s4861 + $0x84] sm:$0xc]
      %v5354 = vld [vmem:[%s4861 + $0x90] sm:$0xc]
      %v5355 = vld [vmem:[%s4861 + $0x9c] sm:$0xc]
      %v5356 = vld [vmem:[%s4861 + $0xa8] sm:$0xc]
      %v5357 = vld [vmem:[%s4861 + $0xb4] sm:$0xc]
      %v5358 = vunpack.c.l.bf16 %v5342
      %v5359 = vunpack.c.l.bf16 %v5343
      %v5360 = vunpack.c.l.bf16 %v5344
      %v5361 = vunpack.c.l.bf16 %v5345
      %v5362 = vunpack.c.l.bf16 %v5346
      %v5363 = vunpack.c.l.bf16 %v5347
      %v5364 = vunpack.c.l.bf16 %v5348
      %v5365 = vunpack.c.l.bf16 %v5349
      %v5366 = vunpack.c.l.bf16 %v5350
      %v5367 = vunpack.c.l.bf16 %v5351
      %v5368 = vunpack.c.l.bf16 %v5352
      %v5369 = vunpack.c.l.bf16 %v5353
      %v5370 = vunpack.c.l.bf16 %v5354
      %v5371 = vunpack.c.l.bf16 %v5355
      %v5372 = vunpack.c.l.bf16 %v5356
      %v5373 = vunpack.c.l.bf16 %v5357
      %v5390 = vrot.slane %v5358, 4
      %v5391 = vrot.slane %v4895, 4
      %v5392 = vsel %vm4201, %v5390, %v5391
      %v5393 = vrot.slane %v5230, 4
      %v5394 = vsel %vm4201, %v5391, %v5393
      %v5395 = vrot.slane %v5359, 4
      %v5396 = vrot.slane %v4897, 4
      %v5397 = vsel %vm4201, %v5395, %v5396
      %v5398 = vrot.slane %v5231, 4
      %v5399 = vsel %vm4201, %v5396, %v5398
      %v5400 = vrot.slane %v5360, 4
      %v5401 = vrot.slane %v4899, 4
      %v5402 = vsel %vm4201, %v5400, %v5401
      %v5403 = vrot.slane %v5232, 4
      %v5404 = vsel %vm4201, %v5401, %v5403
      %v5405 = vrot.slane %v5361, 4
      %v5406 = vrot.slane %v4901, 4
      %v5407 = vsel %vm4201, %v5405, %v5406
      %v5408 = vrot.slane %v5233, 4
      %v5409 = vsel %vm4201, %v5406, %v5408
      %v5410 = vrot.slane %v5362, 4
      %v5411 = vrot.slane %v4903, 4
      %v5412 = vsel %vm4201, %v5410, %v5411
      %v5413 = vrot.slane %v5234, 4
      %v5414 = vsel %vm4201, %v5411, %v5413
      %v5415 = vrot.slane %v5363, 4
      %v5416 = vrot.slane %v4905, 4
      %v5417 = vsel %vm4201, %v5415, %v5416
      %v5418 = vrot.slane %v5235, 4
      %v5419 = vsel %vm4201, %v5416, %v5418
      %v5420 = vrot.slane %v5364, 4
      %v5421 = vrot.slane %v4907, 4
      %v5422 = vsel %vm4201, %v5420, %v5421
      %v5423 = vrot.slane %v5236, 4
      %v5424 = vsel %vm4201, %v5421, %v5423
      %v5425 = vrot.slane %v5365, 4
      %v5426 = vrot.slane %v4909, 4
      %v5427 = vsel %vm4201, %v5425, %v5426
      %v5428 = vrot.slane %v5237, 4
      %v5429 = vsel %vm4201, %v5426, %v5428
      %v5430 = vrot.slane %v5366, 4
      %v5431 = vrot.slane %v4911, 4
      %v5432 = vsel %vm4201, %v5430, %v5431
      %v5433 = vrot.slane %v5238, 4
      %v5434 = vsel %vm4201, %v5431, %v5433
      %v5435 = vrot.slane %v5367, 4
      %v5436 = vrot.slane %v4913, 4
      %v5437 = vsel %vm4201, %v5435, %v5436
      %v5438 = vrot.slane %v5239, 4
      %v5439 = vsel %vm4201, %v5436, %v5438
      %v5440 = vrot.slane %v5368, 4
      %v5441 = vrot.slane %v4915, 4
      %v5442 = vsel %vm4201, %v5440, %v5441
      %v5443 = vrot.slane %v5240, 4
      %v5444 = vsel %vm4201, %v5441, %v5443
      %v5445 = vrot.slane %v5369, 4
      %v5446 = vrot.slane %v4917, 4
      %v5447 = vsel %vm4201, %v5445, %v5446
      %v5448 = vrot.slane %v5241, 4
      %v5449 = vsel %vm4201, %v5446, %v5448
      %v5450 = vrot.slane %v5370, 4
      %v5451 = vrot.slane %v4919, 4
      %v5452 = vsel %vm4201, %v5450, %v5451
      %v5453 = vrot.slane %v5242, 4
      %v5454 = vsel %vm4201, %v5451, %v5453
      %v5455 = vrot.slane %v5371, 4
      %v5456 = vrot.slane %v4921, 4
      %v5457 = vsel %vm4201, %v5455, %v5456
      %v5458 = vrot.slane %v5243, 4
      %v5459 = vsel %vm4201, %v5456, %v5458
      %v5460 = vrot.slane %v5372, 4
      %v5461 = vrot.slane %v4923, 4
      %v5462 = vsel %vm4201, %v5460, %v5461
      %v5463 = vrot.slane %v5244, 4
      %v5464 = vsel %vm4201, %v5461, %v5463
      %v5465 = vrot.slane %v5373, 4
      %v5466 = vrot.slane %v4925, 4
      %v5467 = vsel %vm4201, %v5465, %v5466
      %v5468 = vrot.slane %v5245, 4
      %v5469 = vsel %vm4201, %v5466, %v5468
      %5470 = vrot.lane.b32.xlu0 %v3819, 4
      %v5471 = vpop.permute.xlu0 %5470
      %5472 = vrot.lane.b32.xlu0 %v3821, 4
      %v5473 = vpop.permute.xlu0 %5472
      %5474 = vrot.lane.b32.xlu0 %v3824, 4
      %v5475 = vpop.permute.xlu0 %5474
      %5476 = vrot.lane.b32.xlu0 %v3826, 4
      %v5477 = vpop.permute.xlu0 %5476
      %5478 = vrot.lane.b32.xlu0 %v3829, 4
      %v5479 = vpop.permute.xlu0 %5478
      %5480 = vrot.lane.b32.xlu0 %v3831, 4
      %v5481 = vpop.permute.xlu0 %5480
      %5482 = vrot.lane.b32.xlu0 %v3834, 4
      %v5483 = vpop.permute.xlu0 %5482
      %5484 = vrot.lane.b32.xlu0 %v3836, 4
      %v5485 = vpop.permute.xlu0 %5484
      %5486 = vrot.lane.b32.xlu0 %v3839, 4
      %v5487 = vpop.permute.xlu0 %5486
      %5488 = vrot.lane.b32.xlu0 %v3841, 4
      %v5489 = vpop.permute.xlu0 %5488
      %5490 = vrot.lane.b32.xlu0 %v3844, 4
      %v5491 = vpop.permute.xlu0 %5490
      %5492 = vrot.lane.b32.xlu0 %v3846, 4
      %v5493 = vpop.permute.xlu0 %5492
      %5494 = vrot.lane.b32.xlu0 %v3849, 4
      %v5495 = vpop.permute.xlu0 %5494
      %5496 = vrot.lane.b32.xlu0 %v3851, 4
      %v5497 = vpop.permute.xlu0 %5496
      %5498 = vrot.lane.b32.xlu0 %v3854, 4
      %v5499 = vpop.permute.xlu0 %5498
      %5500 = vrot.lane.b32.xlu0 %v3856, 4
      %v5501 = vpop.permute.xlu0 %5500
      %5502 = vrot.lane.b32.xlu0 %v3859, 4
      %v5503 = vpop.permute.xlu0 %5502
      %5504 = vrot.lane.b32.xlu0 %v3861, 4
      %v5505 = vpop.permute.xlu0 %5504
      %5506 = vrot.lane.b32.xlu0 %v3864, 4
      %v5507 = vpop.permute.xlu0 %5506
      %5508 = vrot.lane.b32.xlu0 %v3866, 4
      %v5509 = vpop.permute.xlu0 %5508
      %5510 = vrot.lane.b32.xlu0 %v3869, 4
      %v5511 = vpop.permute.xlu0 %5510
      %5512 = vrot.lane.b32.xlu0 %v3871, 4
      %v5513 = vpop.permute.xlu0 %5512
      %5514 = vrot.lane.b32.xlu0 %v3874, 4
      %v5515 = vpop.permute.xlu0 %5514
      %5516 = vrot.lane.b32.xlu0 %v3876, 4
      %v5517 = vpop.permute.xlu0 %5516
      %5518 = vrot.lane.b32.xlu0 %v3879, 4
      %v5519 = vpop.permute.xlu0 %5518
      %5520 = vrot.lane.b32.xlu0 %v3881, 4
      %v5521 = vpop.permute.xlu0 %5520
      %5522 = vrot.lane.b32.xlu0 %v3884, 4
      %v5523 = vpop.permute.xlu0 %5522
      %5524 = vrot.lane.b32.xlu0 %v3886, 4
      %v5525 = vpop.permute.xlu0 %5524
      %5526 = vrot.lane.b32.xlu0 %v3889, 4
      %v5527 = vpop.permute.xlu0 %5526
      %5528 = vrot.lane.b32.xlu0 %v3891, 4
      %v5529 = vpop.permute.xlu0 %5528
      %5530 = vrot.lane.b32.xlu0 %v3894, 4
      %v5531 = vpop.permute.xlu0 %5530
      %5532 = vrot.lane.b32.xlu0 %v3896, 4
      %v5533 = vpop.permute.xlu0 %5532
      %5566 = vrot.lane.b32.xlu0 %v3947, 8
      %v5567 = vpop.permute.xlu0 %5566
      %5568 = vrot.lane.b32.xlu0 %v3949, 8
      %v5569 = vpop.permute.xlu0 %5568
      %5570 = vrot.lane.b32.xlu0 %v3952, 8
      %v5571 = vpop.permute.xlu0 %5570
      %5572 = vrot.lane.b32.xlu0 %v3954, 8
      %v5573 = vpop.permute.xlu0 %5572
      %5574 = vrot.lane.b32.xlu0 %v3957, 8
      %v5575 = vpop.permute.xlu0 %5574
      %5576 = vrot.lane.b32.xlu0 %v3959, 8
      %v5577 = vpop.permute.xlu0 %5576
      %5578 = vrot.lane.b32.xlu0 %v3962, 8
      %v5579 = vpop.permute.xlu0 %5578
      %5580 = vrot.lane.b32.xlu0 %v3964, 8
      %v5581 = vpop.permute.xlu0 %5580
      %5582 = vrot.lane.b32.xlu0 %v3967, 8
      %v5583 = vpop.permute.xlu0 %5582
      %5584 = vrot.lane.b32.xlu0 %v3969, 8
      %v5585 = vpop.permute.xlu0 %5584
      %5586 = vrot.lane.b32.xlu0 %v3972, 8
      %v5587 = vpop.permute.xlu0 %5586
      %5588 = vrot.lane.b32.xlu0 %v3974, 8
      %v5589 = vpop.permute.xlu0 %5588
      %5590 = vrot.lane.b32.xlu0 %v3977, 8
      %v5591 = vpop.permute.xlu0 %5590
      %5592 = vrot.lane.b32.xlu0 %v3979, 8
      %v5593 = vpop.permute.xlu0 %5592
      %5594 = vrot.lane.b32.xlu0 %v3982, 8
      %v5595 = vpop.permute.xlu0 %5594
      %5596 = vrot.lane.b32.xlu0 %v3984, 8
      %v5597 = vpop.permute.xlu0 %5596
      %5598 = vrot.lane.b32.xlu0 %v3987, 8
      %v5599 = vpop.permute.xlu0 %5598
      %5600 = vrot.lane.b32.xlu0 %v3989, 8
      %v5601 = vpop.permute.xlu0 %5600
      %5602 = vrot.lane.b32.xlu0 %v3992, 8
      %v5603 = vpop.permute.xlu0 %5602
      %5604 = vrot.lane.b32.xlu0 %v3994, 8
      %v5605 = vpop.permute.xlu0 %5604
      %5606 = vrot.lane.b32.xlu0 %v3997, 8
      %v5607 = vpop.permute.xlu0 %5606
      %5608 = vrot.lane.b32.xlu0 %v3999, 8
      %v5609 = vpop.permute.xlu0 %5608
      %5610 = vrot.lane.b32.xlu0 %v4002, 8
      %v5611 = vpop.permute.xlu0 %5610
      %5612 = vrot.lane.b32.xlu0 %v4004, 8
      %v5613 = vpop.permute.xlu0 %5612
      %5614 = vrot.lane.b32.xlu0 %v4007, 8
      %v5615 = vpop.permute.xlu0 %5614
      %5616 = vrot.lane.b32.xlu0 %v4009, 8
      %v5617 = vpop.permute.xlu0 %5616
      %5618 = vrot.lane.b32.xlu0 %v4012, 8
      %v5619 = vpop.permute.xlu0 %5618
      %5620 = vrot.lane.b32.xlu0 %v4014, 8
      %v5621 = vpop.permute.xlu0 %5620
      %5622 = vrot.lane.b32.xlu0 %v4017, 8
      %v5623 = vpop.permute.xlu0 %5622
      %5624 = vrot.lane.b32.xlu0 %v4019, 8
      %v5625 = vpop.permute.xlu0 %5624
      %5626 = vrot.lane.b32.xlu0 %v4022, 8
      %v5627 = vpop.permute.xlu0 %5626
      %5628 = vrot.lane.b32.xlu0 %v4024, 8
      %v5629 = vpop.permute.xlu0 %5628
      %5662 = vrot.lane.b32.xlu0 %v4075, 12
      %v5663 = vpop.permute.xlu0 %5662
      %5664 = vrot.lane.b32.xlu0 %v4077, 12
      %v5665 = vpop.permute.xlu0 %5664
      %5666 = vrot.lane.b32.xlu0 %v4080, 12
      %v5667 = vpop.permute.xlu0 %5666
      %5668 = vrot.lane.b32.xlu0 %v4082, 12
      %v5669 = vpop.permute.xlu0 %5668
      %5670 = vrot.lane.b32.xlu0 %v4085, 12
      %v5671 = vpop.permute.xlu0 %5670
      %5672 = vrot.lane.b32.xlu0 %v4087, 12
      %v5673 = vpop.permute.xlu0 %5672
      %5674 = vrot.lane.b32.xlu0 %v4090, 12
      %v5675 = vpop.permute.xlu0 %5674
      %5676 = vrot.lane.b32.xlu0 %v4092, 12
      %v5677 = vpop.permute.xlu0 %5676
      %5678 = vrot.lane.b32.xlu0 %v4095, 12
      %v5679 = vpop.permute.xlu0 %5678
      %5680 = vrot.lane.b32.xlu0 %v4097, 12
      %v5681 = vpop.permute.xlu0 %5680
      %5682 = vrot.lane.b32.xlu0 %v4100, 12
      %v5683 = vpop.permute.xlu0 %5682
      %5684 = vrot.lane.b32.xlu0 %v4102, 12
      %v5685 = vpop.permute.xlu0 %5684
      %5686 = vrot.lane.b32.xlu0 %v4105, 12
      %v5687 = vpop.permute.xlu0 %5686
      %5688 = vrot.lane.b32.xlu0 %v4107, 12
      %v5689 = vpop.permute.xlu0 %5688
      %5690 = vrot.lane.b32.xlu0 %v4110, 12
      %v5691 = vpop.permute.xlu0 %5690
      %5692 = vrot.lane.b32.xlu0 %v4112, 12
      %v5693 = vpop.permute.xlu0 %5692
      %5694 = vrot.lane.b32.xlu0 %v4115, 12
      %v5695 = vpop.permute.xlu0 %5694
      %5696 = vrot.lane.b32.xlu0 %v4117, 12
      %v5697 = vpop.permute.xlu0 %5696
      %5698 = vrot.lane.b32.xlu0 %v4120, 12
      %v5699 = vpop.permute.xlu0 %5698
      %5700 = vrot.lane.b32.xlu0 %v4122, 12
      %v5701 = vpop.permute.xlu0 %5700
      %5702 = vrot.lane.b32.xlu0 %v4125, 12
      %v5703 = vpop.permute.xlu0 %5702
      %5704 = vrot.lane.b32.xlu0 %v4127, 12
      %v5705 = vpop.permute.xlu0 %5704
      %5706 = vrot.lane.b32.xlu0 %v4130, 12
      %v5707 = vpop.permute.xlu0 %5706
      %5708 = vrot.lane.b32.xlu0 %v4132, 12
      %v5709 = vpop.permute.xlu0 %5708
      %5710 = vrot.lane.b32.xlu0 %v4135, 12
      %v5711 = vpop.permute.xlu0 %5710
      %5712 = vrot.lane.b32.xlu0 %v4137, 12
      %v5713 = vpop.permute.xlu0 %5712
      %5714 = vrot.lane.b32.xlu0 %v4140, 12
      %v5715 = vpop.permute.xlu0 %5714
      %5716 = vrot.lane.b32.xlu0 %v4142, 12
      %v5717 = vpop.permute.xlu0 %5716
      %5718 = vrot.lane.b32.xlu0 %v4145, 12
      %v5719 = vpop.permute.xlu0 %5718
      %5720 = vrot.lane.b32.xlu0 %v4147, 12
      %v5721 = vpop.permute.xlu0 %5720
      %5722 = vrot.lane.b32.xlu0 %v4150, 12
      %v5723 = vpop.permute.xlu0 %5722
      %5724 = vrot.lane.b32.xlu0 %v4152, 12
      %v5725 = vpop.permute.xlu0 %5724
      %5758 = vrot.lane.b32.xlu0 %v4204, 16
      %v5759 = vpop.permute.xlu0 %5758
      %5760 = vrot.lane.b32.xlu0 %v4206, 16
      %v5761 = vpop.permute.xlu0 %5760
      %5762 = vrot.lane.b32.xlu0 %v4209, 16
      %v5763 = vpop.permute.xlu0 %5762
      %5764 = vrot.lane.b32.xlu0 %v4211, 16
      %v5765 = vpop.permute.xlu0 %5764
      %5766 = vrot.lane.b32.xlu0 %v4214, 16
      %v5767 = vpop.permute.xlu0 %5766
      %5768 = vrot.lane.b32.xlu0 %v4216, 16
      %v5769 = vpop.permute.xlu0 %5768
      %5770 = vrot.lane.b32.xlu0 %v4219, 16
      %v5771 = vpop.permute.xlu0 %5770
      %5772 = vrot.lane.b32.xlu0 %v4221, 16
      %v5773 = vpop.permute.xlu0 %5772
      %5774 = vrot.lane.b32.xlu0 %v4224, 16
      %v5775 = vpop.permute.xlu0 %5774
      %5776 = vrot.lane.b32.xlu0 %v4226, 16
      %v5777 = vpop.permute.xlu0 %5776
      %5778 = vrot.lane.b32.xlu0 %v4229, 16
      %v5779 = vpop.permute.xlu0 %5778
      %5780 = vrot.lane.b32.xlu0 %v4231, 16
      %v5781 = vpop.permute.xlu0 %5780
      %5782 = vrot.lane.b32.xlu0 %v4234, 16
      %v5783 = vpop.permute.xlu0 %5782
      %5784 = vrot.lane.b32.xlu0 %v4236, 16
      %v5785 = vpop.permute.xlu0 %5784
      %5786 = vrot.lane.b32.xlu0 %v4239, 16
      %v5787 = vpop.permute.xlu0 %5786
      %5788 = vrot.lane.b32.xlu0 %v4241, 16
      %v5789 = vpop.permute.xlu0 %5788
      %5790 = vrot.lane.b32.xlu0 %v4244, 16
      %v5791 = vpop.permute.xlu0 %5790
      %5792 = vrot.lane.b32.xlu0 %v4246, 16
      %v5793 = vpop.permute.xlu0 %5792
      %5794 = vrot.lane.b32.xlu0 %v4249, 16
      %v5795 = vpop.permute.xlu0 %5794
      %5796 = vrot.lane.b32.xlu0 %v4251, 16
      %v5797 = vpop.permute.xlu0 %5796
      %5798 = vrot.lane.b32.xlu0 %v4254, 16
      %v5799 = vpop.permute.xlu0 %5798
      %5800 = vrot.lane.b32.xlu0 %v4256, 16
      %v5801 = vpop.permute.xlu0 %5800
      %5802 = vrot.lane.b32.xlu0 %v4259, 16
      %v5803 = vpop.permute.xlu0 %5802
      %5804 = vrot.lane.b32.xlu0 %v4261, 16
      %v5805 = vpop.permute.xlu0 %5804
      %5806 = vrot.lane.b32.xlu0 %v4264, 16
      %v5807 = vpop.permute.xlu0 %5806
      %5808 = vrot.lane.b32.xlu0 %v4266, 16
      %v5809 = vpop.permute.xlu0 %5808
      %5810 = vrot.lane.b32.xlu0 %v4269, 16
      %v5811 = vpop.permute.xlu0 %5810
      %5812 = vrot.lane.b32.xlu0 %v4271, 16
      %v5813 = vpop.permute.xlu0 %5812
      %5814 = vrot.lane.b32.xlu0 %v4274, 16
      %v5815 = vpop.permute.xlu0 %5814
      %5816 = vrot.lane.b32.xlu0 %v4276, 16
      %v5817 = vpop.permute.xlu0 %5816
      %5818 = vrot.lane.b32.xlu0 %v4279, 16
      %v5819 = vpop.permute.xlu0 %5818
      %5820 = vrot.lane.b32.xlu0 %v4281, 16
      %v5821 = vpop.permute.xlu0 %5820
      %5886 = vrot.lane.b32.xlu0 %v4314, 20
      %v5887 = vpop.permute.xlu0 %5886
      %5888 = vrot.lane.b32.xlu0 %v4315, 20
      %v5889 = vpop.permute.xlu0 %5888
      %5890 = vrot.lane.b32.xlu0 %v4316, 20
      %v5891 = vpop.permute.xlu0 %5890
      %5892 = vrot.lane.b32.xlu0 %v4317, 20
      %v5893 = vpop.permute.xlu0 %5892
      %5894 = vrot.lane.b32.xlu0 %v4318, 20
      %v5895 = vpop.permute.xlu0 %5894
      %5896 = vrot.lane.b32.xlu0 %v4319, 20
      %v5897 = vpop.permute.xlu0 %5896
      %5898 = vrot.lane.b32.xlu0 %v4320, 20
      %v5899 = vpop.permute.xlu0 %5898
      %5900 = vrot.lane.b32.xlu0 %v4321, 20
      %v5901 = vpop.permute.xlu0 %5900
      %5902 = vrot.lane.b32.xlu0 %v4322, 20
      %v5903 = vpop.permute.xlu0 %5902
      %5904 = vrot.lane.b32.xlu0 %v4323, 20
      %v5905 = vpop.permute.xlu0 %5904
      %5906 = vrot.lane.b32.xlu0 %v4324, 20
      %v5907 = vpop.permute.xlu0 %5906
      %5908 = vrot.lane.b32.xlu0 %v4325, 20
      %v5909 = vpop.permute.xlu0 %5908
      %5910 = vrot.lane.b32.xlu0 %v4326, 20
      %v5911 = vpop.permute.xlu0 %5910
      %5912 = vrot.lane.b32.xlu0 %v4327, 20
      %v5913 = vpop.permute.xlu0 %5912
      %5914 = vrot.lane.b32.xlu0 %v4328, 20
      %v5915 = vpop.permute.xlu0 %5914
      %5916 = vrot.lane.b32.xlu0 %v4329, 20
      %v5917 = vpop.permute.xlu0 %5916
      %5918 = vrot.lane.b32.xlu0 %v4330, 20
      %v5919 = vpop.permute.xlu0 %5918
      %5920 = vrot.lane.b32.xlu0 %v4331, 20
      %v5921 = vpop.permute.xlu0 %5920
      %5922 = vrot.lane.b32.xlu0 %v4332, 20
      %v5923 = vpop.permute.xlu0 %5922
      %5924 = vrot.lane.b32.xlu0 %v4333, 20
      %v5925 = vpop.permute.xlu0 %5924
      %5926 = vrot.lane.b32.xlu0 %v4334, 20
      %v5927 = vpop.permute.xlu0 %5926
      %5928 = vrot.lane.b32.xlu0 %v4335, 20
      %v5929 = vpop.permute.xlu0 %5928
      %5930 = vrot.lane.b32.xlu0 %v4336, 20
      %v5931 = vpop.permute.xlu0 %5930
      %5932 = vrot.lane.b32.xlu0 %v4337, 20
      %v5933 = vpop.permute.xlu0 %5932
      %5934 = vrot.lane.b32.xlu0 %v4338, 20
      %v5935 = vpop.permute.xlu0 %5934
      %5936 = vrot.lane.b32.xlu0 %v4339, 20
      %v5937 = vpop.permute.xlu0 %5936
      %5938 = vrot.lane.b32.xlu0 %v4340, 20
      %v5939 = vpop.permute.xlu0 %5938
      %5940 = vrot.lane.b32.xlu0 %v4341, 20
      %v5941 = vpop.permute.xlu0 %5940
      %5942 = vrot.lane.b32.xlu0 %v4342, 20
      %v5943 = vpop.permute.xlu0 %5942
      %5944 = vrot.lane.b32.xlu0 %v4343, 20
      %v5945 = vpop.permute.xlu0 %5944
      %5946 = vrot.lane.b32.xlu0 %v4344, 20
      %v5947 = vpop.permute.xlu0 %5946
      %5948 = vrot.lane.b32.xlu0 %v4345, 20
      %v5949 = vpop.permute.xlu0 %5948
      %5982 = vrot.lane.b32.xlu0 %v403, 24
      %v5983 = vpop.permute.xlu0 %5982
      %5984 = vrot.lane.b32.xlu0 %v405, 24
      %v5985 = vpop.permute.xlu0 %5984
      %5986 = vrot.lane.b32.xlu0 %v408, 24
      %v5987 = vpop.permute.xlu0 %5986
      %5988 = vrot.lane.b32.xlu0 %v410, 24
      %v5989 = vpop.permute.xlu0 %5988
      %5990 = vrot.lane.b32.xlu0 %v413, 24
      %v5991 = vpop.permute.xlu0 %5990
      %5992 = vrot.lane.b32.xlu0 %v415, 24
      %v5993 = vpop.permute.xlu0 %5992
      %5994 = vrot.lane.b32.xlu0 %v418, 24
      %v5995 = vpop.permute.xlu0 %5994
      %5996 = vrot.lane.b32.xlu0 %v420, 24
      %v5997 = vpop.permute.xlu0 %5996
      %5998 = vrot.lane.b32.xlu0 %v423, 24
      %v5999 = vpop.permute.xlu0 %5998
      %6000 = vrot.lane.b32.xlu0 %v425, 24
      %v6001 = vpop.permute.xlu0 %6000
      %6002 = vrot.lane.b32.xlu0 %v428, 24
      %v6003 = vpop.permute.xlu0 %6002
      %6004 = vrot.lane.b32.xlu0 %v430, 24
      %v6005 = vpop.permute.xlu0 %6004
      %6006 = vrot.lane.b32.xlu0 %v433, 24
      %v6007 = vpop.permute.xlu0 %6006
      %6008 = vrot.lane.b32.xlu0 %v435, 24
      %v6009 = vpop.permute.xlu0 %6008
      %6010 = vrot.lane.b32.xlu0 %v438, 24
      %v6011 = vpop.permute.xlu0 %6010
      %6012 = vrot.lane.b32.xlu0 %v440, 24
      %v6013 = vpop.permute.xlu0 %6012
      %6014 = vrot.lane.b32.xlu0 %v443, 24
      %v6015 = vpop.permute.xlu0 %6014
      %6016 = vrot.lane.b32.xlu0 %v445, 24
      %v6017 = vpop.permute.xlu0 %6016
      %6018 = vrot.lane.b32.xlu0 %v448, 24
      %v6019 = vpop.permute.xlu0 %6018
      %6020 = vrot.lane.b32.xlu0 %v450, 24
      %v6021 = vpop.permute.xlu0 %6020
      %6022 = vrot.lane.b32.xlu0 %v453, 24
      %v6023 = vpop.permute.xlu0 %6022
      %6024 = vrot.lane.b32.xlu0 %v455, 24
      %v6025 = vpop.permute.xlu0 %6024
      %6026 = vrot.lane.b32.xlu0 %v458, 24
      %v6027 = vpop.permute.xlu0 %6026
      %6028 = vrot.lane.b32.xlu0 %v460, 24
      %v6029 = vpop.permute.xlu0 %6028
      %6030 = vrot.lane.b32.xlu0 %v463, 24
      %v6031 = vpop.permute.xlu0 %6030
      %6032 = vrot.lane.b32.xlu0 %v465, 24
      %v6033 = vpop.permute.xlu0 %6032
      %6034 = vrot.lane.b32.xlu0 %v468, 24
      %v6035 = vpop.permute.xlu0 %6034
      %6036 = vrot.lane.b32.xlu0 %v470, 24
      %v6037 = vpop.permute.xlu0 %6036
      %6038 = vrot.lane.b32.xlu0 %v473, 24
      %v6039 = vpop.permute.xlu0 %6038
      %6040 = vrot.lane.b32.xlu0 %v475, 24
      %v6041 = vpop.permute.xlu0 %6040
      %6042 = vrot.lane.b32.xlu0 %v478, 24
      %v6043 = vpop.permute.xlu0 %6042
      %6044 = vrot.lane.b32.xlu0 %v480, 24
      %v6045 = vpop.permute.xlu0 %6044
      %6078 = vrot.lane.b32.xlu0 %v564, 28
      %v6079 = vpop.permute.xlu0 %6078
      %6080 = vrot.lane.b32.xlu0 %v566, 28
      %v6081 = vpop.permute.xlu0 %6080
      %6082 = vrot.lane.b32.xlu0 %v569, 28
      %v6083 = vpop.permute.xlu0 %6082
      %6084 = vrot.lane.b32.xlu0 %v571, 28
      %v6085 = vpop.permute.xlu0 %6084
      %6086 = vrot.lane.b32.xlu0 %v574, 28
      %v6087 = vpop.permute.xlu0 %6086
      %6088 = vrot.lane.b32.xlu0 %v576, 28
      %v6089 = vpop.permute.xlu0 %6088
      %6090 = vrot.lane.b32.xlu0 %v579, 28
      %v6091 = vpop.permute.xlu0 %6090
      %6092 = vrot.lane.b32.xlu0 %v581, 28
      %v6093 = vpop.permute.xlu0 %6092
      %6094 = vrot.lane.b32.xlu0 %v584, 28
      %v6095 = vpop.permute.xlu0 %6094
      %6096 = vrot.lane.b32.xlu0 %v586, 28
      %v6097 = vpop.permute.xlu0 %6096
      %6098 = vrot.lane.b32.xlu0 %v589, 28
      %v6099 = vpop.permute.xlu0 %6098
      %6100 = vrot.lane.b32.xlu0 %v591, 28
      %v6101 = vpop.permute.xlu0 %6100
      %6102 = vrot.lane.b32.xlu0 %v594, 28
      %v6103 = vpop.permute.xlu0 %6102
      %6104 = vrot.lane.b32.xlu0 %v596, 28
      %v6105 = vpop.permute.xlu0 %6104
      %6106 = vrot.lane.b32.xlu0 %v599, 28
      %v6107 = vpop.permute.xlu0 %6106
      %6108 = vrot.lane.b32.xlu0 %v601, 28
      %v6109 = vpop.permute.xlu0 %6108
      %6110 = vrot.lane.b32.xlu0 %v604, 28
      %v6111 = vpop.permute.xlu0 %6110
      %6112 = vrot.lane.b32.xlu0 %v606, 28
      %v6113 = vpop.permute.xlu0 %6112
      %6114 = vrot.lane.b32.xlu0 %v609, 28
      %v6115 = vpop.permute.xlu0 %6114
      %6116 = vrot.lane.b32.xlu0 %v611, 28
      %v6117 = vpop.permute.xlu0 %6116
      %6118 = vrot.lane.b32.xlu0 %v614, 28
      %v6119 = vpop.permute.xlu0 %6118
      %6120 = vrot.lane.b32.xlu0 %v616, 28
      %v6121 = vpop.permute.xlu0 %6120
      %6122 = vrot.lane.b32.xlu0 %v619, 28
      %v6123 = vpop.permute.xlu0 %6122
      %6124 = vrot.lane.b32.xlu0 %v621, 28
      %v6125 = vpop.permute.xlu0 %6124
      %6126 = vrot.lane.b32.xlu0 %v624, 28
      %v6127 = vpop.permute.xlu0 %6126
      %6128 = vrot.lane.b32.xlu0 %v626, 28
      %v6129 = vpop.permute.xlu0 %6128
      %6130 = vrot.lane.b32.xlu0 %v629, 28
      %v6131 = vpop.permute.xlu0 %6130
      %6132 = vrot.lane.b32.xlu0 %v631, 28
      %v6133 = vpop.permute.xlu0 %6132
      %6134 = vrot.lane.b32.xlu0 %v634, 28
      %v6135 = vpop.permute.xlu0 %6134
      %6136 = vrot.lane.b32.xlu0 %v636, 28
      %v6137 = vpop.permute.xlu0 %6136
      %6138 = vrot.lane.b32.xlu0 %v639, 28
      %v6139 = vpop.permute.xlu0 %6138
      %6140 = vrot.lane.b32.xlu0 %v641, 28
      %v6141 = vpop.permute.xlu0 %6140
      %6174 = vrot.lane.b32.xlu0 %v693, 32
      %v6175 = vpop.permute.xlu0 %6174
      %6176 = vrot.lane.b32.xlu0 %v695, 32
      %v6177 = vpop.permute.xlu0 %6176
      %6178 = vrot.lane.b32.xlu0 %v698, 32
      %v6179 = vpop.permute.xlu0 %6178
      %6180 = vrot.lane.b32.xlu0 %v700, 32
      %v6181 = vpop.permute.xlu0 %6180
      %6182 = vrot.lane.b32.xlu0 %v703, 32
      %v6183 = vpop.permute.xlu0 %6182
      %6184 = vrot.lane.b32.xlu0 %v705, 32
      %v6185 = vpop.permute.xlu0 %6184
      %6186 = vrot.lane.b32.xlu0 %v708, 32
      %v6187 = vpop.permute.xlu0 %6186
      %6188 = vrot.lane.b32.xlu0 %v710, 32
      %v6189 = vpop.permute.xlu0 %6188
      %6190 = vrot.lane.b32.xlu0 %v713, 32
      %v6191 = vpop.permute.xlu0 %6190
      %6192 = vrot.lane.b32.xlu0 %v715, 32
      %v6193 = vpop.permute.xlu0 %6192
      %6194 = vrot.lane.b32.xlu0 %v718, 32
      %v6195 = vpop.permute.xlu0 %6194
      %6196 = vrot.lane.b32.xlu0 %v720, 32
      %v6197 = vpop.permute.xlu0 %6196
      %6198 = vrot.lane.b32.xlu0 %v723, 32
      %v6199 = vpop.permute.xlu0 %6198
      %6200 = vrot.lane.b32.xlu0 %v725, 32
      %v6201 = vpop.permute.xlu0 %6200
      %6202 = vrot.lane.b32.xlu0 %v728, 32
      %v6203 = vpop.permute.xlu0 %6202
      %6204 = vrot.lane.b32.xlu0 %v730, 32
      %v6205 = vpop.permute.xlu0 %6204
      %6206 = vrot.lane.b32.xlu0 %v733, 32
      %v6207 = vpop.permute.xlu0 %6206
      %6208 = vrot.lane.b32.xlu0 %v735, 32
      %v6209 = vpop.permute.xlu0 %6208
      %6210 = vrot.lane.b32.xlu0 %v738, 32
      %v6211 = vpop.permute.xlu0 %6210
      %6212 = vrot.lane.b32.xlu0 %v740, 32
      %v6213 = vpop.permute.xlu0 %6212
      %6214 = vrot.lane.b32.xlu0 %v743, 32
      %v6215 = vpop.permute.xlu0 %6214
      %6216 = vrot.lane.b32.xlu0 %v745, 32
      %v6217 = vpop.permute.xlu0 %6216
      %6218 = vrot.lane.b32.xlu0 %v748, 32
      %v6219 = vpop.permute.xlu0 %6218
      %6220 = vrot.lane.b32.xlu0 %v750, 32
      %v6221 = vpop.permute.xlu0 %6220
      %6222 = vrot.lane.b32.xlu0 %v753, 32
      %v6223 = vpop.permute.xlu0 %6222
      %6224 = vrot.lane.b32.xlu0 %v755, 32
      %v6225 = vpop.permute.xlu0 %6224
      %6226 = vrot.lane.b32.xlu0 %v758, 32
      %v6227 = vpop.permute.xlu0 %6226
      %6228 = vrot.lane.b32.xlu0 %v760, 32
      %v6229 = vpop.permute.xlu0 %6228
      %6230 = vrot.lane.b32.xlu0 %v763, 32
      %v6231 = vpop.permute.xlu0 %6230
      %6232 = vrot.lane.b32.xlu0 %v765, 32
      %v6233 = vpop.permute.xlu0 %6232
      %6234 = vrot.lane.b32.xlu0 %v768, 32
      %v6235 = vpop.permute.xlu0 %6234
      %6236 = vrot.lane.b32.xlu0 %v770, 32
      %v6237 = vpop.permute.xlu0 %6236
      %6270 = vrot.lane.b32.xlu0 %v4396, 36
      %v6271 = vpop.permute.xlu0 %6270
      %6272 = vrot.lane.b32.xlu0 %v4398, 36
      %v6273 = vpop.permute.xlu0 %6272
      %6274 = vrot.lane.b32.xlu0 %v4401, 36
      %v6275 = vpop.permute.xlu0 %6274
      %6276 = vrot.lane.b32.xlu0 %v4403, 36
      %v6277 = vpop.permute.xlu0 %6276
      %6278 = vrot.lane.b32.xlu0 %v4406, 36
      %v6279 = vpop.permute.xlu0 %6278
      %6280 = vrot.lane.b32.xlu0 %v4408, 36
      %v6281 = vpop.permute.xlu0 %6280
      %6282 = vrot.lane.b32.xlu0 %v4411, 36
      %v6283 = vpop.permute.xlu0 %6282
      %6284 = vrot.lane.b32.xlu0 %v4413, 36
      %v6285 = vpop.permute.xlu0 %6284
      %6286 = vrot.lane.b32.xlu0 %v4416, 36
      %v6287 = vpop.permute.xlu0 %6286
      %6288 = vrot.lane.b32.xlu0 %v4418, 36
      %v6289 = vpop.permute.xlu0 %6288
      %6290 = vrot.lane.b32.xlu0 %v4421, 36
      %v6291 = vpop.permute.xlu0 %6290
      %6292 = vrot.lane.b32.xlu0 %v4423, 36
      %v6293 = vpop.permute.xlu0 %6292
      %6294 = vrot.lane.b32.xlu0 %v4426, 36
      %v6295 = vpop.permute.xlu0 %6294
      %6296 = vrot.lane.b32.xlu0 %v4428, 36
      %v6297 = vpop.permute.xlu0 %6296
      %6298 = vrot.lane.b32.xlu0 %v4431, 36
      %v6299 = vpop.permute.xlu0 %6298
      %6300 = vrot.lane.b32.xlu0 %v4433, 36
      %v6301 = vpop.permute.xlu0 %6300
      %6302 = vrot.lane.b32.xlu0 %v4436, 36
      %v6303 = vpop.permute.xlu0 %6302
      %6304 = vrot.lane.b32.xlu0 %v4438, 36
      %v6305 = vpop.permute.xlu0 %6304
      %6306 = vrot.lane.b32.xlu0 %v4441, 36
      %v6307 = vpop.permute.xlu0 %6306
      %6308 = vrot.lane.b32.xlu0 %v4443, 36
      %v6309 = vpop.permute.xlu0 %6308
      %6310 = vrot.lane.b32.xlu0 %v4446, 36
      %v6311 = vpop.permute.xlu0 %6310
      %6312 = vrot.lane.b32.xlu0 %v4448, 36
      %v6313 = vpop.permute.xlu0 %6312
      %6314 = vrot.lane.b32.xlu0 %v4451, 36
      %v6315 = vpop.permute.xlu0 %6314
      %6316 = vrot.lane.b32.xlu0 %v4453, 36
      %v6317 = vpop.permute.xlu0 %6316
      %6318 = vrot.lane.b32.xlu0 %v4456, 36
      %v6319 = vpop.permute.xlu0 %6318
      %6320 = vrot.lane.b32.xlu0 %v4458, 36
      %v6321 = vpop.permute.xlu0 %6320
      %6322 = vrot.lane.b32.xlu0 %v4461, 36
      %v6323 = vpop.permute.xlu0 %6322
      %6324 = vrot.lane.b32.xlu0 %v4463, 36
      %v6325 = vpop.permute.xlu0 %6324
      %6326 = vrot.lane.b32.xlu0 %v4466, 36
      %v6327 = vpop.permute.xlu0 %6326
      %6328 = vrot.lane.b32.xlu0 %v4468, 36
      %v6329 = vpop.permute.xlu0 %6328
      %6330 = vrot.lane.b32.xlu0 %v4471, 36
      %v6331 = vpop.permute.xlu0 %6330
      %6332 = vrot.lane.b32.xlu0 %v4473, 36
      %v6333 = vpop.permute.xlu0 %6332
      %6398 = vrot.lane.b32.xlu0 %v4506, 40
      %v6399 = vpop.permute.xlu0 %6398
      %6400 = vrot.lane.b32.xlu0 %v4507, 40
      %v6401 = vpop.permute.xlu0 %6400
      %6402 = vrot.lane.b32.xlu0 %v4508, 40
      %v6403 = vpop.permute.xlu0 %6402
      %6404 = vrot.lane.b32.xlu0 %v4509, 40
      %v6405 = vpop.permute.xlu0 %6404
      %6406 = vrot.lane.b32.xlu0 %v4510, 40
      %v6407 = vpop.permute.xlu0 %6406
      %6408 = vrot.lane.b32.xlu0 %v4511, 40
      %v6409 = vpop.permute.xlu0 %6408
      %6410 = vrot.lane.b32.xlu0 %v4512, 40
      %v6411 = vpop.permute.xlu0 %6410
      %6412 = vrot.lane.b32.xlu0 %v4513, 40
      %v6413 = vpop.permute.xlu0 %6412
      %6414 = vrot.lane.b32.xlu0 %v4514, 40
      %v6415 = vpop.permute.xlu0 %6414
      %6416 = vrot.lane.b32.xlu0 %v4515, 40
      %v6417 = vpop.permute.xlu0 %6416
      %6418 = vrot.lane.b32.xlu0 %v4516, 40
      %v6419 = vpop.permute.xlu0 %6418
      %6420 = vrot.lane.b32.xlu0 %v4517, 40
      %v6421 = vpop.permute.xlu0 %6420
      %6422 = vrot.lane.b32.xlu0 %v4518, 40
      %v6423 = vpop.permute.xlu0 %6422
      %6424 = vrot.lane.b32.xlu0 %v4519, 40
      %v6425 = vpop.permute.xlu0 %6424
      %6426 = vrot.lane.b32.xlu0 %v4520, 40
      %v6427 = vpop.permute.xlu0 %6426
      %6428 = vrot.lane.b32.xlu0 %v4521, 40
      %v6429 = vpop.permute.xlu0 %6428
      %6430 = vrot.lane.b32.xlu0 %v4522, 40
      %v6431 = vpop.permute.xlu0 %6430
      %6432 = vrot.lane.b32.xlu0 %v4523, 40
      %v6433 = vpop.permute.xlu0 %6432
      %6434 = vrot.lane.b32.xlu0 %v4524, 40
      %v6435 = vpop.permute.xlu0 %6434
      %6436 = vrot.lane.b32.xlu0 %v4525, 40
      %v6437 = vpop.permute.xlu0 %6436
      %6438 = vrot.lane.b32.xlu0 %v4526, 40
      %v6439 = vpop.permute.xlu0 %6438
      %6440 = vrot.lane.b32.xlu0 %v4527, 40
      %v6441 = vpop.permute.xlu0 %6440
      %6442 = vrot.lane.b32.xlu0 %v4528, 40
      %v6443 = vpop.permute.xlu0 %6442
      %6444 = vrot.lane.b32.xlu0 %v4529, 40
      %v6445 = vpop.permute.xlu0 %6444
      %6446 = vrot.lane.b32.xlu0 %v4530, 40
      %v6447 = vpop.permute.xlu0 %6446
      %6448 = vrot.lane.b32.xlu0 %v4531, 40
      %v6449 = vpop.permute.xlu0 %6448
      %6450 = vrot.lane.b32.xlu0 %v4532, 40
      %v6451 = vpop.permute.xlu0 %6450
      %6452 = vrot.lane.b32.xlu0 %v4533, 40
      %v6453 = vpop.permute.xlu0 %6452
      %6454 = vrot.lane.b32.xlu0 %v4534, 40
      %v6455 = vpop.permute.xlu0 %6454
      %6456 = vrot.lane.b32.xlu0 %v4535, 40
      %v6457 = vpop.permute.xlu0 %6456
      %6458 = vrot.lane.b32.xlu0 %v4536, 40
      %v6459 = vpop.permute.xlu0 %6458
      %6460 = vrot.lane.b32.xlu0 %v4537, 40
      %v6461 = vpop.permute.xlu0 %6460
      %6494 = vrot.lane.b32.xlu0 %v921, 44
      %v6495 = vpop.permute.xlu0 %6494
      %6496 = vrot.lane.b32.xlu0 %v923, 44
      %v6497 = vpop.permute.xlu0 %6496
      %6498 = vrot.lane.b32.xlu0 %v926, 44
      %v6499 = vpop.permute.xlu0 %6498
      %6500 = vrot.lane.b32.xlu0 %v928, 44
      %v6501 = vpop.permute.xlu0 %6500
      %6502 = vrot.lane.b32.xlu0 %v931, 44
      %v6503 = vpop.permute.xlu0 %6502
      %6504 = vrot.lane.b32.xlu0 %v933, 44
      %v6505 = vpop.permute.xlu0 %6504
      %6506 = vrot.lane.b32.xlu0 %v936, 44
      %v6507 = vpop.permute.xlu0 %6506
      %6508 = vrot.lane.b32.xlu0 %v938, 44
      %v6509 = vpop.permute.xlu0 %6508
      %6510 = vrot.lane.b32.xlu0 %v941, 44
      %v6511 = vpop.permute.xlu0 %6510
      %6512 = vrot.lane.b32.xlu0 %v943, 44
      %v6513 = vpop.permute.xlu0 %6512
      %6514 = vrot.lane.b32.xlu0 %v946, 44
      %v6515 = vpop.permute.xlu0 %6514
      %6516 = vrot.lane.b32.xlu0 %v948, 44
      %v6517 = vpop.permute.xlu0 %6516
      %6518 = vrot.lane.b32.xlu0 %v951, 44
      %v6519 = vpop.permute.xlu0 %6518
      %6520 = vrot.lane.b32.xlu0 %v953, 44
      %v6521 = vpop.permute.xlu0 %6520
      %6522 = vrot.lane.b32.xlu0 %v956, 44
      %v6523 = vpop.permute.xlu0 %6522
      %6524 = vrot.lane.b32.xlu0 %v958, 44
      %v6525 = vpop.permute.xlu0 %6524
      %6526 = vrot.lane.b32.xlu0 %v961, 44
      %v6527 = vpop.permute.xlu0 %6526
      %6528 = vrot.lane.b32.xlu0 %v963, 44
      %v6529 = vpop.permute.xlu0 %6528
      %6530 = vrot.lane.b32.xlu0 %v966, 44
      %v6531 = vpop.permute.xlu0 %6530
      %6532 = vrot.lane.b32.xlu0 %v968, 44
      %v6533 = vpop.permute.xlu0 %6532
      %6534 = vrot.lane.b32.xlu0 %v971, 44
      %v6535 = vpop.permute.xlu0 %6534
      %6536 = vrot.lane.b32.xlu0 %v973, 44
      %v6537 = vpop.permute.xlu0 %6536
      %6538 = vrot.lane.b32.xlu0 %v976, 44
      %v6539 = vpop.permute.xlu0 %6538
      %6540 = vrot.lane.b32.xlu0 %v978, 44
      %v6541 = vpop.permute.xlu0 %6540
      %6542 = vrot.lane.b32.xlu0 %v981, 44
      %v6543 = vpop.permute.xlu0 %6542
      %6544 = vrot.lane.b32.xlu0 %v983, 44
      %v6545 = vpop.permute.xlu0 %6544
      %6546 = vrot.lane.b32.xlu0 %v986, 44
      %v6547 = vpop.permute.xlu0 %6546
      %6548 = vrot.lane.b32.xlu0 %v988, 44
      %v6549 = vpop.permute.xlu0 %6548
      %6550 = vrot.lane.b32.xlu0 %v991, 44
      %v6551 = vpop.permute.xlu0 %6550
      %6552 = vrot.lane.b32.xlu0 %v993, 44
      %v6553 = vpop.permute.xlu0 %6552
      %6554 = vrot.lane.b32.xlu0 %v996, 44
      %v6555 = vpop.permute.xlu0 %6554
      %6556 = vrot.lane.b32.xlu0 %v998, 44
      %v6557 = vpop.permute.xlu0 %6556
      %6590 = vrot.lane.b32.xlu0 %v1049, 48
      %v6591 = vpop.permute.xlu0 %6590
      %6592 = vrot.lane.b32.xlu0 %v1051, 48
      %v6593 = vpop.permute.xlu0 %6592
      %6594 = vrot.lane.b32.xlu0 %v1054, 48
      %v6595 = vpop.permute.xlu0 %6594
      %6596 = vrot.lane.b32.xlu0 %v1056, 48
      %v6597 = vpop.permute.xlu0 %6596
      %6598 = vrot.lane.b32.xlu0 %v1059, 48
      %v6599 = vpop.permute.xlu0 %6598
      %6600 = vrot.lane.b32.xlu0 %v1061, 48
      %v6601 = vpop.permute.xlu0 %6600
      %6602 = vrot.lane.b32.xlu0 %v1064, 48
      %v6603 = vpop.permute.xlu0 %6602
      %6604 = vrot.lane.b32.xlu0 %v1066, 48
      %v6605 = vpop.permute.xlu0 %6604
      %6606 = vrot.lane.b32.xlu0 %v1069, 48
      %v6607 = vpop.permute.xlu0 %6606
      %6608 = vrot.lane.b32.xlu0 %v1071, 48
      %v6609 = vpop.permute.xlu0 %6608
      %6610 = vrot.lane.b32.xlu0 %v1074, 48
      %v6611 = vpop.permute.xlu0 %6610
      %6612 = vrot.lane.b32.xlu0 %v1076, 48
      %v6613 = vpop.permute.xlu0 %6612
      %6614 = vrot.lane.b32.xlu0 %v1079, 48
      %v6615 = vpop.permute.xlu0 %6614
      %6616 = vrot.lane.b32.xlu0 %v1081, 48
      %v6617 = vpop.permute.xlu0 %6616
      %6618 = vrot.lane.b32.xlu0 %v1084, 48
      %v6619 = vpop.permute.xlu0 %6618
      %6620 = vrot.lane.b32.xlu0 %v1086, 48
      %v6621 = vpop.permute.xlu0 %6620
      %6622 = vrot.lane.b32.xlu0 %v1089, 48
      %v6623 = vpop.permute.xlu0 %6622
      %6624 = vrot.lane.b32.xlu0 %v1091, 48
      %v6625 = vpop.permute.xlu0 %6624
      %6626 = vrot.lane.b32.xlu0 %v1094, 48
      %v6627 = vpop.permute.xlu0 %6626
      %6628 = vrot.lane.b32.xlu0 %v1096, 48
      %v6629 = vpop.permute.xlu0 %6628
      %6630 = vrot.lane.b32.xlu0 %v1099, 48
      %v6631 = vpop.permute.xlu0 %6630
      %6632 = vrot.lane.b32.xlu0 %v1101, 48
      %v6633 = vpop.permute.xlu0 %6632
      %6634 = vrot.lane.b32.xlu0 %v1104, 48
      %v6635 = vpop.permute.xlu0 %6634
      %6636 = vrot.lane.b32.xlu0 %v1106, 48
      %v6637 = vpop.permute.xlu0 %6636
      %6638 = vrot.lane.b32.xlu0 %v1109, 48
      %v6639 = vpop.permute.xlu0 %6638
      %6640 = vrot.lane.b32.xlu0 %v1111, 48
      %v6641 = vpop.permute.xlu0 %6640
      %6642 = vrot.lane.b32.xlu0 %v1114, 48
      %v6643 = vpop.permute.xlu0 %6642
      %6644 = vrot.lane.b32.xlu0 %v1116, 48
      %v6645 = vpop.permute.xlu0 %6644
      %6646 = vrot.lane.b32.xlu0 %v1119, 48
      %v6647 = vpop.permute.xlu0 %6646
      %6648 = vrot.lane.b32.xlu0 %v1121, 48
      %v6649 = vpop.permute.xlu0 %6648
      %6650 = vrot.lane.b32.xlu0 %v1124, 48
      %v6651 = vpop.permute.xlu0 %6650
      %6652 = vrot.lane.b32.xlu0 %v1126, 48
      %v6653 = vpop.permute.xlu0 %6652
      %6686 = vrot.lane.b32.xlu0 %v1177, 52
      %v6687 = vpop.permute.xlu0 %6686
      %6688 = vrot.lane.b32.xlu0 %v1179, 52
      %v6689 = vpop.permute.xlu0 %6688
      %6690 = vrot.lane.b32.xlu0 %v1182, 52
      %v6691 = vpop.permute.xlu0 %6690
      %6692 = vrot.lane.b32.xlu0 %v1184, 52
      %v6693 = vpop.permute.xlu0 %6692
      %6694 = vrot.lane.b32.xlu0 %v1187, 52
      %v6695 = vpop.permute.xlu0 %6694
      %6696 = vrot.lane.b32.xlu0 %v1189, 52
      %v6697 = vpop.permute.xlu0 %6696
      %6698 = vrot.lane.b32.xlu0 %v1192, 52
      %v6699 = vpop.permute.xlu0 %6698
      %6700 = vrot.lane.b32.xlu0 %v1194, 52
      %v6701 = vpop.permute.xlu0 %6700
      %6702 = vrot.lane.b32.xlu0 %v1197, 52
      %v6703 = vpop.permute.xlu0 %6702
      %6704 = vrot.lane.b32.xlu0 %v1199, 52
      %v6705 = vpop.permute.xlu0 %6704
      %6706 = vrot.lane.b32.xlu0 %v1202, 52
      %v6707 = vpop.permute.xlu0 %6706
      %6708 = vrot.lane.b32.xlu0 %v1204, 52
      %v6709 = vpop.permute.xlu0 %6708
      %6710 = vrot.lane.b32.xlu0 %v1207, 52
      %v6711 = vpop.permute.xlu0 %6710
      %6712 = vrot.lane.b32.xlu0 %v1209, 52
      %v6713 = vpop.permute.xlu0 %6712
      %6714 = vrot.lane.b32.xlu0 %v1212, 52
      %v6715 = vpop.permute.xlu0 %6714
      %6716 = vrot.lane.b32.xlu0 %v1214, 52
      %v6717 = vpop.permute.xlu0 %6716
      %6718 = vrot.lane.b32.xlu0 %v1217, 52
      %v6719 = vpop.permute.xlu0 %6718
      %6720 = vrot.lane.b32.xlu0 %v1219, 52
      %v6721 = vpop.permute.xlu0 %6720
      %6722 = vrot.lane.b32.xlu0 %v1222, 52
      %v6723 = vpop.permute.xlu0 %6722
      %6724 = vrot.lane.b32.xlu0 %v1224, 52
      %v6725 = vpop.permute.xlu0 %6724
      %6726 = vrot.lane.b32.xlu0 %v1227, 52
      %v6727 = vpop.permute.xlu0 %6726
      %6728 = vrot.lane.b32.xlu0 %v1229, 52
      %v6729 = vpop.permute.xlu0 %6728
      %6730 = vrot.lane.b32.xlu0 %v1232, 52
      %v6731 = vpop.permute.xlu0 %6730
      %6732 = vrot.lane.b32.xlu0 %v1234, 52
      %v6733 = vpop.permute.xlu0 %6732
      %6734 = vrot.lane.b32.xlu0 %v1237, 52
      %v6735 = vpop.permute.xlu0 %6734
      %6736 = vrot.lane.b32.xlu0 %v1239, 52
      %v6737 = vpop.permute.xlu0 %6736
      %6738 = vrot.lane.b32.xlu0 %v1242, 52
      %v6739 = vpop.permute.xlu0 %6738
      %6740 = vrot.lane.b32.xlu0 %v1244, 52
      %v6741 = vpop.permute.xlu0 %6740
      %6742 = vrot.lane.b32.xlu0 %v1247, 52
      %v6743 = vpop.permute.xlu0 %6742
      %6744 = vrot.lane.b32.xlu0 %v1249, 52
      %v6745 = vpop.permute.xlu0 %6744
      %6746 = vrot.lane.b32.xlu0 %v1252, 52
      %v6747 = vpop.permute.xlu0 %6746
      %6748 = vrot.lane.b32.xlu0 %v1254, 52
      %v6749 = vpop.permute.xlu0 %6748
      %6782 = vrot.lane.b32.xlu0 %v4588, 56
      %v6783 = vpop.permute.xlu0 %6782
      %6784 = vrot.lane.b32.xlu0 %v4590, 56
      %v6785 = vpop.permute.xlu0 %6784
      %6786 = vrot.lane.b32.xlu0 %v4593, 56
      %v6787 = vpop.permute.xlu0 %6786
      %6788 = vrot.lane.b32.xlu0 %v4595, 56
      %v6789 = vpop.permute.xlu0 %6788
      %6790 = vrot.lane.b32.xlu0 %v4598, 56
      %v6791 = vpop.permute.xlu0 %6790
      %6792 = vrot.lane.b32.xlu0 %v4600, 56
      %v6793 = vpop.permute.xlu0 %6792
      %6794 = vrot.lane.b32.xlu0 %v4603, 56
      %v6795 = vpop.permute.xlu0 %6794
      %6796 = vrot.lane.b32.xlu0 %v4605, 56
      %v6797 = vpop.permute.xlu0 %6796
      %6798 = vrot.lane.b32.xlu0 %v4608, 56
      %v6799 = vpop.permute.xlu0 %6798
      %6800 = vrot.lane.b32.xlu0 %v4610, 56
      %v6801 = vpop.permute.xlu0 %6800
      %6802 = vrot.lane.b32.xlu0 %v4613, 56
      %v6803 = vpop.permute.xlu0 %6802
      %6804 = vrot.lane.b32.xlu0 %v4615, 56
      %v6805 = vpop.permute.xlu0 %6804
      %6806 = vrot.lane.b32.xlu0 %v4618, 56
      %v6807 = vpop.permute.xlu0 %6806
      %6808 = vrot.lane.b32.xlu0 %v4620, 56
      %v6809 = vpop.permute.xlu0 %6808
      %6810 = vrot.lane.b32.xlu0 %v4623, 56
      %v6811 = vpop.permute.xlu0 %6810
      %6812 = vrot.lane.b32.xlu0 %v4625, 56
      %v6813 = vpop.permute.xlu0 %6812
      %6814 = vrot.lane.b32.xlu0 %v4628, 56
      %v6815 = vpop.permute.xlu0 %6814
      %6816 = vrot.lane.b32.xlu0 %v4630, 56
      %v6817 = vpop.permute.xlu0 %6816
      %6818 = vrot.lane.b32.xlu0 %v4633, 56
      %v6819 = vpop.permute.xlu0 %6818
      %6820 = vrot.lane.b32.xlu0 %v4635, 56
      %v6821 = vpop.permute.xlu0 %6820
      %6822 = vrot.lane.b32.xlu0 %v4638, 56
      %v6823 = vpop.permute.xlu0 %6822
      %6824 = vrot.lane.b32.xlu0 %v4640, 56
      %v6825 = vpop.permute.xlu0 %6824
      %6826 = vrot.lane.b32.xlu0 %v4643, 56
      %v6827 = vpop.permute.xlu0 %6826
      %6828 = vrot.lane.b32.xlu0 %v4645, 56
      %v6829 = vpop.permute.xlu0 %6828
      %6830 = vrot.lane.b32.xlu0 %v4648, 56
      %v6831 = vpop.permute.xlu0 %6830
      %6832 = vrot.lane.b32.xlu0 %v4650, 56
      %v6833 = vpop.permute.xlu0 %6832
      %6834 = vrot.lane.b32.xlu0 %v4653, 56
      %v6835 = vpop.permute.xlu0 %6834
      %6836 = vrot.lane.b32.xlu0 %v4655, 56
      %v6837 = vpop.permute.xlu0 %6836
      %6838 = vrot.lane.b32.xlu0 %v4658, 56
      %v6839 = vpop.permute.xlu0 %6838
      %6840 = vrot.lane.b32.xlu0 %v4660, 56
      %v6841 = vpop.permute.xlu0 %6840
      %6842 = vrot.lane.b32.xlu0 %v4663, 56
      %v6843 = vpop.permute.xlu0 %6842
      %6844 = vrot.lane.b32.xlu0 %v4665, 56
      %v6845 = vpop.permute.xlu0 %6844
      %6910 = vrot.lane.b32.xlu0 %v4698, 60
      %v6911 = vpop.permute.xlu0 %6910
      %6912 = vrot.lane.b32.xlu0 %v4699, 60
      %v6913 = vpop.permute.xlu0 %6912
      %6914 = vrot.lane.b32.xlu0 %v4700, 60
      %v6915 = vpop.permute.xlu0 %6914
      %6916 = vrot.lane.b32.xlu0 %v4701, 60
      %v6917 = vpop.permute.xlu0 %6916
      %6918 = vrot.lane.b32.xlu0 %v4702, 60
      %v6919 = vpop.permute.xlu0 %6918
      %6920 = vrot.lane.b32.xlu0 %v4703, 60
      %v6921 = vpop.permute.xlu0 %6920
      %6922 = vrot.lane.b32.xlu0 %v4704, 60
      %v6923 = vpop.permute.xlu0 %6922
      %6924 = vrot.lane.b32.xlu0 %v4705, 60
      %v6925 = vpop.permute.xlu0 %6924
      %6926 = vrot.lane.b32.xlu0 %v4706, 60
      %v6927 = vpop.permute.xlu0 %6926
      %6928 = vrot.lane.b32.xlu0 %v4707, 60
      %v6929 = vpop.permute.xlu0 %6928
      %6930 = vrot.lane.b32.xlu0 %v4708, 60
      %v6931 = vpop.permute.xlu0 %6930
      %6932 = vrot.lane.b32.xlu0 %v4709, 60
      %v6933 = vpop.permute.xlu0 %6932
      %6934 = vrot.lane.b32.xlu0 %v4710, 60
      %v6935 = vpop.permute.xlu0 %6934
      %6936 = vrot.lane.b32.xlu0 %v4711, 60
      %v6937 = vpop.permute.xlu0 %6936
      %6938 = vrot.lane.b32.xlu0 %v4712, 60
      %v6939 = vpop.permute.xlu0 %6938
      %6940 = vrot.lane.b32.xlu0 %v4713, 60
      %v6941 = vpop.permute.xlu0 %6940
      %6942 = vrot.lane.b32.xlu0 %v4714, 60
      %v6943 = vpop.permute.xlu0 %6942
      %6944 = vrot.lane.b32.xlu0 %v4715, 60
      %v6945 = vpop.permute.xlu0 %6944
      %6946 = vrot.lane.b32.xlu0 %v4716, 60
      %v6947 = vpop.permute.xlu0 %6946
      %6948 = vrot.lane.b32.xlu0 %v4717, 60
      %v6949 = vpop.permute.xlu0 %6948
      %6950 = vrot.lane.b32.xlu0 %v4718, 60
      %v6951 = vpop.permute.xlu0 %6950
      %6952 = vrot.lane.b32.xlu0 %v4719, 60
      %v6953 = vpop.permute.xlu0 %6952
      %6954 = vrot.lane.b32.xlu0 %v4720, 60
      %v6955 = vpop.permute.xlu0 %6954
      %6956 = vrot.lane.b32.xlu0 %v4721, 60
      %v6957 = vpop.permute.xlu0 %6956
      %6958 = vrot.lane.b32.xlu0 %v4722, 60
      %v6959 = vpop.permute.xlu0 %6958
      %6960 = vrot.lane.b32.xlu0 %v4723, 60
      %v6961 = vpop.permute.xlu0 %6960
      %6962 = vrot.lane.b32.xlu0 %v4724, 60
      %v6963 = vpop.permute.xlu0 %6962
      %6964 = vrot.lane.b32.xlu0 %v4725, 60
      %v6965 = vpop.permute.xlu0 %6964
      %6966 = vrot.lane.b32.xlu0 %v4726, 60
      %v6967 = vpop.permute.xlu0 %6966
      %6968 = vrot.lane.b32.xlu0 %v4727, 60
      %v6969 = vpop.permute.xlu0 %6968
      %6970 = vrot.lane.b32.xlu0 %v4728, 60
      %v6971 = vpop.permute.xlu0 %6970
      %6972 = vrot.lane.b32.xlu0 %v4729, 60
      %v6973 = vpop.permute.xlu0 %6972
      %v7006 = vsel %vm2539, %v3705, %v5471
      %v7007 = vsel %vm2539, %v3706, %v5473
      %v7008 = vsel %vm2539, %v3707, %v5475
      %v7009 = vsel %vm2539, %v3708, %v5477
      %v7010 = vsel %vm2539, %v3709, %v5479
      %v7011 = vsel %vm2539, %v3710, %v5481
      %v7012 = vsel %vm2539, %v3711, %v5483
      %v7013 = vsel %vm2539, %v3712, %v5485
      %v7014 = vsel %vm2539, %v3713, %v5487
      %v7015 = vsel %vm2539, %v3714, %v5489
      %v7016 = vsel %vm2539, %v3715, %v5491
      %v7017 = vsel %vm2539, %v3716, %v5493
      %v7018 = vsel %vm2539, %v3717, %v5495
      %v7019 = vsel %vm2539, %v3718, %v5497
      %v7020 = vsel %vm2539, %v3719, %v5499
      %v7021 = vsel %vm2539, %v3720, %v5501
      %v7022 = vsel %vm2539, %v3721, %v5503
      %v7023 = vsel %vm2539, %v3722, %v5505
      %v7024 = vsel %vm2539, %v3723, %v5507
      %v7025 = vsel %vm2539, %v3724, %v5509
      %v7026 = vsel %vm2539, %v3725, %v5511
      %v7027 = vsel %vm2539, %v3726, %v5513
      %v7028 = vsel %vm2539, %v3727, %v5515
      %v7029 = vsel %vm2539, %v3728, %v5517
      %v7030 = vsel %vm2539, %v3729, %v5519
      %v7031 = vsel %vm2539, %v3730, %v5521
      %v7032 = vsel %vm2539, %v3731, %v5523
      %v7033 = vsel %vm2539, %v3732, %v5525
      %v7034 = vsel %vm2539, %v3733, %v5527
      %v7035 = vsel %vm2539, %v3734, %v5529
      %v7036 = vsel %vm2539, %v3735, %v5531
      %v7037 = vsel %vm2539, %v3736, %v5533
      %v7038 = vsel %vm2572, %v7006, %v5567
      %v7039 = vsel %vm2572, %v7007, %v5569
      %v7040 = vsel %vm2572, %v7008, %v5571
      %v7041 = vsel %vm2572, %v7009, %v5573
      %v7042 = vsel %vm2572, %v7010, %v5575
      %v7043 = vsel %vm2572, %v7011, %v5577
      %v7044 = vsel %vm2572, %v7012, %v5579
      %v7045 = vsel %vm2572, %v7013, %v5581
      %v7046 = vsel %vm2572, %v7014, %v5583
      %v7047 = vsel %vm2572, %v7015, %v5585
      %v7048 = vsel %vm2572, %v7016, %v5587
      %v7049 = vsel %vm2572, %v7017, %v5589
      %v7050 = vsel %vm2572, %v7018, %v5591
      %v7051 = vsel %vm2572, %v7019, %v5593
      %v7052 = vsel %vm2572, %v7020, %v5595
      %v7053 = vsel %vm2572, %v7021, %v5597
      %v7054 = vsel %vm2572, %v7022, %v5599
      %v7055 = vsel %vm2572, %v7023, %v5601
      %v7056 = vsel %vm2572, %v7024, %v5603
      %v7057 = vsel %vm2572, %v7025, %v5605
      %v7058 = vsel %vm2572, %v7026, %v5607
      %v7059 = vsel %vm2572, %v7027, %v5609
      %v7060 = vsel %vm2572, %v7028, %v5611
      %v7061 = vsel %vm2572, %v7029, %v5613
      %v7062 = vsel %vm2572, %v7030, %v5615
      %v7063 = vsel %vm2572, %v7031, %v5617
      %v7064 = vsel %vm2572, %v7032, %v5619
      %v7065 = vsel %vm2572, %v7033, %v5621
      %v7066 = vsel %vm2572, %v7034, %v5623
      %v7067 = vsel %vm2572, %v7035, %v5625
      %v7068 = vsel %vm2572, %v7036, %v5627
      %v7069 = vsel %vm2572, %v7037, %v5629
      %v7070 = vsel %vm2605, %v7038, %v5663
      %v7071 = vsel %vm2605, %v7039, %v5665
      %v7072 = vsel %vm2605, %v7040, %v5667
      %v7073 = vsel %vm2605, %v7041, %v5669
      %v7074 = vsel %vm2605, %v7042, %v5671
      %v7075 = vsel %vm2605, %v7043, %v5673
      %v7076 = vsel %vm2605, %v7044, %v5675
      %v7077 = vsel %vm2605, %v7045, %v5677
      %v7078 = vsel %vm2605, %v7046, %v5679
      %v7079 = vsel %vm2605, %v7047, %v5681
      %v7080 = vsel %vm2605, %v7048, %v5683
      %v7081 = vsel %vm2605, %v7049, %v5685
      %v7082 = vsel %vm2605, %v7050, %v5687
      %v7083 = vsel %vm2605, %v7051, %v5689
      %v7084 = vsel %vm2605, %v7052, %v5691
      %v7085 = vsel %vm2605, %v7053, %v5693
      %v7086 = vsel %vm2605, %v7054, %v5695
      %v7087 = vsel %vm2605, %v7055, %v5697
      %v7088 = vsel %vm2605, %v7056, %v5699
      %v7089 = vsel %vm2605, %v7057, %v5701
      %v7090 = vsel %vm2605, %v7058, %v5703
      %v7091 = vsel %vm2605, %v7059, %v5705
      %v7092 = vsel %vm2605, %v7060, %v5707
      %v7093 = vsel %vm2605, %v7061, %v5709
      %v7094 = vsel %vm2605, %v7062, %v5711
      %v7095 = vsel %vm2605, %v7063, %v5713
      %v7096 = vsel %vm2605, %v7064, %v5715
      %v7097 = vsel %vm2605, %v7065, %v5717
      %v7098 = vsel %vm2605, %v7066, %v5719
      %v7099 = vsel %vm2605, %v7067, %v5721
      %v7100 = vsel %vm2605, %v7068, %v5723
      %v7101 = vsel %vm2605, %v7069, %v5725
      %v7102 = vsel %vm2638, %v7070, %v5759
      %v7103 = vsel %vm2638, %v7071, %v5761
      %v7104 = vsel %vm2638, %v7072, %v5763
      %v7105 = vsel %vm2638, %v7073, %v5765
      %v7106 = vsel %vm2638, %v7074, %v5767
      %v7107 = vsel %vm2638, %v7075, %v5769
      %v7108 = vsel %vm2638, %v7076, %v5771
      %v7109 = vsel %vm2638, %v7077, %v5773
      %v7110 = vsel %vm2638, %v7078, %v5775
      %v7111 = vsel %vm2638, %v7079, %v5777
      %v7112 = vsel %vm2638, %v7080, %v5779
      %v7113 = vsel %vm2638, %v7081, %v5781
      %v7114 = vsel %vm2638, %v7082, %v5783
      %v7115 = vsel %vm2638, %v7083, %v5785
      %v7116 = vsel %vm2638, %v7084, %v5787
      %v7117 = vsel %vm2638, %v7085, %v5789
      %v7118 = vsel %vm2638, %v7086, %v5791
      %v7119 = vsel %vm2638, %v7087, %v5793
      %v7120 = vsel %vm2638, %v7088, %v5795
      %v7121 = vsel %vm2638, %v7089, %v5797
      %v7122 = vsel %vm2638, %v7090, %v5799
      %v7123 = vsel %vm2638, %v7091, %v5801
      %v7124 = vsel %vm2638, %v7092, %v5803
      %v7125 = vsel %vm2638, %v7093, %v5805
      %v7126 = vsel %vm2638, %v7094, %v5807
      %v7127 = vsel %vm2638, %v7095, %v5809
      %v7128 = vsel %vm2638, %v7096, %v5811
      %v7129 = vsel %vm2638, %v7097, %v5813
      %v7130 = vsel %vm2638, %v7098, %v5815
      %v7131 = vsel %vm2638, %v7099, %v5817
      %v7132 = vsel %vm2638, %v7100, %v5819
      %v7133 = vsel %vm2638, %v7101, %v5821
      %v7134 = vsel %vm2671, %v7102, %v5887
      %v7135 = vsel %vm2671, %v7103, %v5889
      %v7136 = vsel %vm2671, %v7104, %v5891
      %v7137 = vsel %vm2671, %v7105, %v5893
      %v7138 = vsel %vm2671, %v7106, %v5895
      %v7139 = vsel %vm2671, %v7107, %v5897
      %v7140 = vsel %vm2671, %v7108, %v5899
      %v7141 = vsel %vm2671, %v7109, %v5901
      %v7142 = vsel %vm2671, %v7110, %v5903
      %v7143 = vsel %vm2671, %v7111, %v5905
      %v7144 = vsel %vm2671, %v7112, %v5907
      %v7145 = vsel %vm2671, %v7113, %v5909
      %v7146 = vsel %vm2671, %v7114, %v5911
      %v7147 = vsel %vm2671, %v7115, %v5913
      %v7148 = vsel %vm2671, %v7116, %v5915
      %v7149 = vsel %vm2671, %v7117, %v5917
      %v7150 = vsel %vm2671, %v7118, %v5919
      %v7151 = vsel %vm2671, %v7119, %v5921
      %v7152 = vsel %vm2671, %v7120, %v5923
      %v7153 = vsel %vm2671, %v7121, %v5925
      %v7154 = vsel %vm2671, %v7122, %v5927
      %v7155 = vsel %vm2671, %v7123, %v5929
      %v7156 = vsel %vm2671, %v7124, %v5931
      %v7157 = vsel %vm2671, %v7125, %v5933
      %v7158 = vsel %vm2671, %v7126, %v5935
      %v7159 = vsel %vm2671, %v7127, %v5937
      %v7160 = vsel %vm2671, %v7128, %v5939
      %v7161 = vsel %vm2671, %v7129, %v5941
      %v7162 = vsel %vm2671, %v7130, %v5943
      %v7163 = vsel %vm2671, %v7131, %v5945
      %v7164 = vsel %vm2671, %v7132, %v5947
      %v7165 = vsel %vm2671, %v7133, %v5949
      %v7166 = vsel %vm2704, %v7134, %v5983
      %v7167 = vsel %vm2704, %v7135, %v5985
      %v7168 = vsel %vm2704, %v7136, %v5987
      %v7169 = vsel %vm2704, %v7137, %v5989
      %v7170 = vsel %vm2704, %v7138, %v5991
      %v7171 = vsel %vm2704, %v7139, %v5993
      %v7172 = vsel %vm2704, %v7140, %v5995
      %v7173 = vsel %vm2704, %v7141, %v5997
      %v7174 = vsel %vm2704, %v7142, %v5999
      %v7175 = vsel %vm2704, %v7143, %v6001
      %v7176 = vsel %vm2704, %v7144, %v6003
      %v7177 = vsel %vm2704, %v7145, %v6005
      %v7178 = vsel %vm2704, %v7146, %v6007
      %v7179 = vsel %vm2704, %v7147, %v6009
      %v7180 = vsel %vm2704, %v7148, %v6011
      %v7181 = vsel %vm2704, %v7149, %v6013
      %v7182 = vsel %vm2704, %v7150, %v6015
      %v7183 = vsel %vm2704, %v7151, %v6017
      %v7184 = vsel %vm2704, %v7152, %v6019
      %v7185 = vsel %vm2704, %v7153, %v6021
      %v7186 = vsel %vm2704, %v7154, %v6023
      %v7187 = vsel %vm2704, %v7155, %v6025
      %v7188 = vsel %vm2704, %v7156, %v6027
      %v7189 = vsel %vm2704, %v7157, %v6029
      %v7190 = vsel %vm2704, %v7158, %v6031
      %v7191 = vsel %vm2704, %v7159, %v6033
      %v7192 = vsel %vm2704, %v7160, %v6035
      %v7193 = vsel %vm2704, %v7161, %v6037
      %v7194 = vsel %vm2704, %v7162, %v6039
      %v7195 = vsel %vm2704, %v7163, %v6041
      %v7196 = vsel %vm2704, %v7164, %v6043
      %v7197 = vsel %vm2704, %v7165, %v6045
      %v7198 = vsel %vm2737, %v7166, %v6079
      %v7199 = vsel %vm2737, %v7167, %v6081
      %v7200 = vsel %vm2737, %v7168, %v6083
      %v7201 = vsel %vm2737, %v7169, %v6085
      %v7202 = vsel %vm2737, %v7170, %v6087
      %v7203 = vsel %vm2737, %v7171, %v6089
      %v7204 = vsel %vm2737, %v7172, %v6091
      %v7205 = vsel %vm2737, %v7173, %v6093
      %v7206 = vsel %vm2737, %v7174, %v6095
      %v7207 = vsel %vm2737, %v7175, %v6097
      %v7208 = vsel %vm2737, %v7176, %v6099
      %v7209 = vsel %vm2737, %v7177, %v6101
      %v7210 = vsel %vm2737, %v7178, %v6103
      %v7211 = vsel %vm2737, %v7179, %v6105
      %v7212 = vsel %vm2737, %v7180, %v6107
      %v7213 = vsel %vm2737, %v7181, %v6109
      %v7214 = vsel %vm2737, %v7182, %v6111
      %v7215 = vsel %vm2737, %v7183, %v6113
      %v7216 = vsel %vm2737, %v7184, %v6115
      %v7217 = vsel %vm2737, %v7185, %v6117
      %v7218 = vsel %vm2737, %v7186, %v6119
      %v7219 = vsel %vm2737, %v7187, %v6121
      %v7220 = vsel %vm2737, %v7188, %v6123
      %v7221 = vsel %vm2737, %v7189, %v6125
      %v7222 = vsel %vm2737, %v7190, %v6127
      %v7223 = vsel %vm2737, %v7191, %v6129
      %v7224 = vsel %vm2737, %v7192, %v6131
      %v7225 = vsel %vm2737, %v7193, %v6133
      %v7226 = vsel %vm2737, %v7194, %v6135
      %v7227 = vsel %vm2737, %v7195, %v6137
      %v7228 = vsel %vm2737, %v7196, %v6139
      %v7229 = vsel %vm2737, %v7197, %v6141
      %v7230 = vsel %vm2770, %v7198, %v6175
      %v7231 = vsel %vm2770, %v7199, %v6177
      %v7232 = vsel %vm2770, %v7200, %v6179
      %v7233 = vsel %vm2770, %v7201, %v6181
      %v7234 = vsel %vm2770, %v7202, %v6183
      %v7235 = vsel %vm2770, %v7203, %v6185
      %v7236 = vsel %vm2770, %v7204, %v6187
      %v7237 = vsel %vm2770, %v7205, %v6189
      %v7238 = vsel %vm2770, %v7206, %v6191
      %v7239 = vsel %vm2770, %v7207, %v6193
      %v7240 = vsel %vm2770, %v7208, %v6195
      %v7241 = vsel %vm2770, %v7209, %v6197
      %v7242 = vsel %vm2770, %v7210, %v6199
      %v7243 = vsel %vm2770, %v7211, %v6201
      %v7244 = vsel %vm2770, %v7212, %v6203
      %v7245 = vsel %vm2770, %v7213, %v6205
      %v7246 = vsel %vm2770, %v7214, %v6207
      %v7247 = vsel %vm2770, %v7215, %v6209
      %v7248 = vsel %vm2770, %v7216, %v6211
      %v7249 = vsel %vm2770, %v7217, %v6213
      %v7250 = vsel %vm2770, %v7218, %v6215
      %v7251 = vsel %vm2770, %v7219, %v6217
      %v7252 = vsel %vm2770, %v7220, %v6219
      %v7253 = vsel %vm2770, %v7221, %v6221
      %v7254 = vsel %vm2770, %v7222, %v6223
      %v7255 = vsel %vm2770, %v7223, %v6225
      %v7256 = vsel %vm2770, %v7224, %v6227
      %v7257 = vsel %vm2770, %v7225, %v6229
      %v7258 = vsel %vm2770, %v7226, %v6231
      %v7259 = vsel %vm2770, %v7227, %v6233
      %v7260 = vsel %vm2770, %v7228, %v6235
      %v7261 = vsel %vm2770, %v7229, %v6237
      %v7262 = vsel %vm2839, %v7230, %v6271
      %v7263 = vsel %vm2839, %v7231, %v6273
      %v7264 = vsel %vm2839, %v7232, %v6275
      %v7265 = vsel %vm2839, %v7233, %v6277
      %v7266 = vsel %vm2839, %v7234, %v6279
      %v7267 = vsel %vm2839, %v7235, %v6281
      %v7268 = vsel %vm2839, %v7236, %v6283
      %v7269 = vsel %vm2839, %v7237, %v6285
      %v7270 = vsel %vm2839, %v7238, %v6287
      %v7271 = vsel %vm2839, %v7239, %v6289
      %v7272 = vsel %vm2839, %v7240, %v6291
      %v7273 = vsel %vm2839, %v7241, %v6293
      %v7274 = vsel %vm2839, %v7242, %v6295
      %v7275 = vsel %vm2839, %v7243, %v6297
      %v7276 = vsel %vm2839, %v7244, %v6299
      %v7277 = vsel %vm2839, %v7245, %v6301
      %v7278 = vsel %vm2839, %v7246, %v6303
      %v7279 = vsel %vm2839, %v7247, %v6305
      %v7280 = vsel %vm2839, %v7248, %v6307
      %v7281 = vsel %vm2839, %v7249, %v6309
      %v7282 = vsel %vm2839, %v7250, %v6311
      %v7283 = vsel %vm2839, %v7251, %v6313
      %v7284 = vsel %vm2839, %v7252, %v6315
      %v7285 = vsel %vm2839, %v7253, %v6317
      %v7286 = vsel %vm2839, %v7254, %v6319
      %v7287 = vsel %vm2839, %v7255, %v6321
      %v7288 = vsel %vm2839, %v7256, %v6323
      %v7289 = vsel %vm2839, %v7257, %v6325
      %v7290 = vsel %vm2839, %v7258, %v6327
      %v7291 = vsel %vm2839, %v7259, %v6329
      %v7292 = vsel %vm2839, %v7260, %v6331
      %v7293 = vsel %vm2839, %v7261, %v6333
      %vm7294 = vcmask 326656
      %v7295 = vsel %vm7294, %v7262, %v6399
      %v7296 = vsel %vm7294, %v7263, %v6401
      %v7297 = vsel %vm7294, %v7264, %v6403
      %v7298 = vsel %vm7294, %v7265, %v6405
      %v7299 = vsel %vm7294, %v7266, %v6407
      %v7300 = vsel %vm7294, %v7267, %v6409
      %v7301 = vsel %vm7294, %v7268, %v6411
      %v7302 = vsel %vm7294, %v7269, %v6413
      %v7303 = vsel %vm7294, %v7270, %v6415
      %v7304 = vsel %vm7294, %v7271, %v6417
      %v7305 = vsel %vm7294, %v7272, %v6419
      %v7306 = vsel %vm7294, %v7273, %v6421
      %v7307 = vsel %vm7294, %v7274, %v6423
      %v7308 = vsel %vm7294, %v7275, %v6425
      %v7309 = vsel %vm7294, %v7276, %v6427
      %v7310 = vsel %vm7294, %v7277, %v6429
      %v7311 = vsel %vm7294, %v7278, %v6431
      %v7312 = vsel %vm7294, %v7279, %v6433
      %v7313 = vsel %vm7294, %v7280, %v6435
      %v7314 = vsel %vm7294, %v7281, %v6437
      %v7315 = vsel %vm7294, %v7282, %v6439
      %v7316 = vsel %vm7294, %v7283, %v6441
      %v7317 = vsel %vm7294, %v7284, %v6443
      %v7318 = vsel %vm7294, %v7285, %v6445
      %v7319 = vsel %vm7294, %v7286, %v6447
      %v7320 = vsel %vm7294, %v7287, %v6449
      %v7321 = vsel %vm7294, %v7288, %v6451
      %v7322 = vsel %vm7294, %v7289, %v6453
      %v7323 = vsel %vm7294, %v7290, %v6455
      %v7324 = vsel %vm7294, %v7291, %v6457
      %v7325 = vsel %vm7294, %v7292, %v6459
      %v7326 = vsel %vm7294, %v7293, %v6461
      %vm7327 = vcmask 359424
      %v7328 = vsel %vm7327, %v7295, %v6495
      %v7329 = vsel %vm7327, %v7296, %v6497
      %v7330 = vsel %vm7327, %v7297, %v6499
      %v7331 = vsel %vm7327, %v7298, %v6501
      %v7332 = vsel %vm7327, %v7299, %v6503
      %v7333 = vsel %vm7327, %v7300, %v6505
      %v7334 = vsel %vm7327, %v7301, %v6507
      %v7335 = vsel %vm7327, %v7302, %v6509
      %v7336 = vsel %vm7327, %v7303, %v6511
      %v7337 = vsel %vm7327, %v7304, %v6513
      %v7338 = vsel %vm7327, %v7305, %v6515
      %v7339 = vsel %vm7327, %v7306, %v6517
      %v7340 = vsel %vm7327, %v7307, %v6519
      %v7341 = vsel %vm7327, %v7308, %v6521
      %v7342 = vsel %vm7327, %v7309, %v6523
      %v7343 = vsel %vm7327, %v7310, %v6525
      %v7344 = vsel %vm7327, %v7311, %v6527
      %v7345 = vsel %vm7327, %v7312, %v6529
      %v7346 = vsel %vm7327, %v7313, %v6531
      %v7347 = vsel %vm7327, %v7314, %v6533
      %v7348 = vsel %vm7327, %v7315, %v6535
      %v7349 = vsel %vm7327, %v7316, %v6537
      %v7350 = vsel %vm7327, %v7317, %v6539
      %v7351 = vsel %vm7327, %v7318, %v6541
      %v7352 = vsel %vm7327, %v7319, %v6543
      %v7353 = vsel %vm7327, %v7320, %v6545
      %v7354 = vsel %vm7327, %v7321, %v6547
      %v7355 = vsel %vm7327, %v7322, %v6549
      %v7356 = vsel %vm7327, %v7323, %v6551
      %v7357 = vsel %vm7327, %v7324, %v6553
      %v7358 = vsel %vm7327, %v7325, %v6555
      %v7359 = vsel %vm7327, %v7326, %v6557
      %vm7360 = vcmask 392192
      %v7361 = vsel %vm7360, %v7328, %v6591
      %v7362 = vsel %vm7360, %v7329, %v6593
      %v7363 = vsel %vm7360, %v7330, %v6595
      %v7364 = vsel %vm7360, %v7331, %v6597
      %v7365 = vsel %vm7360, %v7332, %v6599
      %v7366 = vsel %vm7360, %v7333, %v6601
      %v7367 = vsel %vm7360, %v7334, %v6603
      %v7368 = vsel %vm7360, %v7335, %v6605
      %v7369 = vsel %vm7360, %v7336, %v6607
      %v7370 = vsel %vm7360, %v7337, %v6609
      %v7371 = vsel %vm7360, %v7338, %v6611
      %v7372 = vsel %vm7360, %v7339, %v6613
      %v7373 = vsel %vm7360, %v7340, %v6615
      %v7374 = vsel %vm7360, %v7341, %v6617
      %v7375 = vsel %vm7360, %v7342, %v6619
      %v7376 = vsel %vm7360, %v7343, %v6621
      %v7377 = vsel %vm7360, %v7344, %v6623
      %v7378 = vsel %vm7360, %v7345, %v6625
      %v7379 = vsel %vm7360, %v7346, %v6627
      %v7380 = vsel %vm7360, %v7347, %v6629
      %v7381 = vsel %vm7360, %v7348, %v6631
      %v7382 = vsel %vm7360, %v7349, %v6633
      %v7383 = vsel %vm7360, %v7350, %v6635
      %v7384 = vsel %vm7360, %v7351, %v6637
      %v7385 = vsel %vm7360, %v7352, %v6639
      %v7386 = vsel %vm7360, %v7353, %v6641
      %v7387 = vsel %vm7360, %v7354, %v6643
      %v7388 = vsel %vm7360, %v7355, %v6645
      %v7389 = vsel %vm7360, %v7356, %v6647
      %v7390 = vsel %vm7360, %v7357, %v6649
      %v7391 = vsel %vm7360, %v7358, %v6651
      %v7392 = vsel %vm7360, %v7359, %v6653
      %vm7393 = vcmask 424960
      %v7394 = vsel %vm7393, %v7361, %v6687
      %v7395 = vsel %vm7393, %v7362, %v6689
      %v7396 = vsel %vm7393, %v7363, %v6691
      %v7397 = vsel %vm7393, %v7364, %v6693
      %v7398 = vsel %vm7393, %v7365, %v6695
      %v7399 = vsel %vm7393, %v7366, %v6697
      %v7400 = vsel %vm7393, %v7367, %v6699
      %v7401 = vsel %vm7393, %v7368, %v6701
      %v7402 = vsel %vm7393, %v7369, %v6703
      %v7403 = vsel %vm7393, %v7370, %v6705
      %v7404 = vsel %vm7393, %v7371, %v6707
      %v7405 = vsel %vm7393, %v7372, %v6709
      %v7406 = vsel %vm7393, %v7373, %v6711
      %v7407 = vsel %vm7393, %v7374, %v6713
      %v7408 = vsel %vm7393, %v7375, %v6715
      %v7409 = vsel %vm7393, %v7376, %v6717
      %v7410 = vsel %vm7393, %v7377, %v6719
      %v7411 = vsel %vm7393, %v7378, %v6721
      %v7412 = vsel %vm7393, %v7379, %v6723
      %v7413 = vsel %vm7393, %v7380, %v6725
      %v7414 = vsel %vm7393, %v7381, %v6727
      %v7415 = vsel %vm7393, %v7382, %v6729
      %v7416 = vsel %vm7393, %v7383, %v6731
      %v7417 = vsel %vm7393, %v7384, %v6733
      %v7418 = vsel %vm7393, %v7385, %v6735
      %v7419 = vsel %vm7393, %v7386, %v6737
      %v7420 = vsel %vm7393, %v7387, %v6739
      %v7421 = vsel %vm7393, %v7388, %v6741
      %v7422 = vsel %vm7393, %v7389, %v6743
      %v7423 = vsel %vm7393, %v7390, %v6745
      %v7424 = vsel %vm7393, %v7391, %v6747
      %v7425 = vsel %vm7393, %v7392, %v6749
      %vm7426 = vcmask 457728
      %v7427 = vsel %vm7426, %v7394, %v6783
      %v7428 = vsel %vm7426, %v7395, %v6785
      %v7429 = vsel %vm7426, %v7396, %v6787
      %v7430 = vsel %vm7426, %v7397, %v6789
      %v7431 = vsel %vm7426, %v7398, %v6791
      %v7432 = vsel %vm7426, %v7399, %v6793
      %v7433 = vsel %vm7426, %v7400, %v6795
      %v7434 = vsel %vm7426, %v7401, %v6797
      %v7435 = vsel %vm7426, %v7402, %v6799
      %v7436 = vsel %vm7426, %v7403, %v6801
      %v7437 = vsel %vm7426, %v7404, %v6803
      %v7438 = vsel %vm7426, %v7405, %v6805
      %v7439 = vsel %vm7426, %v7406, %v6807
      %v7440 = vsel %vm7426, %v7407, %v6809
      %v7441 = vsel %vm7426, %v7408, %v6811
      %v7442 = vsel %vm7426, %v7409, %v6813
      %v7443 = vsel %vm7426, %v7410, %v6815
      %v7444 = vsel %vm7426, %v7411, %v6817
      %v7445 = vsel %vm7426, %v7412, %v6819
      %v7446 = vsel %vm7426, %v7413, %v6821
      %v7447 = vsel %vm7426, %v7414, %v6823
      %v7448 = vsel %vm7426, %v7415, %v6825
      %v7449 = vsel %vm7426, %v7416, %v6827
      %v7450 = vsel %vm7426, %v7417, %v6829
      %v7451 = vsel %vm7426, %v7418, %v6831
      %v7452 = vsel %vm7426, %v7419, %v6833
      %v7453 = vsel %vm7426, %v7420, %v6835
      %v7454 = vsel %vm7426, %v7421, %v6837
      %v7455 = vsel %vm7426, %v7422, %v6839
      %v7456 = vsel %vm7426, %v7423, %v6841
      %v7457 = vsel %vm7426, %v7424, %v6843
      %v7458 = vsel %vm7426, %v7425, %v6845
      %vm7459 = vcmask 490496
      %v7460 = vsel %vm7459, %v7427, %v6911
      %v7461 = vsel %vm7459, %v7428, %v6913
      %v7462 = vsel %vm7459, %v7429, %v6915
      %v7463 = vsel %vm7459, %v7430, %v6917
      %v7464 = vsel %vm7459, %v7431, %v6919
      %v7465 = vsel %vm7459, %v7432, %v6921
      %v7466 = vsel %vm7459, %v7433, %v6923
      %v7467 = vsel %vm7459, %v7434, %v6925
      %v7468 = vsel %vm7459, %v7435, %v6927
      %v7469 = vsel %vm7459, %v7436, %v6929
      %v7470 = vsel %vm7459, %v7437, %v6931
      %v7471 = vsel %vm7459, %v7438, %v6933
      %v7472 = vsel %vm7459, %v7439, %v6935
      %v7473 = vsel %vm7459, %v7440, %v6937
      %v7474 = vsel %vm7459, %v7441, %v6939
      %v7475 = vsel %vm7459, %v7442, %v6941
      %v7476 = vsel %vm7459, %v7443, %v6943
      %v7477 = vsel %vm7459, %v7444, %v6945
      %v7478 = vsel %vm7459, %v7445, %v6947
      %v7479 = vsel %vm7459, %v7446, %v6949
      %v7480 = vsel %vm7459, %v7447, %v6951
      %v7481 = vsel %vm7459, %v7448, %v6953
      %v7482 = vsel %vm7459, %v7449, %v6955
      %v7483 = vsel %vm7459, %v7450, %v6957
      %v7484 = vsel %vm7459, %v7451, %v6959
      %v7485 = vsel %vm7459, %v7452, %v6961
      %v7486 = vsel %vm7459, %v7453, %v6963
      %v7487 = vsel %vm7459, %v7454, %v6965
      %v7488 = vsel %vm7459, %v7455, %v6967
      %v7489 = vsel %vm7459, %v7456, %v6969
      %v7490 = vsel %vm7459, %v7457, %v6971
      %v7491 = vsel %vm7459, %v7458, %v6973
      %7492 = vrot.lane.b32.xlu0 %v1565, 4
      %v7493 = vpop.permute.xlu0 %7492
      %7494 = vrot.lane.b32.xlu0 %v1567, 4
      %v7495 = vpop.permute.xlu0 %7494
      %7496 = vrot.lane.b32.xlu0 %v1570, 4
      %v7497 = vpop.permute.xlu0 %7496
      %7498 = vrot.lane.b32.xlu0 %v1572, 4
      %v7499 = vpop.permute.xlu0 %7498
      %7500 = vrot.lane.b32.xlu0 %v1575, 4
      %v7501 = vpop.permute.xlu0 %7500
      %7502 = vrot.lane.b32.xlu0 %v1577, 4
      %v7503 = vpop.permute.xlu0 %7502
      %7504 = vrot.lane.b32.xlu0 %v1580, 4
      %v7505 = vpop.permute.xlu0 %7504
      %7506 = vrot.lane.b32.xlu0 %v1582, 4
      %v7507 = vpop.permute.xlu0 %7506
      %7508 = vrot.lane.b32.xlu0 %v1585, 4
      %v7509 = vpop.permute.xlu0 %7508
      %7510 = vrot.lane.b32.xlu0 %v1587, 4
      %v7511 = vpop.permute.xlu0 %7510
      %7512 = vrot.lane.b32.xlu0 %v1590, 4
      %v7513 = vpop.permute.xlu0 %7512
      %7514 = vrot.lane.b32.xlu0 %v1592, 4
      %v7515 = vpop.permute.xlu0 %7514
      %7516 = vrot.lane.b32.xlu0 %v1595, 4
      %v7517 = vpop.permute.xlu0 %7516
      %7518 = vrot.lane.b32.xlu0 %v1597, 4
      %v7519 = vpop.permute.xlu0 %7518
      %7520 = vrot.lane.b32.xlu0 %v1600, 4
      %v7521 = vpop.permute.xlu0 %7520
      %7522 = vrot.lane.b32.xlu0 %v1602, 4
      %v7523 = vpop.permute.xlu0 %7522
      %7524 = vrot.lane.b32.xlu0 %v1605, 4
      %v7525 = vpop.permute.xlu0 %7524
      %7526 = vrot.lane.b32.xlu0 %v1607, 4
      %v7527 = vpop.permute.xlu0 %7526
      %7528 = vrot.lane.b32.xlu0 %v1610, 4
      %v7529 = vpop.permute.xlu0 %7528
      %7530 = vrot.lane.b32.xlu0 %v1612, 4
      %v7531 = vpop.permute.xlu0 %7530
      %7532 = vrot.lane.b32.xlu0 %v1615, 4
      %v7533 = vpop.permute.xlu0 %7532
      %7534 = vrot.lane.b32.xlu0 %v1617, 4
      %v7535 = vpop.permute.xlu0 %7534
      %7536 = vrot.lane.b32.xlu0 %v1620, 4
      %v7537 = vpop.permute.xlu0 %7536
      %7538 = vrot.lane.b32.xlu0 %v1622, 4
      %v7539 = vpop.permute.xlu0 %7538
      %7540 = vrot.lane.b32.xlu0 %v1625, 4
      %v7541 = vpop.permute.xlu0 %7540
      %7542 = vrot.lane.b32.xlu0 %v1627, 4
      %v7543 = vpop.permute.xlu0 %7542
      %7544 = vrot.lane.b32.xlu0 %v1630, 4
      %v7545 = vpop.permute.xlu0 %7544
      %7546 = vrot.lane.b32.xlu0 %v1632, 4
      %v7547 = vpop.permute.xlu0 %7546
      %7548 = vrot.lane.b32.xlu0 %v1635, 4
      %v7549 = vpop.permute.xlu0 %7548
      %7550 = vrot.lane.b32.xlu0 %v1637, 4
      %v7551 = vpop.permute.xlu0 %7550
      %7552 = vrot.lane.b32.xlu0 %v1640, 4
      %v7553 = vpop.permute.xlu0 %7552
      %7554 = vrot.lane.b32.xlu0 %v1642, 4
      %v7555 = vpop.permute.xlu0 %7554
      %7588 = vrot.lane.b32.xlu0 %v1693, 8
      %v7589 = vpop.permute.xlu0 %7588
      %7590 = vrot.lane.b32.xlu0 %v1695, 8
      %v7591 = vpop.permute.xlu0 %7590
      %7592 = vrot.lane.b32.xlu0 %v1698, 8
      %v7593 = vpop.permute.xlu0 %7592
      %7594 = vrot.lane.b32.xlu0 %v1700, 8
      %v7595 = vpop.permute.xlu0 %7594
      %7596 = vrot.lane.b32.xlu0 %v1703, 8
      %v7597 = vpop.permute.xlu0 %7596
      %7598 = vrot.lane.b32.xlu0 %v1705, 8
      %v7599 = vpop.permute.xlu0 %7598
      %7600 = vrot.lane.b32.xlu0 %v1708, 8
      %v7601 = vpop.permute.xlu0 %7600
      %7602 = vrot.lane.b32.xlu0 %v1710, 8
      %v7603 = vpop.permute.xlu0 %7602
      %7604 = vrot.lane.b32.xlu0 %v1713, 8
      %v7605 = vpop.permute.xlu0 %7604
      %7606 = vrot.lane.b32.xlu0 %v1715, 8
      %v7607 = vpop.permute.xlu0 %7606
      %7608 = vrot.lane.b32.xlu0 %v1718, 8
      %v7609 = vpop.permute.xlu0 %7608
      %7610 = vrot.lane.b32.xlu0 %v1720, 8
      %v7611 = vpop.permute.xlu0 %7610
      %7612 = vrot.lane.b32.xlu0 %v1723, 8
      %v7613 = vpop.permute.xlu0 %7612
      %7614 = vrot.lane.b32.xlu0 %v1725, 8
      %v7615 = vpop.permute.xlu0 %7614
      %7616 = vrot.lane.b32.xlu0 %v1728, 8
      %v7617 = vpop.permute.xlu0 %7616
      %7618 = vrot.lane.b32.xlu0 %v1730, 8
      %v7619 = vpop.permute.xlu0 %7618
      %7620 = vrot.lane.b32.xlu0 %v1733, 8
      %v7621 = vpop.permute.xlu0 %7620
      %7622 = vrot.lane.b32.xlu0 %v1735, 8
      %v7623 = vpop.permute.xlu0 %7622
      %7624 = vrot.lane.b32.xlu0 %v1738, 8
      %v7625 = vpop.permute.xlu0 %7624
      %7626 = vrot.lane.b32.xlu0 %v1740, 8
      %v7627 = vpop.permute.xlu0 %7626
      %7628 = vrot.lane.b32.xlu0 %v1743, 8
      %v7629 = vpop.permute.xlu0 %7628
      %7630 = vrot.lane.b32.xlu0 %v1745, 8
      %v7631 = vpop.permute.xlu0 %7630
      %7632 = vrot.lane.b32.xlu0 %v1748, 8
      %v7633 = vpop.permute.xlu0 %7632
      %7634 = vrot.lane.b32.xlu0 %v1750, 8
      %v7635 = vpop.permute.xlu0 %7634
      %7636 = vrot.lane.b32.xlu0 %v1753, 8
      %v7637 = vpop.permute.xlu0 %7636
      %7638 = vrot.lane.b32.xlu0 %v1755, 8
      %v7639 = vpop.permute.xlu0 %7638
      %7640 = vrot.lane.b32.xlu0 %v1758, 8
      %v7641 = vpop.permute.xlu0 %7640
      %7642 = vrot.lane.b32.xlu0 %v1760, 8
      %v7643 = vpop.permute.xlu0 %7642
      %7644 = vrot.lane.b32.xlu0 %v1763, 8
      %v7645 = vpop.permute.xlu0 %7644
      %7646 = vrot.lane.b32.xlu0 %v1765, 8
      %v7647 = vpop.permute.xlu0 %7646
      %7648 = vrot.lane.b32.xlu0 %v1768, 8
      %v7649 = vpop.permute.xlu0 %7648
      %7650 = vrot.lane.b32.xlu0 %v1770, 8
      %v7651 = vpop.permute.xlu0 %7650
      %7684 = vrot.lane.b32.xlu0 %v4780, 12
      %v7685 = vpop.permute.xlu0 %7684
      %7686 = vrot.lane.b32.xlu0 %v4782, 12
      %v7687 = vpop.permute.xlu0 %7686
      %7688 = vrot.lane.b32.xlu0 %v4785, 12
      %v7689 = vpop.permute.xlu0 %7688
      %7690 = vrot.lane.b32.xlu0 %v4787, 12
      %v7691 = vpop.permute.xlu0 %7690
      %7692 = vrot.lane.b32.xlu0 %v4790, 12
      %v7693 = vpop.permute.xlu0 %7692
      %7694 = vrot.lane.b32.xlu0 %v4792, 12
      %v7695 = vpop.permute.xlu0 %7694
      %7696 = vrot.lane.b32.xlu0 %v4795, 12
      %v7697 = vpop.permute.xlu0 %7696
      %7698 = vrot.lane.b32.xlu0 %v4797, 12
      %v7699 = vpop.permute.xlu0 %7698
      %7700 = vrot.lane.b32.xlu0 %v4800, 12
      %v7701 = vpop.permute.xlu0 %7700
      %7702 = vrot.lane.b32.xlu0 %v4802, 12
      %v7703 = vpop.permute.xlu0 %7702
      %7704 = vrot.lane.b32.xlu0 %v4805, 12
      %v7705 = vpop.permute.xlu0 %7704
      %7706 = vrot.lane.b32.xlu0 %v4807, 12
      %v7707 = vpop.permute.xlu0 %7706
      %7708 = vrot.lane.b32.xlu0 %v4810, 12
      %v7709 = vpop.permute.xlu0 %7708
      %7710 = vrot.lane.b32.xlu0 %v4812, 12
      %v7711 = vpop.permute.xlu0 %7710
      %7712 = vrot.lane.b32.xlu0 %v4815, 12
      %v7713 = vpop.permute.xlu0 %7712
      %7714 = vrot.lane.b32.xlu0 %v4817, 12
      %v7715 = vpop.permute.xlu0 %7714
      %7716 = vrot.lane.b32.xlu0 %v4820, 12
      %v7717 = vpop.permute.xlu0 %7716
      %7718 = vrot.lane.b32.xlu0 %v4822, 12
      %v7719 = vpop.permute.xlu0 %7718
      %7720 = vrot.lane.b32.xlu0 %v4825, 12
      %v7721 = vpop.permute.xlu0 %7720
      %7722 = vrot.lane.b32.xlu0 %v4827, 12
      %v7723 = vpop.permute.xlu0 %7722
      %7724 = vrot.lane.b32.xlu0 %v4830, 12
      %v7725 = vpop.permute.xlu0 %7724
      %7726 = vrot.lane.b32.xlu0 %v4832, 12
      %v7727 = vpop.permute.xlu0 %7726
      %7728 = vrot.lane.b32.xlu0 %v4835, 12
      %v7729 = vpop.permute.xlu0 %7728
      %7730 = vrot.lane.b32.xlu0 %v4837, 12
      %v7731 = vpop.permute.xlu0 %7730
      %7732 = vrot.lane.b32.xlu0 %v4840, 12
      %v7733 = vpop.permute.xlu0 %7732
      %7734 = vrot.lane.b32.xlu0 %v4842, 12
      %v7735 = vpop.permute.xlu0 %7734
      %7736 = vrot.lane.b32.xlu0 %v4845, 12
      %v7737 = vpop.permute.xlu0 %7736
      %7738 = vrot.lane.b32.xlu0 %v4847, 12
      %v7739 = vpop.permute.xlu0 %7738
      %7740 = vrot.lane.b32.xlu0 %v4850, 12
      %v7741 = vpop.permute.xlu0 %7740
      %7742 = vrot.lane.b32.xlu0 %v4852, 12
      %v7743 = vpop.permute.xlu0 %7742
      %7744 = vrot.lane.b32.xlu0 %v4855, 12
      %v7745 = vpop.permute.xlu0 %7744
      %7746 = vrot.lane.b32.xlu0 %v4857, 12
      %v7747 = vpop.permute.xlu0 %7746
      %7780 = vrot.lane.b32.xlu0 %v4894, 16
      %v7781 = vpop.permute.xlu0 %7780
      %7782 = vrot.lane.b32.xlu0 %v4895, 16
      %v7783 = vpop.permute.xlu0 %7782
      %7784 = vrot.lane.b32.xlu0 %v4896, 16
      %v7785 = vpop.permute.xlu0 %7784
      %7786 = vrot.lane.b32.xlu0 %v4897, 16
      %v7787 = vpop.permute.xlu0 %7786
      %7788 = vrot.lane.b32.xlu0 %v4898, 16
      %v7789 = vpop.permute.xlu0 %7788
      %7790 = vrot.lane.b32.xlu0 %v4899, 16
      %v7791 = vpop.permute.xlu0 %7790
      %7792 = vrot.lane.b32.xlu0 %v4900, 16
      %v7793 = vpop.permute.xlu0 %7792
      %7794 = vrot.lane.b32.xlu0 %v4901, 16
      %v7795 = vpop.permute.xlu0 %7794
      %7796 = vrot.lane.b32.xlu0 %v4902, 16
      %v7797 = vpop.permute.xlu0 %7796
      %7798 = vrot.lane.b32.xlu0 %v4903, 16
      %v7799 = vpop.permute.xlu0 %7798
      %7800 = vrot.lane.b32.xlu0 %v4904, 16
      %v7801 = vpop.permute.xlu0 %7800
      %7802 = vrot.lane.b32.xlu0 %v4905, 16
      %v7803 = vpop.permute.xlu0 %7802
      %7804 = vrot.lane.b32.xlu0 %v4906, 16
      %v7805 = vpop.permute.xlu0 %7804
      %7806 = vrot.lane.b32.xlu0 %v4907, 16
      %v7807 = vpop.permute.xlu0 %7806
      %7808 = vrot.lane.b32.xlu0 %v4908, 16
      %v7809 = vpop.permute.xlu0 %7808
      %7810 = vrot.lane.b32.xlu0 %v4909, 16
      %v7811 = vpop.permute.xlu0 %7810
      %7812 = vrot.lane.b32.xlu0 %v4910, 16
      %v7813 = vpop.permute.xlu0 %7812
      %7814 = vrot.lane.b32.xlu0 %v4911, 16
      %v7815 = vpop.permute.xlu0 %7814
      %7816 = vrot.lane.b32.xlu0 %v4912, 16
      %v7817 = vpop.permute.xlu0 %7816
      %7818 = vrot.lane.b32.xlu0 %v4913, 16
      %v7819 = vpop.permute.xlu0 %7818
      %7820 = vrot.lane.b32.xlu0 %v4914, 16
      %v7821 = vpop.permute.xlu0 %7820
      %7822 = vrot.lane.b32.xlu0 %v4915, 16
      %v7823 = vpop.permute.xlu0 %7822
      %7824 = vrot.lane.b32.xlu0 %v4916, 16
      %v7825 = vpop.permute.xlu0 %7824
      %7826 = vrot.lane.b32.xlu0 %v4917, 16
      %v7827 = vpop.permute.xlu0 %7826
      %7828 = vrot.lane.b32.xlu0 %v4918, 16
      %v7829 = vpop.permute.xlu0 %7828
      %7830 = vrot.lane.b32.xlu0 %v4919, 16
      %v7831 = vpop.permute.xlu0 %7830
      %7832 = vrot.lane.b32.xlu0 %v4920, 16
      %v7833 = vpop.permute.xlu0 %7832
      %7834 = vrot.lane.b32.xlu0 %v4921, 16
      %v7835 = vpop.permute.xlu0 %7834
      %7836 = vrot.lane.b32.xlu0 %v4922, 16
      %v7837 = vpop.permute.xlu0 %7836
      %7838 = vrot.lane.b32.xlu0 %v4923, 16
      %v7839 = vpop.permute.xlu0 %7838
      %7840 = vrot.lane.b32.xlu0 %v4924, 16
      %v7841 = vpop.permute.xlu0 %7840
      %7842 = vrot.lane.b32.xlu0 %v4925, 16
      %v7843 = vpop.permute.xlu0 %7842
      %7876 = vrot.lane.b32.xlu0 %v5008, 20
      %v7877 = vpop.permute.xlu0 %7876
      %7878 = vrot.lane.b32.xlu0 %v5010, 20
      %v7879 = vpop.permute.xlu0 %7878
      %7880 = vrot.lane.b32.xlu0 %v5013, 20
      %v7881 = vpop.permute.xlu0 %7880
      %7882 = vrot.lane.b32.xlu0 %v5015, 20
      %v7883 = vpop.permute.xlu0 %7882
      %7884 = vrot.lane.b32.xlu0 %v5018, 20
      %v7885 = vpop.permute.xlu0 %7884
      %7886 = vrot.lane.b32.xlu0 %v5020, 20
      %v7887 = vpop.permute.xlu0 %7886
      %7888 = vrot.lane.b32.xlu0 %v5023, 20
      %v7889 = vpop.permute.xlu0 %7888
      %7890 = vrot.lane.b32.xlu0 %v5025, 20
      %v7891 = vpop.permute.xlu0 %7890
      %7892 = vrot.lane.b32.xlu0 %v5028, 20
      %v7893 = vpop.permute.xlu0 %7892
      %7894 = vrot.lane.b32.xlu0 %v5030, 20
      %v7895 = vpop.permute.xlu0 %7894
      %7896 = vrot.lane.b32.xlu0 %v5033, 20
      %v7897 = vpop.permute.xlu0 %7896
      %7898 = vrot.lane.b32.xlu0 %v5035, 20
      %v7899 = vpop.permute.xlu0 %7898
      %7900 = vrot.lane.b32.xlu0 %v5038, 20
      %v7901 = vpop.permute.xlu0 %7900
      %7902 = vrot.lane.b32.xlu0 %v5040, 20
      %v7903 = vpop.permute.xlu0 %7902
      %7904 = vrot.lane.b32.xlu0 %v5043, 20
      %v7905 = vpop.permute.xlu0 %7904
      %7906 = vrot.lane.b32.xlu0 %v5045, 20
      %v7907 = vpop.permute.xlu0 %7906
      %7908 = vrot.lane.b32.xlu0 %v5048, 20
      %v7909 = vpop.permute.xlu0 %7908
      %7910 = vrot.lane.b32.xlu0 %v5050, 20
      %v7911 = vpop.permute.xlu0 %7910
      %7912 = vrot.lane.b32.xlu0 %v5053, 20
      %v7913 = vpop.permute.xlu0 %7912
      %7914 = vrot.lane.b32.xlu0 %v5055, 20
      %v7915 = vpop.permute.xlu0 %7914
      %7916 = vrot.lane.b32.xlu0 %v5058, 20
      %v7917 = vpop.permute.xlu0 %7916
      %7918 = vrot.lane.b32.xlu0 %v5060, 20
      %v7919 = vpop.permute.xlu0 %7918
      %7920 = vrot.lane.b32.xlu0 %v5063, 20
      %v7921 = vpop.permute.xlu0 %7920
      %7922 = vrot.lane.b32.xlu0 %v5065, 20
      %v7923 = vpop.permute.xlu0 %7922
      %7924 = vrot.lane.b32.xlu0 %v5068, 20
      %v7925 = vpop.permute.xlu0 %7924
      %7926 = vrot.lane.b32.xlu0 %v5070, 20
      %v7927 = vpop.permute.xlu0 %7926
      %7928 = vrot.lane.b32.xlu0 %v5073, 20
      %v7929 = vpop.permute.xlu0 %7928
      %7930 = vrot.lane.b32.xlu0 %v5075, 20
      %v7931 = vpop.permute.xlu0 %7930
      %7932 = vrot.lane.b32.xlu0 %v5078, 20
      %v7933 = vpop.permute.xlu0 %7932
      %7934 = vrot.lane.b32.xlu0 %v5080, 20
      %v7935 = vpop.permute.xlu0 %7934
      %7936 = vrot.lane.b32.xlu0 %v5083, 20
      %v7937 = vpop.permute.xlu0 %7936
      %7938 = vrot.lane.b32.xlu0 %v5085, 20
      %v7939 = vpop.permute.xlu0 %7938
      %7972 = vrot.lane.b32.xlu0 %v5136, 24
      %v7973 = vpop.permute.xlu0 %7972
      %7974 = vrot.lane.b32.xlu0 %v5138, 24
      %v7975 = vpop.permute.xlu0 %7974
      %7976 = vrot.lane.b32.xlu0 %v5141, 24
      %v7977 = vpop.permute.xlu0 %7976
      %7978 = vrot.lane.b32.xlu0 %v5143, 24
      %v7979 = vpop.permute.xlu0 %7978
      %7980 = vrot.lane.b32.xlu0 %v5146, 24
      %v7981 = vpop.permute.xlu0 %7980
      %7982 = vrot.lane.b32.xlu0 %v5148, 24
      %v7983 = vpop.permute.xlu0 %7982
      %7984 = vrot.lane.b32.xlu0 %v5151, 24
      %v7985 = vpop.permute.xlu0 %7984
      %7986 = vrot.lane.b32.xlu0 %v5153, 24
      %v7987 = vpop.permute.xlu0 %7986
      %7988 = vrot.lane.b32.xlu0 %v5156, 24
      %v7989 = vpop.permute.xlu0 %7988
      %7990 = vrot.lane.b32.xlu0 %v5158, 24
      %v7991 = vpop.permute.xlu0 %7990
      %7992 = vrot.lane.b32.xlu0 %v5161, 24
      %v7993 = vpop.permute.xlu0 %7992
      %7994 = vrot.lane.b32.xlu0 %v5163, 24
      %v7995 = vpop.permute.xlu0 %7994
      %7996 = vrot.lane.b32.xlu0 %v5166, 24
      %v7997 = vpop.permute.xlu0 %7996
      %7998 = vrot.lane.b32.xlu0 %v5168, 24
      %v7999 = vpop.permute.xlu0 %7998
      %8000 = vrot.lane.b32.xlu0 %v5171, 24
      %v8001 = vpop.permute.xlu0 %8000
      %8002 = vrot.lane.b32.xlu0 %v5173, 24
      %v8003 = vpop.permute.xlu0 %8002
      %8004 = vrot.lane.b32.xlu0 %v5176, 24
      %v8005 = vpop.permute.xlu0 %8004
      %8006 = vrot.lane.b32.xlu0 %v5178, 24
      %v8007 = vpop.permute.xlu0 %8006
      %8008 = vrot.lane.b32.xlu0 %v5181, 24
      %v8009 = vpop.permute.xlu0 %8008
      %8010 = vrot.lane.b32.xlu0 %v5183, 24
      %v8011 = vpop.permute.xlu0 %8010
      %8012 = vrot.lane.b32.xlu0 %v5186, 24
      %v8013 = vpop.permute.xlu0 %8012
      %8014 = vrot.lane.b32.xlu0 %v5188, 24
      %v8015 = vpop.permute.xlu0 %8014
      %8016 = vrot.lane.b32.xlu0 %v5191, 24
      %v8017 = vpop.permute.xlu0 %8016
      %8018 = vrot.lane.b32.xlu0 %v5193, 24
      %v8019 = vpop.permute.xlu0 %8018
      %8020 = vrot.lane.b32.xlu0 %v5196, 24
      %v8021 = vpop.permute.xlu0 %8020
      %8022 = vrot.lane.b32.xlu0 %v5198, 24
      %v8023 = vpop.permute.xlu0 %8022
      %8024 = vrot.lane.b32.xlu0 %v5201, 24
      %v8025 = vpop.permute.xlu0 %8024
      %8026 = vrot.lane.b32.xlu0 %v5203, 24
      %v8027 = vpop.permute.xlu0 %8026
      %8028 = vrot.lane.b32.xlu0 %v5206, 24
      %v8029 = vpop.permute.xlu0 %8028
      %8030 = vrot.lane.b32.xlu0 %v5208, 24
      %v8031 = vpop.permute.xlu0 %8030
      %8032 = vrot.lane.b32.xlu0 %v5211, 24
      %v8033 = vpop.permute.xlu0 %8032
      %8034 = vrot.lane.b32.xlu0 %v5213, 24
      %v8035 = vpop.permute.xlu0 %8034
      %8068 = vrot.lane.b32.xlu0 %v5264, 28
      %v8069 = vpop.permute.xlu0 %8068
      %8070 = vrot.lane.b32.xlu0 %v5266, 28
      %v8071 = vpop.permute.xlu0 %8070
      %8072 = vrot.lane.b32.xlu0 %v5269, 28
      %v8073 = vpop.permute.xlu0 %8072
      %8074 = vrot.lane.b32.xlu0 %v5271, 28
      %v8075 = vpop.permute.xlu0 %8074
      %8076 = vrot.lane.b32.xlu0 %v5274, 28
      %v8077 = vpop.permute.xlu0 %8076
      %8078 = vrot.lane.b32.xlu0 %v5276, 28
      %v8079 = vpop.permute.xlu0 %8078
      %8080 = vrot.lane.b32.xlu0 %v5279, 28
      %v8081 = vpop.permute.xlu0 %8080
      %8082 = vrot.lane.b32.xlu0 %v5281, 28
      %v8083 = vpop.permute.xlu0 %8082
      %8084 = vrot.lane.b32.xlu0 %v5284, 28
      %v8085 = vpop.permute.xlu0 %8084
      %8086 = vrot.lane.b32.xlu0 %v5286, 28
      %v8087 = vpop.permute.xlu0 %8086
      %8088 = vrot.lane.b32.xlu0 %v5289, 28
      %v8089 = vpop.permute.xlu0 %8088
      %8090 = vrot.lane.b32.xlu0 %v5291, 28
      %v8091 = vpop.permute.xlu0 %8090
      %8092 = vrot.lane.b32.xlu0 %v5294, 28
      %v8093 = vpop.permute.xlu0 %8092
      %8094 = vrot.lane.b32.xlu0 %v5296, 28
      %v8095 = vpop.permute.xlu0 %8094
      %8096 = vrot.lane.b32.xlu0 %v5299, 28
      %v8097 = vpop.permute.xlu0 %8096
      %8098 = vrot.lane.b32.xlu0 %v5301, 28
      %v8099 = vpop.permute.xlu0 %8098
      %8100 = vrot.lane.b32.xlu0 %v5304, 28
      %v8101 = vpop.permute.xlu0 %8100
      %8102 = vrot.lane.b32.xlu0 %v5306, 28
      %v8103 = vpop.permute.xlu0 %8102
      %8104 = vrot.lane.b32.xlu0 %v5309, 28
      %v8105 = vpop.permute.xlu0 %8104
      %8106 = vrot.lane.b32.xlu0 %v5311, 28
      %v8107 = vpop.permute.xlu0 %8106
      %8108 = vrot.lane.b32.xlu0 %v5314, 28
      %v8109 = vpop.permute.xlu0 %8108
      %8110 = vrot.lane.b32.xlu0 %v5316, 28
      %v8111 = vpop.permute.xlu0 %8110
      %8112 = vrot.lane.b32.xlu0 %v5319, 28
      %v8113 = vpop.permute.xlu0 %8112
      %8114 = vrot.lane.b32.xlu0 %v5321, 28
      %v8115 = vpop.permute.xlu0 %8114
      %8116 = vrot.lane.b32.xlu0 %v5324, 28
      %v8117 = vpop.permute.xlu0 %8116
      %8118 = vrot.lane.b32.xlu0 %v5326, 28
      %v8119 = vpop.permute.xlu0 %8118
      %8120 = vrot.lane.b32.xlu0 %v5329, 28
      %v8121 = vpop.permute.xlu0 %8120
      %8122 = vrot.lane.b32.xlu0 %v5331, 28
      %v8123 = vpop.permute.xlu0 %8122
      %8124 = vrot.lane.b32.xlu0 %v5334, 28
      %v8125 = vpop.permute.xlu0 %8124
      %8126 = vrot.lane.b32.xlu0 %v5336, 28
      %v8127 = vpop.permute.xlu0 %8126
      %8128 = vrot.lane.b32.xlu0 %v5339, 28
      %v8129 = vpop.permute.xlu0 %8128
      %8130 = vrot.lane.b32.xlu0 %v5341, 28
      %v8131 = vpop.permute.xlu0 %8130
      %8164 = vrot.lane.b32.xlu0 %v5392, 32
      %v8165 = vpop.permute.xlu0 %8164
      %8166 = vrot.lane.b32.xlu0 %v5394, 32
      %v8167 = vpop.permute.xlu0 %8166
      %8168 = vrot.lane.b32.xlu0 %v5397, 32
      %v8169 = vpop.permute.xlu0 %8168
      %8170 = vrot.lane.b32.xlu0 %v5399, 32
      %v8171 = vpop.permute.xlu0 %8170
      %8172 = vrot.lane.b32.xlu0 %v5402, 32
      %v8173 = vpop.permute.xlu0 %8172
      %8174 = vrot.lane.b32.xlu0 %v5404, 32
      %v8175 = vpop.permute.xlu0 %8174
      %8176 = vrot.lane.b32.xlu0 %v5407, 32
      %v8177 = vpop.permute.xlu0 %8176
      %8178 = vrot.lane.b32.xlu0 %v5409, 32
      %v8179 = vpop.permute.xlu0 %8178
      %8180 = vrot.lane.b32.xlu0 %v5412, 32
      %v8181 = vpop.permute.xlu0 %8180
      %8182 = vrot.lane.b32.xlu0 %v5414, 32
      %v8183 = vpop.permute.xlu0 %8182
      %8184 = vrot.lane.b32.xlu0 %v5417, 32
      %v8185 = vpop.permute.xlu0 %8184
      %8186 = vrot.lane.b32.xlu0 %v5419, 32
      %v8187 = vpop.permute.xlu0 %8186
      %8188 = vrot.lane.b32.xlu0 %v5422, 32
      %v8189 = vpop.permute.xlu0 %8188
      %8190 = vrot.lane.b32.xlu0 %v5424, 32
      %v8191 = vpop.permute.xlu0 %8190
      %8192 = vrot.lane.b32.xlu0 %v5427, 32
      %v8193 = vpop.permute.xlu0 %8192
      %8194 = vrot.lane.b32.xlu0 %v5429, 32
      %v8195 = vpop.permute.xlu0 %8194
      %8196 = vrot.lane.b32.xlu0 %v5432, 32
      %v8197 = vpop.permute.xlu0 %8196
      %8198 = vrot.lane.b32.xlu0 %v5434, 32
      %v8199 = vpop.permute.xlu0 %8198
      %8200 = vrot.lane.b32.xlu0 %v5437, 32
      %v8201 = vpop.permute.xlu0 %8200
      %8202 = vrot.lane.b32.xlu0 %v5439, 32
      %v8203 = vpop.permute.xlu0 %8202
      %8204 = vrot.lane.b32.xlu0 %v5442, 32
      %v8205 = vpop.permute.xlu0 %8204
      %8206 = vrot.lane.b32.xlu0 %v5444, 32
      %v8207 = vpop.permute.xlu0 %8206
      %8208 = vrot.lane.b32.xlu0 %v5447, 32
      %v8209 = vpop.permute.xlu0 %8208
      %8210 = vrot.lane.b32.xlu0 %v5449, 32
      %v8211 = vpop.permute.xlu0 %8210
      %8212 = vrot.lane.b32.xlu0 %v5452, 32
      %v8213 = vpop.permute.xlu0 %8212
      %8214 = vrot.lane.b32.xlu0 %v5454, 32
      %v8215 = vpop.permute.xlu0 %8214
      %8216 = vrot.lane.b32.xlu0 %v5457, 32
      %v8217 = vpop.permute.xlu0 %8216
      %8218 = vrot.lane.b32.xlu0 %v5459, 32
      %v8219 = vpop.permute.xlu0 %8218
      %8220 = vrot.lane.b32.xlu0 %v5462, 32
      %v8221 = vpop.permute.xlu0 %8220
      %8222 = vrot.lane.b32.xlu0 %v5464, 32
      %v8223 = vpop.permute.xlu0 %8222
      %8224 = vrot.lane.b32.xlu0 %v5467, 32
      %v8225 = vpop.permute.xlu0 %8224
      %8226 = vrot.lane.b32.xlu0 %v5469, 32
      %v8227 = vpop.permute.xlu0 %8226
      %v8260 = vsel %vm2539, %v1405, %v7493
      %v8261 = vsel %vm2539, %v1407, %v7495
      %v8262 = vsel %vm2539, %v1410, %v7497
      %v8263 = vsel %vm2539, %v1412, %v7499
      %v8264 = vsel %vm2539, %v1415, %v7501
      %v8265 = vsel %vm2539, %v1417, %v7503
      %v8266 = vsel %vm2539, %v1420, %v7505
      %v8267 = vsel %vm2539, %v1422, %v7507
      %v8268 = vsel %vm2539, %v1425, %v7509
      %v8269 = vsel %vm2539, %v1427, %v7511
      %v8270 = vsel %vm2539, %v1430, %v7513
      %v8271 = vsel %vm2539, %v1432, %v7515
      %v8272 = vsel %vm2539, %v1435, %v7517
      %v8273 = vsel %vm2539, %v1437, %v7519
      %v8274 = vsel %vm2539, %v1440, %v7521
      %v8275 = vsel %vm2539, %v1442, %v7523
      %v8276 = vsel %vm2539, %v1445, %v7525
      %v8277 = vsel %vm2539, %v1447, %v7527
      %v8278 = vsel %vm2539, %v1450, %v7529
      %v8279 = vsel %vm2539, %v1452, %v7531
      %v8280 = vsel %vm2539, %v1455, %v7533
      %v8281 = vsel %vm2539, %v1457, %v7535
      %v8282 = vsel %vm2539, %v1460, %v7537
      %v8283 = vsel %vm2539, %v1462, %v7539
      %v8284 = vsel %vm2539, %v1465, %v7541
      %v8285 = vsel %vm2539, %v1467, %v7543
      %v8286 = vsel %vm2539, %v1470, %v7545
      %v8287 = vsel %vm2539, %v1472, %v7547
      %v8288 = vsel %vm2539, %v1475, %v7549
      %v8289 = vsel %vm2539, %v1477, %v7551
      %v8290 = vsel %vm2539, %v1480, %v7553
      %v8291 = vsel %vm2539, %v1482, %v7555
      %v8292 = vsel %vm2572, %v8260, %v7589
      %v8293 = vsel %vm2572, %v8261, %v7591
      %v8294 = vsel %vm2572, %v8262, %v7593
      %v8295 = vsel %vm2572, %v8263, %v7595
      %v8296 = vsel %vm2572, %v8264, %v7597
      %v8297 = vsel %vm2572, %v8265, %v7599
      %v8298 = vsel %vm2572, %v8266, %v7601
      %v8299 = vsel %vm2572, %v8267, %v7603
      %v8300 = vsel %vm2572, %v8268, %v7605
      %v8301 = vsel %vm2572, %v8269, %v7607
      %v8302 = vsel %vm2572, %v8270, %v7609
      %v8303 = vsel %vm2572, %v8271, %v7611
      %v8304 = vsel %vm2572, %v8272, %v7613
      %v8305 = vsel %vm2572, %v8273, %v7615
      %v8306 = vsel %vm2572, %v8274, %v7617
      %v8307 = vsel %vm2572, %v8275, %v7619
      %v8308 = vsel %vm2572, %v8276, %v7621
      %v8309 = vsel %vm2572, %v8277, %v7623
      %v8310 = vsel %vm2572, %v8278, %v7625
      %v8311 = vsel %vm2572, %v8279, %v7627
      %v8312 = vsel %vm2572, %v8280, %v7629
      %v8313 = vsel %vm2572, %v8281, %v7631
      %v8314 = vsel %vm2572, %v8282, %v7633
      %v8315 = vsel %vm2572, %v8283, %v7635
      %v8316 = vsel %vm2572, %v8284, %v7637
      %v8317 = vsel %vm2572, %v8285, %v7639
      %v8318 = vsel %vm2572, %v8286, %v7641
      %v8319 = vsel %vm2572, %v8287, %v7643
      %v8320 = vsel %vm2572, %v8288, %v7645
      %v8321 = vsel %vm2572, %v8289, %v7647
      %v8322 = vsel %vm2572, %v8290, %v7649
      %v8323 = vsel %vm2572, %v8291, %v7651
      %v8324 = vsel %vm2605, %v8292, %v7685
      %v8325 = vsel %vm2605, %v8293, %v7687
      %v8326 = vsel %vm2605, %v8294, %v7689
      %v8327 = vsel %vm2605, %v8295, %v7691
      %v8328 = vsel %vm2605, %v8296, %v7693
      %v8329 = vsel %vm2605, %v8297, %v7695
      %v8330 = vsel %vm2605, %v8298, %v7697
      %v8331 = vsel %vm2605, %v8299, %v7699
      %v8332 = vsel %vm2605, %v8300, %v7701
      %v8333 = vsel %vm2605, %v8301, %v7703
      %v8334 = vsel %vm2605, %v8302, %v7705
      %v8335 = vsel %vm2605, %v8303, %v7707
      %v8336 = vsel %vm2605, %v8304, %v7709
      %v8337 = vsel %vm2605, %v8305, %v7711
      %v8338 = vsel %vm2605, %v8306, %v7713
      %v8339 = vsel %vm2605, %v8307, %v7715
      %v8340 = vsel %vm2605, %v8308, %v7717
      %v8341 = vsel %vm2605, %v8309, %v7719
      %v8342 = vsel %vm2605, %v8310, %v7721
      %v8343 = vsel %vm2605, %v8311, %v7723
      %v8344 = vsel %vm2605, %v8312, %v7725
      %v8345 = vsel %vm2605, %v8313, %v7727
      %v8346 = vsel %vm2605, %v8314, %v7729
      %v8347 = vsel %vm2605, %v8315, %v7731
      %v8348 = vsel %vm2605, %v8316, %v7733
      %v8349 = vsel %vm2605, %v8317, %v7735
      %v8350 = vsel %vm2605, %v8318, %v7737
      %v8351 = vsel %vm2605, %v8319, %v7739
      %v8352 = vsel %vm2605, %v8320, %v7741
      %v8353 = vsel %vm2605, %v8321, %v7743
      %v8354 = vsel %vm2605, %v8322, %v7745
      %v8355 = vsel %vm2605, %v8323, %v7747
      %v8356 = vsel %vm2638, %v8324, %v7781
      %v8357 = vsel %vm2638, %v8325, %v7783
      %v8358 = vsel %vm2638, %v8326, %v7785
      %v8359 = vsel %vm2638, %v8327, %v7787
      %v8360 = vsel %vm2638, %v8328, %v7789
      %v8361 = vsel %vm2638, %v8329, %v7791
      %v8362 = vsel %vm2638, %v8330, %v7793
      %v8363 = vsel %vm2638, %v8331, %v7795
      %v8364 = vsel %vm2638, %v8332, %v7797
      %v8365 = vsel %vm2638, %v8333, %v7799
      %v8366 = vsel %vm2638, %v8334, %v7801
      %v8367 = vsel %vm2638, %v8335, %v7803
      %v8368 = vsel %vm2638, %v8336, %v7805
      %v8369 = vsel %vm2638, %v8337, %v7807
      %v8370 = vsel %vm2638, %v8338, %v7809
      %v8371 = vsel %vm2638, %v8339, %v7811
      %v8372 = vsel %vm2638, %v8340, %v7813
      %v8373 = vsel %vm2638, %v8341, %v7815
      %v8374 = vsel %vm2638, %v8342, %v7817
      %v8375 = vsel %vm2638, %v8343, %v7819
      %v8376 = vsel %vm2638, %v8344, %v7821
      %v8377 = vsel %vm2638, %v8345, %v7823
      %v8378 = vsel %vm2638, %v8346, %v7825
      %v8379 = vsel %vm2638, %v8347, %v7827
      %v8380 = vsel %vm2638, %v8348, %v7829
      %v8381 = vsel %vm2638, %v8349, %v7831
      %v8382 = vsel %vm2638, %v8350, %v7833
      %v8383 = vsel %vm2638, %v8351, %v7835
      %v8384 = vsel %vm2638, %v8352, %v7837
      %v8385 = vsel %vm2638, %v8353, %v7839
      %v8386 = vsel %vm2638, %v8354, %v7841
      %v8387 = vsel %vm2638, %v8355, %v7843
      %v8388 = vsel %vm2671, %v8356, %v7877
      %v8389 = vsel %vm2671, %v8357, %v7879
      %v8390 = vsel %vm2671, %v8358, %v7881
      %v8391 = vsel %vm2671, %v8359, %v7883
      %v8392 = vsel %vm2671, %v8360, %v7885
      %v8393 = vsel %vm2671, %v8361, %v7887
      %v8394 = vsel %vm2671, %v8362, %v7889
      %v8395 = vsel %vm2671, %v8363, %v7891
      %v8396 = vsel %vm2671, %v8364, %v7893
      %v8397 = vsel %vm2671, %v8365, %v7895
      %v8398 = vsel %vm2671, %v8366, %v7897
      %v8399 = vsel %vm2671, %v8367, %v7899
      %v8400 = vsel %vm2671, %v8368, %v7901
      %v8401 = vsel %vm2671, %v8369, %v7903
      %v8402 = vsel %vm2671, %v8370, %v7905
      %v8403 = vsel %vm2671, %v8371, %v7907
      %v8404 = vsel %vm2671, %v8372, %v7909
      %v8405 = vsel %vm2671, %v8373, %v7911
      %v8406 = vsel %vm2671, %v8374, %v7913
      %v8407 = vsel %vm2671, %v8375, %v7915
      %v8408 = vsel %vm2671, %v8376, %v7917
      %v8409 = vsel %vm2671, %v8377, %v7919
      %v8410 = vsel %vm2671, %v8378, %v7921
      %v8411 = vsel %vm2671, %v8379, %v7923
      %v8412 = vsel %vm2671, %v8380, %v7925
      %v8413 = vsel %vm2671, %v8381, %v7927
      %v8414 = vsel %vm2671, %v8382, %v7929
      %v8415 = vsel %vm2671, %v8383, %v7931
      %v8416 = vsel %vm2671, %v8384, %v7933
      %v8417 = vsel %vm2671, %v8385, %v7935
      %v8418 = vsel %vm2671, %v8386, %v7937
      %v8419 = vsel %vm2671, %v8387, %v7939
      %v8420 = vsel %vm2704, %v8388, %v7973
      %v8421 = vsel %vm2704, %v8389, %v7975
      %v8422 = vsel %vm2704, %v8390, %v7977
      %v8423 = vsel %vm2704, %v8391, %v7979
      %v8424 = vsel %vm2704, %v8392, %v7981
      %v8425 = vsel %vm2704, %v8393, %v7983
      %v8426 = vsel %vm2704, %v8394, %v7985
      %v8427 = vsel %vm2704, %v8395, %v7987
      %v8428 = vsel %vm2704, %v8396, %v7989
      %v8429 = vsel %vm2704, %v8397, %v7991
      %v8430 = vsel %vm2704, %v8398, %v7993
      %v8431 = vsel %vm2704, %v8399, %v7995
      %v8432 = vsel %vm2704, %v8400, %v7997
      %v8433 = vsel %vm2704, %v8401, %v7999
      %v8434 = vsel %vm2704, %v8402, %v8001
      %v8435 = vsel %vm2704, %v8403, %v8003
      %v8436 = vsel %vm2704, %v8404, %v8005
      %v8437 = vsel %vm2704, %v8405, %v8007
      %v8438 = vsel %vm2704, %v8406, %v8009
      %v8439 = vsel %vm2704, %v8407, %v8011
      %v8440 = vsel %vm2704, %v8408, %v8013
      %v8441 = vsel %vm2704, %v8409, %v8015
      %v8442 = vsel %vm2704, %v8410, %v8017
      %v8443 = vsel %vm2704, %v8411, %v8019
      %v8444 = vsel %vm2704, %v8412, %v8021
      %v8445 = vsel %vm2704, %v8413, %v8023
      %v8446 = vsel %vm2704, %v8414, %v8025
      %v8447 = vsel %vm2704, %v8415, %v8027
      %v8448 = vsel %vm2704, %v8416, %v8029
      %v8449 = vsel %vm2704, %v8417, %v8031
      %v8450 = vsel %vm2704, %v8418, %v8033
      %v8451 = vsel %vm2704, %v8419, %v8035
      %v8452 = vsel %vm2737, %v8420, %v8069
      %v8453 = vsel %vm2737, %v8421, %v8071
      %v8454 = vsel %vm2737, %v8422, %v8073
      %v8455 = vsel %vm2737, %v8423, %v8075
      %v8456 = vsel %vm2737, %v8424, %v8077
      %v8457 = vsel %vm2737, %v8425, %v8079
      %v8458 = vsel %vm2737, %v8426, %v8081
      %v8459 = vsel %vm2737, %v8427, %v8083
      %v8460 = vsel %vm2737, %v8428, %v8085
      %v8461 = vsel %vm2737, %v8429, %v8087
      %v8462 = vsel %vm2737, %v8430, %v8089
      %v8463 = vsel %vm2737, %v8431, %v8091
      %v8464 = vsel %vm2737, %v8432, %v8093
      %v8465 = vsel %vm2737, %v8433, %v8095
      %v8466 = vsel %vm2737, %v8434, %v8097
      %v8467 = vsel %vm2737, %v8435, %v8099
      %v8468 = vsel %vm2737, %v8436, %v8101
      %v8469 = vsel %vm2737, %v8437, %v8103
      %v8470 = vsel %vm2737, %v8438, %v8105
      %v8471 = vsel %vm2737, %v8439, %v8107
      %v8472 = vsel %vm2737, %v8440, %v8109
      %v8473 = vsel %vm2737, %v8441, %v8111
      %v8474 = vsel %vm2737, %v8442, %v8113
      %v8475 = vsel %vm2737, %v8443, %v8115
      %v8476 = vsel %vm2737, %v8444, %v8117
      %v8477 = vsel %vm2737, %v8445, %v8119
      %v8478 = vsel %vm2737, %v8446, %v8121
      %v8479 = vsel %vm2737, %v8447, %v8123
      %v8480 = vsel %vm2737, %v8448, %v8125
      %v8481 = vsel %vm2737, %v8449, %v8127
      %v8482 = vsel %vm2737, %v8450, %v8129
      %v8483 = vsel %vm2737, %v8451, %v8131
      %v8484 = vsel %vm2770, %v8452, %v8165
      %v8485 = vsel %vm2770, %v8453, %v8167
      %v8486 = vsel %vm2770, %v8454, %v8169
      %v8487 = vsel %vm2770, %v8455, %v8171
      %v8488 = vsel %vm2770, %v8456, %v8173
      %v8489 = vsel %vm2770, %v8457, %v8175
      %v8490 = vsel %vm2770, %v8458, %v8177
      %v8491 = vsel %vm2770, %v8459, %v8179
      %v8492 = vsel %vm2770, %v8460, %v8181
      %v8493 = vsel %vm2770, %v8461, %v8183
      %v8494 = vsel %vm2770, %v8462, %v8185
      %v8495 = vsel %vm2770, %v8463, %v8187
      %v8496 = vsel %vm2770, %v8464, %v8189
      %v8497 = vsel %vm2770, %v8465, %v8191
      %v8498 = vsel %vm2770, %v8466, %v8193
      %v8499 = vsel %vm2770, %v8467, %v8195
      %v8500 = vsel %vm2770, %v8468, %v8197
      %v8501 = vsel %vm2770, %v8469, %v8199
      %v8502 = vsel %vm2770, %v8470, %v8201
      %v8503 = vsel %vm2770, %v8471, %v8203
      %v8504 = vsel %vm2770, %v8472, %v8205
      %v8505 = vsel %vm2770, %v8473, %v8207
      %v8506 = vsel %vm2770, %v8474, %v8209
      %v8507 = vsel %vm2770, %v8475, %v8211
      %v8508 = vsel %vm2770, %v8476, %v8213
      %v8509 = vsel %vm2770, %v8477, %v8215
      %v8510 = vsel %vm2770, %v8478, %v8217
      %v8511 = vsel %vm2770, %v8479, %v8219
      %v8512 = vsel %vm2770, %v8480, %v8221
      %v8513 = vsel %vm2770, %v8481, %v8223
      %v8514 = vsel %vm2770, %v8482, %v8225
      %v8515 = vsel %vm2770, %v8483, %v8227
      %8548 = vrot.lane.b32.xlu0 %v8484, 64
      %v8549 = vpop.permute.xlu0 %8548
      %8550 = vrot.lane.b32.xlu0 %v8485, 64
      %v8551 = vpop.permute.xlu0 %8550
      %8552 = vrot.lane.b32.xlu0 %v8486, 64
      %v8553 = vpop.permute.xlu0 %8552
      %8554 = vrot.lane.b32.xlu0 %v8487, 64
      %v8555 = vpop.permute.xlu0 %8554
      %8556 = vrot.lane.b32.xlu0 %v8488, 64
      %v8557 = vpop.permute.xlu0 %8556
      %8558 = vrot.lane.b32.xlu0 %v8489, 64
      %v8559 = vpop.permute.xlu0 %8558
      %8560 = vrot.lane.b32.xlu0 %v8490, 64
      %v8561 = vpop.permute.xlu0 %8560
      %8562 = vrot.lane.b32.xlu0 %v8491, 64
      %v8563 = vpop.permute.xlu0 %8562
      %8564 = vrot.lane.b32.xlu0 %v8492, 64
      %v8565 = vpop.permute.xlu0 %8564
      %8566 = vrot.lane.b32.xlu0 %v8493, 64
      %v8567 = vpop.permute.xlu0 %8566
      %8568 = vrot.lane.b32.xlu0 %v8494, 64
      %v8569 = vpop.permute.xlu0 %8568
      %8570 = vrot.lane.b32.xlu0 %v8495, 64
      %v8571 = vpop.permute.xlu0 %8570
      %8572 = vrot.lane.b32.xlu0 %v8496, 64
      %v8573 = vpop.permute.xlu0 %8572
      %8574 = vrot.lane.b32.xlu0 %v8497, 64
      %v8575 = vpop.permute.xlu0 %8574
      %8576 = vrot.lane.b32.xlu0 %v8498, 64
      %v8577 = vpop.permute.xlu0 %8576
      %8578 = vrot.lane.b32.xlu0 %v8499, 64
      %v8579 = vpop.permute.xlu0 %8578
      %8580 = vrot.lane.b32.xlu0 %v8500, 64
      %v8581 = vpop.permute.xlu0 %8580
      %8582 = vrot.lane.b32.xlu0 %v8501, 64
      %v8583 = vpop.permute.xlu0 %8582
      %8584 = vrot.lane.b32.xlu0 %v8502, 64
      %v8585 = vpop.permute.xlu0 %8584
      %8586 = vrot.lane.b32.xlu0 %v8503, 64
      %v8587 = vpop.permute.xlu0 %8586
      %8588 = vrot.lane.b32.xlu0 %v8504, 64
      %v8589 = vpop.permute.xlu0 %8588
      %8590 = vrot.lane.b32.xlu0 %v8505, 64
      %v8591 = vpop.permute.xlu0 %8590
      %8592 = vrot.lane.b32.xlu0 %v8506, 64
      %v8593 = vpop.permute.xlu0 %8592
      %8594 = vrot.lane.b32.xlu0 %v8507, 64
      %v8595 = vpop.permute.xlu0 %8594
      %8596 = vrot.lane.b32.xlu0 %v8508, 64
      %v8597 = vpop.permute.xlu0 %8596
      %8598 = vrot.lane.b32.xlu0 %v8509, 64
      %v8599 = vpop.permute.xlu0 %8598
      %8600 = vrot.lane.b32.xlu0 %v8510, 64
      %v8601 = vpop.permute.xlu0 %8600
      %8602 = vrot.lane.b32.xlu0 %v8511, 64
      %v8603 = vpop.permute.xlu0 %8602
      %8604 = vrot.lane.b32.xlu0 %v8512, 64
      %v8605 = vpop.permute.xlu0 %8604
      %8606 = vrot.lane.b32.xlu0 %v8513, 64
      %v8607 = vpop.permute.xlu0 %8606
      %8608 = vrot.lane.b32.xlu0 %v8514, 64
      %v8609 = vpop.permute.xlu0 %8608
      %8610 = vrot.lane.b32.xlu0 %v8515, 64
      %v8611 = vpop.permute.xlu0 %8610
      %vm8644 = vcmask 523264
      %v8645 = vsel %vm8644, %v7460, %v8549
      %v8646 = vsel %vm8644, %v7461, %v8551
      %v8647 = vsel %vm8644, %v7462, %v8553
      %v8648 = vsel %vm8644, %v7463, %v8555
      %v8649 = vsel %vm8644, %v7464, %v8557
      %v8650 = vsel %vm8644, %v7465, %v8559
      %v8651 = vsel %vm8644, %v7466, %v8561
      %v8652 = vsel %vm8644, %v7467, %v8563
      %v8653 = vsel %vm8644, %v7468, %v8565
      %v8654 = vsel %vm8644, %v7469, %v8567
      %v8655 = vsel %vm8644, %v7470, %v8569
      %v8656 = vsel %vm8644, %v7471, %v8571
      %v8657 = vsel %vm8644, %v7472, %v8573
      %v8658 = vsel %vm8644, %v7473, %v8575
      %v8659 = vsel %vm8644, %v7474, %v8577
      %v8660 = vsel %vm8644, %v7475, %v8579
      %v8661 = vsel %vm8644, %v7476, %v8581
      %v8662 = vsel %vm8644, %v7477, %v8583
      %v8663 = vsel %vm8644, %v7478, %v8585
      %v8664 = vsel %vm8644, %v7479, %v8587
      %v8665 = vsel %vm8644, %v7480, %v8589
      %v8666 = vsel %vm8644, %v7481, %v8591
      %v8667 = vsel %vm8644, %v7482, %v8593
      %v8668 = vsel %vm8644, %v7483, %v8595
      %v8669 = vsel %vm8644, %v7484, %v8597
      %v8670 = vsel %vm8644, %v7485, %v8599
      %v8671 = vsel %vm8644, %v7486, %v8601
      %v8672 = vsel %vm8644, %v7487, %v8603
      %v8673 = vsel %vm8644, %v7488, %v8605
      %v8674 = vsel %vm8644, %v7489, %v8607
      %v8675 = vsel %vm8644, %v7490, %v8609
      %v8676 = vsel %vm8644, %v7491, %v8611
      %v8677 = vpack.c.bf16 %v8646, %v8645
      %v8678 = vpack.c.bf16 %v8648, %v8647
      %v8679 = vpack.c.bf16 %v8650, %v8649
      %v8680 = vpack.c.bf16 %v8652, %v8651
      %v8681 = vpack.c.bf16 %v8654, %v8653
      %v8682 = vpack.c.bf16 %v8656, %v8655
      %v8683 = vpack.c.bf16 %v8658, %v8657
      %v8684 = vpack.c.bf16 %v8660, %v8659
      %v8685 = vpack.c.bf16 %v8662, %v8661
      %v8686 = vpack.c.bf16 %v8664, %v8663
      %v8687 = vpack.c.bf16 %v8666, %v8665
      %v8688 = vpack.c.bf16 %v8668, %v8667
      %v8689 = vpack.c.bf16 %v8670, %v8669
      %v8690 = vpack.c.bf16 %v8672, %v8671
      %v8691 = vpack.c.bf16 %v8674, %v8673
      %v8692 = vpack.c.bf16 %v8676, %v8675
      %v8693 = vld [vmem:[%s3] sm:$0xf]
      %v8694 = vld [vmem:[%s3 + $0x4] sm:$0xf]
      %v8695 = vld [vmem:[%s3 + $0x8] sm:$0xf]
      %v8696 = vld [vmem:[%s3 + $0xc] sm:$0xf]
      %v8697 = vld [vmem:[%s3 + $0x10] sm:$0xf]
      %v8698 = vld [vmem:[%s3 + $0x14] sm:$0xf]
      %v8699 = vld [vmem:[%s3 + $0x18] sm:$0xf]
      %v8700 = vld [vmem:[%s3 + $0x1c] sm:$0xf]
      %v8701 = vld [vmem:[%s3 + $0x20] sm:$0xf]
      %v8702 = vld [vmem:[%s3 + $0x24] sm:$0xf]
      %v8703 = vld [vmem:[%s3 + $0x28] sm:$0xf]
      %v8704 = vld [vmem:[%s3 + $0x2c] sm:$0xf]
      %v8705 = vld [vmem:[%s3 + $0x30] sm:$0x3]
      %v8719 = vunpack.c.l.b16 %v8693
      %v8720 = vunpack.c.l.b16 %v8694
      %v8721 = vunpack.c.l.b16 %v8695
      %v8722 = vunpack.c.l.b16 %v8696
      %v8723 = vunpack.c.l.b16 %v8697
      %v8724 = vunpack.c.l.b16 %v8698
      %v8725 = vunpack.c.l.b16 %v8699
      %v8726 = vunpack.c.l.b16 %v8700
      %v8727 = vunpack.c.l.b16 %v8701
      %v8728 = vunpack.c.l.b16 %v8702
      %v8729 = vunpack.c.l.b16 %v8703
      %v8730 = vunpack.c.l.b16 %v8704
      %v8731 = vunpack.c.l.b16 %v8705
      %v8732 = vpack.c.b16 %v8720, %v8719
      %v8733 = vpack.c.b16 %v8722, %v8721
      %v8734 = vpack.c.b16 %v8724, %v8723
      %v8735 = vpack.c.b16 %v8726, %v8725
      %v8736 = vpack.c.b16 %v8728, %v8727
      %v8737 = vpack.c.b16 %v8730, %v8729
      %v8738 = vpack.c.b16 %v8731, %v8731
      %vm8745 = vcmask 818176
      %v8747 = vsel %vm8745, %v8677, 0
      %v8750 = vsel %vm8745, %v8678, 0
      %v8753 = vsel %vm8745, %v8679, 0
      %v8756 = vsel %vm8745, %v8680, 0
      %v8759 = vsel %vm8745, %v8681, 0
      %v8762 = vsel %vm8745, %v8682, 0
      %v8765 = vsel %vm8745, %v8683, 0
      %v8768 = vsel %vm8745, %v8684, 0
      %v8771 = vsel %vm8745, %v8685, 0
      %v8774 = vsel %vm8745, %v8686, 0
      %v8777 = vsel %vm8745, %v8687, 0
      %v8780 = vsel %vm8745, %v8688, 0
      %v8783 = vsel %vm8745, %v8689, 0
      %v8786 = vsel %vm8745, %v8690, 0
      %v8789 = vsel %vm8745, %v8691, 0
      %v8792 = vsel %vm8745, %v8692, 0
      %v8795 = vsel %vm2888, %v8738, 0
      %8797 = vmatprep.subr.bf16.mxu0 0
      %8798 = vmatpush1.bf16.msra.mxu0 %v8732
      %8799 = vmatprep.subr.bf16.mxu0 0
      %8800 = vmatpush1.bf16.msra.mxu0 %v8733
      %8801 = vmatprep.subr.bf16.mxu0 0
      %8802 = vmatpush1.bf16.msra.mxu0 %v8734
      %8803 = vmatprep.subr.bf16.mxu0 0
      %8804 = vmatpush1.bf16.msra.mxu0 %v8735
      %8805 = vmatprep.subr.bf16.mxu0 0
      %8806 = vmatpush1.bf16.msra.mxu0 %v8736
      %8807 = vmatprep.subr.bf16.mxu0 0
      %8808 = vmatpush1.bf16.msra.mxu0 %v8737
      %8809 = vmatprep.subr.bf16.mxu0 0
      %8810 = vmatpush1.bf16.msra.mxu0 %v8795
      %8811 = vmatprep.subr.bf16.mxu0 0
      %8812 = vmatpush1.bf16.msra.mxu0 0
      %8813 = vmatprep.subr.bf16.mxu0 0
      %8814 = vmatpush1.bf16.msra.mxu0 0
      %8815 = vmatprep.subr.bf16.mxu0 0
      %8816 = vmatpush1.bf16.msra.mxu0 0
      %8817 = vmatprep.subr.bf16.mxu0 0
      %8818 = vmatpush1.bf16.msra.mxu0 0
      %8819 = vmatprep.subr.bf16.mxu0 0
      %8820 = vmatpush1.bf16.msra.mxu0 0
      %8821 = vmatprep.subr.bf16.mxu0 0
      %8822 = vmatpush1.bf16.msra.mxu0 0
      %8823 = vmatprep.subr.bf16.mxu0 0
      %8824 = vmatpush1.bf16.msra.mxu0 0
      %8825 = vmatprep.subr.bf16.mxu0 0
      %8826 = vmatpush1.bf16.msra.mxu0 0
      %8827 = vmatprep.subr.bf16.mxu0 0
      %8828 = vmatpush1.bf16.msra.mxu0 0
      %8829 = vmatprep.mubr.bf16.mxu0 0
      %8830 = vmatmul.mubr.bf16.gmra.mrb[0].mxu0 %v8747
      %v8831 = vpop.f32.mrb[0].mxu0
      %v8832 = vadd.f32 0.0, %v8831
      %v8833 = vpop.f32.mrb[0].mxu0
      %v8834 = vpop.f32.mrb[0].mxu0
      %v8835 = vadd.f32 0.0, %v8834
      %v8836 = vpop.f32.mrb[0].mxu0
      %8837 = vmatprep.mubr.bf16.mxu0 0
      %8838 = vmatmul.mubr.bf16.gmra.mrb[0].mxu0 %v8750
      %v8839 = vpop.f32.mrb[0].mxu0
      %v8840 = vadd.f32 0.0, %v8839
      %v8841 = vpop.f32.mrb[0].mxu0
      %v8842 = vpop.f32.mrb[0].mxu0
      %v8843 = vadd.f32 0.0, %v8842
      %v8844 = vpop.f32.mrb[0].mxu0
      %8845 = vmatprep.mubr.bf16.mxu0 0
      %8846 = vmatmul.mubr.bf16.gmra.mrb[0].mxu0 %v8753
      %v8847 = vpop.f32.mrb[0].mxu0
      %v8848 = vadd.f32 0.0, %v8847
      %v8849 = vpop.f32.mrb[0].mxu0
      %v8850 = vpop.f32.mrb[0].mxu0
      %v8851 = vadd.f32 0.0, %v8850
      %v8852 = vpop.f32.mrb[0].mxu0
      %8853 = vmatprep.mubr.bf16.mxu0 0
      %8854 = vmatmul.mubr.bf16.gmra.mrb[0].mxu0 %v8756
      %v8855 = vpop.f32.mrb[0].mxu0
      %v8856 = vadd.f32 0.0, %v8855
      %v8857 = vpop.f32.mrb[0].mxu0
      %v8858 = vpop.f32.mrb[0].mxu0
      %v8859 = vadd.f32 0.0, %v8858
      %v8860 = vpop.f32.mrb[0].mxu0
      %8861 = vmatprep.mubr.bf16.mxu0 0
      %8862 = vmatmul.mubr.bf16.gmra.mrb[0].mxu0 %v8759
      %v8863 = vpop.f32.mrb[0].mxu0
      %v8864 = vadd.f32 0.0, %v8863
      %v8865 = vpop.f32.mrb[0].mxu0
      %v8866 = vpop.f32.mrb[0].mxu0
      %v8867 = vadd.f32 0.0, %v8866
      %v8868 = vpop.f32.mrb[0].mxu0
      %8869 = vmatprep.mubr.bf16.mxu0 0
      %8870 = vmatmul.mubr.bf16.gmra.mrb[0].mxu0 %v8762
      %v8871 = vpop.f32.mrb[0].mxu0
      %v8872 = vadd.f32 0.0, %v8871
      %v8873 = vpop.f32.mrb[0].mxu0
      %v8874 = vpop.f32.mrb[0].mxu0
      %v8875 = vadd.f32 0.0, %v8874
      %v8876 = vpop.f32.mrb[0].mxu0
      %8877 = vmatprep.mubr.bf16.mxu0 0
      %8878 = vmatmul.mubr.bf16.gmra.mrb[0].mxu0 %v8765
      %v8879 = vpop.f32.mrb[0].mxu0
      %v8880 = vadd.f32 0.0, %v8879
      %v8881 = vpop.f32.mrb[0].mxu0
      %v8882 = vpop.f32.mrb[0].mxu0
      %v8883 = vadd.f32 0.0, %v8882
      %v8884 = vpop.f32.mrb[0].mxu0
      %8885 = vmatprep.mubr.bf16.mxu0 0
      %8886 = vmatmul.mubr.bf16.gmra.mrb[0].mxu0 %v8768
      %v8887 = vpop.f32.mrb[0].mxu0
      %v8888 = vadd.f32 0.0, %v8887
      %v8889 = vpop.f32.mrb[0].mxu0
      %v8890 = vpop.f32.mrb[0].mxu0
      %v8891 = vadd.f32 0.0, %v8890
      %v8892 = vpop.f32.mrb[0].mxu0
      %8893 = vmatprep.mubr.bf16.mxu0 0
      %8894 = vmatmul.mubr.bf16.gmra.mrb[0].mxu0 %v8771
      %v8895 = vpop.f32.mrb[0].mxu0
      %v8896 = vadd.f32 0.0, %v8895
      %v8897 = vpop.f32.mrb[0].mxu0
      %v8898 = vpop.f32.mrb[0].mxu0
      %v8899 = vadd.f32 0.0, %v8898
      %v8900 = vpop.f32.mrb[0].mxu0
      %8901 = vmatprep.mubr.bf16.mxu0 0
      %8902 = vmatmul.mubr.bf16.gmra.mrb[0].mxu0 %v8774
      %v8903 = vpop.f32.mrb[0].mxu0
      %v8904 = vadd.f32 0.0, %v8903
      %v8905 = vpop.f32.mrb[0].mxu0
      %v8906 = vpop.f32.mrb[0].mxu0
      %v8907 = vadd.f32 0.0, %v8906
      %v8908 = vpop.f32.mrb[0].mxu0
      %8909 = vmatprep.mubr.bf16.mxu0 0
      %8910 = vmatmul.mubr.bf16.gmra.mrb[0].mxu0 %v8777
      %v8911 = vpop.f32.mrb[0].mxu0
      %v8912 = vadd.f32 0.0, %v8911
      %v8913 = vpop.f32.mrb[0].mxu0
      %v8914 = vpop.f32.mrb[0].mxu0
      %v8915 = vadd.f32 0.0, %v8914
      %v8916 = vpop.f32.mrb[0].mxu0
      %8917 = vmatprep.mubr.bf16.mxu0 0
      %8918 = vmatmul.mubr.bf16.gmra.mrb[0].mxu0 %v8780
      %v8919 = vpop.f32.mrb[0].mxu0
      %v8920 = vadd.f32 0.0, %v8919
      %v8921 = vpop.f32.mrb[0].mxu0
      %v8922 = vpop.f32.mrb[0].mxu0
      %v8923 = vadd.f32 0.0, %v8922
      %v8924 = vpop.f32.mrb[0].mxu0
      %8925 = vmatprep.mubr.bf16.mxu0 0
      %8926 = vmatmul.mubr.bf16.gmra.mrb[0].mxu0 %v8783
      %v8927 = vpop.f32.mrb[0].mxu0
      %v8928 = vadd.f32 0.0, %v8927
      %v8929 = vpop.f32.mrb[0].mxu0
      %v8930 = vpop.f32.mrb[0].mxu0
      %v8931 = vadd.f32 0.0, %v8930
      %v8932 = vpop.f32.mrb[0].mxu0
      %8933 = vmatprep.mubr.bf16.mxu0 0
      %8934 = vmatmul.mubr.bf16.gmra.mrb[0].mxu0 %v8786
      %v8935 = vpop.f32.mrb[0].mxu0
      %v8936 = vadd.f32 0.0, %v8935
      %v8937 = vpop.f32.mrb[0].mxu0
      %v8938 = vpop.f32.mrb[0].mxu0
      %v8939 = vadd.f32 0.0, %v8938
      %v8940 = vpop.f32.mrb[0].mxu0
      %8941 = vmatprep.mubr.bf16.mxu0 0
      %8942 = vmatmul.mubr.bf16.gmra.mrb[0].mxu0 %v8789
      %v8943 = vpop.f32.mrb[0].mxu0
      %v8944 = vadd.f32 0.0, %v8943
      %v8945 = vpop.f32.mrb[0].mxu0
      %v8946 = vpop.f32.mrb[0].mxu0
      %v8947 = vadd.f32 0.0, %v8946
      %v8948 = vpop.f32.mrb[0].mxu0
      %8949 = vmatprep.mubr.bf16.mxu0 0
      %8950 = vmatmul.mubr.bf16.gmra.mrb[0].mxu0 %v8792
      %v8951 = vpop.f32.mrb[0].mxu0
      %v8952 = vadd.f32 0.0, %v8951
      %v8953 = vpop.f32.mrb[0].mxu0
      %v8954 = vpop.f32.mrb[0].mxu0
      %v8955 = vadd.f32 0.0, %v8954
      %v8956 = vpop.f32.mrb[0].mxu0
      %8957 = vdwg.mxu0
      %8958 = vrot.lane.b32.xlu0 %v3947, 4
      %v8959 = vpop.permute.xlu0 %8958
      %8960 = vrot.lane.b32.xlu0 %v3949, 4
      %v8961 = vpop.permute.xlu0 %8960
      %8962 = vrot.lane.b32.xlu0 %v3952, 4
      %v8963 = vpop.permute.xlu0 %8962
      %8964 = vrot.lane.b32.xlu0 %v3954, 4
      %v8965 = vpop.permute.xlu0 %8964
      %8966 = vrot.lane.b32.xlu0 %v3957, 4
      %v8967 = vpop.permute.xlu0 %8966
      %8968 = vrot.lane.b32.xlu0 %v3959, 4
      %v8969 = vpop.permute.xlu0 %8968
      %8970 = vrot.lane.b32.xlu0 %v3962, 4
      %v8971 = vpop.permute.xlu0 %8970
      %8972 = vrot.lane.b32.xlu0 %v3964, 4
      %v8973 = vpop.permute.xlu0 %8972
      %8974 = vrot.lane.b32.xlu0 %v3967, 4
      %v8975 = vpop.permute.xlu0 %8974
      %8976 = vrot.lane.b32.xlu0 %v3969, 4
      %v8977 = vpop.permute.xlu0 %8976
      %8978 = vrot.lane.b32.xlu0 %v3972, 4
      %v8979 = vpop.permute.xlu0 %8978
      %8980 = vrot.lane.b32.xlu0 %v3974, 4
      %v8981 = vpop.permute.xlu0 %8980
      %8982 = vrot.lane.b32.xlu0 %v3977, 4
      %v8983 = vpop.permute.xlu0 %8982
      %8984 = vrot.lane.b32.xlu0 %v3979, 4
      %v8985 = vpop.permute.xlu0 %8984
      %8986 = vrot.lane.b32.xlu0 %v3982, 4
      %v8987 = vpop.permute.xlu0 %8986
      %8988 = vrot.lane.b32.xlu0 %v3984, 4
      %v8989 = vpop.permute.xlu0 %8988
      %8990 = vrot.lane.b32.xlu0 %v3987, 4
      %v8991 = vpop.permute.xlu0 %8990
      %8992 = vrot.lane.b32.xlu0 %v3989, 4
      %v8993 = vpop.permute.xlu0 %8992
      %8994 = vrot.lane.b32.xlu0 %v3992, 4
      %v8995 = vpop.permute.xlu0 %8994
      %8996 = vrot.lane.b32.xlu0 %v3994, 4
      %v8997 = vpop.permute.xlu0 %8996
      %8998 = vrot.lane.b32.xlu0 %v3997, 4
      %v8999 = vpop.permute.xlu0 %8998
      %9000 = vrot.lane.b32.xlu0 %v3999, 4
      %v9001 = vpop.permute.xlu0 %9000
      %9002 = vrot.lane.b32.xlu0 %v4002, 4
      %v9003 = vpop.permute.xlu0 %9002
      %9004 = vrot.lane.b32.xlu0 %v4004, 4
      %v9005 = vpop.permute.xlu0 %9004
      %9006 = vrot.lane.b32.xlu0 %v4007, 4
      %v9007 = vpop.permute.xlu0 %9006
      %9008 = vrot.lane.b32.xlu0 %v4009, 4
      %v9009 = vpop.permute.xlu0 %9008
      %9010 = vrot.lane.b32.xlu0 %v4012, 4
      %v9011 = vpop.permute.xlu0 %9010
      %9012 = vrot.lane.b32.xlu0 %v4014, 4
      %v9013 = vpop.permute.xlu0 %9012
      %9014 = vrot.lane.b32.xlu0 %v4017, 4
      %v9015 = vpop.permute.xlu0 %9014
      %9016 = vrot.lane.b32.xlu0 %v4019, 4
      %v9017 = vpop.permute.xlu0 %9016
      %9018 = vrot.lane.b32.xlu0 %v4022, 4
      %v9019 = vpop.permute.xlu0 %9018
      %9020 = vrot.lane.b32.xlu0 %v4024, 4
      %v9021 = vpop.permute.xlu0 %9020
      %9054 = vrot.lane.b32.xlu0 %v4204, 8
      %v9055 = vpop.permute.xlu0 %9054
      %9056 = vrot.lane.b32.xlu0 %v4206, 8
      %v9057 = vpop.permute.xlu0 %9056
      %9058 = vrot.lane.b32.xlu0 %v4209, 8
      %v9059 = vpop.permute.xlu0 %9058
      %9060 = vrot.lane.b32.xlu0 %v4211, 8
      %v9061 = vpop.permute.xlu0 %9060
      %9062 = vrot.lane.b32.xlu0 %v4214, 8
      %v9063 = vpop.permute.xlu0 %9062
      %9064 = vrot.lane.b32.xlu0 %v4216, 8
      %v9065 = vpop.permute.xlu0 %9064
      %9066 = vrot.lane.b32.xlu0 %v4219, 8
      %v9067 = vpop.permute.xlu0 %9066
      %9068 = vrot.lane.b32.xlu0 %v4221, 8
      %v9069 = vpop.permute.xlu0 %9068
      %9070 = vrot.lane.b32.xlu0 %v4224, 8
      %v9071 = vpop.permute.xlu0 %9070
      %9072 = vrot.lane.b32.xlu0 %v4226, 8
      %v9073 = vpop.permute.xlu0 %9072
      %9074 = vrot.lane.b32.xlu0 %v4229, 8
      %v9075 = vpop.permute.xlu0 %9074
      %9076 = vrot.lane.b32.xlu0 %v4231, 8
      %v9077 = vpop.permute.xlu0 %9076
      %9078 = vrot.lane.b32.xlu0 %v4234, 8
      %v9079 = vpop.permute.xlu0 %9078
      %9080 = vrot.lane.b32.xlu0 %v4236, 8
      %v9081 = vpop.permute.xlu0 %9080
      %9082 = vrot.lane.b32.xlu0 %v4239, 8
      %v9083 = vpop.permute.xlu0 %9082
      %9084 = vrot.lane.b32.xlu0 %v4241, 8
      %v9085 = vpop.permute.xlu0 %9084
      %9086 = vrot.lane.b32.xlu0 %v4244, 8
      %v9087 = vpop.permute.xlu0 %9086
      %9088 = vrot.lane.b32.xlu0 %v4246, 8
      %v9089 = vpop.permute.xlu0 %9088
      %9090 = vrot.lane.b32.xlu0 %v4249, 8
      %v9091 = vpop.permute.xlu0 %9090
      %9092 = vrot.lane.b32.xlu0 %v4251, 8
      %v9093 = vpop.permute.xlu0 %9092
      %9094 = vrot.lane.b32.xlu0 %v4254, 8
      %v9095 = vpop.permute.xlu0 %9094
      %9096 = vrot.lane.b32.xlu0 %v4256, 8
      %v9097 = vpop.permute.xlu0 %9096
      %9098 = vrot.lane.b32.xlu0 %v4259, 8
      %v9099 = vpop.permute.xlu0 %9098
      %9100 = vrot.lane.b32.xlu0 %v4261, 8
      %v9101 = vpop.permute.xlu0 %9100
      %9102 = vrot.lane.b32.xlu0 %v4264, 8
      %v9103 = vpop.permute.xlu0 %9102
      %9104 = vrot.lane.b32.xlu0 %v4266, 8
      %v9105 = vpop.permute.xlu0 %9104
      %9106 = vrot.lane.b32.xlu0 %v4269, 8
      %v9107 = vpop.permute.xlu0 %9106
      %9108 = vrot.lane.b32.xlu0 %v4271, 8
      %v9109 = vpop.permute.xlu0 %9108
      %9110 = vrot.lane.b32.xlu0 %v4274, 8
      %v9111 = vpop.permute.xlu0 %9110
      %9112 = vrot.lane.b32.xlu0 %v4276, 8
      %v9113 = vpop.permute.xlu0 %9112
      %9114 = vrot.lane.b32.xlu0 %v4279, 8
      %v9115 = vpop.permute.xlu0 %9114
      %9116 = vrot.lane.b32.xlu0 %v4281, 8
      %v9117 = vpop.permute.xlu0 %9116
      %9150 = vrot.lane.b32.xlu0 %v4506, 12
      %v9151 = vpop.permute.xlu0 %9150
      %9152 = vrot.lane.b32.xlu0 %v4507, 12
      %v9153 = vpop.permute.xlu0 %9152
      %9154 = vrot.lane.b32.xlu0 %v4508, 12
      %v9155 = vpop.permute.xlu0 %9154
      %9156 = vrot.lane.b32.xlu0 %v4509, 12
      %v9157 = vpop.permute.xlu0 %9156
      %9158 = vrot.lane.b32.xlu0 %v4510, 12
      %v9159 = vpop.permute.xlu0 %9158
      %9160 = vrot.lane.b32.xlu0 %v4511, 12
      %v9161 = vpop.permute.xlu0 %9160
      %9162 = vrot.lane.b32.xlu0 %v4512, 12
      %v9163 = vpop.permute.xlu0 %9162
      %9164 = vrot.lane.b32.xlu0 %v4513, 12
      %v9165 = vpop.permute.xlu0 %9164
      %9166 = vrot.lane.b32.xlu0 %v4514, 12
      %v9167 = vpop.permute.xlu0 %9166
      %9168 = vrot.lane.b32.xlu0 %v4515, 12
      %v9169 = vpop.permute.xlu0 %9168
      %9170 = vrot.lane.b32.xlu0 %v4516, 12
      %v9171 = vpop.permute.xlu0 %9170
      %9172 = vrot.lane.b32.xlu0 %v4517, 12
      %v9173 = vpop.permute.xlu0 %9172
      %9174 = vrot.lane.b32.xlu0 %v4518, 12
      %v9175 = vpop.permute.xlu0 %9174
      %9176 = vrot.lane.b32.xlu0 %v4519, 12
      %v9177 = vpop.permute.xlu0 %9176
      %9178 = vrot.lane.b32.xlu0 %v4520, 12
      %v9179 = vpop.permute.xlu0 %9178
      %9180 = vrot.lane.b32.xlu0 %v4521, 12
      %v9181 = vpop.permute.xlu0 %9180
      %9182 = vrot.lane.b32.xlu0 %v4522, 12
      %v9183 = vpop.permute.xlu0 %9182
      %9184 = vrot.lane.b32.xlu0 %v4523, 12
      %v9185 = vpop.permute.xlu0 %9184
      %9186 = vrot.lane.b32.xlu0 %v4524, 12
      %v9187 = vpop.permute.xlu0 %9186
      %9188 = vrot.lane.b32.xlu0 %v4525, 12
      %v9189 = vpop.permute.xlu0 %9188
      %9190 = vrot.lane.b32.xlu0 %v4526, 12
      %v9191 = vpop.permute.xlu0 %9190
      %9192 = vrot.lane.b32.xlu0 %v4527, 12
      %v9193 = vpop.permute.xlu0 %9192
      %9194 = vrot.lane.b32.xlu0 %v4528, 12
      %v9195 = vpop.permute.xlu0 %9194
      %9196 = vrot.lane.b32.xlu0 %v4529, 12
      %v9197 = vpop.permute.xlu0 %9196
      %9198 = vrot.lane.b32.xlu0 %v4530, 12
      %v9199 = vpop.permute.xlu0 %9198
      %9200 = vrot.lane.b32.xlu0 %v4531, 12
      %v9201 = vpop.permute.xlu0 %9200
      %9202 = vrot.lane.b32.xlu0 %v4532, 12
      %v9203 = vpop.permute.xlu0 %9202
      %9204 = vrot.lane.b32.xlu0 %v4533, 12
      %v9205 = vpop.permute.xlu0 %9204
      %9206 = vrot.lane.b32.xlu0 %v4534, 12
      %v9207 = vpop.permute.xlu0 %9206
      %9208 = vrot.lane.b32.xlu0 %v4535, 12
      %v9209 = vpop.permute.xlu0 %9208
      %9210 = vrot.lane.b32.xlu0 %v4536, 12
      %v9211 = vpop.permute.xlu0 %9210
      %9212 = vrot.lane.b32.xlu0 %v4537, 12
      %v9213 = vpop.permute.xlu0 %9212
      %9246 = vrot.lane.b32.xlu0 %v4588, 20
      %v9247 = vpop.permute.xlu0 %9246
      %9248 = vrot.lane.b32.xlu0 %v4590, 20
      %v9249 = vpop.permute.xlu0 %9248
      %9250 = vrot.lane.b32.xlu0 %v4593, 20
      %v9251 = vpop.permute.xlu0 %9250
      %9252 = vrot.lane.b32.xlu0 %v4595, 20
      %v9253 = vpop.permute.xlu0 %9252
      %9254 = vrot.lane.b32.xlu0 %v4598, 20
      %v9255 = vpop.permute.xlu0 %9254
      %9256 = vrot.lane.b32.xlu0 %v4600, 20
      %v9257 = vpop.permute.xlu0 %9256
      %9258 = vrot.lane.b32.xlu0 %v4603, 20
      %v9259 = vpop.permute.xlu0 %9258
      %9260 = vrot.lane.b32.xlu0 %v4605, 20
      %v9261 = vpop.permute.xlu0 %9260
      %9262 = vrot.lane.b32.xlu0 %v4608, 20
      %v9263 = vpop.permute.xlu0 %9262
      %9264 = vrot.lane.b32.xlu0 %v4610, 20
      %v9265 = vpop.permute.xlu0 %9264
      %9266 = vrot.lane.b32.xlu0 %v4613, 20
      %v9267 = vpop.permute.xlu0 %9266
      %9268 = vrot.lane.b32.xlu0 %v4615, 20
      %v9269 = vpop.permute.xlu0 %9268
      %9270 = vrot.lane.b32.xlu0 %v4618, 20
      %v9271 = vpop.permute.xlu0 %9270
      %9272 = vrot.lane.b32.xlu0 %v4620, 20
      %v9273 = vpop.permute.xlu0 %9272
      %9274 = vrot.lane.b32.xlu0 %v4623, 20
      %v9275 = vpop.permute.xlu0 %9274
      %9276 = vrot.lane.b32.xlu0 %v4625, 20
      %v9277 = vpop.permute.xlu0 %9276
      %9278 = vrot.lane.b32.xlu0 %v4628, 20
      %v9279 = vpop.permute.xlu0 %9278
      %9280 = vrot.lane.b32.xlu0 %v4630, 20
      %v9281 = vpop.permute.xlu0 %9280
      %9282 = vrot.lane.b32.xlu0 %v4633, 20
      %v9283 = vpop.permute.xlu0 %9282
      %9284 = vrot.lane.b32.xlu0 %v4635, 20
      %v9285 = vpop.permute.xlu0 %9284
      %9286 = vrot.lane.b32.xlu0 %v4638, 20
      %v9287 = vpop.permute.xlu0 %9286
      %9288 = vrot.lane.b32.xlu0 %v4640, 20
      %v9289 = vpop.permute.xlu0 %9288
      %9290 = vrot.lane.b32.xlu0 %v4643, 20
      %v9291 = vpop.permute.xlu0 %9290
      %9292 = vrot.lane.b32.xlu0 %v4645, 20
      %v9293 = vpop.permute.xlu0 %9292
      %9294 = vrot.lane.b32.xlu0 %v4648, 20
      %v9295 = vpop.permute.xlu0 %9294
      %9296 = vrot.lane.b32.xlu0 %v4650, 20
      %v9297 = vpop.permute.xlu0 %9296
      %9298 = vrot.lane.b32.xlu0 %v4653, 20
      %v9299 = vpop.permute.xlu0 %9298
      %9300 = vrot.lane.b32.xlu0 %v4655, 20
      %v9301 = vpop.permute.xlu0 %9300
      %9302 = vrot.lane.b32.xlu0 %v4658, 20
      %v9303 = vpop.permute.xlu0 %9302
      %9304 = vrot.lane.b32.xlu0 %v4660, 20
      %v9305 = vpop.permute.xlu0 %9304
      %9306 = vrot.lane.b32.xlu0 %v4663, 20
      %v9307 = vpop.permute.xlu0 %9306
      %9308 = vrot.lane.b32.xlu0 %v4665, 20
      %v9309 = vpop.permute.xlu0 %9308
      %9342 = vrot.lane.b32.xlu0 %v4894, 24
      %v9343 = vpop.permute.xlu0 %9342
      %9344 = vrot.lane.b32.xlu0 %v4895, 24
      %v9345 = vpop.permute.xlu0 %9344
      %9346 = vrot.lane.b32.xlu0 %v4896, 24
      %v9347 = vpop.permute.xlu0 %9346
      %9348 = vrot.lane.b32.xlu0 %v4897, 24
      %v9349 = vpop.permute.xlu0 %9348
      %9350 = vrot.lane.b32.xlu0 %v4898, 24
      %v9351 = vpop.permute.xlu0 %9350
      %9352 = vrot.lane.b32.xlu0 %v4899, 24
      %v9353 = vpop.permute.xlu0 %9352
      %9354 = vrot.lane.b32.xlu0 %v4900, 24
      %v9355 = vpop.permute.xlu0 %9354
      %9356 = vrot.lane.b32.xlu0 %v4901, 24
      %v9357 = vpop.permute.xlu0 %9356
      %9358 = vrot.lane.b32.xlu0 %v4902, 24
      %v9359 = vpop.permute.xlu0 %9358
      %9360 = vrot.lane.b32.xlu0 %v4903, 24
      %v9361 = vpop.permute.xlu0 %9360
      %9362 = vrot.lane.b32.xlu0 %v4904, 24
      %v9363 = vpop.permute.xlu0 %9362
      %9364 = vrot.lane.b32.xlu0 %v4905, 24
      %v9365 = vpop.permute.xlu0 %9364
      %9366 = vrot.lane.b32.xlu0 %v4906, 24
      %v9367 = vpop.permute.xlu0 %9366
      %9368 = vrot.lane.b32.xlu0 %v4907, 24
      %v9369 = vpop.permute.xlu0 %9368
      %9370 = vrot.lane.b32.xlu0 %v4908, 24
      %v9371 = vpop.permute.xlu0 %9370
      %9372 = vrot.lane.b32.xlu0 %v4909, 24
      %v9373 = vpop.permute.xlu0 %9372
      %9374 = vrot.lane.b32.xlu0 %v4910, 24
      %v9375 = vpop.permute.xlu0 %9374
      %9376 = vrot.lane.b32.xlu0 %v4911, 24
      %v9377 = vpop.permute.xlu0 %9376
      %9378 = vrot.lane.b32.xlu0 %v4912, 24
      %v9379 = vpop.permute.xlu0 %9378
      %9380 = vrot.lane.b32.xlu0 %v4913, 24
      %v9381 = vpop.permute.xlu0 %9380
      %9382 = vrot.lane.b32.xlu0 %v4914, 24
      %v9383 = vpop.permute.xlu0 %9382
      %9384 = vrot.lane.b32.xlu0 %v4915, 24
      %v9385 = vpop.permute.xlu0 %9384
      %9386 = vrot.lane.b32.xlu0 %v4916, 24
      %v9387 = vpop.permute.xlu0 %9386
      %9388 = vrot.lane.b32.xlu0 %v4917, 24
      %v9389 = vpop.permute.xlu0 %9388
      %9390 = vrot.lane.b32.xlu0 %v4918, 24
      %v9391 = vpop.permute.xlu0 %9390
      %9392 = vrot.lane.b32.xlu0 %v4919, 24
      %v9393 = vpop.permute.xlu0 %9392
      %9394 = vrot.lane.b32.xlu0 %v4920, 24
      %v9395 = vpop.permute.xlu0 %9394
      %9396 = vrot.lane.b32.xlu0 %v4921, 24
      %v9397 = vpop.permute.xlu0 %9396
      %9398 = vrot.lane.b32.xlu0 %v4922, 24
      %v9399 = vpop.permute.xlu0 %9398
      %9400 = vrot.lane.b32.xlu0 %v4923, 24
      %v9401 = vpop.permute.xlu0 %9400
      %9402 = vrot.lane.b32.xlu0 %v4924, 24
      %v9403 = vpop.permute.xlu0 %9402
      %9404 = vrot.lane.b32.xlu0 %v4925, 24
      %v9405 = vpop.permute.xlu0 %9404
      %9438 = vrot.lane.b32.xlu0 %v5136, 28
      %v9439 = vpop.permute.xlu0 %9438
      %9440 = vrot.lane.b32.xlu0 %v5138, 28
      %v9441 = vpop.permute.xlu0 %9440
      %9442 = vrot.lane.b32.xlu0 %v5141, 28
      %v9443 = vpop.permute.xlu0 %9442
      %9444 = vrot.lane.b32.xlu0 %v5143, 28
      %v9445 = vpop.permute.xlu0 %9444
      %9446 = vrot.lane.b32.xlu0 %v5146, 28
      %v9447 = vpop.permute.xlu0 %9446
      %9448 = vrot.lane.b32.xlu0 %v5148, 28
      %v9449 = vpop.permute.xlu0 %9448
      %9450 = vrot.lane.b32.xlu0 %v5151, 28
      %v9451 = vpop.permute.xlu0 %9450
      %9452 = vrot.lane.b32.xlu0 %v5153, 28
      %v9453 = vpop.permute.xlu0 %9452
      %9454 = vrot.lane.b32.xlu0 %v5156, 28
      %v9455 = vpop.permute.xlu0 %9454
      %9456 = vrot.lane.b32.xlu0 %v5158, 28
      %v9457 = vpop.permute.xlu0 %9456
      %9458 = vrot.lane.b32.xlu0 %v5161, 28
      %v9459 = vpop.permute.xlu0 %9458
      %9460 = vrot.lane.b32.xlu0 %v5163, 28
      %v9461 = vpop.permute.xlu0 %9460
      %9462 = vrot.lane.b32.xlu0 %v5166, 28
      %v9463 = vpop.permute.xlu0 %9462
      %9464 = vrot.lane.b32.xlu0 %v5168, 28
      %v9465 = vpop.permute.xlu0 %9464
      %9466 = vrot.lane.b32.xlu0 %v5171, 28
      %v9467 = vpop.permute.xlu0 %9466
      %9468 = vrot.lane.b32.xlu0 %v5173, 28
      %v9469 = vpop.permute.xlu0 %9468
      %9470 = vrot.lane.b32.xlu0 %v5176, 28
      %v9471 = vpop.permute.xlu0 %9470
      %9472 = vrot.lane.b32.xlu0 %v5178, 28
      %v9473 = vpop.permute.xlu0 %9472
      %9474 = vrot.lane.b32.xlu0 %v5181, 28
      %v9475 = vpop.permute.xlu0 %9474
      %9476 = vrot.lane.b32.xlu0 %v5183, 28
      %v9477 = vpop.permute.xlu0 %9476
      %9478 = vrot.lane.b32.xlu0 %v5186, 28
      %v9479 = vpop.permute.xlu0 %9478
      %9480 = vrot.lane.b32.xlu0 %v5188, 28
      %v9481 = vpop.permute.xlu0 %9480
      %9482 = vrot.lane.b32.xlu0 %v5191, 28
      %v9483 = vpop.permute.xlu0 %9482
      %9484 = vrot.lane.b32.xlu0 %v5193, 28
      %v9485 = vpop.permute.xlu0 %9484
      %9486 = vrot.lane.b32.xlu0 %v5196, 28
      %v9487 = vpop.permute.xlu0 %9486
      %9488 = vrot.lane.b32.xlu0 %v5198, 28
      %v9489 = vpop.permute.xlu0 %9488
      %9490 = vrot.lane.b32.xlu0 %v5201, 28
      %v9491 = vpop.permute.xlu0 %9490
      %9492 = vrot.lane.b32.xlu0 %v5203, 28
      %v9493 = vpop.permute.xlu0 %9492
      %9494 = vrot.lane.b32.xlu0 %v5206, 28
      %v9495 = vpop.permute.xlu0 %9494
      %9496 = vrot.lane.b32.xlu0 %v5208, 28
      %v9497 = vpop.permute.xlu0 %9496
      %9498 = vrot.lane.b32.xlu0 %v5211, 28
      %v9499 = vpop.permute.xlu0 %9498
      %9500 = vrot.lane.b32.xlu0 %v5213, 28
      %v9501 = vpop.permute.xlu0 %9500
      %v9534 = vsel %vm2539, %v3705, %v8959
      %v9535 = vsel %vm2539, %v3706, %v8961
      %v9536 = vsel %vm2539, %v3707, %v8963
      %v9537 = vsel %vm2539, %v3708, %v8965
      %v9538 = vsel %vm2539, %v3709, %v8967
      %v9539 = vsel %vm2539, %v3710, %v8969
      %v9540 = vsel %vm2539, %v3711, %v8971
      %v9541 = vsel %vm2539, %v3712, %v8973
      %v9542 = vsel %vm2539, %v3713, %v8975
      %v9543 = vsel %vm2539, %v3714, %v8977
      %v9544 = vsel %vm2539, %v3715, %v8979
      %v9545 = vsel %vm2539, %v3716, %v8981
      %v9546 = vsel %vm2539, %v3717, %v8983
      %v9547 = vsel %vm2539, %v3718, %v8985
      %v9548 = vsel %vm2539, %v3719, %v8987
      %v9549 = vsel %vm2539, %v3720, %v8989
      %v9550 = vsel %vm2539, %v3721, %v8991
      %v9551 = vsel %vm2539, %v3722, %v8993
      %v9552 = vsel %vm2539, %v3723, %v8995
      %v9553 = vsel %vm2539, %v3724, %v8997
      %v9554 = vsel %vm2539, %v3725, %v8999
      %v9555 = vsel %vm2539, %v3726, %v9001
      %v9556 = vsel %vm2539, %v3727, %v9003
      %v9557 = vsel %vm2539, %v3728, %v9005
      %v9558 = vsel %vm2539, %v3729, %v9007
      %v9559 = vsel %vm2539, %v3730, %v9009
      %v9560 = vsel %vm2539, %v3731, %v9011
      %v9561 = vsel %vm2539, %v3732, %v9013
      %v9562 = vsel %vm2539, %v3733, %v9015
      %v9563 = vsel %vm2539, %v3734, %v9017
      %v9564 = vsel %vm2539, %v3735, %v9019
      %v9565 = vsel %vm2539, %v3736, %v9021
      %v9566 = vsel %vm2572, %v9534, %v9055
      %v9567 = vsel %vm2572, %v9535, %v9057
      %v9568 = vsel %vm2572, %v9536, %v9059
      %v9569 = vsel %vm2572, %v9537, %v9061
      %v9570 = vsel %vm2572, %v9538, %v9063
      %v9571 = vsel %vm2572, %v9539, %v9065
      %v9572 = vsel %vm2572, %v9540, %v9067
      %v9573 = vsel %vm2572, %v9541, %v9069
      %v9574 = vsel %vm2572, %v9542, %v9071
      %v9575 = vsel %vm2572, %v9543, %v9073
      %v9576 = vsel %vm2572, %v9544, %v9075
      %v9577 = vsel %vm2572, %v9545, %v9077
      %v9578 = vsel %vm2572, %v9546, %v9079
      %v9579 = vsel %vm2572, %v9547, %v9081
      %v9580 = vsel %vm2572, %v9548, %v9083
      %v9581 = vsel %vm2572, %v9549, %v9085
      %v9582 = vsel %vm2572, %v9550, %v9087
      %v9583 = vsel %vm2572, %v9551, %v9089
      %v9584 = vsel %vm2572, %v9552, %v9091
      %v9585 = vsel %vm2572, %v9553, %v9093
      %v9586 = vsel %vm2572, %v9554, %v9095
      %v9587 = vsel %vm2572, %v9555, %v9097
      %v9588 = vsel %vm2572, %v9556, %v9099
      %v9589 = vsel %vm2572, %v9557, %v9101
      %v9590 = vsel %vm2572, %v9558, %v9103
      %v9591 = vsel %vm2572, %v9559, %v9105
      %v9592 = vsel %vm2572, %v9560, %v9107
      %v9593 = vsel %vm2572, %v9561, %v9109
      %v9594 = vsel %vm2572, %v9562, %v9111
      %v9595 = vsel %vm2572, %v9563, %v9113
      %v9596 = vsel %vm2572, %v9564, %v9115
      %v9597 = vsel %vm2572, %v9565, %v9117
      %v9598 = vsel %vm2605, %v9566, %v9151
      %v9599 = vsel %vm2605, %v9567, %v9153
      %v9600 = vsel %vm2605, %v9568, %v9155
      %v9601 = vsel %vm2605, %v9569, %v9157
      %v9602 = vsel %vm2605, %v9570, %v9159
      %v9603 = vsel %vm2605, %v9571, %v9161
      %v9604 = vsel %vm2605, %v9572, %v9163
      %v9605 = vsel %vm2605, %v9573, %v9165
      %v9606 = vsel %vm2605, %v9574, %v9167
      %v9607 = vsel %vm2605, %v9575, %v9169
      %v9608 = vsel %vm2605, %v9576, %v9171
      %v9609 = vsel %vm2605, %v9577, %v9173
      %v9610 = vsel %vm2605, %v9578, %v9175
      %v9611 = vsel %vm2605, %v9579, %v9177
      %v9612 = vsel %vm2605, %v9580, %v9179
      %v9613 = vsel %vm2605, %v9581, %v9181
      %v9614 = vsel %vm2605, %v9582, %v9183
      %v9615 = vsel %vm2605, %v9583, %v9185
      %v9616 = vsel %vm2605, %v9584, %v9187
      %v9617 = vsel %vm2605, %v9585, %v9189
      %v9618 = vsel %vm2605, %v9586, %v9191
      %v9619 = vsel %vm2605, %v9587, %v9193
      %v9620 = vsel %vm2605, %v9588, %v9195
      %v9621 = vsel %vm2605, %v9589, %v9197
      %v9622 = vsel %vm2605, %v9590, %v9199
      %v9623 = vsel %vm2605, %v9591, %v9201
      %v9624 = vsel %vm2605, %v9592, %v9203
      %v9625 = vsel %vm2605, %v9593, %v9205
      %v9626 = vsel %vm2605, %v9594, %v9207
      %v9627 = vsel %vm2605, %v9595, %v9209
      %v9628 = vsel %vm2605, %v9596, %v9211
      %v9629 = vsel %vm2605, %v9597, %v9213
      %v9630 = vsel %vm2638, %v9598, %v2060
      %v9631 = vsel %vm2638, %v9599, %v2062
      %v9632 = vsel %vm2638, %v9600, %v2064
      %v9633 = vsel %vm2638, %v9601, %v2066
      %v9634 = vsel %vm2638, %v9602, %v2068
      %v9635 = vsel %vm2638, %v9603, %v2070
      %v9636 = vsel %vm2638, %v9604, %v2072
      %v9637 = vsel %vm2638, %v9605, %v2074
      %v9638 = vsel %vm2638, %v9606, %v2076
      %v9639 = vsel %vm2638, %v9607, %v2078
      %v9640 = vsel %vm2638, %v9608, %v2080
      %v9641 = vsel %vm2638, %v9609, %v2082
      %v9642 = vsel %vm2638, %v9610, %v2084
      %v9643 = vsel %vm2638, %v9611, %v2086
      %v9644 = vsel %vm2638, %v9612, %v2088
      %v9645 = vsel %vm2638, %v9613, %v2090
      %v9646 = vsel %vm2638, %v9614, %v2092
      %v9647 = vsel %vm2638, %v9615, %v2094
      %v9648 = vsel %vm2638, %v9616, %v2096
      %v9649 = vsel %vm2638, %v9617, %v2098
      %v9650 = vsel %vm2638, %v9618, %v2100
      %v9651 = vsel %vm2638, %v9619, %v2102
      %v9652 = vsel %vm2638, %v9620, %v2104
      %v9653 = vsel %vm2638, %v9621, %v2106
      %v9654 = vsel %vm2638, %v9622, %v2108
      %v9655 = vsel %vm2638, %v9623, %v2110
      %v9656 = vsel %vm2638, %v9624, %v2112
      %v9657 = vsel %vm2638, %v9625, %v2114
      %v9658 = vsel %vm2638, %v9626, %v2116
      %v9659 = vsel %vm2638, %v9627, %v2118
      %v9660 = vsel %vm2638, %v9628, %v2120
      %v9661 = vsel %vm2638, %v9629, %v2122
      %v9662 = vsel %vm2671, %v9630, %v9247
      %v9663 = vsel %vm2671, %v9631, %v9249
      %v9664 = vsel %vm2671, %v9632, %v9251
      %v9665 = vsel %vm2671, %v9633, %v9253
      %v9666 = vsel %vm2671, %v9634, %v9255
      %v9667 = vsel %vm2671, %v9635, %v9257
      %v9668 = vsel %vm2671, %v9636, %v9259
      %v9669 = vsel %vm2671, %v9637, %v9261
      %v9670 = vsel %vm2671, %v9638, %v9263
      %v9671 = vsel %vm2671, %v9639, %v9265
      %v9672 = vsel %vm2671, %v9640, %v9267
      %v9673 = vsel %vm2671, %v9641, %v9269
      %v9674 = vsel %vm2671, %v9642, %v9271
      %v9675 = vsel %vm2671, %v9643, %v9273
      %v9676 = vsel %vm2671, %v9644, %v9275
      %v9677 = vsel %vm2671, %v9645, %v9277
      %v9678 = vsel %vm2671, %v9646, %v9279
      %v9679 = vsel %vm2671, %v9647, %v9281
      %v9680 = vsel %vm2671, %v9648, %v9283
      %v9681 = vsel %vm2671, %v9649, %v9285
      %v9682 = vsel %vm2671, %v9650, %v9287
      %v9683 = vsel %vm2671, %v9651, %v9289
      %v9684 = vsel %vm2671, %v9652, %v9291
      %v9685 = vsel %vm2671, %v9653, %v9293
      %v9686 = vsel %vm2671, %v9654, %v9295
      %v9687 = vsel %vm2671, %v9655, %v9297
      %v9688 = vsel %vm2671, %v9656, %v9299
      %v9689 = vsel %vm2671, %v9657, %v9301
      %v9690 = vsel %vm2671, %v9658, %v9303
      %v9691 = vsel %vm2671, %v9659, %v9305
      %v9692 = vsel %vm2671, %v9660, %v9307
      %v9693 = vsel %vm2671, %v9661, %v9309
      %v9694 = vsel %vm2704, %v9662, %v9343
      %v9695 = vsel %vm2704, %v9663, %v9345
      %v9696 = vsel %vm2704, %v9664, %v9347
      %v9697 = vsel %vm2704, %v9665, %v9349
      %v9698 = vsel %vm2704, %v9666, %v9351
      %v9699 = vsel %vm2704, %v9667, %v9353
      %v9700 = vsel %vm2704, %v9668, %v9355
      %v9701 = vsel %vm2704, %v9669, %v9357
      %v9702 = vsel %vm2704, %v9670, %v9359
      %v9703 = vsel %vm2704, %v9671, %v9361
      %v9704 = vsel %vm2704, %v9672, %v9363
      %v9705 = vsel %vm2704, %v9673, %v9365
      %v9706 = vsel %vm2704, %v9674, %v9367
      %v9707 = vsel %vm2704, %v9675, %v9369
      %v9708 = vsel %vm2704, %v9676, %v9371
      %v9709 = vsel %vm2704, %v9677, %v9373
      %v9710 = vsel %vm2704, %v9678, %v9375
      %v9711 = vsel %vm2704, %v9679, %v9377
      %v9712 = vsel %vm2704, %v9680, %v9379
      %v9713 = vsel %vm2704, %v9681, %v9381
      %v9714 = vsel %vm2704, %v9682, %v9383
      %v9715 = vsel %vm2704, %v9683, %v9385
      %v9716 = vsel %vm2704, %v9684, %v9387
      %v9717 = vsel %vm2704, %v9685, %v9389
      %v9718 = vsel %vm2704, %v9686, %v9391
      %v9719 = vsel %vm2704, %v9687, %v9393
      %v9720 = vsel %vm2704, %v9688, %v9395
      %v9721 = vsel %vm2704, %v9689, %v9397
      %v9722 = vsel %vm2704, %v9690, %v9399
      %v9723 = vsel %vm2704, %v9691, %v9401
      %v9724 = vsel %vm2704, %v9692, %v9403
      %v9725 = vsel %vm2704, %v9693, %v9405
      %v9726 = vsel %vm2737, %v9694, %v9439
      %v9727 = vsel %vm2737, %v9695, %v9441
      %v9728 = vsel %vm2737, %v9696, %v9443
      %v9729 = vsel %vm2737, %v9697, %v9445
      %v9730 = vsel %vm2737, %v9698, %v9447
      %v9731 = vsel %vm2737, %v9699, %v9449
      %v9732 = vsel %vm2737, %v9700, %v9451
      %v9733 = vsel %vm2737, %v9701, %v9453
      %v9734 = vsel %vm2737, %v9702, %v9455
      %v9735 = vsel %vm2737, %v9703, %v9457
      %v9736 = vsel %vm2737, %v9704, %v9459
      %v9737 = vsel %vm2737, %v9705, %v9461
      %v9738 = vsel %vm2737, %v9706, %v9463
      %v9739 = vsel %vm2737, %v9707, %v9465
      %v9740 = vsel %vm2737, %v9708, %v9467
      %v9741 = vsel %vm2737, %v9709, %v9469
      %v9742 = vsel %vm2737, %v9710, %v9471
      %v9743 = vsel %vm2737, %v9711, %v9473
      %v9744 = vsel %vm2737, %v9712, %v9475
      %v9745 = vsel %vm2737, %v9713, %v9477
      %v9746 = vsel %vm2737, %v9714, %v9479
      %v9747 = vsel %vm2737, %v9715, %v9481
      %v9748 = vsel %vm2737, %v9716, %v9483
      %v9749 = vsel %vm2737, %v9717, %v9485
      %v9750 = vsel %vm2737, %v9718, %v9487
      %v9751 = vsel %vm2737, %v9719, %v9489
      %v9752 = vsel %vm2737, %v9720, %v9491
      %v9753 = vsel %vm2737, %v9721, %v9493
      %v9754 = vsel %vm2737, %v9722, %v9495
      %v9755 = vsel %vm2737, %v9723, %v9497
      %v9756 = vsel %vm2737, %v9724, %v9499
      %v9757 = vsel %vm2737, %v9725, %v9501
      %v9758 = vsel %vm2770, %v9726, %v8165
      %v9759 = vsel %vm2770, %v9727, %v8167
      %v9760 = vsel %vm2770, %v9728, %v8169
      %v9761 = vsel %vm2770, %v9729, %v8171
      %v9762 = vsel %vm2770, %v9730, %v8173
      %v9763 = vsel %vm2770, %v9731, %v8175
      %v9764 = vsel %vm2770, %v9732, %v8177
      %v9765 = vsel %vm2770, %v9733, %v8179
      %v9766 = vsel %vm2770, %v9734, %v8181
      %v9767 = vsel %vm2770, %v9735, %v8183
      %v9768 = vsel %vm2770, %v9736, %v8185
      %v9769 = vsel %vm2770, %v9737, %v8187
      %v9770 = vsel %vm2770, %v9738, %v8189
      %v9771 = vsel %vm2770, %v9739, %v8191
      %v9772 = vsel %vm2770, %v9740, %v8193
      %v9773 = vsel %vm2770, %v9741, %v8195
      %v9774 = vsel %vm2770, %v9742, %v8197
      %v9775 = vsel %vm2770, %v9743, %v8199
      %v9776 = vsel %vm2770, %v9744, %v8201
      %v9777 = vsel %vm2770, %v9745, %v8203
      %v9778 = vsel %vm2770, %v9746, %v8205
      %v9779 = vsel %vm2770, %v9747, %v8207
      %v9780 = vsel %vm2770, %v9748, %v8209
      %v9781 = vsel %vm2770, %v9749, %v8211
      %v9782 = vsel %vm2770, %v9750, %v8213
      %v9783 = vsel %vm2770, %v9751, %v8215
      %v9784 = vsel %vm2770, %v9752, %v8217
      %v9785 = vsel %vm2770, %v9753, %v8219
      %v9786 = vsel %vm2770, %v9754, %v8221
      %v9787 = vsel %vm2770, %v9755, %v8223
      %v9788 = vsel %vm2770, %v9756, %v8225
      %v9789 = vsel %vm2770, %v9757, %v8227
      %v9790 = vpack.c.bf16 %v9759, %v9758
      %v9791 = vpack.c.bf16 %v9761, %v9760
      %v9792 = vpack.c.bf16 %v9763, %v9762
      %v9793 = vpack.c.bf16 %v9765, %v9764
      %v9794 = vpack.c.bf16 %v9767, %v9766
      %v9795 = vpack.c.bf16 %v9769, %v9768
      %v9796 = vpack.c.bf16 %v9771, %v9770
      %v9797 = vpack.c.bf16 %v9773, %v9772
      %v9798 = vpack.c.bf16 %v9775, %v9774
      %v9799 = vpack.c.bf16 %v9777, %v9776
      %v9800 = vpack.c.bf16 %v9779, %v9778
      %v9801 = vpack.c.bf16 %v9781, %v9780
      %v9802 = vpack.c.bf16 %v9783, %v9782
      %v9803 = vpack.c.bf16 %v9785, %v9784
      %v9804 = vpack.c.bf16 %v9787, %v9786
      %v9805 = vpack.c.bf16 %v9789, %v9788
      %v9806 = vld [vmem:[%s4] sm:$0xf]
      %v9807 = vld [vmem:[%s4 + $0x4] sm:$0xf]
      %v9808 = vld [vmem:[%s4 + $0x8] sm:$0xf]
      %v9809 = vld [vmem:[%s4 + $0xc] sm:$0xf]
      %v9810 = vld [vmem:[%s4 + $0x10] sm:$0x3]
      %v9816 = vunpack.c.l.b16 %v9806
      %v9817 = vunpack.c.l.b16 %v9807
      %v9818 = vunpack.c.l.b16 %v9808
      %v9819 = vunpack.c.l.b16 %v9809
      %v9820 = vunpack.c.l.b16 %v9810
      %v9821 = vpack.c.b16 %v9817, %v9816
      %v9822 = vpack.c.b16 %v9819, %v9818
      %v9823 = vpack.c.b16 %v9820, %v9820
      %v9827 = vsel %vm2839, %v9790, 0
      %v9830 = vsel %vm2839, %v9791, 0
      %v9833 = vsel %vm2839, %v9792, 0
      %v9836 = vsel %vm2839, %v9793, 0
      %v9839 = vsel %vm2839, %v9794, 0
      %v9842 = vsel %vm2839, %v9795, 0
      %v9845 = vsel %vm2839, %v9796, 0
      %v9848 = vsel %vm2839, %v9797, 0
      %v9851 = vsel %vm2839, %v9798, 0
      %v9854 = vsel %vm2839, %v9799, 0
      %v9857 = vsel %vm2839, %v9800, 0
      %v9860 = vsel %vm2839, %v9801, 0
      %v9863 = vsel %vm2839, %v9802, 0
      %v9866 = vsel %vm2839, %v9803, 0
      %v9869 = vsel %vm2839, %v9804, 0
      %v9872 = vsel %vm2839, %v9805, 0
      %v9875 = vsel %vm2888, %v9823, 0
      %9877 = vmatprep.subr.bf16.mxu0 0
      %9878 = vmatpush1.bf16.msra.mxu0 %v9821
      %9879 = vmatprep.subr.bf16.mxu0 0
      %9880 = vmatpush1.bf16.msra.mxu0 %v9822
      %9881 = vmatprep.subr.bf16.mxu0 0
      %9882 = vmatpush1.bf16.msra.mxu0 %v9875
      %9883 = vmatprep.subr.bf16.mxu0 0
      %9884 = vmatpush1.bf16.msra.mxu0 0
      %9885 = vmatprep.subr.bf16.mxu0 0
      %9886 = vmatpush1.bf16.msra.mxu0 0
      %9887 = vmatprep.subr.bf16.mxu0 0
      %9888 = vmatpush1.bf16.msra.mxu0 0
      %9889 = vmatprep.subr.bf16.mxu0 0
      %9890 = vmatpush1.bf16.msra.mxu0 0
      %9891 = vmatprep.subr.bf16.mxu0 0
      %9892 = vmatpush1.bf16.msra.mxu0 0
      %9893 = vmatprep.subr.bf16.mxu0 0
      %9894 = vmatpush1.bf16.msra.mxu0 0
      %9895 = vmatprep.subr.bf16.mxu0 0
      %9896 = vmatpush1.bf16.msra.mxu0 0
      %9897 = vmatprep.subr.bf16.mxu0 0
      %9898 = vmatpush1.bf16.msra.mxu0 0
      %9899 = vmatprep.subr.bf16.mxu0 0
      %9900 = vmatpush1.bf16.msra.mxu0 0
      %9901 = vmatprep.subr.bf16.mxu0 0
      %9902 = vmatpush1.bf16.msra.mxu0 0
      %9903 = vmatprep.subr.bf16.mxu0 0
      %9904 = vmatpush1.bf16.msra.mxu0 0
      %9905 = vmatprep.subr.bf16.mxu0 0
      %9906 = vmatpush1.bf16.msra.mxu0 0
      %9907 = vmatprep.subr.bf16.mxu0 0
      %9908 = vmatpush1.bf16.msra.mxu0 0
      %9909 = vmatprep.mubr.bf16.mxu0 0
      %9910 = vmatmul.mubr.bf16.gmra.mrb[0].mxu0 %v9827
      %v9911 = vpop.f32.mrb[0].mxu0
      %v9912 = vadd.f32 0.0, %v9911
      %v9913 = vpop.f32.mrb[0].mxu0
      %v9914 = vpop.f32.mrb[0].mxu0
      %v9915 = vadd.f32 0.0, %v9914
      %v9916 = vpop.f32.mrb[0].mxu0
      %9917 = vmatprep.mubr.bf16.mxu0 0
      %9918 = vmatmul.mubr.bf16.gmra.mrb[0].mxu0 %v9830
      %v9919 = vpop.f32.mrb[0].mxu0
      %v9920 = vadd.f32 0.0, %v9919
      %v9921 = vpop.f32.mrb[0].mxu0
      %v9922 = vpop.f32.mrb[0].mxu0
      %v9923 = vadd.f32 0.0, %v9922
      %v9924 = vpop.f32.mrb[0].mxu0
      %9925 = vmatprep.mubr.bf16.mxu0 0
      %9926 = vmatmul.mubr.bf16.gmra.mrb[0].mxu0 %v9833
      %v9927 = vpop.f32.mrb[0].mxu0
      %v9928 = vadd.f32 0.0, %v9927
      %v9929 = vpop.f32.mrb[0].mxu0
      %v9930 = vpop.f32.mrb[0].mxu0
      %v9931 = vadd.f32 0.0, %v9930
      %v9932 = vpop.f32.mrb[0].mxu0
      %9933 = vmatprep.mubr.bf16.mxu0 0
      %9934 = vmatmul.mubr.bf16.gmra.mrb[0].mxu0 %v9836
      %v9935 = vpop.f32.mrb[0].mxu0
      %v9936 = vadd.f32 0.0, %v9935
      %v9937 = vpop.f32.mrb[0].mxu0
      %v9938 = vpop.f32.mrb[0].mxu0
      %v9939 = vadd.f32 0.0, %v9938
      %v9940 = vpop.f32.mrb[0].mxu0
      %9941 = vmatprep.mubr.bf16.mxu0 0
      %9942 = vmatmul.mubr.bf16.gmra.mrb[0].mxu0 %v9839
      %v9943 = vpop.f32.mrb[0].mxu0
      %v9944 = vadd.f32 0.0, %v9943
      %v9945 = vpop.f32.mrb[0].mxu0
      %v9946 = vpop.f32.mrb[0].mxu0
      %v9947 = vadd.f32 0.0, %v9946
      %v9948 = vpop.f32.mrb[0].mxu0
      %9949 = vmatprep.mubr.bf16.mxu0 0
      %9950 = vmatmul.mubr.bf16.gmra.mrb[0].mxu0 %v9842
      %v9951 = vpop.f32.mrb[0].mxu0
      %v9952 = vadd.f32 0.0, %v9951
      %v9953 = vpop.f32.mrb[0].mxu0
      %v9954 = vpop.f32.mrb[0].mxu0
      %v9955 = vadd.f32 0.0, %v9954
      %v9956 = vpop.f32.mrb[0].mxu0
      %9957 = vmatprep.mubr.bf16.mxu0 0
      %9958 = vmatmul.mubr.bf16.gmra.mrb[0].mxu0 %v9845
      %v9959 = vpop.f32.mrb[0].mxu0
      %v9960 = vadd.f32 0.0, %v9959
      %v9961 = vpop.f32.mrb[0].mxu0
      %v9962 = vpop.f32.mrb[0].mxu0
      %v9963 = vadd.f32 0.0, %v9962
      %v9964 = vpop.f32.mrb[0].mxu0
      %9965 = vmatprep.mubr.bf16.mxu0 0
      %9966 = vmatmul.mubr.bf16.gmra.mrb[0].mxu0 %v9848
      %v9967 = vpop.f32.mrb[0].mxu0
      %v9968 = vadd.f32 0.0, %v9967
      %v9969 = vpop.f32.mrb[0].mxu0
      %v9970 = vpop.f32.mrb[0].mxu0
      %v9971 = vadd.f32 0.0, %v9970
      %v9972 = vpop.f32.mrb[0].mxu0
      %9973 = vmatprep.mubr.bf16.mxu0 0
      %9974 = vmatmul.mubr.bf16.gmra.mrb[0].mxu0 %v9851
      %v9975 = vpop.f32.mrb[0].mxu0
      %v9976 = vadd.f32 0.0, %v9975
      %v9977 = vpop.f32.mrb[0].mxu0
      %v9978 = vpop.f32.mrb[0].mxu0
      %v9979 = vadd.f32 0.0, %v9978
      %v9980 = vpop.f32.mrb[0].mxu0
      %9981 = vmatprep.mubr.bf16.mxu0 0
      %9982 = vmatmul.mubr.bf16.gmra.mrb[0].mxu0 %v9854
      %v9983 = vpop.f32.mrb[0].mxu0
      %v9984 = vadd.f32 0.0, %v9983
      %v9985 = vpop.f32.mrb[0].mxu0
      %v9986 = vpop.f32.mrb[0].mxu0
      %v9987 = vadd.f32 0.0, %v9986
      %v9988 = vpop.f32.mrb[0].mxu0
      %9989 = vmatprep.mubr.bf16.mxu0 0
      %9990 = vmatmul.mubr.bf16.gmra.mrb[0].mxu0 %v9857
      %v9991 = vpop.f32.mrb[0].mxu0
      %v9992 = vadd.f32 0.0, %v9991
      %v9993 = vpop.f32.mrb[0].mxu0
      %v9994 = vpop.f32.mrb[0].mxu0
      %v9995 = vadd.f32 0.0, %v9994
      %v9996 = vpop.f32.mrb[0].mxu0
      %9997 = vmatprep.mubr.bf16.mxu0 0
      %9998 = vmatmul.mubr.bf16.gmra.mrb[0].mxu0 %v9860
      %v9999 = vpop.f32.mrb[0].mxu0
      %v10000 = vadd.f32 0.0, %v9999
      %v10001 = vpop.f32.mrb[0].mxu0
      %v10002 = vpop.f32.mrb[0].mxu0
      %v10003 = vadd.f32 0.0, %v10002
      %v10004 = vpop.f32.mrb[0].mxu0
      %10005 = vmatprep.mubr.bf16.mxu0 0
      %10006 = vmatmul.mubr.bf16.gmra.mrb[0].mxu0 %v9863
      %v10007 = vpop.f32.mrb[0].mxu0
      %v10008 = vadd.f32 0.0, %v10007
      %v10009 = vpop.f32.mrb[0].mxu0
      %v10010 = vpop.f32.mrb[0].mxu0
      %v10011 = vadd.f32 0.0, %v10010
      %v10012 = vpop.f32.mrb[0].mxu0
      %10013 = vmatprep.mubr.bf16.mxu0 0
      %10014 = vmatmul.mubr.bf16.gmra.mrb[0].mxu0 %v9866
      %v10015 = vpop.f32.mrb[0].mxu0
      %v10016 = vadd.f32 0.0, %v10015
      %v10017 = vpop.f32.mrb[0].mxu0
      %v10018 = vpop.f32.mrb[0].mxu0
      %v10019 = vadd.f32 0.0, %v10018
      %v10020 = vpop.f32.mrb[0].mxu0
      %10021 = vmatprep.mubr.bf16.mxu0 0
      %10022 = vmatmul.mubr.bf16.gmra.mrb[0].mxu0 %v9869
      %v10023 = vpop.f32.mrb[0].mxu0
      %v10024 = vadd.f32 0.0, %v10023
      %v10025 = vpop.f32.mrb[0].mxu0
      %v10026 = vpop.f32.mrb[0].mxu0
      %v10027 = vadd.f32 0.0, %v10026
      %v10028 = vpop.f32.mrb[0].mxu0
      %10029 = vmatprep.mubr.bf16.mxu0 0
      %10030 = vmatmul.mubr.bf16.gmra.mrb[0].mxu0 %v9872
      %v10031 = vpop.f32.mrb[0].mxu0
      %v10032 = vadd.f32 0.0, %v10031
      %v10033 = vpop.f32.mrb[0].mxu0
      %v10034 = vpop.f32.mrb[0].mxu0
      %v10035 = vadd.f32 0.0, %v10034
      %v10036 = vpop.f32.mrb[0].mxu0
      %10037 = vdwg.mxu0
      %10070 = vrot.lane.b32.xlu0 %v3544, 4
      %v10071 = vpop.permute.xlu0 %10070
      %10072 = vrot.lane.b32.xlu0 %v3547, 4
      %v10073 = vpop.permute.xlu0 %10072
      %10074 = vrot.lane.b32.xlu0 %v3552, 4
      %v10075 = vpop.permute.xlu0 %10074
      %10076 = vrot.lane.b32.xlu0 %v3555, 4
      %v10077 = vpop.permute.xlu0 %10076
      %10078 = vrot.lane.b32.xlu0 %v3560, 4
      %v10079 = vpop.permute.xlu0 %10078
      %10080 = vrot.lane.b32.xlu0 %v3563, 4
      %v10081 = vpop.permute.xlu0 %10080
      %10082 = vrot.lane.b32.xlu0 %v3568, 4
      %v10083 = vpop.permute.xlu0 %10082
      %10084 = vrot.lane.b32.xlu0 %v3571, 4
      %v10085 = vpop.permute.xlu0 %10084
      %10086 = vrot.lane.b32.xlu0 %v3576, 4
      %v10087 = vpop.permute.xlu0 %10086
      %10088 = vrot.lane.b32.xlu0 %v3579, 4
      %v10089 = vpop.permute.xlu0 %10088
      %10090 = vrot.lane.b32.xlu0 %v3584, 4
      %v10091 = vpop.permute.xlu0 %10090
      %10092 = vrot.lane.b32.xlu0 %v3587, 4
      %v10093 = vpop.permute.xlu0 %10092
      %10094 = vrot.lane.b32.xlu0 %v3592, 4
      %v10095 = vpop.permute.xlu0 %10094
      %10096 = vrot.lane.b32.xlu0 %v3595, 4
      %v10097 = vpop.permute.xlu0 %10096
      %10098 = vrot.lane.b32.xlu0 %v3600, 4
      %v10099 = vpop.permute.xlu0 %10098
      %10100 = vrot.lane.b32.xlu0 %v3603, 4
      %v10101 = vpop.permute.xlu0 %10100
      %10102 = vrot.lane.b32.xlu0 %v3608, 4
      %v10103 = vpop.permute.xlu0 %10102
      %10104 = vrot.lane.b32.xlu0 %v3611, 4
      %v10105 = vpop.permute.xlu0 %10104
      %10106 = vrot.lane.b32.xlu0 %v3616, 4
      %v10107 = vpop.permute.xlu0 %10106
      %10108 = vrot.lane.b32.xlu0 %v3619, 4
      %v10109 = vpop.permute.xlu0 %10108
      %10110 = vrot.lane.b32.xlu0 %v3624, 4
      %v10111 = vpop.permute.xlu0 %10110
      %10112 = vrot.lane.b32.xlu0 %v3627, 4
      %v10113 = vpop.permute.xlu0 %10112
      %10114 = vrot.lane.b32.xlu0 %v3632, 4
      %v10115 = vpop.permute.xlu0 %10114
      %10116 = vrot.lane.b32.xlu0 %v3635, 4
      %v10117 = vpop.permute.xlu0 %10116
      %10118 = vrot.lane.b32.xlu0 %v3640, 4
      %v10119 = vpop.permute.xlu0 %10118
      %10120 = vrot.lane.b32.xlu0 %v3643, 4
      %v10121 = vpop.permute.xlu0 %10120
      %10122 = vrot.lane.b32.xlu0 %v3648, 4
      %v10123 = vpop.permute.xlu0 %10122
      %10124 = vrot.lane.b32.xlu0 %v3651, 4
      %v10125 = vpop.permute.xlu0 %10124
      %10126 = vrot.lane.b32.xlu0 %v3656, 4
      %v10127 = vpop.permute.xlu0 %10126
      %10128 = vrot.lane.b32.xlu0 %v3659, 4
      %v10129 = vpop.permute.xlu0 %10128
      %10130 = vrot.lane.b32.xlu0 %v3664, 4
      %v10131 = vpop.permute.xlu0 %10130
      %10132 = vrot.lane.b32.xlu0 %v3667, 4
      %v10133 = vpop.permute.xlu0 %10132
      %10198 = vrot.lane.b32.xlu0 %v8832, 8
      %v10199 = vpop.permute.xlu0 %10198
      %10200 = vrot.lane.b32.xlu0 %v8835, 8
      %v10201 = vpop.permute.xlu0 %10200
      %10202 = vrot.lane.b32.xlu0 %v8840, 8
      %v10203 = vpop.permute.xlu0 %10202
      %10204 = vrot.lane.b32.xlu0 %v8843, 8
      %v10205 = vpop.permute.xlu0 %10204
      %10206 = vrot.lane.b32.xlu0 %v8848, 8
      %v10207 = vpop.permute.xlu0 %10206
      %10208 = vrot.lane.b32.xlu0 %v8851, 8
      %v10209 = vpop.permute.xlu0 %10208
      %10210 = vrot.lane.b32.xlu0 %v8856, 8
      %v10211 = vpop.permute.xlu0 %10210
      %10212 = vrot.lane.b32.xlu0 %v8859, 8
      %v10213 = vpop.permute.xlu0 %10212
      %10214 = vrot.lane.b32.xlu0 %v8864, 8
      %v10215 = vpop.permute.xlu0 %10214
      %10216 = vrot.lane.b32.xlu0 %v8867, 8
      %v10217 = vpop.permute.xlu0 %10216
      %10218 = vrot.lane.b32.xlu0 %v8872, 8
      %v10219 = vpop.permute.xlu0 %10218
      %10220 = vrot.lane.b32.xlu0 %v8875, 8
      %v10221 = vpop.permute.xlu0 %10220
      %10222 = vrot.lane.b32.xlu0 %v8880, 8
      %v10223 = vpop.permute.xlu0 %10222
      %10224 = vrot.lane.b32.xlu0 %v8883, 8
      %v10225 = vpop.permute.xlu0 %10224
      %10226 = vrot.lane.b32.xlu0 %v8888, 8
      %v10227 = vpop.permute.xlu0 %10226
      %10228 = vrot.lane.b32.xlu0 %v8891, 8
      %v10229 = vpop.permute.xlu0 %10228
      %10230 = vrot.lane.b32.xlu0 %v8896, 8
      %v10231 = vpop.permute.xlu0 %10230
      %10232 = vrot.lane.b32.xlu0 %v8899, 8
      %v10233 = vpop.permute.xlu0 %10232
      %10234 = vrot.lane.b32.xlu0 %v8904, 8
      %v10235 = vpop.permute.xlu0 %10234
      %10236 = vrot.lane.b32.xlu0 %v8907, 8
      %v10237 = vpop.permute.xlu0 %10236
      %10238 = vrot.lane.b32.xlu0 %v8912, 8
      %v10239 = vpop.permute.xlu0 %10238
      %10240 = vrot.lane.b32.xlu0 %v8915, 8
      %v10241 = vpop.permute.xlu0 %10240
      %10242 = vrot.lane.b32.xlu0 %v8920, 8
      %v10243 = vpop.permute.xlu0 %10242
      %10244 = vrot.lane.b32.xlu0 %v8923, 8
      %v10245 = vpop.permute.xlu0 %10244
      %10246 = vrot.lane.b32.xlu0 %v8928, 8
      %v10247 = vpop.permute.xlu0 %10246
      %10248 = vrot.lane.b32.xlu0 %v8931, 8
      %v10249 = vpop.permute.xlu0 %10248
      %10250 = vrot.lane.b32.xlu0 %v8936, 8
      %v10251 = vpop.permute.xlu0 %10250
      %10252 = vrot.lane.b32.xlu0 %v8939, 8
      %v10253 = vpop.permute.xlu0 %10252
      %10254 = vrot.lane.b32.xlu0 %v8944, 8
      %v10255 = vpop.permute.xlu0 %10254
      %10256 = vrot.lane.b32.xlu0 %v8947, 8
      %v10257 = vpop.permute.xlu0 %10256
      %10258 = vrot.lane.b32.xlu0 %v8952, 8
      %v10259 = vpop.permute.xlu0 %10258
      %10260 = vrot.lane.b32.xlu0 %v8955, 8
      %v10261 = vpop.permute.xlu0 %10260
      %10326 = vrot.lane.b32.xlu0 %v9912, 12
      %v10327 = vpop.permute.xlu0 %10326
      %10328 = vrot.lane.b32.xlu0 %v9915, 12
      %v10329 = vpop.permute.xlu0 %10328
      %10330 = vrot.lane.b32.xlu0 %v9920, 12
      %v10331 = vpop.permute.xlu0 %10330
      %10332 = vrot.lane.b32.xlu0 %v9923, 12
      %v10333 = vpop.permute.xlu0 %10332
      %10334 = vrot.lane.b32.xlu0 %v9928, 12
      %v10335 = vpop.permute.xlu0 %10334
      %10336 = vrot.lane.b32.xlu0 %v9931, 12
      %v10337 = vpop.permute.xlu0 %10336
      %10338 = vrot.lane.b32.xlu0 %v9936, 12
      %v10339 = vpop.permute.xlu0 %10338
      %10340 = vrot.lane.b32.xlu0 %v9939, 12
      %v10341 = vpop.permute.xlu0 %10340
      %10342 = vrot.lane.b32.xlu0 %v9944, 12
      %v10343 = vpop.permute.xlu0 %10342
      %10344 = vrot.lane.b32.xlu0 %v9947, 12
      %v10345 = vpop.permute.xlu0 %10344
      %10346 = vrot.lane.b32.xlu0 %v9952, 12
      %v10347 = vpop.permute.xlu0 %10346
      %10348 = vrot.lane.b32.xlu0 %v9955, 12
      %v10349 = vpop.permute.xlu0 %10348
      %10350 = vrot.lane.b32.xlu0 %v9960, 12
      %v10351 = vpop.permute.xlu0 %10350
      %10352 = vrot.lane.b32.xlu0 %v9963, 12
      %v10353 = vpop.permute.xlu0 %10352
      %10354 = vrot.lane.b32.xlu0 %v9968, 12
      %v10355 = vpop.permute.xlu0 %10354
      %10356 = vrot.lane.b32.xlu0 %v9971, 12
      %v10357 = vpop.permute.xlu0 %10356
      %10358 = vrot.lane.b32.xlu0 %v9976, 12
      %v10359 = vpop.permute.xlu0 %10358
      %10360 = vrot.lane.b32.xlu0 %v9979, 12
      %v10361 = vpop.permute.xlu0 %10360
      %10362 = vrot.lane.b32.xlu0 %v9984, 12
      %v10363 = vpop.permute.xlu0 %10362
      %10364 = vrot.lane.b32.xlu0 %v9987, 12
      %v10365 = vpop.permute.xlu0 %10364
      %10366 = vrot.lane.b32.xlu0 %v9992, 12
      %v10367 = vpop.permute.xlu0 %10366
      %10368 = vrot.lane.b32.xlu0 %v9995, 12
      %v10369 = vpop.permute.xlu0 %10368
      %10370 = vrot.lane.b32.xlu0 %v10000, 12
      %v10371 = vpop.permute.xlu0 %10370
      %10372 = vrot.lane.b32.xlu0 %v10003, 12
      %v10373 = vpop.permute.xlu0 %10372
      %10374 = vrot.lane.b32.xlu0 %v10008, 12
      %v10375 = vpop.permute.xlu0 %10374
      %10376 = vrot.lane.b32.xlu0 %v10011, 12
      %v10377 = vpop.permute.xlu0 %10376
      %10378 = vrot.lane.b32.xlu0 %v10016, 12
      %v10379 = vpop.permute.xlu0 %10378
      %10380 = vrot.lane.b32.xlu0 %v10019, 12
      %v10381 = vpop.permute.xlu0 %10380
      %10382 = vrot.lane.b32.xlu0 %v10024, 12
      %v10383 = vpop.permute.xlu0 %10382
      %10384 = vrot.lane.b32.xlu0 %v10027, 12
      %v10385 = vpop.permute.xlu0 %10384
      %10386 = vrot.lane.b32.xlu0 %v10032, 12
      %v10387 = vpop.permute.xlu0 %10386
      %10388 = vrot.lane.b32.xlu0 %v10035, 12
      %v10389 = vpop.permute.xlu0 %10388
      %v10422 = vsel %vm2539, %v2927, %v10071
      %v10423 = vsel %vm2539, %v2930, %v10073
      %v10424 = vsel %vm2539, %v2935, %v10075
      %v10425 = vsel %vm2539, %v2938, %v10077
      %v10426 = vsel %vm2539, %v2943, %v10079
      %v10427 = vsel %vm2539, %v2946, %v10081
      %v10428 = vsel %vm2539, %v2951, %v10083
      %v10429 = vsel %vm2539, %v2954, %v10085
      %v10430 = vsel %vm2539, %v2959, %v10087
      %v10431 = vsel %vm2539, %v2962, %v10089
      %v10432 = vsel %vm2539, %v2967, %v10091
      %v10433 = vsel %vm2539, %v2970, %v10093
      %v10434 = vsel %vm2539, %v2975, %v10095
      %v10435 = vsel %vm2539, %v2978, %v10097
      %v10436 = vsel %vm2539, %v2983, %v10099
      %v10437 = vsel %vm2539, %v2986, %v10101
      %v10438 = vsel %vm2539, %v2991, %v10103
      %v10439 = vsel %vm2539, %v2994, %v10105
      %v10440 = vsel %vm2539, %v2999, %v10107
      %v10441 = vsel %vm2539, %v3002, %v10109
      %v10442 = vsel %vm2539, %v3007, %v10111
      %v10443 = vsel %vm2539, %v3010, %v10113
      %v10444 = vsel %vm2539, %v3015, %v10115
      %v10445 = vsel %vm2539, %v3018, %v10117
      %v10446 = vsel %vm2539, %v3023, %v10119
      %v10447 = vsel %vm2539, %v3026, %v10121
      %v10448 = vsel %vm2539, %v3031, %v10123
      %v10449 = vsel %vm2539, %v3034, %v10125
      %v10450 = vsel %vm2539, %v3039, %v10127
      %v10451 = vsel %vm2539, %v3042, %v10129
      %v10452 = vsel %vm2539, %v3047, %v10131
      %v10453 = vsel %vm2539, %v3050, %v10133
      %v10454 = vsel %vm2572, %v10422, %v10199
      %v10455 = vsel %vm2572, %v10423, %v10201
      %v10456 = vsel %vm2572, %v10424, %v10203
      %v10457 = vsel %vm2572, %v10425, %v10205
      %v10458 = vsel %vm2572, %v10426, %v10207
      %v10459 = vsel %vm2572, %v10427, %v10209
      %v10460 = vsel %vm2572, %v10428, %v10211
      %v10461 = vsel %vm2572, %v10429, %v10213
      %v10462 = vsel %vm2572, %v10430, %v10215
      %v10463 = vsel %vm2572, %v10431, %v10217
      %v10464 = vsel %vm2572, %v10432, %v10219
      %v10465 = vsel %vm2572, %v10433, %v10221
      %v10466 = vsel %vm2572, %v10434, %v10223
      %v10467 = vsel %vm2572, %v10435, %v10225
      %v10468 = vsel %vm2572, %v10436, %v10227
      %v10469 = vsel %vm2572, %v10437, %v10229
      %v10470 = vsel %vm2572, %v10438, %v10231
      %v10471 = vsel %vm2572, %v10439, %v10233
      %v10472 = vsel %vm2572, %v10440, %v10235
      %v10473 = vsel %vm2572, %v10441, %v10237
      %v10474 = vsel %vm2572, %v10442, %v10239
      %v10475 = vsel %vm2572, %v10443, %v10241
      %v10476 = vsel %vm2572, %v10444, %v10243
      %v10477 = vsel %vm2572, %v10445, %v10245
      %v10478 = vsel %vm2572, %v10446, %v10247
      %v10479 = vsel %vm2572, %v10447, %v10249
      %v10480 = vsel %vm2572, %v10448, %v10251
      %v10481 = vsel %vm2572, %v10449, %v10253
      %v10482 = vsel %vm2572, %v10450, %v10255
      %v10483 = vsel %vm2572, %v10451, %v10257
      %v10484 = vsel %vm2572, %v10452, %v10259
      %v10485 = vsel %vm2572, %v10453, %v10261
      %v10486 = vsel %vm2605, %v10454, %v10327
      %v10487 = vsel %vm2605, %v10455, %v10329
      %v10488 = vsel %vm2605, %v10456, %v10331
      %v10489 = vsel %vm2605, %v10457, %v10333
      %v10490 = vsel %vm2605, %v10458, %v10335
      %v10491 = vsel %vm2605, %v10459, %v10337
      %v10492 = vsel %vm2605, %v10460, %v10339
      %v10493 = vsel %vm2605, %v10461, %v10341
      %v10494 = vsel %vm2605, %v10462, %v10343
      %v10495 = vsel %vm2605, %v10463, %v10345
      %v10496 = vsel %vm2605, %v10464, %v10347
      %v10497 = vsel %vm2605, %v10465, %v10349
      %v10498 = vsel %vm2605, %v10466, %v10351
      %v10499 = vsel %vm2605, %v10467, %v10353
      %v10500 = vsel %vm2605, %v10468, %v10355
      %v10501 = vsel %vm2605, %v10469, %v10357
      %v10502 = vsel %vm2605, %v10470, %v10359
      %v10503 = vsel %vm2605, %v10471, %v10361
      %v10504 = vsel %vm2605, %v10472, %v10363
      %v10505 = vsel %vm2605, %v10473, %v10365
      %v10506 = vsel %vm2605, %v10474, %v10367
      %v10507 = vsel %vm2605, %v10475, %v10369
      %v10508 = vsel %vm2605, %v10476, %v10371
      %v10509 = vsel %vm2605, %v10477, %v10373
      %v10510 = vsel %vm2605, %v10478, %v10375
      %v10511 = vsel %vm2605, %v10479, %v10377
      %v10512 = vsel %vm2605, %v10480, %v10379
      %v10513 = vsel %vm2605, %v10481, %v10381
      %v10514 = vsel %vm2605, %v10482, %v10383
      %v10515 = vsel %vm2605, %v10483, %v10385
      %v10516 = vsel %vm2605, %v10484, %v10387
      %v10517 = vsel %vm2605, %v10485, %v10389
      %10518 = vst.msk [vmem:[%s248] sm:$0xff] %vm2638, %v10486
      %10519 = vst.msk [vmem:[%s248 + $0x8] sm:$0xff] %vm2638, %v10487
      %10520 = vst.msk [vmem:[%s248 + $0x10] sm:$0xff] %vm2638, %v10488
      %10521 = vst.msk [vmem:[%s248 + $0x18] sm:$0xff] %vm2638, %v10489
      %10522 = vst.msk [vmem:[%s248 + $0x20] sm:$0xff] %vm2638, %v10490
      %10523 = vst.msk [vmem:[%s248 + $0x28] sm:$0xff] %vm2638, %v10491
      %10524 = vst.msk [vmem:[%s248 + $0x30] sm:$0xff] %vm2638, %v10492
      %10525 = vst.msk [vmem:[%s248 + $0x38] sm:$0xff] %vm2638, %v10493
      %10526 = vst.msk [vmem:[%s248 + $0x40] sm:$0xff] %vm2638, %v10494
      %10527 = vst.msk [vmem:[%s248 + $0x48] sm:$0xff] %vm2638, %v10495
      %10528 = vst.msk [vmem:[%s248 + $0x50] sm:$0xff] %vm2638, %v10496
      %10529 = vst.msk [vmem:[%s248 + $0x58] sm:$0xff] %vm2638, %v10497
      %10530 = vst.msk [vmem:[%s248 + $0x60] sm:$0xff] %vm2638, %v10498
      %10531 = vst.msk [vmem:[%s248 + $0x68] sm:$0xff] %vm2638, %v10499
      %10532 = vst.msk [vmem:[%s248 + $0x70] sm:$0xff] %vm2638, %v10500
      %10533 = vst.msk [vmem:[%s248 + $0x78] sm:$0xff] %vm2638, %v10501
      %10534 = vst.msk [vmem:[%s248 + $0x80] sm:$0xff] %vm2638, %v10502
      %10535 = vst.msk [vmem:[%s248 + $0x88] sm:$0xff] %vm2638, %v10503
      %10536 = vst.msk [vmem:[%s248 + $0x90] sm:$0xff] %vm2638, %v10504
      %10537 = vst.msk [vmem:[%s248 + $0x98] sm:$0xff] %vm2638, %v10505
      %10538 = vst.msk [vmem:[%s248 + $0xa0] sm:$0xff] %vm2638, %v10506
      %10539 = vst.msk [vmem:[%s248 + $0xa8] sm:$0xff] %vm2638, %v10507
      %10540 = vst.msk [vmem:[%s248 + $0xb0] sm:$0xff] %vm2638, %v10508
      %10541 = vst.msk [vmem:[%s248 + $0xb8] sm:$0xff] %vm2638, %v10509
      %10542 = vst.msk [vmem:[%s248 + $0xc0] sm:$0xff] %vm2638, %v10510
      %10543 = vst.msk [vmem:[%s248 + $0xc8] sm:$0xff] %vm2638, %v10511
      %10544 = vst.msk [vmem:[%s248 + $0xd0] sm:$0xff] %vm2638, %v10512
      %10545 = vst.msk [vmem:[%s248 + $0xd8] sm:$0xff] %vm2638, %v10513
      %10546 = vst.msk [vmem:[%s248 + $0xe0] sm:$0xff] %vm2638, %v10514
      %10547 = vst.msk [vmem:[%s248 + $0xe8] sm:$0xff] %vm2638, %v10515
      %10548 = vst.msk [vmem:[%s248 + $0xf0] sm:$0xff] %vm2638, %v10516
      %10549 = vst.msk [vmem:[%s248 + $0xf8] sm:$0xff] %vm2638, %v10517
      %s10550 = smul.u32 16, %s21
      %p10551 = scmp.lt.s32.totalorder %s20, 1
      %s10552 = scalar_select %p10551, %s20, 1
      %p10553 = scmp.lt.s32.totalorder %s10550, 15
      %s10554 = scalar_select %p10553, %s10550, 15
      %s10555 = smul.addr %s10554, 2
      %s10556 = smul.addr %s10552, 32
      %s10557 = sadd.s32 %s10555, %s10556
      %s10558 = smul.addr %s10557, 8
      %s10559 = scalar_lea.vmem %s5, %s10558
      // Predicated region
      $region41: #{_forward_jit.1} parent=39 // pred_check
        %p10560 = pneg %p158
      $region42: #{_forward_jit.1} parent=39 // pred_check_branch
        %10562 = sbr.rel (%p10560) target = $region44
      $region43: #{_forward_jit.1} parent=39 // pred_region
        %s10563 = smul.u32 16, %s21
      $region44: #{_forward_jit.1} parent=39 // pred_fallthru
        _
    $region40: #{_forward_jit.1} parent=5 // pred_fallthru
      _
    %p10564 = scmp.le.s32.totalorder 2, %s11
    // Predicated region
    $region45: #{_forward_jit.1} parent=5 // pred_check
      %p10565 = pneg %p10564
    $region46: #{_forward_jit.1} parent=5 // pred_check_branch
      %10567 = sbr.rel (%p10565) target = $region48
    $region47: #{_forward_jit.1} parent=5 // pred_region
      %s10568 = ssub.s32 %s11, 2
      // Predicated region
      $region49: #{_forward_jit.1} parent=47 // pred_check
        %p10569 = pneg %p164
      $region50: #{_forward_jit.1} parent=47 // pred_check_branch
        %10571 = sbr.rel (%p10569) target = $region52
      $region51: #{_forward_jit.1} parent=47 // pred_region
        %s10572 = smul.u32 16, %s23
        %p10573 = scmp.lt.s32.totalorder %s22, 1
        %s10574 = scalar_select %p10573, %s22, 1
        %p10575 = scmp.lt.s32.totalorder %s10572, 15
        %s10576 = scalar_select %p10575, %s10572, 15
        %s10577 = smul.addr %s10576, 2
        %s10578 = smul.addr %s10574, 32
        %s10579 = sadd.s32 %s10577, %s10578
        %s10580 = smul.addr %s10579, 8
        %s10581 = scalar_lea.vmem %s5, %s10580
      $region52: #{_forward_jit.1} parent=47 // pred_fallthru
        _
    $region48: #{_forward_jit.1} parent=5 // pred_fallthru
      _
  $region6: #{_forward_jit.1} parent=0 // loop_footer
    %s15 = sadd.s32 1, %s11
  $region7: #{_forward_jit.1} parent=0 // loop_footer_branch
    %10 = sbr.rel target = $region3
  $region8: #{_forward_jit.1} parent=0 // loop_exit
    _

</llo_original>
